<compile_context>
chip_gen: v7x
topology: tpu7x:2x2x1
jax: 0.10.0
libtpu: 0.0.40
codegen_flags: <defaults>
</compile_context>

<pallas_src>
import functools

import jax
import jax.numpy as jnp
from jax.experimental import pallas as pl
from jax.experimental.pallas import tpu as pltpu


def _series_kernel(x_ref, w_ref, s_ref, o_ref,
                   act_ref, xpad_ref, patch_ref,
                   *, nplanes, compute_dtype):
    """One grid step = one residual block applied to one (batch, depth-tile).

    act_ref   : (TD, H, W, C)            running activation (VMEM resident)
    xpad_ref  : (TD+nplanes-1, H+2, W+16, C)  zero-padded conv input buffer
                (W padded by 8 on the low side so the interior store is
                 sublane-aligned; taps read at offsets 7/8/9)
    patch_ref : (TD*H*W, nplanes*9*C)    im2col patch matrix
    """
    b = pl.program_id(2)
    TD, H, W, C = act_ref.shape
    pdlo = (nplanes - 1) // 2

    # First block of the series for this (batch, depth-tile): load the input
    # tile into the resident activation buffer and zero the pad borders once.
    @pl.when(b == 0)
    def _():
        xpad_ref[...] = jnp.zeros(xpad_ref.shape, xpad_ref.dtype)
        act_ref[...] = x_ref[0].astype(jnp.float32)

    def conv3x3_same(x4d, w):
        # x4d: (TD, H, W, C) f32, w: (nplanes*9*C, C). 'same' zero padding.
        # Interior store: dims 0/1 are major (free), dim 2 offset is 8-aligned.
        xpad_ref[pdlo:pdlo + TD, 1:1 + H, 8:8 + W, :] = x4d
        # im2col: each tap occupies its own C-wide lane slot of the patch
        # matrix -> a single (TD*H*W, K*C) @ (K*C, C) MXU matmul.
        for kd in range(nplanes):
            for kh in range(3):
                for kw in range(3):
                    kidx = (kd * 3 + kh) * 3 + kw
                    tap = xpad_ref[kd:kd + TD, kh:kh + H,
                                   7 + kw:7 + kw + W, :]
                    patch_ref[:, kidx * C:(kidx + 1) * C] = (
                        tap.reshape(TD * H * W, C))
        return jnp.dot(patch_ref[...].astype(compute_dtype),
                       w.astype(compute_dtype),
                       preferred_element_type=jnp.float32)

    residual = act_ref[...]                    # (TD, H, W, C)
    wpair = w_ref[0]                           # (2, K*C, C)  BN scale folded in
    shifts = s_ref[0]                          # (2, C)       bias + BN folded in

    # conv1 -> BN1 -> ReLU       (epilogue is one add + ReLU: everything folded)
    h1 = jnp.maximum(conv3x3_same(residual, wpair[0]) + shifts[0:1, :], 0.0)
    # conv2 -> BN2 -> + residual -> ReLU
    y2 = conv3x3_same(h1.reshape(TD, H, W, C), wpair[1]) + shifts[1:2, :]
    out = jnp.maximum(y2 + residual.reshape(TD * H * W, C), 0.0)

    # Carry the activation to the next block of the series (stays in VMEM).
    act_ref[...] = out.reshape(TD, H, W, C)

    # Only the final block's activation is written back to HBM.
    @pl.when(b == pl.num_programs(2) - 1)
    def _():
        o_ref[0] = out.reshape(TD, H, W, C).astype(o_ref.dtype)


def sparse_block_series(x, w1, b1, bn1, w2, bn2, *, nplanes=1, eps=1e-4,
                        d_tile=None, compute_dtype=jnp.float32):
    """Dense-grid SparseBlockSeries forward (residual + batch-norm config).

    x  : (N, D, H, W, C) float32, channels-last dense voxel grid
    w1 : (n_blocks, nplanes, 3, 3, C, C)   conv1 weights per block
    b1 : (n_blocks, C)                     conv1 bias per block
    bn1: (gamma, beta, running_mean, running_var), each (n_blocks, C)
    w2 : (n_blocks, nplanes, 3, 3, C, C)   conv2 weights (bias=False)
    bn2: (gamma, beta, running_mean, running_var), each (n_blocks, C)
    """
    N, D, H, W, C = x.shape
    n_blocks = w1.shape[0]
    K = nplanes * 9

    # Tiling D needs a halo unless the depth filter size is 1.
    if d_tile is None or nplanes != 1 or D % d_tile != 0:
        d_tile = D

    g1, be1, m1, v1 = bn1
    g2, be2, m2, v2 = bn2
    scale1 = g1 / jnp.sqrt(v1 + eps)                       # (nb, C)
    scale2 = g2 / jnp.sqrt(v2 + eps)
    # Fold BN scale into the weight output-channels; fold conv bias + BN shift
    # into a single per-channel shift -> the kernel epilogue is add + ReLU only.
    wf1 = (w1 * scale1[:, None, None, None, None, :]).reshape(n_blocks, K * C, C)
    wf2 = (w2 * scale2[:, None, None, None, None, :]).reshape(n_blocks, K * C, C)
    shift1 = be1 + (b1 - m1) * scale1
    shift2 = be2 - m2 * scale2

    w_all = jnp.stack([wf1, wf2], axis=1).astype(compute_dtype)   # (nb,2,K*C,C)
    s_all = jnp.stack([shift1, shift2], axis=1).astype(jnp.float32)  # (nb,2,C)

    kernel = functools.partial(_series_kernel, nplanes=nplanes,
                               compute_dtype=compute_dtype)

    return pl.pallas_call(
        kernel,
        out_shape=jax.ShapeDtypeStruct((N, D, H, W, C), x.dtype),
        grid_spec=pltpu.PrefetchScalarGridSpec(
            num_scalar_prefetch=0,
            grid=(N, D // d_tile, n_blocks),
            in_specs=[
                pl.BlockSpec((1, d_tile, H, W, C),
                             lambda n, dt, b: (n, dt, 0, 0, 0)),
                pl.BlockSpec((1, 2, K * C, C),
                             lambda n, dt, b: (b, 0, 0, 0)),
                pl.BlockSpec((1, 2, C),
                             lambda n, dt, b: (b, 0, 0)),
            ],
            out_specs=pl.BlockSpec((1, d_tile, H, W, C),
                                   lambda n, dt, b: (n, dt, 0, 0, 0)),
            scratch_shapes=[
                pltpu.VMEM((d_tile, H, W, C), jnp.float32),
                pltpu.VMEM((d_tile + nplanes - 1, H + 2, W + 16, C),
                           jnp.float32),
                pltpu.VMEM((d_tile * H * W, K * C), jnp.float32),
            ],
        ),
        compiler_params=pltpu.CompilerParams(
            dimension_semantics=("parallel", "parallel", "arbitrary"),
            vmem_limit_bytes=32 * 1024 * 1024),
    )(x, w_all, s_all)


# ----------------------------- pure-JAX reference -----------------------------

def _conv_same_ref(x, w, bias, nplanes):
    N, D, H, W, C = x.shape
    pdlo = (nplanes - 1) // 2
    pdhi = nplanes - 1 - pdlo
    xp = jnp.pad(x, ((0, 0), (pdlo, pdhi), (1, 1), (1, 1), (0, 0)))
    out = jnp.zeros((N, D, H, W, w.shape[-1]), jnp.float32)
    for kd in range(nplanes):
        for kh in range(3):
            for kw in range(3):
                patch = xp[:, kd:kd + D, kh:kh + H, kw:kw + W, :]
                out = out + jnp.einsum("ndhwc,co->ndhwo", patch, w[kd, kh, kw],
                                       precision=jax.lax.Precision.HIGHEST)
    if bias is not None:
        out = out + bias
    return out


def _bn_ref(x, gamma, beta, mean, var, eps):
    return (x - mean) / jnp.sqrt(var + eps) * gamma + beta


def _reference(x, w1, b1, bn1, w2, bn2, *, nplanes=1, eps=1e-4):
    g1, be1, m1, v1 = bn1
    g2, be2, m2, v2 = bn2
    n_blocks = w1.shape[0]
    for i in range(n_blocks):
        residual = x
        h = _conv_same_ref(x, w1[i], b1[i], nplanes)
        h = jnp.maximum(_bn_ref(h, g1[i], be1[i], m1[i], v1[i], eps), 0.0)
        h = _conv_same_ref(h, w2[i], None, nplanes)
        h = _bn_ref(h, g2[i], be2[i], m2[i], v2[i], eps)
        x = jnp.maximum(h + residual, 0.0)
    return x


if __name__ == "__main__":
    # Small shapes: batch=2, depth=4, spatial=16x16, channels=8, 2 residual
    # blocks, depth-filter size nplanes=1 (the module's default n_planes).
    N, D, H, W = 2, 4, 16, 16
    inplanes, nplanes, n_blocks = 8, 1, 2
    C = inplanes

    key = jax.random.PRNGKey(0)
    ks = jax.random.split(key, 6)

    x = jax.random.normal(ks[0], (N, D, H, W, C), jnp.float32)
    wscale = 1.0 / jnp.sqrt(9.0 * C)
    w1 = wscale * jax.random.normal(ks[1], (n_blocks, nplanes, 3, 3, C, C),
                                    jnp.float32)
    b1 = 0.1 * jax.random.normal(ks[2], (n_blocks, C), jnp.float32)
    w2 = wscale * jax.random.normal(ks[3], (n_blocks, nplanes, 3, 3, C, C),
                                    jnp.float32)

    def bn_params(k):
        kg, kb, km, kv = jax.random.split(k, 4)
        gamma = 1.0 + 0.1 * jax.random.normal(kg, (n_blocks, C), jnp.float32)
        beta = 0.1 * jax.random.normal(kb, (n_blocks, C), jnp.float32)
        mean = 0.1 * jax.random.normal(km, (n_blocks, C), jnp.float32)
        var = jnp.abs(jax.random.normal(kv, (n_blocks, C), jnp.float32)) + 0.5
        return gamma, beta, mean, var

    bn1 = bn_params(ks[4])
    bn2 = bn_params(ks[5])

    out = sparse_block_series(x, w1, b1, bn1, w2, bn2,
                              nplanes=nplanes, d_tile=2)
    out = jax.block_until_ready(out)

    ref = _reference(x, w1, b1, bn1, w2, bn2, nplanes=nplanes)
    assert out.shape == (N, D, H, W, C)
    max_err = float(jnp.max(jnp.abs(out - ref)))
    assert jnp.allclose(out, ref, atol=3e-2, rtol=3e-2), max_err
    print("KERNEL_OK")
</pallas_src>

<mosaic_0001>
module attributes {stable_mosaic.version = 11 : i64} {
  func.func @_series_kernel(%arg0: i32, %arg1: i32, %arg2: i32, %arg3: memref<1x2x16x16x8xf32, #tpu.memory_space<vmem>>, %arg4: memref<1x2x72x8xf32, #tpu.memory_space<vmem>>, %arg5: memref<1x2x8xf32, #tpu.memory_space<vmem>>, %arg6: memref<1x2x16x16x8xf32, #tpu.memory_space<vmem>>, %arg7: memref<2x16x16x8xf32, #tpu.memory_space<vmem>>, %arg8: memref<2x18x32x8xf32, #tpu.memory_space<vmem>>, %arg9: memref<512x72xf32, #tpu.memory_space<vmem>>) attributes {dimension_semantics = [#tpu.dimension_semantics<parallel>, #tpu.dimension_semantics<parallel>, #tpu.dimension_semantics<arbitrary>], iteration_bounds = array<i64: 2, 2, 2>, scalar_prefetch = 0 : i64, scratch_operands = 3 : i64, tpu.core_type = #tpu.core_type<tc>, window_params = [{transform_indices = @transform_0, window_bounds = array<i64: 1, 2, 16, 16, 8>}, {transform_indices = @transform_1, window_bounds = array<i64: 1, 2, 72, 8>}, {transform_indices = @transform_2, window_bounds = array<i64: 1, 2, 8>}, {transform_indices = @transform_3, window_bounds = array<i64: 1, 2, 16, 16, 8>}]} {
    %c0_i32 = arith.constant 0 : i32
    %0 = arith.cmpi eq, %arg2, %c0_i32 : i32
    %1 = arith.extui %0 : i1 to i32
    %c0_i32_0 = arith.constant 0 : i32
    %2 = arith.cmpi ne, %1, %c0_i32_0 : i32
    scf.if %2 {
      %cst_127 = arith.constant 0.000000e+00 : f32
      %90 = vector.broadcast %cst_127 : f32 to vector<2x18x32x8xf32>
      %c0_128 = arith.constant 0 : index
      %c0_129 = arith.constant 0 : index
      %c0_130 = arith.constant 0 : index
      %c0_131 = arith.constant 0 : index
      %91 = vector.load %arg8[%c0_128, %c0_129, %c0_130, %c0_131] : memref<2x18x32x8xf32, #tpu.memory_space<vmem>>, vector<2x18x32x8xf32>
      tpu.vector_store %arg8[%c0_128, %c0_129, %c0_130, %c0_131], %90 {strides = array<i32>} : memref<2x18x32x8xf32, #tpu.memory_space<vmem>>, vector<2x18x32x8xf32>,
      %c0_132 = arith.constant 0 : index
      %c0_133 = arith.constant 0 : index
      %c0_134 = arith.constant 0 : index
      %c0_135 = arith.constant 0 : index
      %c0_136 = arith.constant 0 : index
      %92 = vector.load %arg3[%c0_132, %c0_133, %c0_134, %c0_135, %c0_136] : memref<1x2x16x16x8xf32, #tpu.memory_space<vmem>>, vector<1x2x16x16x8xf32>
      %93 = vector.shape_cast %92 : vector<1x2x16x16x8xf32> to vector<2x16x16x8xf32>
      %c0_137 = arith.constant 0 : index
      %c0_138 = arith.constant 0 : index
      %c0_139 = arith.constant 0 : index
      %c0_140 = arith.constant 0 : index
      %94 = vector.load %arg7[%c0_137, %c0_138, %c0_139, %c0_140] : memref<2x16x16x8xf32, #tpu.memory_space<vmem>>, vector<2x16x16x8xf32>
      tpu.vector_store %arg7[%c0_137, %c0_138, %c0_139, %c0_140], %93 {strides = array<i32>} : memref<2x16x16x8xf32, #tpu.memory_space<vmem>>, vector<2x16x16x8xf32>,
    } else {
    }
    %c0 = arith.constant 0 : index
    %c0_1 = arith.constant 0 : index
    %c0_2 = arith.constant 0 : index
    %c0_3 = arith.constant 0 : index
    %3 = vector.load %arg7[%c0, %c0_1, %c0_2, %c0_3] : memref<2x16x16x8xf32, #tpu.memory_space<vmem>>, vector<2x16x16x8xf32>
    %c0_4 = arith.constant 0 : index
    %c0_5 = arith.constant 0 : index
    %c0_6 = arith.constant 0 : index
    %c0_7 = arith.constant 0 : index
    %4 = vector.load %arg4[%c0_4, %c0_5, %c0_6, %c0_7] : memref<1x2x72x8xf32, #tpu.memory_space<vmem>>, vector<1x2x72x8xf32>
    %5 = vector.shape_cast %4 : vector<1x2x72x8xf32> to vector<2x72x8xf32>
    %c0_8 = arith.constant 0 : index
    %c0_9 = arith.constant 0 : index
    %c0_10 = arith.constant 0 : index
    %6 = vector.load %arg5[%c0_8, %c0_9, %c0_10] : memref<1x2x8xf32, #tpu.memory_space<vmem>>, vector<1x2x8xf32>
    %7 = vector.shape_cast %6 : vector<1x2x8xf32> to vector<2x8xf32>
    %8 = vector.extract_strided_slice %5 {offsets = [0, 0, 0], sizes = [1, 72, 8], strides = [1, 1, 1]} : vector<2x72x8xf32> to vector<1x72x8xf32>
    %9 = vector.shape_cast %8 : vector<1x72x8xf32> to vector<72x8xf32>
    %c0_11 = arith.constant 0 : index
    %c1 = arith.constant 1 : index
    %c8 = arith.constant 8 : index
    %c0_12 = arith.constant 0 : index
    %10 = vector.load %arg8[%c0_11, %c1, %c8, %c0_12] : memref<2x18x32x8xf32, #tpu.memory_space<vmem>>, vector<2x16x16x8xf32>
    tpu.vector_store %arg8[%c0_11, %c1, %c8, %c0_12], %3 {strides = array<i32>} : memref<2x18x32x8xf32, #tpu.memory_space<vmem>>, vector<2x16x16x8xf32>,
    %c0_13 = arith.constant 0 : index
    %c0_14 = arith.constant 0 : index
    %c7 = arith.constant 7 : index
    %c0_15 = arith.constant 0 : index
    %11 = vector.load %arg8[%c0_13, %c0_14, %c7, %c0_15] : memref<2x18x32x8xf32, #tpu.memory_space<vmem>>, vector<2x16x16x8xf32>
    %12 = vector.shape_cast %11 : vector<2x16x16x8xf32> to vector<512x8xf32>
    %c0_16 = arith.constant 0 : index
    %c0_17 = arith.constant 0 : index
    %13 = vector.load %arg9[%c0_16, %c0_17] : memref<512x72xf32, #tpu.memory_space<vmem>>, vector<512x8xf32>
    tpu.vector_store %arg9[%c0_16, %c0_17], %12 {strides = array<i32>} : memref<512x72xf32, #tpu.memory_space<vmem>>, vector<512x8xf32>,
    %c0_18 = arith.constant 0 : index
    %c0_19 = arith.constant 0 : index
    %c8_20 = arith.constant 8 : index
    %c0_21 = arith.constant 0 : index
    %14 = vector.load %arg8[%c0_18, %c0_19, %c8_20, %c0_21] : memref<2x18x32x8xf32, #tpu.memory_space<vmem>>, vector<2x16x16x8xf32>
    %15 = vector.shape_cast %14 : vector<2x16x16x8xf32> to vector<512x8xf32>
    %c0_22 = arith.constant 0 : index
    %c8_23 = arith.constant 8 : index
    %16 = vector.load %arg9[%c0_22, %c8_23] : memref<512x72xf32, #tpu.memory_space<vmem>>, vector<512x8xf32>
    tpu.vector_store %arg9[%c0_22, %c8_23], %15 {strides = array<i32>} : memref<512x72xf32, #tpu.memory_space<vmem>>, vector<512x8xf32>,
    %c0_24 = arith.constant 0 : index
    %c0_25 = arith.constant 0 : index
    %c9 = arith.constant 9 : index
    %c0_26 = arith.constant 0 : index
    %17 = vector.load %arg8[%c0_24, %c0_25, %c9, %c0_26] : memref<2x18x32x8xf32, #tpu.memory_space<vmem>>, vector<2x16x16x8xf32>
    %18 = vector.shape_cast %17 : vector<2x16x16x8xf32> to vector<512x8xf32>
    %c0_27 = arith.constant 0 : index
    %c16 = arith.constant 16 : index
    %19 = vector.load %arg9[%c0_27, %c16] : memref<512x72xf32, #tpu.memory_space<vmem>>, vector<512x8xf32>
    tpu.vector_store %arg9[%c0_27, %c16], %18 {strides = array<i32>} : memref<512x72xf32, #tpu.memory_space<vmem>>, vector<512x8xf32>,
    %c0_28 = arith.constant 0 : index
    %c1_29 = arith.constant 1 : index
    %c7_30 = arith.constant 7 : index
    %c0_31 = arith.constant 0 : index
    %20 = vector.load %arg8[%c0_28, %c1_29, %c7_30, %c0_31] : memref<2x18x32x8xf32, #tpu.memory_space<vmem>>, vector<2x16x16x8xf32>
    %21 = vector.shape_cast %20 : vector<2x16x16x8xf32> to vector<512x8xf32>
    %c0_32 = arith.constant 0 : index
    %c24 = arith.constant 24 : index
    %22 = vector.load %arg9[%c0_32, %c24] : memref<512x72xf32, #tpu.memory_space<vmem>>, vector<512x8xf32>
    tpu.vector_store %arg9[%c0_32, %c24], %21 {strides = array<i32>} : memref<512x72xf32, #tpu.memory_space<vmem>>, vector<512x8xf32>,
    %c0_33 = arith.constant 0 : index
    %c1_34 = arith.constant 1 : index
    %c8_35 = arith.constant 8 : index
    %c0_36 = arith.constant 0 : index
    %23 = vector.load %arg8[%c0_33, %c1_34, %c8_35, %c0_36] : memref<2x18x32x8xf32, #tpu.memory_space<vmem>>, vector<2x16x16x8xf32>
    %24 = vector.shape_cast %23 : vector<2x16x16x8xf32> to vector<512x8xf32>
    %c0_37 = arith.constant 0 : index
    %c32 = arith.constant 32 : index
    %25 = vector.load %arg9[%c0_37, %c32] : memref<512x72xf32, #tpu.memory_space<vmem>>, vector<512x8xf32>
    tpu.vector_store %arg9[%c0_37, %c32], %24 {strides = array<i32>} : memref<512x72xf32, #tpu.memory_space<vmem>>, vector<512x8xf32>,
    %c0_38 = arith.constant 0 : index
    %c1_39 = arith.constant 1 : index
    %c9_40 = arith.constant 9 : index
    %c0_41 = arith.constant 0 : index
    %26 = vector.load %arg8[%c0_38, %c1_39, %c9_40, %c0_41] : memref<2x18x32x8xf32, #tpu.memory_space<vmem>>, vector<2x16x16x8xf32>
    %27 = vector.shape_cast %26 : vector<2x16x16x8xf32> to vector<512x8xf32>
    %c0_42 = arith.constant 0 : index
    %c40 = arith.constant 40 : index
    %28 = vector.load %arg9[%c0_42, %c40] : memref<512x72xf32, #tpu.memory_space<vmem>>, vector<512x8xf32>
    tpu.vector_store %arg9[%c0_42, %c40], %27 {strides = array<i32>} : memref<512x72xf32, #tpu.memory_space<vmem>>, vector<512x8xf32>,
    %c0_43 = arith.constant 0 : index
    %c2 = arith.constant 2 : index
    %c7_44 = arith.constant 7 : index
    %c0_45 = arith.constant 0 : index
    %29 = vector.load %arg8[%c0_43, %c2, %c7_44, %c0_45] : memref<2x18x32x8xf32, #tpu.memory_space<vmem>>, vector<2x16x16x8xf32>
    %30 = vector.shape_cast %29 : vector<2x16x16x8xf32> to vector<512x8xf32>
    %c0_46 = arith.constant 0 : index
    %c48 = arith.constant 48 : index
    %31 = vector.load %arg9[%c0_46, %c48] : memref<512x72xf32, #tpu.memory_space<vmem>>, vector<512x8xf32>
    tpu.vector_store %arg9[%c0_46, %c48], %30 {strides = array<i32>} : memref<512x72xf32, #tpu.memory_space<vmem>>, vector<512x8xf32>,
    %c0_47 = arith.constant 0 : index
    %c2_48 = arith.constant 2 : index
    %c8_49 = arith.constant 8 : index
    %c0_50 = arith.constant 0 : index
    %32 = vector.load %arg8[%c0_47, %c2_48, %c8_49, %c0_50] : memref<2x18x32x8xf32, #tpu.memory_space<vmem>>, vector<2x16x16x8xf32>
    %33 = vector.shape_cast %32 : vector<2x16x16x8xf32> to vector<512x8xf32>
    %c0_51 = arith.constant 0 : index
    %c56 = arith.constant 56 : index
    %34 = vector.load %arg9[%c0_51, %c56] : memref<512x72xf32, #tpu.memory_space<vmem>>, vector<512x8xf32>
    tpu.vector_store %arg9[%c0_51, %c56], %33 {strides = array<i32>} : memref<512x72xf32, #tpu.memory_space<vmem>>, vector<512x8xf32>,
    %c0_52 = arith.constant 0 : index
    %c2_53 = arith.constant 2 : index
    %c9_54 = arith.constant 9 : index
    %c0_55 = arith.constant 0 : index
    %35 = vector.load %arg8[%c0_52, %c2_53, %c9_54, %c0_55] : memref<2x18x32x8xf32, #tpu.memory_space<vmem>>, vector<2x16x16x8xf32>
    %36 = vector.shape_cast %35 : vector<2x16x16x8xf32> to vector<512x8xf32>
    %c0_56 = arith.constant 0 : index
    %c64 = arith.constant 64 : index
    %37 = vector.load %arg9[%c0_56, %c64] : memref<512x72xf32, #tpu.memory_space<vmem>>, vector<512x8xf32>
    tpu.vector_store %arg9[%c0_56, %c64], %36 {strides = array<i32>} : memref<512x72xf32, #tpu.memory_space<vmem>>, vector<512x8xf32>,
    %c0_57 = arith.constant 0 : index
    %c0_58 = arith.constant 0 : index
    %38 = vector.load %arg9[%c0_57, %c0_58] : memref<512x72xf32, #tpu.memory_space<vmem>>, vector<512x72xf32>
    %cst = arith.constant dense<0.000000e+00> : vector<512x8xf32>
    %39 = tpu.matmul %38, %9, %cst {dimension_numbers = #tpu.dot_dimension_numbers<[1], [0], [0], [1], [0, 0, 1, 1], [], []>} : vector<512x72xf32>, vector<72x8xf32>, vector<512x8xf32> -> vector<512x8xf32>
    %40 = vector.extract_strided_slice %7 {offsets = [0, 0], sizes = [1, 8], strides = [1, 1]} : vector<2x8xf32> to vector<1x8xf32>
    %41 = vector.broadcast %40 : vector<1x8xf32> to vector<512x8xf32>
    %42 = arith.addf %39, %41 : vector<512x8xf32>
    %cst_59 = arith.constant 0.000000e+00 : f32
    %43 = vector.broadcast %cst_59 : f32 to vector<512x8xf32>
    %44 = arith.maximumf %42, %43 : vector<512x8xf32>
    %45 = vector.shape_cast %44 : vector<512x8xf32> to vector<2x16x16x8xf32>
    %46 = vector.extract_strided_slice %5 {offsets = [1, 0, 0], sizes = [1, 72, 8], strides = [1, 1, 1]} : vector<2x72x8xf32> to vector<1x72x8xf32>
    %47 = vector.shape_cast %46 : vector<1x72x8xf32> to vector<72x8xf32>
    %c0_60 = arith.constant 0 : index
    %c1_61 = arith.constant 1 : index
    %c8_62 = arith.constant 8 : index
    %c0_63 = arith.constant 0 : index
    %48 = vector.load %arg8[%c0_60, %c1_61, %c8_62, %c0_63] : memref<2x18x32x8xf32, #tpu.memory_space<vmem>>, vector<2x16x16x8xf32>
    tpu.vector_store %arg8[%c0_60, %c1_61, %c8_62, %c0_63], %45 {strides = array<i32>} : memref<2x18x32x8xf32, #tpu.memory_space<vmem>>, vector<2x16x16x8xf32>,
    %c0_64 = arith.constant 0 : index
    %c0_65 = arith.constant 0 : index
    %c7_66 = arith.constant 7 : index
    %c0_67 = arith.constant 0 : index
    %49 = vector.load %arg8[%c0_64, %c0_65, %c7_66, %c0_67] : memref<2x18x32x8xf32, #tpu.memory_space<vmem>>, vector<2x16x16x8xf32>
    %50 = vector.shape_cast %49 : vector<2x16x16x8xf32> to vector<512x8xf32>
    %c0_68 = arith.constant 0 : index
    %c0_69 = arith.constant 0 : index
    %51 = vector.load %arg9[%c0_68, %c0_69] : memref<512x72xf32, #tpu.memory_space<vmem>>, vector<512x8xf32>
    tpu.vector_store %arg9[%c0_68, %c0_69], %50 {strides = array<i32>} : memref<512x72xf32, #tpu.memory_space<vmem>>, vector<512x8xf32>,
    %c0_70 = arith.constant 0 : index
    %c0_71 = arith.constant 0 : index
    %c8_72 = arith.constant 8 : index
    %c0_73 = arith.constant 0 : index
    %52 = vector.load %arg8[%c0_70, %c0_71, %c8_72, %c0_73] : memref<2x18x32x8xf32, #tpu.memory_space<vmem>>, vector<2x16x16x8xf32>
    %53 = vector.shape_cast %52 : vector<2x16x16x8xf32> to vector<512x8xf32>
    %c0_74 = arith.constant 0 : index
    %c8_75 = arith.constant 8 : index
    %54 = vector.load %arg9[%c0_74, %c8_75] : memref<512x72xf32, #tpu.memory_space<vmem>>, vector<512x8xf32>
    tpu.vector_store %arg9[%c0_74, %c8_75], %53 {strides = array<i32>} : memref<512x72xf32, #tpu.memory_space<vmem>>, vector<512x8xf32>,
    %c0_76 = arith.constant 0 : index
    %c0_77 = arith.constant 0 : index
    %c9_78 = arith.constant 9 : index
    %c0_79 = arith.constant 0 : index
    %55 = vector.load %arg8[%c0_76, %c0_77, %c9_78, %c0_79] : memref<2x18x32x8xf32, #tpu.memory_space<vmem>>, vector<2x16x16x8xf32>
    %56 = vector.shape_cast %55 : vector<2x16x16x8xf32> to vector<512x8xf32>
    %c0_80 = arith.constant 0 : index
    %c16_81 = arith.constant 16 : index
    %57 = vector.load %arg9[%c0_80, %c16_81] : memref<512x72xf32, #tpu.memory_space<vmem>>, vector<512x8xf32>
    tpu.vector_store %arg9[%c0_80, %c16_81], %56 {strides = array<i32>} : memref<512x72xf32, #tpu.memory_space<vmem>>, vector<512x8xf32>,
    %c0_82 = arith.constant 0 : index
    %c1_83 = arith.constant 1 : index
    %c7_84 = arith.constant 7 : index
    %c0_85 = arith.constant 0 : index
    %58 = vector.load %arg8[%c0_82, %c1_83, %c7_84, %c0_85] : memref<2x18x32x8xf32, #tpu.memory_space<vmem>>, vector<2x16x16x8xf32>
    %59 = vector.shape_cast %58 : vector<2x16x16x8xf32> to vector<512x8xf32>
    %c0_86 = arith.constant 0 : index
    %c24_87 = arith.constant 24 : index
    %60 = vector.load %arg9[%c0_86, %c24_87] : memref<512x72xf32, #tpu.memory_space<vmem>>, vector<512x8xf32>
    tpu.vector_store %arg9[%c0_86, %c24_87], %59 {strides = array<i32>} : memref<512x72xf32, #tpu.memory_space<vmem>>, vector<512x8xf32>,
    %c0_88 = arith.constant 0 : index
    %c1_89 = arith.constant 1 : index
    %c8_90 = arith.constant 8 : index
    %c0_91 = arith.constant 0 : index
    %61 = vector.load %arg8[%c0_88, %c1_89, %c8_90, %c0_91] : memref<2x18x32x8xf32, #tpu.memory_space<vmem>>, vector<2x16x16x8xf32>
    %62 = vector.shape_cast %61 : vector<2x16x16x8xf32> to vector<512x8xf32>
    %c0_92 = arith.constant 0 : index
    %c32_93 = arith.constant 32 : index
    %63 = vector.load %arg9[%c0_92, %c32_93] : memref<512x72xf32, #tpu.memory_space<vmem>>, vector<512x8xf32>
    tpu.vector_store %arg9[%c0_92, %c32_93], %62 {strides = array<i32>} : memref<512x72xf32, #tpu.memory_space<vmem>>, vector<512x8xf32>,
    %c0_94 = arith.constant 0 : index
    %c1_95 = arith.constant 1 : index
    %c9_96 = arith.constant 9 : index
    %c0_97 = arith.constant 0 : index
    %64 = vector.load %arg8[%c0_94, %c1_95, %c9_96, %c0_97] : memref<2x18x32x8xf32, #tpu.memory_space<vmem>>, vector<2x16x16x8xf32>
    %65 = vector.shape_cast %64 : vector<2x16x16x8xf32> to vector<512x8xf32>
    %c0_98 = arith.constant 0 : index
    %c40_99 = arith.constant 40 : index
    %66 = vector.load %arg9[%c0_98, %c40_99] : memref<512x72xf32, #tpu.memory_space<vmem>>, vector<512x8xf32>
    tpu.vector_store %arg9[%c0_98, %c40_99], %65 {strides = array<i32>} : memref<512x72xf32, #tpu.memory_space<vmem>>, vector<512x8xf32>,
    %c0_100 = arith.constant 0 : index
    %c2_101 = arith.constant 2 : index
    %c7_102 = arith.constant 7 : index
    %c0_103 = arith.constant 0 : index
    %67 = vector.load %arg8[%c0_100, %c2_101, %c7_102, %c0_103] : memref<2x18x32x8xf32, #tpu.memory_space<vmem>>, vector<2x16x16x8xf32>
    %68 = vector.shape_cast %67 : vector<2x16x16x8xf32> to vector<512x8xf32>
    %c0_104 = arith.constant 0 : index
    %c48_105 = arith.constant 48 : index
    %69 = vector.load %arg9[%c0_104, %c48_105] : memref<512x72xf32, #tpu.memory_space<vmem>>, vector<512x8xf32>
    tpu.vector_store %arg9[%c0_104, %c48_105], %68 {strides = array<i32>} : memref<512x72xf32, #tpu.memory_space<vmem>>, vector<512x8xf32>,
    %c0_106 = arith.constant 0 : index
    %c2_107 = arith.constant 2 : index
    %c8_108 = arith.constant 8 : index
    %c0_109 = arith.constant 0 : index
    %70 = vector.load %arg8[%c0_106, %c2_107, %c8_108, %c0_109] : memref<2x18x32x8xf32, #tpu.memory_space<vmem>>, vector<2x16x16x8xf32>
    %71 = vector.shape_cast %70 : vector<2x16x16x8xf32> to vector<512x8xf32>
    %c0_110 = arith.constant 0 : index
    %c56_111 = arith.constant 56 : index
    %72 = vector.load %arg9[%c0_110, %c56_111] : memref<512x72xf32, #tpu.memory_space<vmem>>, vector<512x8xf32>
    tpu.vector_store %arg9[%c0_110, %c56_111], %71 {strides = array<i32>} : memref<512x72xf32, #tpu.memory_space<vmem>>, vector<512x8xf32>,
    %c0_112 = arith.constant 0 : index
    %c2_113 = arith.constant 2 : index
    %c9_114 = arith.constant 9 : index
    %c0_115 = arith.constant 0 : index
    %73 = vector.load %arg8[%c0_112, %c2_113, %c9_114, %c0_115] : memref<2x18x32x8xf32, #tpu.memory_space<vmem>>, vector<2x16x16x8xf32>
    %74 = vector.shape_cast %73 : vector<2x16x16x8xf32> to vector<512x8xf32>
    %c0_116 = arith.constant 0 : index
    %c64_117 = arith.constant 64 : index
    %75 = vector.load %arg9[%c0_116, %c64_117] : memref<512x72xf32, #tpu.memory_space<vmem>>, vector<512x8xf32>
    tpu.vector_store %arg9[%c0_116, %c64_117], %74 {strides = array<i32>} : memref<512x72xf32, #tpu.memory_space<vmem>>, vector<512x8xf32>,
    %c0_118 = arith.constant 0 : index
    %c0_119 = arith.constant 0 : index
    %76 = vector.load %arg9[%c0_118, %c0_119] : memref<512x72xf32, #tpu.memory_space<vmem>>, vector<512x72xf32>
    %cst_120 = arith.constant dense<0.000000e+00> : vector<512x8xf32>
    %77 = tpu.matmul %76, %47, %cst_120 {dimension_numbers = #tpu.dot_dimension_numbers<[1], [0], [0], [1], [0, 0, 1, 1], [], []>} : vector<512x72xf32>, vector<72x8xf32>, vector<512x8xf32> -> vector<512x8xf32>
    %78 = vector.extract_strided_slice %7 {offsets = [1, 0], sizes = [1, 8], strides = [1, 1]} : vector<2x8xf32> to vector<1x8xf32>
    %79 = vector.broadcast %78 : vector<1x8xf32> to vector<512x8xf32>
    %80 = arith.addf %77, %79 : vector<512x8xf32>
    %81 = vector.shape_cast %3 : vector<2x16x16x8xf32> to vector<512x8xf32>
    %82 = arith.addf %80, %81 : vector<512x8xf32>
    %cst_121 = arith.constant 0.000000e+00 : f32
    %83 = vector.broadcast %cst_121 : f32 to vector<512x8xf32>
    %84 = arith.maximumf %82, %83 : vector<512x8xf32>
    %85 = vector.shape_cast %84 : vector<512x8xf32> to vector<2x16x16x8xf32>
    %c0_122 = arith.constant 0 : index
    %c0_123 = arith.constant 0 : index
    %c0_124 = arith.constant 0 : index
    %c0_125 = arith.constant 0 : index
    %86 = vector.load %arg7[%c0_122, %c0_123, %c0_124, %c0_125] : memref<2x16x16x8xf32, #tpu.memory_space<vmem>>, vector<2x16x16x8xf32>
    tpu.vector_store %arg7[%c0_122, %c0_123, %c0_124, %c0_125], %85 {strides = array<i32>} : memref<2x16x16x8xf32, #tpu.memory_space<vmem>>, vector<2x16x16x8xf32>,
    %c1_i32 = arith.constant 1 : i32
    %87 = arith.cmpi eq, %arg2, %c1_i32 : i32
    %88 = arith.extui %87 : i1 to i32
    %c0_i32_126 = arith.constant 0 : i32
    %89 = arith.cmpi ne, %88, %c0_i32_126 : i32
    scf.if %89 {
      %90 = vector.shape_cast %84 : vector<512x8xf32> to vector<2x16x16x8xf32>
      %c0_127 = arith.constant 0 : index
      %c0_128 = arith.constant 0 : index
      %c0_129 = arith.constant 0 : index
      %c0_130 = arith.constant 0 : index
      %c0_131 = arith.constant 0 : index
      %91 = vector.load %arg6[%c0_127, %c0_128, %c0_129, %c0_130, %c0_131] : memref<1x2x16x16x8xf32, #tpu.memory_space<vmem>>, vector<1x2x16x16x8xf32>
      %92 = vector.shape_cast %91 : vector<1x2x16x16x8xf32> to vector<2x16x16x8xf32>
      %93 = vector.shape_cast %90 : vector<2x16x16x8xf32> to vector<1x2x16x16x8xf32>
      tpu.vector_store %arg6[%c0_127, %c0_128, %c0_129, %c0_130, %c0_131], %93 {strides = array<i32>} : memref<1x2x16x16x8xf32, #tpu.memory_space<vmem>>, vector<1x2x16x16x8xf32>,
    } else {
    }
    return
  }
  func.func @transform_0(%arg0: i32, %arg1: i32, %arg2: i32) -> (i32, i32, i32, i32, i32) {
    %c0_i32 = arith.constant 0 : i32
    %c0_i32_0 = arith.constant 0 : i32
    %c0_i32_1 = arith.constant 0 : i32
    %c0_i32_2 = arith.constant 0 : i32
    return %arg0, %arg1, %c0_i32, %c0_i32_0, %c0_i32_1 : i32, i32, i32, i32, i32
  }
  func.func @transform_1(%arg0: i32, %arg1: i32, %arg2: i32) -> (i32, i32, i32, i32) {
    %c0_i32 = arith.constant 0 : i32
    %c0_i32_0 = arith.constant 0 : i32
    %c0_i32_1 = arith.constant 0 : i32
    %c0_i32_2 = arith.constant 0 : i32
    return %arg2, %c0_i32, %c0_i32_0, %c0_i32_1 : i32, i32, i32, i32
  }
  func.func @transform_2(%arg0: i32, %arg1: i32, %arg2: i32) -> (i32, i32, i32) {
    %c0_i32 = arith.constant 0 : i32
    %c0_i32_0 = arith.constant 0 : i32
    %c0_i32_1 = arith.constant 0 : i32
    return %arg2, %c0_i32, %c0_i32_0 : i32, i32, i32
  }
  func.func @transform_3(%arg0: i32, %arg1: i32, %arg2: i32) -> (i32, i32, i32, i32, i32) {
    %c0_i32 = arith.constant 0 : i32
    %c0_i32_0 = arith.constant 0 : i32
    %c0_i32_1 = arith.constant 0 : i32
    %c0_i32_2 = arith.constant 0 : i32
    return %arg0, %arg1, %c0_i32, %c0_i32_0, %c0_i32_1 : i32, i32, i32, i32, i32
  }
}

</mosaic_0001>

<llo_original>
// kernel: tpu_custom_call.1
$region0: #{tpu_custom_call.1}
  #allocation0 [shape = 'u32[]', space=smem, size = 0x4, offset = 0x4, fixed_abs, tag = 'smem constant byte address 0x4 - core index']
  #allocation1 [shape = 'u32[144,128]{1,0:T(1,128)}', space=vmem, size = 0x12000, scoped, tag = 'internal scratch']
  #allocation2 [shape = 'f32[2,16,16,8]{3,2,1,0:T(8,128)}', space=vmem, size = 0x40000, scoped, tag = 'scratch operand']
  #allocation3 [shape = 'f32[2,18,32,8]{3,2,1,0:T(8,128)}', space=vmem, size = 0x90000, scoped, tag = 'scratch operand']
  #allocation4 [shape = 'f32[512,72]{1,0:T(8,128)}', space=vmem, size = 0x40000, scoped, tag = 'scratch operand']
  %s0 = inlined_call_operand.vmem [shape: f32[2,4,16,16,8], index: 0, kind: input, shape index: {}]
  %s1 = inlined_call_operand.vmem [shape: f32[2,2,72,8], index: 1, kind: input, shape index: {}]
  %s2 = inlined_call_operand.vmem [shape: f32[2,2,8], index: 2, kind: input, shape index: {}]
  %s3 = inlined_call_operand.vmem [shape: f32[2,4,16,16,8], index: 3, kind: output, shape index: {}]
  %s4 = sld [smem:[#allocation0]]
  $region53: #{tpu_custom_call.1} parent=0
    _
  %s6 = ssub.s32 1, %s4
  %s7 = scalar_select 0, %s6, %s4
  loop: start=0, step=1, limit=10
  $region2: #{tpu_custom_call.1} parent=0 // loop_pre_header
    _
  $region3: #{tpu_custom_call.1} parent=0 // loop_header
    %s9 = sphi 0, %s13
    %p10 = scmp.ge.s32.totalorder %s9, 10
    %s16 = sphi 0, %s35
    %s17 = sphi 0, %s31
    %s18 = sphi 0, %s27
    %s19 = sphi 0, %s16
    %s20 = sphi 0, %s17
    %s21 = sphi 0, %s18
    %s22 = sphi 0, %s19
    %s23 = sphi 0, %s20
    %s24 = sphi 0, %s21
    %s40 = sphi 0, %s42
    %s43 = sphi 0, %s40
    %s44 = sphi 0, %s43
    %s60 = sphi 0, %s44
    %s66 = sphi 0, %s68
    %s69 = sphi 0, %s66
    %s70 = sphi 0, %s69
    %s86 = sphi 0, %s70
    %s92 = sphi 0, %s94
    %s95 = sphi 0, %s92
    %s96 = sphi 0, %s95
    %s112 = sphi 0, %s96
    %s120 = sphi 0, %s122
    %s123 = sphi 0, %s120
    %s124 = sphi 0, %s123
    %s140 = sphi 0, %s124
  $region4: #{tpu_custom_call.1} parent=0 // loop_header_branch
    %12 = sbr.rel (%p10) target = $region8
  $region5: #{tpu_custom_call.1} parent=0 // loop_body
    %s14 = ssub.s32 %s9, 1
    %s15 = ssub.s32 %s9, 2
    %s25 = sadd.s32 1, %s18
    %p26 = scmp.ge.s32.totalorder %s25, 2
    %s27 = scalar_select %p26, 0, %s25
    %s28 = sadd.s32 1, %s17
    %s29 = scalar_select %p26, %s28, %s17
    %p30 = scmp.ge.s32.totalorder %s29, 2
    %s31 = scalar_select %p30, 0, %s29
    %s32 = sadd.s32 1, %s16
    %s33 = scalar_select %p30, %s32, %s16
    %p34 = scmp.ge.s32.totalorder %s33, 2
    %s35 = scalar_select %p34, 0, %s33
    %s36 = ssub.s32 %s16, %s35
    %s37 = ssub.s32 %s17, %s31
    %s38 = sor.u32 %s36, %s37
    %p39 = scmp.eq.s32.totalorder %s38, 0
    %s41 = sadd.s32 %s40, 1
    %s42 = scalar_select %p39, %s40, %s41
    %p45 = pneg %p39
    %p46 = scmp.eq.s32.totalorder %s9, 7
    %p47 = por %p45, %p46
    %p48 = scmp.ne.s32.totalorder %s40, %s43
    %p49 = scmp.eq.s32.totalorder %s9, 0
    %p50 = por %p48, %p49
    %p51 = scmp.ne.s32.totalorder %s40, %s43
    %p52 = scmp.eq.s32.totalorder %s14, 7
    %p53 = por %p51, %p52
    %p54 = scmp.ne.s32.totalorder %s43, %s44
    %p55 = scmp.eq.s32.totalorder %s14, 0
    %p56 = por %p54, %p55
    %p57 = scmp.ne.s32.totalorder %s43, %s44
    %p58 = scmp.eq.s32.totalorder %s15, 7
    %p59 = por %p57, %p58
    %p61 = scmp.ne.s32.totalorder %s44, %s60
    %p62 = scmp.eq.s32.totalorder %s15, 0
    %p63 = por %p61, %p62
    %s64 = ssub.s32 %s18, %s27
    %p65 = scmp.eq.s32.totalorder %s64, 0
    %s67 = sadd.s32 %s66, 1
    %s68 = scalar_select %p65, %s66, %s67
    %p71 = pneg %p65
    %p72 = scmp.eq.s32.totalorder %s9, 7
    %p73 = por %p71, %p72
    %p74 = scmp.ne.s32.totalorder %s66, %s69
    %p75 = scmp.eq.s32.totalorder %s9, 0
    %p76 = por %p74, %p75
    %p77 = scmp.ne.s32.totalorder %s66, %s69
    %p78 = scmp.eq.s32.totalorder %s14, 7
    %p79 = por %p77, %p78
    %p80 = scmp.ne.s32.totalorder %s69, %s70
    %p81 = scmp.eq.s32.totalorder %s14, 0
    %p82 = por %p80, %p81
    %p83 = scmp.ne.s32.totalorder %s69, %s70
    %p84 = scmp.eq.s32.totalorder %s15, 7
    %p85 = por %p83, %p84
    %p87 = scmp.ne.s32.totalorder %s70, %s86
    %p88 = scmp.eq.s32.totalorder %s15, 0
    %p89 = por %p87, %p88
    %s90 = ssub.s32 %s18, %s27
    %p91 = scmp.eq.s32.totalorder %s90, 0
    %s93 = sadd.s32 %s92, 1
    %s94 = scalar_select %p91, %s92, %s93
    %p97 = pneg %p91
    %p98 = scmp.eq.s32.totalorder %s9, 7
    %p99 = por %p97, %p98
    %p100 = scmp.ne.s32.totalorder %s92, %s95
    %p101 = scmp.eq.s32.totalorder %s9, 0
    %p102 = por %p100, %p101
    %p103 = scmp.ne.s32.totalorder %s92, %s95
    %p104 = scmp.eq.s32.totalorder %s14, 7
    %p105 = por %p103, %p104
    %p106 = scmp.ne.s32.totalorder %s95, %s96
    %p107 = scmp.eq.s32.totalorder %s14, 0
    %p108 = por %p106, %p107
    %p109 = scmp.ne.s32.totalorder %s95, %s96
    %p110 = scmp.eq.s32.totalorder %s15, 7
    %p111 = por %p109, %p110
    %p113 = scmp.ne.s32.totalorder %s96, %s112
    %p114 = scmp.eq.s32.totalorder %s15, 0
    %p115 = por %p113, %p114
    %s116 = ssub.s32 %s16, %s35
    %s117 = ssub.s32 %s17, %s31
    %s118 = sor.u32 %s116, %s117
    %p119 = scmp.eq.s32.totalorder %s118, 0
    %s121 = sadd.s32 %s120, 1
    %s122 = scalar_select %p119, %s120, %s121
    %p125 = pneg %p119
    %p126 = scmp.eq.s32.totalorder %s9, 7
    %p127 = por %p125, %p126
    %p128 = scmp.ne.s32.totalorder %s120, %s123
    %p129 = scmp.eq.s32.totalorder %s9, 0
    %p130 = por %p128, %p129
    %p131 = scmp.ne.s32.totalorder %s120, %s123
    %p132 = scmp.eq.s32.totalorder %s14, 7
    %p133 = por %p131, %p132
    %p134 = scmp.ne.s32.totalorder %s123, %s124
    %p135 = scmp.eq.s32.totalorder %s14, 0
    %p136 = por %p134, %p135
    %p137 = scmp.ne.s32.totalorder %s123, %s124
    %p138 = scmp.eq.s32.totalorder %s15, 7
    %p139 = por %p137, %p138
    %p141 = scmp.ne.s32.totalorder %s124, %s140
    %p142 = scmp.eq.s32.totalorder %s15, 0
    %p143 = por %p141, %p142
    %p144 = scmp.le.s32.totalorder 1, %s9
    %p145 = scmp.lt.s32.totalorder %s9, 9
    %p146 = pnand %p144, %p145
    %p147 = pneg %p146
    // Predicated region
    $region9: #{tpu_custom_call.1} parent=5 // pred_check
      _
    $region10: #{tpu_custom_call.1} parent=5 // pred_check_branch
      %149 = sbr.rel (%p146) target = $region12
    $region11: #{tpu_custom_call.1} parent=5 // pred_region
      %s150 = ssub.s32 %s9, 1
    $region12: #{tpu_custom_call.1} parent=5 // pred_fallthru
      _
    %p151 = scmp.lt.s32.totalorder %s9, 8
    // Predicated region
    $region13: #{tpu_custom_call.1} parent=5 // pred_check
      %p152 = pneg %p151
    $region14: #{tpu_custom_call.1} parent=5 // pred_check_branch
      %154 = sbr.rel (%p152) target = $region16
    $region15: #{tpu_custom_call.1} parent=5 // pred_region
      // Predicated region
      $region17: #{tpu_custom_call.1} parent=15 // pred_check
        %p155 = pneg %p50
      $region18: #{tpu_custom_call.1} parent=15 // pred_check_branch
        %157 = sbr.rel (%p155) target = $region20
      $region19: #{tpu_custom_call.1} parent=15 // pred_region
        %s158 = smul.u32 2, %s17
        %p159 = scmp.lt.s32.totalorder %s16, 1
        %s160 = scalar_select %p159, %s16, 1
        %p161 = scmp.lt.s32.totalorder %s158, 3
        %s162 = scalar_select %p161, %s158, 3
        %s163 = smul.addr %s162, 32
        %s164 = smul.addr %s160, 128
        %s165 = sadd.s32 %s163, %s164
        %s166 = smul.addr %s165, 8
        %s167 = scalar_lea.vmem %s0, %s166
        %s168 = smul.u32 2, %s17
      $region20: #{tpu_custom_call.1} parent=15 // pred_fallthru
        _
      // Predicated region
      $region21: #{tpu_custom_call.1} parent=15 // pred_check
        %p169 = pneg %p76
      $region22: #{tpu_custom_call.1} parent=15 // pred_check_branch
        %171 = sbr.rel (%p169) target = $region24
      $region23: #{tpu_custom_call.1} parent=15 // pred_region
        %p172 = scmp.lt.s32.totalorder %s18, 1
        %s173 = scalar_select %p172, %s18, 1
        %s174 = smul.addr %s173, 18
        %s175 = smul.addr %s174, 8
        %s176 = scalar_lea.vmem %s1, %s175
      $region24: #{tpu_custom_call.1} parent=15 // pred_fallthru
        _
      // Predicated region
      $region25: #{tpu_custom_call.1} parent=15 // pred_check
        %p177 = pneg %p102
      $region26: #{tpu_custom_call.1} parent=15 // pred_check_branch
        %179 = sbr.rel (%p177) target = $region28
      $region27: #{tpu_custom_call.1} parent=15 // pred_region
        %p180 = scmp.lt.s32.totalorder %s18, 1
        %s181 = scalar_select %p180, %s18, 1
        %s182 = smul.addr %s181, 2
        %s183 = scalar_lea.vmem %s2, %s182
      $region28: #{tpu_custom_call.1} parent=15 // pred_fallthru
        _
    $region16: #{tpu_custom_call.1} parent=5 // pred_fallthru
      _
    %p184 = scmp.le.s32.totalorder 1, %s9
    %p185 = scmp.lt.s32.totalorder %s9, 9
    %p186 = pnand %p184, %p185
    %p187 = pneg %p186
    // Predicated region
    $region29: #{tpu_custom_call.1} parent=5 // pred_check
      _
    $region30: #{tpu_custom_call.1} parent=5 // pred_check_branch
      %189 = sbr.rel (%p186) target = $region32
    $region31: #{tpu_custom_call.1} parent=5 // pred_region
      %s190 = ssub.s32 %s9, 1
      %s191 = smul.u32 2, %s20
      %p192 = scmp.lt.s32.totalorder %s19, 1
      %s193 = scalar_select %p192, %s19, 1
      %p194 = scmp.lt.s32.totalorder %s191, 3
      %s195 = scalar_select %p194, %s191, 3
      %s196 = smul.addr %s195, 32
      %s197 = smul.addr %s193, 128
      %s198 = sadd.s32 %s196, %s197
      %s199 = smul.addr %s198, 8
      %s200 = scalar_lea.vmem %s0, %s199
      %p201 = pneg %p56
      %p202 = pneg %p53
      %p203 = scmp.lt.s32.totalorder %s21, 1
      %s204 = scalar_select %p203, %s21, 1
      %s205 = smul.addr %s204, 18
      %s206 = smul.addr %s205, 8
      %s207 = scalar_lea.vmem %s1, %s206
      %p208 = pneg %p82
      %p209 = pneg %p79
      %p210 = scmp.lt.s32.totalorder %s21, 1
      %s211 = scalar_select %p210, %s21, 1
      %s212 = smul.addr %s211, 2
      %s213 = scalar_lea.vmem %s2, %s212
      %p214 = pneg %p108
      %p215 = pneg %p105
      %p216 = pneg %p136
      %p217 = pneg %p133
      %s218 = smul.u32 2, %s20
      %p219 = scmp.lt.s32.totalorder %s19, 1
      %s220 = scalar_select %p219, %s19, 1
      %p221 = scmp.lt.s32.totalorder %s218, 3
      %s222 = scalar_select %p221, %s218, 3
      %s223 = smul.addr %s222, 32
      %s224 = smul.addr %s220, 128
      %s225 = sadd.s32 %s223, %s224
      %s226 = smul.addr %s225, 8
      %s227 = scalar_lea.vmem %s3, %s226
      %s228 = smul.u32 2, %s20
      %p229 = scmp.lt.s32.totalorder %s19, 1
      %s230 = scalar_select %p229, %s19, 1
      %p231 = scmp.lt.s32.totalorder %s228, 3
      %s232 = scalar_select %p231, %s228, 3
      %s233 = smul.addr %s232, 32
      %s234 = smul.addr %s230, 128
      %s235 = sadd.s32 %s233, %s234
      %s236 = smul.addr %s235, 8
      %s237 = scalar_lea.vmem %s0, %s236
      %s238 = smul.u32 2, %s20
      %p239 = scmp.lt.s32.totalorder %s21, 1
      %s240 = scalar_select %p239, %s21, 1
      %s241 = smul.addr %s240, 18
      %s242 = smul.addr %s241, 8
      %s243 = scalar_lea.vmem %s1, %s242
      %p244 = scmp.lt.s32.totalorder %s21, 1
      %s245 = scalar_select %p244, %s21, 1
      %s246 = smul.addr %s245, 2
      %s247 = scalar_lea.vmem %s2, %s246
      %s248 = smul.u32 2, %s20
      %p249 = scmp.lt.s32.totalorder %s19, 1
      %s250 = scalar_select %p249, %s19, 1
      %p251 = scmp.lt.s32.totalorder %s248, 3
      %s252 = scalar_select %p251, %s248, 3
      %s253 = smul.addr %s252, 32
      %s254 = smul.addr %s250, 128
      %s255 = sadd.s32 %s253, %s254
      %s256 = smul.addr %s255, 8
      %s257 = scalar_lea.vmem %s3, %s256
      %s258 = smul.u32 2, %s20
      %p259 = scmp.eq.s32.totalorder %s21, 0
      // Predicated region
      $region33: #{tpu_custom_call.1} parent=31 // pred_check
        %p260 = pneg %p259
      $region34: #{tpu_custom_call.1} parent=31 // pred_check_branch
        %262 = sbr.rel (%p260) target = $region36
      $region35: #{tpu_custom_call.1} parent=31 // pred_region
        %vm263 = vcmask 64512
        %264 = vst.msk [vmem:[#allocation3] sm:$0xff] %vm263, 0.0
        %265 = vst.msk [vmem:[#allocation3 + $0x8] sm:$0xff] %vm263, 0.0
        %266 = vst.msk [vmem:[#allocation3 + $0x10] sm:$0xff] %vm263, 0.0
        %267 = vst.msk [vmem:[#allocation3 + $0x18] sm:$0xff] %vm263, 0.0
        %268 = vst.msk [vmem:[#allocation3 + $0x20] sm:$0xff] %vm263, 0.0
        %269 = vst.msk [vmem:[#allocation3 + $0x28] sm:$0xff] %vm263, 0.0
        %270 = vst.msk [vmem:[#allocation3 + $0x30] sm:$0xff] %vm263, 0.0
        %271 = vst.msk [vmem:[#allocation3 + $0x38] sm:$0xff] %vm263, 0.0
        %272 = vst.msk [vmem:[#allocation3 + $0x40] sm:$0xff] %vm263, 0.0
        %273 = vst.msk [vmem:[#allocation3 + $0x48] sm:$0xff] %vm263, 0.0
        %274 = vst.msk [vmem:[#allocation3 + $0x50] sm:$0xff] %vm263, 0.0
        %275 = vst.msk [vmem:[#allocation3 + $0x58] sm:$0xff] %vm263, 0.0
        %276 = vst.msk [vmem:[#allocation3 + $0x60] sm:$0xff] %vm263, 0.0
        %277 = vst.msk [vmem:[#allocation3 + $0x68] sm:$0xff] %vm263, 0.0
        %278 = vst.msk [vmem:[#allocation3 + $0x70] sm:$0xff] %vm263, 0.0
        %279 = vst.msk [vmem:[#allocation3 + $0x78] sm:$0xff] %vm263, 0.0
        %280 = vst.msk [vmem:[#allocation3 + $0x80] sm:$0xff] %vm263, 0.0
        %281 = vst.msk [vmem:[#allocation3 + $0x88] sm:$0xff] %vm263, 0.0
        %282 = vst.msk [vmem:[#allocation3 + $0x90] sm:$0xff] %vm263, 0.0
        %283 = vst.msk [vmem:[#allocation3 + $0x98] sm:$0xff] %vm263, 0.0
        %284 = vst.msk [vmem:[#allocation3 + $0xa0] sm:$0xff] %vm263, 0.0
        %285 = vst.msk [vmem:[#allocation3 + $0xa8] sm:$0xff] %vm263, 0.0
        %286 = vst.msk [vmem:[#allocation3 + $0xb0] sm:$0xff] %vm263, 0.0
        %287 = vst.msk [vmem:[#allocation3 + $0xb8] sm:$0xff] %vm263, 0.0
        %288 = vst.msk [vmem:[#allocation3 + $0xc0] sm:$0xff] %vm263, 0.0
        %289 = vst.msk [vmem:[#allocation3 + $0xc8] sm:$0xff] %vm263, 0.0
        %290 = vst.msk [vmem:[#allocation3 + $0xd0] sm:$0xff] %vm263, 0.0
        %291 = vst.msk [vmem:[#allocation3 + $0xd8] sm:$0xff] %vm263, 0.0
        %292 = vst.msk [vmem:[#allocation3 + $0xe0] sm:$0xff] %vm263, 0.0
        %293 = vst.msk [vmem:[#allocation3 + $0xe8] sm:$0xff] %vm263, 0.0
        %294 = vst.msk [vmem:[#allocation3 + $0xf0] sm:$0xff] %vm263, 0.0
        %295 = vst.msk [vmem:[#allocation3 + $0xf8] sm:$0xff] %vm263, 0.0
        %296 = vst.msk [vmem:[#allocation3 + $0x100] sm:$0xff] %vm263, 0.0
        %297 = vst.msk [vmem:[#allocation3 + $0x108] sm:$0xff] %vm263, 0.0
        %298 = vst.msk [vmem:[#allocation3 + $0x110] sm:$0xff] %vm263, 0.0
        %299 = vst.msk [vmem:[#allocation3 + $0x118] sm:$0xff] %vm263, 0.0
        %300 = vst.msk [vmem:[#allocation3 + $0x120] sm:$0xff] %vm263, 0.0
        %301 = vst.msk [vmem:[#allocation3 + $0x128] sm:$0xff] %vm263, 0.0
        %302 = vst.msk [vmem:[#allocation3 + $0x130] sm:$0xff] %vm263, 0.0
        %303 = vst.msk [vmem:[#allocation3 + $0x138] sm:$0xff] %vm263, 0.0
        %304 = vst.msk [vmem:[#allocation3 + $0x140] sm:$0xff] %vm263, 0.0
        %305 = vst.msk [vmem:[#allocation3 + $0x148] sm:$0xff] %vm263, 0.0
        %306 = vst.msk [vmem:[#allocation3 + $0x150] sm:$0xff] %vm263, 0.0
        %307 = vst.msk [vmem:[#allocation3 + $0x158] sm:$0xff] %vm263, 0.0
        %308 = vst.msk [vmem:[#allocation3 + $0x160] sm:$0xff] %vm263, 0.0
        %309 = vst.msk [vmem:[#allocation3 + $0x168] sm:$0xff] %vm263, 0.0
        %310 = vst.msk [vmem:[#allocation3 + $0x170] sm:$0xff] %vm263, 0.0
        %311 = vst.msk [vmem:[#allocation3 + $0x178] sm:$0xff] %vm263, 0.0
        %312 = vst.msk [vmem:[#allocation3 + $0x180] sm:$0xff] %vm263, 0.0
        %313 = vst.msk [vmem:[#allocation3 + $0x188] sm:$0xff] %vm263, 0.0
        %314 = vst.msk [vmem:[#allocation3 + $0x190] sm:$0xff] %vm263, 0.0
        %315 = vst.msk [vmem:[#allocation3 + $0x198] sm:$0xff] %vm263, 0.0
        %316 = vst.msk [vmem:[#allocation3 + $0x1a0] sm:$0xff] %vm263, 0.0
        %317 = vst.msk [vmem:[#allocation3 + $0x1a8] sm:$0xff] %vm263, 0.0
        %318 = vst.msk [vmem:[#allocation3 + $0x1b0] sm:$0xff] %vm263, 0.0
        %319 = vst.msk [vmem:[#allocation3 + $0x1b8] sm:$0xff] %vm263, 0.0
        %320 = vst.msk [vmem:[#allocation3 + $0x1c0] sm:$0xff] %vm263, 0.0
        %321 = vst.msk [vmem:[#allocation3 + $0x1c8] sm:$0xff] %vm263, 0.0
        %322 = vst.msk [vmem:[#allocation3 + $0x1d0] sm:$0xff] %vm263, 0.0
        %323 = vst.msk [vmem:[#allocation3 + $0x1d8] sm:$0xff] %vm263, 0.0
        %324 = vst.msk [vmem:[#allocation3 + $0x1e0] sm:$0xff] %vm263, 0.0
        %325 = vst.msk [vmem:[#allocation3 + $0x1e8] sm:$0xff] %vm263, 0.0
        %326 = vst.msk [vmem:[#allocation3 + $0x1f0] sm:$0xff] %vm263, 0.0
        %327 = vst.msk [vmem:[#allocation3 + $0x1f8] sm:$0xff] %vm263, 0.0
        %328 = vst.msk [vmem:[#allocation3 + $0x200] sm:$0xff] %vm263, 0.0
        %329 = vst.msk [vmem:[#allocation3 + $0x208] sm:$0xff] %vm263, 0.0
        %330 = vst.msk [vmem:[#allocation3 + $0x210] sm:$0xff] %vm263, 0.0
        %331 = vst.msk [vmem:[#allocation3 + $0x218] sm:$0xff] %vm263, 0.0
        %332 = vst.msk [vmem:[#allocation3 + $0x220] sm:$0xff] %vm263, 0.0
        %333 = vst.msk [vmem:[#allocation3 + $0x228] sm:$0xff] %vm263, 0.0
        %334 = vst.msk [vmem:[#allocation3 + $0x230] sm:$0xff] %vm263, 0.0
        %335 = vst.msk [vmem:[#allocation3 + $0x238] sm:$0xff] %vm263, 0.0
        %336 = vst.msk [vmem:[#allocation3 + $0x240] sm:$0xff] %vm263, 0.0
        %337 = vst.msk [vmem:[#allocation3 + $0x248] sm:$0xff] %vm263, 0.0
        %338 = vst.msk [vmem:[#allocation3 + $0x250] sm:$0xff] %vm263, 0.0
        %339 = vst.msk [vmem:[#allocation3 + $0x258] sm:$0xff] %vm263, 0.0
        %340 = vst.msk [vmem:[#allocation3 + $0x260] sm:$0xff] %vm263, 0.0
        %341 = vst.msk [vmem:[#allocation3 + $0x268] sm:$0xff] %vm263, 0.0
        %342 = vst.msk [vmem:[#allocation3 + $0x270] sm:$0xff] %vm263, 0.0
        %343 = vst.msk [vmem:[#allocation3 + $0x278] sm:$0xff] %vm263, 0.0
        %344 = vst.msk [vmem:[#allocation3 + $0x280] sm:$0xff] %vm263, 0.0
        %345 = vst.msk [vmem:[#allocation3 + $0x288] sm:$0xff] %vm263, 0.0
        %346 = vst.msk [vmem:[#allocation3 + $0x290] sm:$0xff] %vm263, 0.0
        %347 = vst.msk [vmem:[#allocation3 + $0x298] sm:$0xff] %vm263, 0.0
        %348 = vst.msk [vmem:[#allocation3 + $0x2a0] sm:$0xff] %vm263, 0.0
        %349 = vst.msk [vmem:[#allocation3 + $0x2a8] sm:$0xff] %vm263, 0.0
        %350 = vst.msk [vmem:[#allocation3 + $0x2b0] sm:$0xff] %vm263, 0.0
        %351 = vst.msk [vmem:[#allocation3 + $0x2b8] sm:$0xff] %vm263, 0.0
        %352 = vst.msk [vmem:[#allocation3 + $0x2c0] sm:$0xff] %vm263, 0.0
        %353 = vst.msk [vmem:[#allocation3 + $0x2c8] sm:$0xff] %vm263, 0.0
        %354 = vst.msk [vmem:[#allocation3 + $0x2d0] sm:$0xff] %vm263, 0.0
        %355 = vst.msk [vmem:[#allocation3 + $0x2d8] sm:$0xff] %vm263, 0.0
        %356 = vst.msk [vmem:[#allocation3 + $0x2e0] sm:$0xff] %vm263, 0.0
        %357 = vst.msk [vmem:[#allocation3 + $0x2e8] sm:$0xff] %vm263, 0.0
        %358 = vst.msk [vmem:[#allocation3 + $0x2f0] sm:$0xff] %vm263, 0.0
        %359 = vst.msk [vmem:[#allocation3 + $0x2f8] sm:$0xff] %vm263, 0.0
        %360 = vst.msk [vmem:[#allocation3 + $0x300] sm:$0xff] %vm263, 0.0
        %361 = vst.msk [vmem:[#allocation3 + $0x308] sm:$0xff] %vm263, 0.0
        %362 = vst.msk [vmem:[#allocation3 + $0x310] sm:$0xff] %vm263, 0.0
        %363 = vst.msk [vmem:[#allocation3 + $0x318] sm:$0xff] %vm263, 0.0
        %364 = vst.msk [vmem:[#allocation3 + $0x320] sm:$0xff] %vm263, 0.0
        %365 = vst.msk [vmem:[#allocation3 + $0x328] sm:$0xff] %vm263, 0.0
        %366 = vst.msk [vmem:[#allocation3 + $0x330] sm:$0xff] %vm263, 0.0
        %367 = vst.msk [vmem:[#allocation3 + $0x338] sm:$0xff] %vm263, 0.0
        %368 = vst.msk [vmem:[#allocation3 + $0x340] sm:$0xff] %vm263, 0.0
        %369 = vst.msk [vmem:[#allocation3 + $0x348] sm:$0xff] %vm263, 0.0
        %370 = vst.msk [vmem:[#allocation3 + $0x350] sm:$0xff] %vm263, 0.0
        %371 = vst.msk [vmem:[#allocation3 + $0x358] sm:$0xff] %vm263, 0.0
        %372 = vst.msk [vmem:[#allocation3 + $0x360] sm:$0xff] %vm263, 0.0
        %373 = vst.msk [vmem:[#allocation3 + $0x368] sm:$0xff] %vm263, 0.0
        %374 = vst.msk [vmem:[#allocation3 + $0x370] sm:$0xff] %vm263, 0.0
        %375 = vst.msk [vmem:[#allocation3 + $0x378] sm:$0xff] %vm263, 0.0
        %376 = vst.msk [vmem:[#allocation3 + $0x380] sm:$0xff] %vm263, 0.0
        %377 = vst.msk [vmem:[#allocation3 + $0x388] sm:$0xff] %vm263, 0.0
        %378 = vst.msk [vmem:[#allocation3 + $0x390] sm:$0xff] %vm263, 0.0
        %379 = vst.msk [vmem:[#allocation3 + $0x398] sm:$0xff] %vm263, 0.0
        %380 = vst.msk [vmem:[#allocation3 + $0x3a0] sm:$0xff] %vm263, 0.0
        %381 = vst.msk [vmem:[#allocation3 + $0x3a8] sm:$0xff] %vm263, 0.0
        %382 = vst.msk [vmem:[#allocation3 + $0x3b0] sm:$0xff] %vm263, 0.0
        %383 = vst.msk [vmem:[#allocation3 + $0x3b8] sm:$0xff] %vm263, 0.0
        %384 = vst.msk [vmem:[#allocation3 + $0x3c0] sm:$0xff] %vm263, 0.0
        %385 = vst.msk [vmem:[#allocation3 + $0x3c8] sm:$0xff] %vm263, 0.0
        %386 = vst.msk [vmem:[#allocation3 + $0x3d0] sm:$0xff] %vm263, 0.0
        %387 = vst.msk [vmem:[#allocation3 + $0x3d8] sm:$0xff] %vm263, 0.0
        %388 = vst.msk [vmem:[#allocation3 + $0x3e0] sm:$0xff] %vm263, 0.0
        %389 = vst.msk [vmem:[#allocation3 + $0x3e8] sm:$0xff] %vm263, 0.0
        %390 = vst.msk [vmem:[#allocation3 + $0x3f0] sm:$0xff] %vm263, 0.0
        %391 = vst.msk [vmem:[#allocation3 + $0x3f8] sm:$0xff] %vm263, 0.0
        %392 = vst.msk [vmem:[#allocation3 + $0x400] sm:$0xff] %vm263, 0.0
        %393 = vst.msk [vmem:[#allocation3 + $0x408] sm:$0xff] %vm263, 0.0
        %394 = vst.msk [vmem:[#allocation3 + $0x410] sm:$0xff] %vm263, 0.0
        %395 = vst.msk [vmem:[#allocation3 + $0x418] sm:$0xff] %vm263, 0.0
        %396 = vst.msk [vmem:[#allocation3 + $0x420] sm:$0xff] %vm263, 0.0
        %397 = vst.msk [vmem:[#allocation3 + $0x428] sm:$0xff] %vm263, 0.0
        %398 = vst.msk [vmem:[#allocation3 + $0x430] sm:$0xff] %vm263, 0.0
        %399 = vst.msk [vmem:[#allocation3 + $0x438] sm:$0xff] %vm263, 0.0
        %400 = vst.msk [vmem:[#allocation3 + $0x440] sm:$0xff] %vm263, 0.0
        %401 = vst.msk [vmem:[#allocation3 + $0x448] sm:$0xff] %vm263, 0.0
        %402 = vst.msk [vmem:[#allocation3 + $0x450] sm:$0xff] %vm263, 0.0
        %403 = vst.msk [vmem:[#allocation3 + $0x458] sm:$0xff] %vm263, 0.0
        %404 = vst.msk [vmem:[#allocation3 + $0x460] sm:$0xff] %vm263, 0.0
        %405 = vst.msk [vmem:[#allocation3 + $0x468] sm:$0xff] %vm263, 0.0
        %406 = vst.msk [vmem:[#allocation3 + $0x470] sm:$0xff] %vm263, 0.0
        %407 = vst.msk [vmem:[#allocation3 + $0x478] sm:$0xff] %vm263, 0.0
        %v408 = vld [vmem:[%s237] sm:$0xff]
        %v409 = vld [vmem:[%s237 + $0x8] sm:$0xff]
        %v410 = vld [vmem:[%s237 + $0x10] sm:$0xff]
        %v411 = vld [vmem:[%s237 + $0x18] sm:$0xff]
        %v412 = vld [vmem:[%s237 + $0x20] sm:$0xff]
        %v413 = vld [vmem:[%s237 + $0x28] sm:$0xff]
        %v414 = vld [vmem:[%s237 + $0x30] sm:$0xff]
        %v415 = vld [vmem:[%s237 + $0x38] sm:$0xff]
        %v416 = vld [vmem:[%s237 + $0x40] sm:$0xff]
        %v417 = vld [vmem:[%s237 + $0x48] sm:$0xff]
        %v418 = vld [vmem:[%s237 + $0x50] sm:$0xff]
        %v419 = vld [vmem:[%s237 + $0x58] sm:$0xff]
        %v420 = vld [vmem:[%s237 + $0x60] sm:$0xff]
        %v421 = vld [vmem:[%s237 + $0x68] sm:$0xff]
        %v422 = vld [vmem:[%s237 + $0x70] sm:$0xff]
        %v423 = vld [vmem:[%s237 + $0x78] sm:$0xff]
        %v424 = vld [vmem:[%s237 + $0x80] sm:$0xff]
        %v425 = vld [vmem:[%s237 + $0x88] sm:$0xff]
        %v426 = vld [vmem:[%s237 + $0x90] sm:$0xff]
        %v427 = vld [vmem:[%s237 + $0x98] sm:$0xff]
        %v428 = vld [vmem:[%s237 + $0xa0] sm:$0xff]
        %v429 = vld [vmem:[%s237 + $0xa8] sm:$0xff]
        %v430 = vld [vmem:[%s237 + $0xb0] sm:$0xff]
        %v431 = vld [vmem:[%s237 + $0xb8] sm:$0xff]
        %v432 = vld [vmem:[%s237 + $0xc0] sm:$0xff]
        %v433 = vld [vmem:[%s237 + $0xc8] sm:$0xff]
        %v434 = vld [vmem:[%s237 + $0xd0] sm:$0xff]
        %v435 = vld [vmem:[%s237 + $0xd8] sm:$0xff]
        %v436 = vld [vmem:[%s237 + $0xe0] sm:$0xff]
        %v437 = vld [vmem:[%s237 + $0xe8] sm:$0xff]
        %v438 = vld [vmem:[%s237 + $0xf0] sm:$0xff]
        %v439 = vld [vmem:[%s237 + $0xf8] sm:$0xff]
        %v440 = vld [vmem:[%s237 + $0x100] sm:$0xff]
        %v441 = vld [vmem:[%s237 + $0x108] sm:$0xff]
        %v442 = vld [vmem:[%s237 + $0x110] sm:$0xff]
        %v443 = vld [vmem:[%s237 + $0x118] sm:$0xff]
        %v444 = vld [vmem:[%s237 + $0x120] sm:$0xff]
        %v445 = vld [vmem:[%s237 + $0x128] sm:$0xff]
        %v446 = vld [vmem:[%s237 + $0x130] sm:$0xff]
        %v447 = vld [vmem:[%s237 + $0x138] sm:$0xff]
        %v448 = vld [vmem:[%s237 + $0x140] sm:$0xff]
        %v449 = vld [vmem:[%s237 + $0x148] sm:$0xff]
        %v450 = vld [vmem:[%s237 + $0x150] sm:$0xff]
        %v451 = vld [vmem:[%s237 + $0x158] sm:$0xff]
        %v452 = vld [vmem:[%s237 + $0x160] sm:$0xff]
        %v453 = vld [vmem:[%s237 + $0x168] sm:$0xff]
        %v454 = vld [vmem:[%s237 + $0x170] sm:$0xff]
        %v455 = vld [vmem:[%s237 + $0x178] sm:$0xff]
        %v456 = vld [vmem:[%s237 + $0x180] sm:$0xff]
        %v457 = vld [vmem:[%s237 + $0x188] sm:$0xff]
        %v458 = vld [vmem:[%s237 + $0x190] sm:$0xff]
        %v459 = vld [vmem:[%s237 + $0x198] sm:$0xff]
        %v460 = vld [vmem:[%s237 + $0x1a0] sm:$0xff]
        %v461 = vld [vmem:[%s237 + $0x1a8] sm:$0xff]
        %v462 = vld [vmem:[%s237 + $0x1b0] sm:$0xff]
        %v463 = vld [vmem:[%s237 + $0x1b8] sm:$0xff]
        %v464 = vld [vmem:[%s237 + $0x1c0] sm:$0xff]
        %v465 = vld [vmem:[%s237 + $0x1c8] sm:$0xff]
        %v466 = vld [vmem:[%s237 + $0x1d0] sm:$0xff]
        %v467 = vld [vmem:[%s237 + $0x1d8] sm:$0xff]
        %v468 = vld [vmem:[%s237 + $0x1e0] sm:$0xff]
        %v469 = vld [vmem:[%s237 + $0x1e8] sm:$0xff]
        %v470 = vld [vmem:[%s237 + $0x1f0] sm:$0xff]
        %v471 = vld [vmem:[%s237 + $0x1f8] sm:$0xff]
        %472 = vst.msk [vmem:[#allocation2] sm:$0xff] %vm263, %v408
        %473 = vst.msk [vmem:[#allocation2 + $0x8] sm:$0xff] %vm263, %v409
        %474 = vst.msk [vmem:[#allocation2 + $0x10] sm:$0xff] %vm263, %v410
        %475 = vst.msk [vmem:[#allocation2 + $0x18] sm:$0xff] %vm263, %v411
        %476 = vst.msk [vmem:[#allocation2 + $0x20] sm:$0xff] %vm263, %v412
        %477 = vst.msk [vmem:[#allocation2 + $0x28] sm:$0xff] %vm263, %v413
        %478 = vst.msk [vmem:[#allocation2 + $0x30] sm:$0xff] %vm263, %v414
        %479 = vst.msk [vmem:[#allocation2 + $0x38] sm:$0xff] %vm263, %v415
        %480 = vst.msk [vmem:[#allocation2 + $0x40] sm:$0xff] %vm263, %v416
        %481 = vst.msk [vmem:[#allocation2 + $0x48] sm:$0xff] %vm263, %v417
        %482 = vst.msk [vmem:[#allocation2 + $0x50] sm:$0xff] %vm263, %v418
        %483 = vst.msk [vmem:[#allocation2 + $0x58] sm:$0xff] %vm263, %v419
        %484 = vst.msk [vmem:[#allocation2 + $0x60] sm:$0xff] %vm263, %v420
        %485 = vst.msk [vmem:[#allocation2 + $0x68] sm:$0xff] %vm263, %v421
        %486 = vst.msk [vmem:[#allocation2 + $0x70] sm:$0xff] %vm263, %v422
        %487 = vst.msk [vmem:[#allocation2 + $0x78] sm:$0xff] %vm263, %v423
        %488 = vst.msk [vmem:[#allocation2 + $0x80] sm:$0xff] %vm263, %v424
        %489 = vst.msk [vmem:[#allocation2 + $0x88] sm:$0xff] %vm263, %v425
        %490 = vst.msk [vmem:[#allocation2 + $0x90] sm:$0xff] %vm263, %v426
        %491 = vst.msk [vmem:[#allocation2 + $0x98] sm:$0xff] %vm263, %v427
        %492 = vst.msk [vmem:[#allocation2 + $0xa0] sm:$0xff] %vm263, %v428
        %493 = vst.msk [vmem:[#allocation2 + $0xa8] sm:$0xff] %vm263, %v429
        %494 = vst.msk [vmem:[#allocation2 + $0xb0] sm:$0xff] %vm263, %v430
        %495 = vst.msk [vmem:[#allocation2 + $0xb8] sm:$0xff] %vm263, %v431
        %496 = vst.msk [vmem:[#allocation2 + $0xc0] sm:$0xff] %vm263, %v432
        %497 = vst.msk [vmem:[#allocation2 + $0xc8] sm:$0xff] %vm263, %v433
        %498 = vst.msk [vmem:[#allocation2 + $0xd0] sm:$0xff] %vm263, %v434
        %499 = vst.msk [vmem:[#allocation2 + $0xd8] sm:$0xff] %vm263, %v435
        %500 = vst.msk [vmem:[#allocation2 + $0xe0] sm:$0xff] %vm263, %v436
        %501 = vst.msk [vmem:[#allocation2 + $0xe8] sm:$0xff] %vm263, %v437
        %502 = vst.msk [vmem:[#allocation2 + $0xf0] sm:$0xff] %vm263, %v438
        %503 = vst.msk [vmem:[#allocation2 + $0xf8] sm:$0xff] %vm263, %v439
        %504 = vst.msk [vmem:[#allocation2 + $0x100] sm:$0xff] %vm263, %v440
        %505 = vst.msk [vmem:[#allocation2 + $0x108] sm:$0xff] %vm263, %v441
        %506 = vst.msk [vmem:[#allocation2 + $0x110] sm:$0xff] %vm263, %v442
        %507 = vst.msk [vmem:[#allocation2 + $0x118] sm:$0xff] %vm263, %v443
        %508 = vst.msk [vmem:[#allocation2 + $0x120] sm:$0xff] %vm263, %v444
        %509 = vst.msk [vmem:[#allocation2 + $0x128] sm:$0xff] %vm263, %v445
        %510 = vst.msk [vmem:[#allocation2 + $0x130] sm:$0xff] %vm263, %v446
        %511 = vst.msk [vmem:[#allocation2 + $0x138] sm:$0xff] %vm263, %v447
        %512 = vst.msk [vmem:[#allocation2 + $0x140] sm:$0xff] %vm263, %v448
        %513 = vst.msk [vmem:[#allocation2 + $0x148] sm:$0xff] %vm263, %v449
        %514 = vst.msk [vmem:[#allocation2 + $0x150] sm:$0xff] %vm263, %v450
        %515 = vst.msk [vmem:[#allocation2 + $0x158] sm:$0xff] %vm263, %v451
        %516 = vst.msk [vmem:[#allocation2 + $0x160] sm:$0xff] %vm263, %v452
        %517 = vst.msk [vmem:[#allocation2 + $0x168] sm:$0xff] %vm263, %v453
        %518 = vst.msk [vmem:[#allocation2 + $0x170] sm:$0xff] %vm263, %v454
        %519 = vst.msk [vmem:[#allocation2 + $0x178] sm:$0xff] %vm263, %v455
        %520 = vst.msk [vmem:[#allocation2 + $0x180] sm:$0xff] %vm263, %v456
        %521 = vst.msk [vmem:[#allocation2 + $0x188] sm:$0xff] %vm263, %v457
        %522 = vst.msk [vmem:[#allocation2 + $0x190] sm:$0xff] %vm263, %v458
        %523 = vst.msk [vmem:[#allocation2 + $0x198] sm:$0xff] %vm263, %v459
        %524 = vst.msk [vmem:[#allocation2 + $0x1a0] sm:$0xff] %vm263, %v460
        %525 = vst.msk [vmem:[#allocation2 + $0x1a8] sm:$0xff] %vm263, %v461
        %526 = vst.msk [vmem:[#allocation2 + $0x1b0] sm:$0xff] %vm263, %v462
        %527 = vst.msk [vmem:[#allocation2 + $0x1b8] sm:$0xff] %vm263, %v463
        %528 = vst.msk [vmem:[#allocation2 + $0x1c0] sm:$0xff] %vm263, %v464
        %529 = vst.msk [vmem:[#allocation2 + $0x1c8] sm:$0xff] %vm263, %v465
        %530 = vst.msk [vmem:[#allocation2 + $0x1d0] sm:$0xff] %vm263, %v466
        %531 = vst.msk [vmem:[#allocation2 + $0x1d8] sm:$0xff] %vm263, %v467
        %532 = vst.msk [vmem:[#allocation2 + $0x1e0] sm:$0xff] %vm263, %v468
        %533 = vst.msk [vmem:[#allocation2 + $0x1e8] sm:$0xff] %vm263, %v469
        %534 = vst.msk [vmem:[#allocation2 + $0x1f0] sm:$0xff] %vm263, %v470
        %535 = vst.msk [vmem:[#allocation2 + $0x1f8] sm:$0xff] %vm263, %v471
      $region36: #{tpu_custom_call.1} parent=31 // pred_fallthru
        _
      %v536 = vld [vmem:[#allocation2] sm:$0xff]
      %v537 = vld [vmem:[#allocation2 + $0x8] sm:$0xff]
      %v538 = vld [vmem:[#allocation2 + $0x10] sm:$0xff]
      %v539 = vld [vmem:[#allocation2 + $0x18] sm:$0xff]
      %v540 = vld [vmem:[#allocation2 + $0x20] sm:$0xff]
      %v541 = vld [vmem:[#allocation2 + $0x28] sm:$0xff]
      %v542 = vld [vmem:[#allocation2 + $0x30] sm:$0xff]
      %v543 = vld [vmem:[#allocation2 + $0x38] sm:$0xff]
      %v544 = vld [vmem:[#allocation2 + $0x40] sm:$0xff]
      %v545 = vld [vmem:[#allocation2 + $0x48] sm:$0xff]
      %v546 = vld [vmem:[#allocation2 + $0x50] sm:$0xff]
      %v547 = vld [vmem:[#allocation2 + $0x58] sm:$0xff]
      %v548 = vld [vmem:[#allocation2 + $0x60] sm:$0xff]
      %v549 = vld [vmem:[#allocation2 + $0x68] sm:$0xff]
      %v550 = vld [vmem:[#allocation2 + $0x70] sm:$0xff]
      %v551 = vld [vmem:[#allocation2 + $0x78] sm:$0xff]
      %v552 = vld [vmem:[#allocation2 + $0x80] sm:$0xff]
      %v553 = vld [vmem:[#allocation2 + $0x88] sm:$0xff]
      %v554 = vld [vmem:[#allocation2 + $0x90] sm:$0xff]
      %v555 = vld [vmem:[#allocation2 + $0x98] sm:$0xff]
      %v556 = vld [vmem:[#allocation2 + $0xa0] sm:$0xff]
      %v557 = vld [vmem:[#allocation2 + $0xa8] sm:$0xff]
      %v558 = vld [vmem:[#allocation2 + $0xb0] sm:$0xff]
      %v559 = vld [vmem:[#allocation2 + $0xb8] sm:$0xff]
      %v560 = vld [vmem:[#allocation2 + $0xc0] sm:$0xff]
      %v561 = vld [vmem:[#allocation2 + $0xc8] sm:$0xff]
      %v562 = vld [vmem:[#allocation2 + $0xd0] sm:$0xff]
      %v563 = vld [vmem:[#allocation2 + $0xd8] sm:$0xff]
      %v564 = vld [vmem:[#allocation2 + $0xe0] sm:$0xff]
      %v565 = vld [vmem:[#allocation2 + $0xe8] sm:$0xff]
      %v566 = vld [vmem:[#allocation2 + $0xf0] sm:$0xff]
      %v567 = vld [vmem:[#allocation2 + $0xf8] sm:$0xff]
      %v568 = vld [vmem:[#allocation2 + $0x100] sm:$0xff]
      %v569 = vld [vmem:[#allocation2 + $0x108] sm:$0xff]
      %v570 = vld [vmem:[#allocation2 + $0x110] sm:$0xff]
      %v571 = vld [vmem:[#allocation2 + $0x118] sm:$0xff]
      %v572 = vld [vmem:[#allocation2 + $0x120] sm:$0xff]
      %v573 = vld [vmem:[#allocation2 + $0x128] sm:$0xff]
      %v574 = vld [vmem:[#allocation2 + $0x130] sm:$0xff]
      %v575 = vld [vmem:[#allocation2 + $0x138] sm:$0xff]
      %v576 = vld [vmem:[#allocation2 + $0x140] sm:$0xff]
      %v577 = vld [vmem:[#allocation2 + $0x148] sm:$0xff]
      %v578 = vld [vmem:[#allocation2 + $0x150] sm:$0xff]
      %v579 = vld [vmem:[#allocation2 + $0x158] sm:$0xff]
      %v580 = vld [vmem:[#allocation2 + $0x160] sm:$0xff]
      %v581 = vld [vmem:[#allocation2 + $0x168] sm:$0xff]
      %v582 = vld [vmem:[#allocation2 + $0x170] sm:$0xff]
      %v583 = vld [vmem:[#allocation2 + $0x178] sm:$0xff]
      %v584 = vld [vmem:[#allocation2 + $0x180] sm:$0xff]
      %v585 = vld [vmem:[#allocation2 + $0x188] sm:$0xff]
      %v586 = vld [vmem:[#allocation2 + $0x190] sm:$0xff]
      %v587 = vld [vmem:[#allocation2 + $0x198] sm:$0xff]
      %v588 = vld [vmem:[#allocation2 + $0x1a0] sm:$0xff]
      %v589 = vld [vmem:[#allocation2 + $0x1a8] sm:$0xff]
      %v590 = vld [vmem:[#allocation2 + $0x1b0] sm:$0xff]
      %v591 = vld [vmem:[#allocation2 + $0x1b8] sm:$0xff]
      %v592 = vld [vmem:[#allocation2 + $0x1c0] sm:$0xff]
      %v593 = vld [vmem:[#allocation2 + $0x1c8] sm:$0xff]
      %v594 = vld [vmem:[#allocation2 + $0x1d0] sm:$0xff]
      %v595 = vld [vmem:[#allocation2 + $0x1d8] sm:$0xff]
      %v596 = vld [vmem:[#allocation2 + $0x1e0] sm:$0xff]
      %v597 = vld [vmem:[#allocation2 + $0x1e8] sm:$0xff]
      %v598 = vld [vmem:[#allocation2 + $0x1f0] sm:$0xff]
      %v599 = vld [vmem:[#allocation2 + $0x1f8] sm:$0xff]
      %v600 = vld [vmem:[%s243] sm:$0xff]
      %v601 = vld [vmem:[%s243 + $0x8] sm:$0xff]
      %v602 = vld [vmem:[%s243 + $0x10] sm:$0xff]
      %v603 = vld [vmem:[%s243 + $0x18] sm:$0xff]
      %v604 = vld [vmem:[%s243 + $0x20] sm:$0xff]
      %v605 = vld [vmem:[%s243 + $0x28] sm:$0xff]
      %v606 = vld [vmem:[%s243 + $0x30] sm:$0xff]
      %v607 = vld [vmem:[%s243 + $0x38] sm:$0xff]
      %v608 = vld [vmem:[%s243 + $0x40] sm:$0xff]
      %v609 = vld [vmem:[%s243 + $0x48] sm:$0xff]
      %v610 = vld [vmem:[%s243 + $0x50] sm:$0xff]
      %v611 = vld [vmem:[%s243 + $0x58] sm:$0xff]
      %v612 = vld [vmem:[%s243 + $0x60] sm:$0xff]
      %v613 = vld [vmem:[%s243 + $0x68] sm:$0xff]
      %v614 = vld [vmem:[%s243 + $0x70] sm:$0xff]
      %v615 = vld [vmem:[%s243 + $0x78] sm:$0xff]
      %v616 = vld [vmem:[%s243 + $0x80] sm:$0xff]
      %v617 = vld [vmem:[%s243 + $0x88] sm:$0xff]
      %v618 = vld [vmem:[%s247] sm:$0x3]
      %s619 = scalar_lea.vmem [#allocation3], 32
      %vm620 = vcmask 64512
      %621 = vst.msk [vmem:[%s619 + $0x8] sm:$0xff] %vm620, %v536
      %622 = vst.msk [vmem:[%s619 + $0x10] sm:$0xff] %vm620, %v537
      %623 = vst.msk [vmem:[%s619 + $0x28] sm:$0xff] %vm620, %v538
      %624 = vst.msk [vmem:[%s619 + $0x30] sm:$0xff] %vm620, %v539
      %625 = vst.msk [vmem:[%s619 + $0x48] sm:$0xff] %vm620, %v540
      %626 = vst.msk [vmem:[%s619 + $0x50] sm:$0xff] %vm620, %v541
      %627 = vst.msk [vmem:[%s619 + $0x68] sm:$0xff] %vm620, %v542
      %628 = vst.msk [vmem:[%s619 + $0x70] sm:$0xff] %vm620, %v543
      %629 = vst.msk [vmem:[%s619 + $0x88] sm:$0xff] %vm620, %v544
      %630 = vst.msk [vmem:[%s619 + $0x90] sm:$0xff] %vm620, %v545
      %631 = vst.msk [vmem:[%s619 + $0xa8] sm:$0xff] %vm620, %v546
      %632 = vst.msk [vmem:[%s619 + $0xb0] sm:$0xff] %vm620, %v547
      %633 = vst.msk [vmem:[%s619 + $0xc8] sm:$0xff] %vm620, %v548
      %634 = vst.msk [vmem:[%s619 + $0xd0] sm:$0xff] %vm620, %v549
      %635 = vst.msk [vmem:[%s619 + $0xe8] sm:$0xff] %vm620, %v550
      %636 = vst.msk [vmem:[%s619 + $0xf0] sm:$0xff] %vm620, %v551
      %637 = vst.msk [vmem:[%s619 + $0x108] sm:$0xff] %vm620, %v552
      %638 = vst.msk [vmem:[%s619 + $0x110] sm:$0xff] %vm620, %v553
      %639 = vst.msk [vmem:[%s619 + $0x128] sm:$0xff] %vm620, %v554
      %640 = vst.msk [vmem:[%s619 + $0x130] sm:$0xff] %vm620, %v555
      %641 = vst.msk [vmem:[%s619 + $0x148] sm:$0xff] %vm620, %v556
      %642 = vst.msk [vmem:[%s619 + $0x150] sm:$0xff] %vm620, %v557
      %643 = vst.msk [vmem:[%s619 + $0x168] sm:$0xff] %vm620, %v558
      %644 = vst.msk [vmem:[%s619 + $0x170] sm:$0xff] %vm620, %v559
      %645 = vst.msk [vmem:[%s619 + $0x188] sm:$0xff] %vm620, %v560
      %646 = vst.msk [vmem:[%s619 + $0x190] sm:$0xff] %vm620, %v561
      %647 = vst.msk [vmem:[%s619 + $0x1a8] sm:$0xff] %vm620, %v562
      %648 = vst.msk [vmem:[%s619 + $0x1b0] sm:$0xff] %vm620, %v563
      %649 = vst.msk [vmem:[%s619 + $0x1c8] sm:$0xff] %vm620, %v564
      %650 = vst.msk [vmem:[%s619 + $0x1d0] sm:$0xff] %vm620, %v565
      %651 = vst.msk [vmem:[%s619 + $0x1e8] sm:$0xff] %vm620, %v566
      %652 = vst.msk [vmem:[%s619 + $0x1f0] sm:$0xff] %vm620, %v567
      %653 = vst.msk [vmem:[%s619 + $0x248] sm:$0xff] %vm620, %v568
      %654 = vst.msk [vmem:[%s619 + $0x250] sm:$0xff] %vm620, %v569
      %655 = vst.msk [vmem:[%s619 + $0x268] sm:$0xff] %vm620, %v570
      %656 = vst.msk [vmem:[%s619 + $0x270] sm:$0xff] %vm620, %v571
      %657 = vst.msk [vmem:[%s619 + $0x288] sm:$0xff] %vm620, %v572
      %658 = vst.msk [vmem:[%s619 + $0x290] sm:$0xff] %vm620, %v573
      %659 = vst.msk [vmem:[%s619 + $0x2a8] sm:$0xff] %vm620, %v574
      %660 = vst.msk [vmem:[%s619 + $0x2b0] sm:$0xff] %vm620, %v575
      %661 = vst.msk [vmem:[%s619 + $0x2c8] sm:$0xff] %vm620, %v576
      %662 = vst.msk [vmem:[%s619 + $0x2d0] sm:$0xff] %vm620, %v577
      %663 = vst.msk [vmem:[%s619 + $0x2e8] sm:$0xff] %vm620, %v578
      %664 = vst.msk [vmem:[%s619 + $0x2f0] sm:$0xff] %vm620, %v579
      %665 = vst.msk [vmem:[%s619 + $0x308] sm:$0xff] %vm620, %v580
      %666 = vst.msk [vmem:[%s619 + $0x310] sm:$0xff] %vm620, %v581
      %667 = vst.msk [vmem:[%s619 + $0x328] sm:$0xff] %vm620, %v582
      %668 = vst.msk [vmem:[%s619 + $0x330] sm:$0xff] %vm620, %v583
      %669 = vst.msk [vmem:[%s619 + $0x348] sm:$0xff] %vm620, %v584
      %670 = vst.msk [vmem:[%s619 + $0x350] sm:$0xff] %vm620, %v585
      %671 = vst.msk [vmem:[%s619 + $0x368] sm:$0xff] %vm620, %v586
      %672 = vst.msk [vmem:[%s619 + $0x370] sm:$0xff] %vm620, %v587
      %673 = vst.msk [vmem:[%s619 + $0x388] sm:$0xff] %vm620, %v588
      %674 = vst.msk [vmem:[%s619 + $0x390] sm:$0xff] %vm620, %v589
      %675 = vst.msk [vmem:[%s619 + $0x3a8] sm:$0xff] %vm620, %v590
      %676 = vst.msk [vmem:[%s619 + $0x3b0] sm:$0xff] %vm620, %v591
      %677 = vst.msk [vmem:[%s619 + $0x3c8] sm:$0xff] %vm620, %v592
      %678 = vst.msk [vmem:[%s619 + $0x3d0] sm:$0xff] %vm620, %v593
      %679 = vst.msk [vmem:[%s619 + $0x3e8] sm:$0xff] %vm620, %v594
      %680 = vst.msk [vmem:[%s619 + $0x3f0] sm:$0xff] %vm620, %v595
      %681 = vst.msk [vmem:[%s619 + $0x408] sm:$0xff] %vm620, %v596
      %682 = vst.msk [vmem:[%s619 + $0x410] sm:$0xff] %vm620, %v597
      %683 = vst.msk [vmem:[%s619 + $0x428] sm:$0xff] %vm620, %v598
      %684 = vst.msk [vmem:[%s619 + $0x430] sm:$0xff] %vm620, %v599
      %v685 = vld [vmem:[#allocation3 + $0x7] sm:$0xff]
      %v686 = vld [vmem:[#allocation3 + $0xf] sm:$0xff]
      %v687 = vld [vmem:[#allocation3 + $0x27] sm:$0xff]
      %v688 = vld [vmem:[#allocation3 + $0x2f] sm:$0xff]
      %v689 = vld [vmem:[#allocation3 + $0x47] sm:$0xff]
      %v690 = vld [vmem:[#allocation3 + $0x4f] sm:$0xff]
      %v691 = vld [vmem:[#allocation3 + $0x67] sm:$0xff]
      %v692 = vld [vmem:[#allocation3 + $0x6f] sm:$0xff]
      %v693 = vld [vmem:[#allocation3 + $0x87] sm:$0xff]
      %v694 = vld [vmem:[#allocation3 + $0x8f] sm:$0xff]
      %v695 = vld [vmem:[#allocation3 + $0xa7] sm:$0xff]
      %v696 = vld [vmem:[#allocation3 + $0xaf] sm:$0xff]
      %v697 = vld [vmem:[#allocation3 + $0xc7] sm:$0xff]
      %v698 = vld [vmem:[#allocation3 + $0xcf] sm:$0xff]
      %v699 = vld [vmem:[#allocation3 + $0xe7] sm:$0xff]
      %v700 = vld [vmem:[#allocation3 + $0xef] sm:$0xff]
      %v701 = vld [vmem:[#allocation3 + $0x107] sm:$0xff]
      %v702 = vld [vmem:[#allocation3 + $0x10f] sm:$0xff]
      %v703 = vld [vmem:[#allocation3 + $0x127] sm:$0xff]
      %v704 = vld [vmem:[#allocation3 + $0x12f] sm:$0xff]
      %v705 = vld [vmem:[#allocation3 + $0x147] sm:$0xff]
      %v706 = vld [vmem:[#allocation3 + $0x14f] sm:$0xff]
      %v707 = vld [vmem:[#allocation3 + $0x167] sm:$0xff]
      %v708 = vld [vmem:[#allocation3 + $0x16f] sm:$0xff]
      %v709 = vld [vmem:[#allocation3 + $0x187] sm:$0xff]
      %v710 = vld [vmem:[#allocation3 + $0x18f] sm:$0xff]
      %v711 = vld [vmem:[#allocation3 + $0x1a7] sm:$0xff]
      %v712 = vld [vmem:[#allocation3 + $0x1af] sm:$0xff]
      %v713 = vld [vmem:[#allocation3 + $0x1c7] sm:$0xff]
      %v714 = vld [vmem:[#allocation3 + $0x1cf] sm:$0xff]
      %v715 = vld [vmem:[#allocation3 + $0x1e7] sm:$0xff]
      %v716 = vld [vmem:[#allocation3 + $0x1ef] sm:$0xff]
      %v717 = vld [vmem:[#allocation3 + $0x247] sm:$0xff]
      %v718 = vld [vmem:[#allocation3 + $0x24f] sm:$0xff]
      %v719 = vld [vmem:[#allocation3 + $0x267] sm:$0xff]
      %v720 = vld [vmem:[#allocation3 + $0x26f] sm:$0xff]
      %v721 = vld [vmem:[#allocation3 + $0x287] sm:$0xff]
      %v722 = vld [vmem:[#allocation3 + $0x28f] sm:$0xff]
      %v723 = vld [vmem:[#allocation3 + $0x2a7] sm:$0xff]
      %v724 = vld [vmem:[#allocation3 + $0x2af] sm:$0xff]
      %v725 = vld [vmem:[#allocation3 + $0x2c7] sm:$0xff]
      %v726 = vld [vmem:[#allocation3 + $0x2cf] sm:$0xff]
      %v727 = vld [vmem:[#allocation3 + $0x2e7] sm:$0xff]
      %v728 = vld [vmem:[#allocation3 + $0x2ef] sm:$0xff]
      %v729 = vld [vmem:[#allocation3 + $0x307] sm:$0xff]
      %v730 = vld [vmem:[#allocation3 + $0x30f] sm:$0xff]
      %v731 = vld [vmem:[#allocation3 + $0x327] sm:$0xff]
      %v732 = vld [vmem:[#allocation3 + $0x32f] sm:$0xff]
      %v733 = vld [vmem:[#allocation3 + $0x347] sm:$0xff]
      %v734 = vld [vmem:[#allocation3 + $0x34f] sm:$0xff]
      %v735 = vld [vmem:[#allocation3 + $0x367] sm:$0xff]
      %v736 = vld [vmem:[#allocation3 + $0x36f] sm:$0xff]
      %v737 = vld [vmem:[#allocation3 + $0x387] sm:$0xff]
      %v738 = vld [vmem:[#allocation3 + $0x38f] sm:$0xff]
      %v739 = vld [vmem:[#allocation3 + $0x3a7] sm:$0xff]
      %v740 = vld [vmem:[#allocation3 + $0x3af] sm:$0xff]
      %v741 = vld [vmem:[#allocation3 + $0x3c7] sm:$0xff]
      %v742 = vld [vmem:[#allocation3 + $0x3cf] sm:$0xff]
      %v743 = vld [vmem:[#allocation3 + $0x3e7] sm:$0xff]
      %v744 = vld [vmem:[#allocation3 + $0x3ef] sm:$0xff]
      %v745 = vld [vmem:[#allocation3 + $0x407] sm:$0xff]
      %v746 = vld [vmem:[#allocation3 + $0x40f] sm:$0xff]
      %v747 = vld [vmem:[#allocation3 + $0x427] sm:$0xff]
      %v748 = vld [vmem:[#allocation3 + $0x42f] sm:$0xff]
      %749 = vst.msk [vmem:[#allocation4] sm:$0xff] %vm620, %v685
      %750 = vst.msk [vmem:[#allocation4 + $0x8] sm:$0xff] %vm620, %v686
      %751 = vst.msk [vmem:[#allocation4 + $0x10] sm:$0xff] %vm620, %v687
      %752 = vst.msk [vmem:[#allocation4 + $0x18] sm:$0xff] %vm620, %v688
      %753 = vst.msk [vmem:[#allocation4 + $0x20] sm:$0xff] %vm620, %v689
      %754 = vst.msk [vmem:[#allocation4 + $0x28] sm:$0xff] %vm620, %v690
      %755 = vst.msk [vmem:[#allocation4 + $0x30] sm:$0xff] %vm620, %v691
      %756 = vst.msk [vmem:[#allocation4 + $0x38] sm:$0xff] %vm620, %v692
      %757 = vst.msk [vmem:[#allocation4 + $0x40] sm:$0xff] %vm620, %v693
      %758 = vst.msk [vmem:[#allocation4 + $0x48] sm:$0xff] %vm620, %v694
      %759 = vst.msk [vmem:[#allocation4 + $0x50] sm:$0xff] %vm620, %v695
      %760 = vst.msk [vmem:[#allocation4 + $0x58] sm:$0xff] %vm620, %v696
      %761 = vst.msk [vmem:[#allocation4 + $0x60] sm:$0xff] %vm620, %v697
      %762 = vst.msk [vmem:[#allocation4 + $0x68] sm:$0xff] %vm620, %v698
      %763 = vst.msk [vmem:[#allocation4 + $0x70] sm:$0xff] %vm620, %v699
      %764 = vst.msk [vmem:[#allocation4 + $0x78] sm:$0xff] %vm620, %v700
      %765 = vst.msk [vmem:[#allocation4 + $0x80] sm:$0xff] %vm620, %v701
      %766 = vst.msk [vmem:[#allocation4 + $0x88] sm:$0xff] %vm620, %v702
      %767 = vst.msk [vmem:[#allocation4 + $0x90] sm:$0xff] %vm620, %v703
      %768 = vst.msk [vmem:[#allocation4 + $0x98] sm:$0xff] %vm620, %v704
      %769 = vst.msk [vmem:[#allocation4 + $0xa0] sm:$0xff] %vm620, %v705
      %770 = vst.msk [vmem:[#allocation4 + $0xa8] sm:$0xff] %vm620, %v706
      %771 = vst.msk [vmem:[#allocation4 + $0xb0] sm:$0xff] %vm620, %v707
      %772 = vst.msk [vmem:[#allocation4 + $0xb8] sm:$0xff] %vm620, %v708
      %773 = vst.msk [vmem:[#allocation4 + $0xc0] sm:$0xff] %vm620, %v709
      %774 = vst.msk [vmem:[#allocation4 + $0xc8] sm:$0xff] %vm620, %v710
      %775 = vst.msk [vmem:[#allocation4 + $0xd0] sm:$0xff] %vm620, %v711
      %776 = vst.msk [vmem:[#allocation4 + $0xd8] sm:$0xff] %vm620, %v712
      %777 = vst.msk [vmem:[#allocation4 + $0xe0] sm:$0xff] %vm620, %v713
      %778 = vst.msk [vmem:[#allocation4 + $0xe8] sm:$0xff] %vm620, %v714
      %779 = vst.msk [vmem:[#allocation4 + $0xf0] sm:$0xff] %vm620, %v715
      %780 = vst.msk [vmem:[#allocation4 + $0xf8] sm:$0xff] %vm620, %v716
      %781 = vst.msk [vmem:[#allocation4 + $0x100] sm:$0xff] %vm620, %v717
      %782 = vst.msk [vmem:[#allocation4 + $0x108] sm:$0xff] %vm620, %v718
      %783 = vst.msk [vmem:[#allocation4 + $0x110] sm:$0xff] %vm620, %v719
      %784 = vst.msk [vmem:[#allocation4 + $0x118] sm:$0xff] %vm620, %v720
      %785 = vst.msk [vmem:[#allocation4 + $0x120] sm:$0xff] %vm620, %v721
      %786 = vst.msk [vmem:[#allocation4 + $0x128] sm:$0xff] %vm620, %v722
      %787 = vst.msk [vmem:[#allocation4 + $0x130] sm:$0xff] %vm620, %v723
      %788 = vst.msk [vmem:[#allocation4 + $0x138] sm:$0xff] %vm620, %v724
      %789 = vst.msk [vmem:[#allocation4 + $0x140] sm:$0xff] %vm620, %v725
      %790 = vst.msk [vmem:[#allocation4 + $0x148] sm:$0xff] %vm620, %v726
      %791 = vst.msk [vmem:[#allocation4 + $0x150] sm:$0xff] %vm620, %v727
      %792 = vst.msk [vmem:[#allocation4 + $0x158] sm:$0xff] %vm620, %v728
      %793 = vst.msk [vmem:[#allocation4 + $0x160] sm:$0xff] %vm620, %v729
      %794 = vst.msk [vmem:[#allocation4 + $0x168] sm:$0xff] %vm620, %v730
      %795 = vst.msk [vmem:[#allocation4 + $0x170] sm:$0xff] %vm620, %v731
      %796 = vst.msk [vmem:[#allocation4 + $0x178] sm:$0xff] %vm620, %v732
      %797 = vst.msk [vmem:[#allocation4 + $0x180] sm:$0xff] %vm620, %v733
      %798 = vst.msk [vmem:[#allocation4 + $0x188] sm:$0xff] %vm620, %v734
      %799 = vst.msk [vmem:[#allocation4 + $0x190] sm:$0xff] %vm620, %v735
      %800 = vst.msk [vmem:[#allocation4 + $0x198] sm:$0xff] %vm620, %v736
      %801 = vst.msk [vmem:[#allocation4 + $0x1a0] sm:$0xff] %vm620, %v737
      %802 = vst.msk [vmem:[#allocation4 + $0x1a8] sm:$0xff] %vm620, %v738
      %803 = vst.msk [vmem:[#allocation4 + $0x1b0] sm:$0xff] %vm620, %v739
      %804 = vst.msk [vmem:[#allocation4 + $0x1b8] sm:$0xff] %vm620, %v740
      %805 = vst.msk [vmem:[#allocation4 + $0x1c0] sm:$0xff] %vm620, %v741
      %806 = vst.msk [vmem:[#allocation4 + $0x1c8] sm:$0xff] %vm620, %v742
      %807 = vst.msk [vmem:[#allocation4 + $0x1d0] sm:$0xff] %vm620, %v743
      %808 = vst.msk [vmem:[#allocation4 + $0x1d8] sm:$0xff] %vm620, %v744
      %809 = vst.msk [vmem:[#allocation4 + $0x1e0] sm:$0xff] %vm620, %v745
      %810 = vst.msk [vmem:[#allocation4 + $0x1e8] sm:$0xff] %vm620, %v746
      %811 = vst.msk [vmem:[#allocation4 + $0x1f0] sm:$0xff] %vm620, %v747
      %812 = vst.msk [vmem:[#allocation4 + $0x1f8] sm:$0xff] %vm620, %v748
      %v813 = vld [vmem:[#allocation3 + $0x8] sm:$0xff]
      %v814 = vld [vmem:[#allocation3 + $0x10] sm:$0xff]
      %v815 = vld [vmem:[#allocation3 + $0x28] sm:$0xff]
      %v816 = vld [vmem:[#allocation3 + $0x30] sm:$0xff]
      %v817 = vld [vmem:[#allocation3 + $0x48] sm:$0xff]
      %v818 = vld [vmem:[#allocation3 + $0x50] sm:$0xff]
      %v819 = vld [vmem:[#allocation3 + $0x68] sm:$0xff]
      %v820 = vld [vmem:[#allocation3 + $0x70] sm:$0xff]
      %v821 = vld [vmem:[#allocation3 + $0x88] sm:$0xff]
      %v822 = vld [vmem:[#allocation3 + $0x90] sm:$0xff]
      %v823 = vld [vmem:[#allocation3 + $0xa8] sm:$0xff]
      %v824 = vld [vmem:[#allocation3 + $0xb0] sm:$0xff]
      %v825 = vld [vmem:[#allocation3 + $0xc8] sm:$0xff]
      %v826 = vld [vmem:[#allocation3 + $0xd0] sm:$0xff]
      %v827 = vld [vmem:[#allocation3 + $0xe8] sm:$0xff]
      %v828 = vld [vmem:[#allocation3 + $0xf0] sm:$0xff]
      %v829 = vld [vmem:[#allocation3 + $0x108] sm:$0xff]
      %v830 = vld [vmem:[#allocation3 + $0x110] sm:$0xff]
      %v831 = vld [vmem:[#allocation3 + $0x128] sm:$0xff]
      %v832 = vld [vmem:[#allocation3 + $0x130] sm:$0xff]
      %v833 = vld [vmem:[#allocation3 + $0x148] sm:$0xff]
      %v834 = vld [vmem:[#allocation3 + $0x150] sm:$0xff]
      %v835 = vld [vmem:[#allocation3 + $0x168] sm:$0xff]
      %v836 = vld [vmem:[#allocation3 + $0x170] sm:$0xff]
      %v837 = vld [vmem:[#allocation3 + $0x188] sm:$0xff]
      %v838 = vld [vmem:[#allocation3 + $0x190] sm:$0xff]
      %v839 = vld [vmem:[#allocation3 + $0x1a8] sm:$0xff]
      %v840 = vld [vmem:[#allocation3 + $0x1b0] sm:$0xff]
      %v841 = vld [vmem:[#allocation3 + $0x1c8] sm:$0xff]
      %v842 = vld [vmem:[#allocation3 + $0x1d0] sm:$0xff]
      %v843 = vld [vmem:[#allocation3 + $0x1e8] sm:$0xff]
      %v844 = vld [vmem:[#allocation3 + $0x1f0] sm:$0xff]
      %v845 = vld [vmem:[#allocation3 + $0x248] sm:$0xff]
      %v846 = vld [vmem:[#allocation3 + $0x250] sm:$0xff]
      %v847 = vld [vmem:[#allocation3 + $0x268] sm:$0xff]
      %v848 = vld [vmem:[#allocation3 + $0x270] sm:$0xff]
      %v849 = vld [vmem:[#allocation3 + $0x288] sm:$0xff]
      %v850 = vld [vmem:[#allocation3 + $0x290] sm:$0xff]
      %v851 = vld [vmem:[#allocation3 + $0x2a8] sm:$0xff]
      %v852 = vld [vmem:[#allocation3 + $0x2b0] sm:$0xff]
      %v853 = vld [vmem:[#allocation3 + $0x2c8] sm:$0xff]
      %v854 = vld [vmem:[#allocation3 + $0x2d0] sm:$0xff]
      %v855 = vld [vmem:[#allocation3 + $0x2e8] sm:$0xff]
      %v856 = vld [vmem:[#allocation3 + $0x2f0] sm:$0xff]
      %v857 = vld [vmem:[#allocation3 + $0x308] sm:$0xff]
      %v858 = vld [vmem:[#allocation3 + $0x310] sm:$0xff]
      %v859 = vld [vmem:[#allocation3 + $0x328] sm:$0xff]
      %v860 = vld [vmem:[#allocation3 + $0x330] sm:$0xff]
      %v861 = vld [vmem:[#allocation3 + $0x348] sm:$0xff]
      %v862 = vld [vmem:[#allocation3 + $0x350] sm:$0xff]
      %v863 = vld [vmem:[#allocation3 + $0x368] sm:$0xff]
      %v864 = vld [vmem:[#allocation3 + $0x370] sm:$0xff]
      %v865 = vld [vmem:[#allocation3 + $0x388] sm:$0xff]
      %v866 = vld [vmem:[#allocation3 + $0x390] sm:$0xff]
      %v867 = vld [vmem:[#allocation3 + $0x3a8] sm:$0xff]
      %v868 = vld [vmem:[#allocation3 + $0x3b0] sm:$0xff]
      %v869 = vld [vmem:[#allocation3 + $0x3c8] sm:$0xff]
      %v870 = vld [vmem:[#allocation3 + $0x3d0] sm:$0xff]
      %v871 = vld [vmem:[#allocation3 + $0x3e8] sm:$0xff]
      %v872 = vld [vmem:[#allocation3 + $0x3f0] sm:$0xff]
      %v873 = vld [vmem:[#allocation3 + $0x408] sm:$0xff]
      %v874 = vld [vmem:[#allocation3 + $0x410] sm:$0xff]
      %v875 = vld [vmem:[#allocation3 + $0x428] sm:$0xff]
      %v876 = vld [vmem:[#allocation3 + $0x430] sm:$0xff]
      %941 = vrot.lane.b32.xlu0 %v813, 8
      %v942 = vpop.permute.xlu0 %941
      %943 = vrot.lane.b32.xlu0 %v814, 8
      %v944 = vpop.permute.xlu0 %943
      %945 = vrot.lane.b32.xlu0 %v815, 8
      %v946 = vpop.permute.xlu0 %945
      %947 = vrot.lane.b32.xlu0 %v816, 8
      %v948 = vpop.permute.xlu0 %947
      %949 = vrot.lane.b32.xlu0 %v817, 8
      %v950 = vpop.permute.xlu0 %949
      %951 = vrot.lane.b32.xlu0 %v818, 8
      %v952 = vpop.permute.xlu0 %951
      %953 = vrot.lane.b32.xlu0 %v819, 8
      %v954 = vpop.permute.xlu0 %953
      %955 = vrot.lane.b32.xlu0 %v820, 8
      %v956 = vpop.permute.xlu0 %955
      %957 = vrot.lane.b32.xlu0 %v821, 8
      %v958 = vpop.permute.xlu0 %957
      %959 = vrot.lane.b32.xlu0 %v822, 8
      %v960 = vpop.permute.xlu0 %959
      %961 = vrot.lane.b32.xlu0 %v823, 8
      %v962 = vpop.permute.xlu0 %961
      %963 = vrot.lane.b32.xlu0 %v824, 8
      %v964 = vpop.permute.xlu0 %963
      %965 = vrot.lane.b32.xlu0 %v825, 8
      %v966 = vpop.permute.xlu0 %965
      %967 = vrot.lane.b32.xlu0 %v826, 8
      %v968 = vpop.permute.xlu0 %967
      %969 = vrot.lane.b32.xlu0 %v827, 8
      %v970 = vpop.permute.xlu0 %969
      %971 = vrot.lane.b32.xlu0 %v828, 8
      %v972 = vpop.permute.xlu0 %971
      %973 = vrot.lane.b32.xlu0 %v829, 8
      %v974 = vpop.permute.xlu0 %973
      %975 = vrot.lane.b32.xlu0 %v830, 8
      %v976 = vpop.permute.xlu0 %975
      %977 = vrot.lane.b32.xlu0 %v831, 8
      %v978 = vpop.permute.xlu0 %977
      %979 = vrot.lane.b32.xlu0 %v832, 8
      %v980 = vpop.permute.xlu0 %979
      %981 = vrot.lane.b32.xlu0 %v833, 8
      %v982 = vpop.permute.xlu0 %981
      %983 = vrot.lane.b32.xlu0 %v834, 8
      %v984 = vpop.permute.xlu0 %983
      %985 = vrot.lane.b32.xlu0 %v835, 8
      %v986 = vpop.permute.xlu0 %985
      %987 = vrot.lane.b32.xlu0 %v836, 8
      %v988 = vpop.permute.xlu0 %987
      %989 = vrot.lane.b32.xlu0 %v837, 8
      %v990 = vpop.permute.xlu0 %989
      %991 = vrot.lane.b32.xlu0 %v838, 8
      %v992 = vpop.permute.xlu0 %991
      %993 = vrot.lane.b32.xlu0 %v839, 8
      %v994 = vpop.permute.xlu0 %993
      %995 = vrot.lane.b32.xlu0 %v840, 8
      %v996 = vpop.permute.xlu0 %995
      %997 = vrot.lane.b32.xlu0 %v841, 8
      %v998 = vpop.permute.xlu0 %997
      %999 = vrot.lane.b32.xlu0 %v842, 8
      %v1000 = vpop.permute.xlu0 %999
      %1001 = vrot.lane.b32.xlu0 %v843, 8
      %v1002 = vpop.permute.xlu0 %1001
      %1003 = vrot.lane.b32.xlu0 %v844, 8
      %v1004 = vpop.permute.xlu0 %1003
      %1005 = vrot.lane.b32.xlu0 %v845, 8
      %v1006 = vpop.permute.xlu0 %1005
      %1007 = vrot.lane.b32.xlu0 %v846, 8
      %v1008 = vpop.permute.xlu0 %1007
      %1009 = vrot.lane.b32.xlu0 %v847, 8
      %v1010 = vpop.permute.xlu0 %1009
      %1011 = vrot.lane.b32.xlu0 %v848, 8
      %v1012 = vpop.permute.xlu0 %1011
      %1013 = vrot.lane.b32.xlu0 %v849, 8
      %v1014 = vpop.permute.xlu0 %1013
      %1015 = vrot.lane.b32.xlu0 %v850, 8
      %v1016 = vpop.permute.xlu0 %1015
      %1017 = vrot.lane.b32.xlu0 %v851, 8
      %v1018 = vpop.permute.xlu0 %1017
      %1019 = vrot.lane.b32.xlu0 %v852, 8
      %v1020 = vpop.permute.xlu0 %1019
      %1021 = vrot.lane.b32.xlu0 %v853, 8
      %v1022 = vpop.permute.xlu0 %1021
      %1023 = vrot.lane.b32.xlu0 %v854, 8
      %v1024 = vpop.permute.xlu0 %1023
      %1025 = vrot.lane.b32.xlu0 %v855, 8
      %v1026 = vpop.permute.xlu0 %1025
      %1027 = vrot.lane.b32.xlu0 %v856, 8
      %v1028 = vpop.permute.xlu0 %1027
      %1029 = vrot.lane.b32.xlu0 %v857, 8
      %v1030 = vpop.permute.xlu0 %1029
      %1031 = vrot.lane.b32.xlu0 %v858, 8
      %v1032 = vpop.permute.xlu0 %1031
      %1033 = vrot.lane.b32.xlu0 %v859, 8
      %v1034 = vpop.permute.xlu0 %1033
      %1035 = vrot.lane.b32.xlu0 %v860, 8
      %v1036 = vpop.permute.xlu0 %1035
      %1037 = vrot.lane.b32.xlu0 %v861, 8
      %v1038 = vpop.permute.xlu0 %1037
      %1039 = vrot.lane.b32.xlu0 %v862, 8
      %v1040 = vpop.permute.xlu0 %1039
      %1041 = vrot.lane.b32.xlu0 %v863, 8
      %v1042 = vpop.permute.xlu0 %1041
      %1043 = vrot.lane.b32.xlu0 %v864, 8
      %v1044 = vpop.permute.xlu0 %1043
      %1045 = vrot.lane.b32.xlu0 %v865, 8
      %v1046 = vpop.permute.xlu0 %1045
      %1047 = vrot.lane.b32.xlu0 %v866, 8
      %v1048 = vpop.permute.xlu0 %1047
      %1049 = vrot.lane.b32.xlu0 %v867, 8
      %v1050 = vpop.permute.xlu0 %1049
      %1051 = vrot.lane.b32.xlu0 %v868, 8
      %v1052 = vpop.permute.xlu0 %1051
      %1053 = vrot.lane.b32.xlu0 %v869, 8
      %v1054 = vpop.permute.xlu0 %1053
      %1055 = vrot.lane.b32.xlu0 %v870, 8
      %v1056 = vpop.permute.xlu0 %1055
      %1057 = vrot.lane.b32.xlu0 %v871, 8
      %v1058 = vpop.permute.xlu0 %1057
      %1059 = vrot.lane.b32.xlu0 %v872, 8
      %v1060 = vpop.permute.xlu0 %1059
      %1061 = vrot.lane.b32.xlu0 %v873, 8
      %v1062 = vpop.permute.xlu0 %1061
      %1063 = vrot.lane.b32.xlu0 %v874, 8
      %v1064 = vpop.permute.xlu0 %1063
      %1065 = vrot.lane.b32.xlu0 %v875, 8
      %v1066 = vpop.permute.xlu0 %1065
      %1067 = vrot.lane.b32.xlu0 %v876, 8
      %v1068 = vpop.permute.xlu0 %1067
      %vm1133 = vcmask 130112
      %1134 = vst.msk [vmem:[#allocation4] sm:$0xff] %vm1133, %v942
      %1135 = vst.msk [vmem:[#allocation4 + $0x8] sm:$0xff] %vm1133, %v944
      %1136 = vst.msk [vmem:[#allocation4 + $0x10] sm:$0xff] %vm1133, %v946
      %1137 = vst.msk [vmem:[#allocation4 + $0x18] sm:$0xff] %vm1133, %v948
      %1138 = vst.msk [vmem:[#allocation4 + $0x20] sm:$0xff] %vm1133, %v950
      %1139 = vst.msk [vmem:[#allocation4 + $0x28] sm:$0xff] %vm1133, %v952
      %1140 = vst.msk [vmem:[#allocation4 + $0x30] sm:$0xff] %vm1133, %v954
      %1141 = vst.msk [vmem:[#allocation4 + $0x38] sm:$0xff] %vm1133, %v956
      %1142 = vst.msk [vmem:[#allocation4 + $0x40] sm:$0xff] %vm1133, %v958
      %1143 = vst.msk [vmem:[#allocation4 + $0x48] sm:$0xff] %vm1133, %v960
      %1144 = vst.msk [vmem:[#allocation4 + $0x50] sm:$0xff] %vm1133, %v962
      %1145 = vst.msk [vmem:[#allocation4 + $0x58] sm:$0xff] %vm1133, %v964
      %1146 = vst.msk [vmem:[#allocation4 + $0x60] sm:$0xff] %vm1133, %v966
      %1147 = vst.msk [vmem:[#allocation4 + $0x68] sm:$0xff] %vm1133, %v968
      %1148 = vst.msk [vmem:[#allocation4 + $0x70] sm:$0xff] %vm1133, %v970
      %1149 = vst.msk [vmem:[#allocation4 + $0x78] sm:$0xff] %vm1133, %v972
      %1150 = vst.msk [vmem:[#allocation4 + $0x80] sm:$0xff] %vm1133, %v974
      %1151 = vst.msk [vmem:[#allocation4 + $0x88] sm:$0xff] %vm1133, %v976
      %1152 = vst.msk [vmem:[#allocation4 + $0x90] sm:$0xff] %vm1133, %v978
      %1153 = vst.msk [vmem:[#allocation4 + $0x98] sm:$0xff] %vm1133, %v980
      %1154 = vst.msk [vmem:[#allocation4 + $0xa0] sm:$0xff] %vm1133, %v982
      %1155 = vst.msk [vmem:[#allocation4 + $0xa8] sm:$0xff] %vm1133, %v984
      %1156 = vst.msk [vmem:[#allocation4 + $0xb0] sm:$0xff] %vm1133, %v986
      %1157 = vst.msk [vmem:[#allocation4 + $0xb8] sm:$0xff] %vm1133, %v988
      %1158 = vst.msk [vmem:[#allocation4 + $0xc0] sm:$0xff] %vm1133, %v990
      %1159 = vst.msk [vmem:[#allocation4 + $0xc8] sm:$0xff] %vm1133, %v992
      %1160 = vst.msk [vmem:[#allocation4 + $0xd0] sm:$0xff] %vm1133, %v994
      %1161 = vst.msk [vmem:[#allocation4 + $0xd8] sm:$0xff] %vm1133, %v996
      %1162 = vst.msk [vmem:[#allocation4 + $0xe0] sm:$0xff] %vm1133, %v998
      %1163 = vst.msk [vmem:[#allocation4 + $0xe8] sm:$0xff] %vm1133, %v1000
      %1164 = vst.msk [vmem:[#allocation4 + $0xf0] sm:$0xff] %vm1133, %v1002
      %1165 = vst.msk [vmem:[#allocation4 + $0xf8] sm:$0xff] %vm1133, %v1004
      %1166 = vst.msk [vmem:[#allocation4 + $0x100] sm:$0xff] %vm1133, %v1006
      %1167 = vst.msk [vmem:[#allocation4 + $0x108] sm:$0xff] %vm1133, %v1008
      %1168 = vst.msk [vmem:[#allocation4 + $0x110] sm:$0xff] %vm1133, %v1010
      %1169 = vst.msk [vmem:[#allocation4 + $0x118] sm:$0xff] %vm1133, %v1012
      %1170 = vst.msk [vmem:[#allocation4 + $0x120] sm:$0xff] %vm1133, %v1014
      %1171 = vst.msk [vmem:[#allocation4 + $0x128] sm:$0xff] %vm1133, %v1016
      %1172 = vst.msk [vmem:[#allocation4 + $0x130] sm:$0xff] %vm1133, %v1018
      %1173 = vst.msk [vmem:[#allocation4 + $0x138] sm:$0xff] %vm1133, %v1020
      %1174 = vst.msk [vmem:[#allocation4 + $0x140] sm:$0xff] %vm1133, %v1022
      %1175 = vst.msk [vmem:[#allocation4 + $0x148] sm:$0xff] %vm1133, %v1024
      %1176 = vst.msk [vmem:[#allocation4 + $0x150] sm:$0xff] %vm1133, %v1026
      %1177 = vst.msk [vmem:[#allocation4 + $0x158] sm:$0xff] %vm1133, %v1028
      %1178 = vst.msk [vmem:[#allocation4 + $0x160] sm:$0xff] %vm1133, %v1030
      %1179 = vst.msk [vmem:[#allocation4 + $0x168] sm:$0xff] %vm1133, %v1032
      %1180 = vst.msk [vmem:[#allocation4 + $0x170] sm:$0xff] %vm1133, %v1034
      %1181 = vst.msk [vmem:[#allocation4 + $0x178] sm:$0xff] %vm1133, %v1036
      %1182 = vst.msk [vmem:[#allocation4 + $0x180] sm:$0xff] %vm1133, %v1038
      %1183 = vst.msk [vmem:[#allocation4 + $0x188] sm:$0xff] %vm1133, %v1040
      %1184 = vst.msk [vmem:[#allocation4 + $0x190] sm:$0xff] %vm1133, %v1042
      %1185 = vst.msk [vmem:[#allocation4 + $0x198] sm:$0xff] %vm1133, %v1044
      %1186 = vst.msk [vmem:[#allocation4 + $0x1a0] sm:$0xff] %vm1133, %v1046
      %1187 = vst.msk [vmem:[#allocation4 + $0x1a8] sm:$0xff] %vm1133, %v1048
      %1188 = vst.msk [vmem:[#allocation4 + $0x1b0] sm:$0xff] %vm1133, %v1050
      %1189 = vst.msk [vmem:[#allocation4 + $0x1b8] sm:$0xff] %vm1133, %v1052
      %1190 = vst.msk [vmem:[#allocation4 + $0x1c0] sm:$0xff] %vm1133, %v1054
      %1191 = vst.msk [vmem:[#allocation4 + $0x1c8] sm:$0xff] %vm1133, %v1056
      %1192 = vst.msk [vmem:[#allocation4 + $0x1d0] sm:$0xff] %vm1133, %v1058
      %1193 = vst.msk [vmem:[#allocation4 + $0x1d8] sm:$0xff] %vm1133, %v1060
      %1194 = vst.msk [vmem:[#allocation4 + $0x1e0] sm:$0xff] %vm1133, %v1062
      %1195 = vst.msk [vmem:[#allocation4 + $0x1e8] sm:$0xff] %vm1133, %v1064
      %1196 = vst.msk [vmem:[#allocation4 + $0x1f0] sm:$0xff] %vm1133, %v1066
      %1197 = vst.msk [vmem:[#allocation4 + $0x1f8] sm:$0xff] %vm1133, %v1068
      %v1198 = vld [vmem:[#allocation3 + $0x9] sm:$0xff]
      %v1199 = vld [vmem:[#allocation3 + $0x11] sm:$0xff]
      %v1200 = vld [vmem:[#allocation3 + $0x29] sm:$0xff]
      %v1201 = vld [vmem:[#allocation3 + $0x31] sm:$0xff]
      %v1202 = vld [vmem:[#allocation3 + $0x49] sm:$0xff]
      %v1203 = vld [vmem:[#allocation3 + $0x51] sm:$0xff]
      %v1204 = vld [vmem:[#allocation3 + $0x69] sm:$0xff]
      %v1205 = vld [vmem:[#allocation3 + $0x71] sm:$0xff]
      %v1206 = vld [vmem:[#allocation3 + $0x89] sm:$0xff]
      %v1207 = vld [vmem:[#allocation3 + $0x91] sm:$0xff]
      %v1208 = vld [vmem:[#allocation3 + $0xa9] sm:$0xff]
      %v1209 = vld [vmem:[#allocation3 + $0xb1] sm:$0xff]
      %v1210 = vld [vmem:[#allocation3 + $0xc9] sm:$0xff]
      %v1211 = vld [vmem:[#allocation3 + $0xd1] sm:$0xff]
      %v1212 = vld [vmem:[#allocation3 + $0xe9] sm:$0xff]
      %v1213 = vld [vmem:[#allocation3 + $0xf1] sm:$0xff]
      %v1214 = vld [vmem:[#allocation3 + $0x109] sm:$0xff]
      %v1215 = vld [vmem:[#allocation3 + $0x111] sm:$0xff]
      %v1216 = vld [vmem:[#allocation3 + $0x129] sm:$0xff]
      %v1217 = vld [vmem:[#allocation3 + $0x131] sm:$0xff]
      %v1218 = vld [vmem:[#allocation3 + $0x149] sm:$0xff]
      %v1219 = vld [vmem:[#allocation3 + $0x151] sm:$0xff]
      %v1220 = vld [vmem:[#allocation3 + $0x169] sm:$0xff]
      %v1221 = vld [vmem:[#allocation3 + $0x171] sm:$0xff]
      %v1222 = vld [vmem:[#allocation3 + $0x189] sm:$0xff]
      %v1223 = vld [vmem:[#allocation3 + $0x191] sm:$0xff]
      %v1224 = vld [vmem:[#allocation3 + $0x1a9] sm:$0xff]
      %v1225 = vld [vmem:[#allocation3 + $0x1b1] sm:$0xff]
      %v1226 = vld [vmem:[#allocation3 + $0x1c9] sm:$0xff]
      %v1227 = vld [vmem:[#allocation3 + $0x1d1] sm:$0xff]
      %v1228 = vld [vmem:[#allocation3 + $0x1e9] sm:$0xff]
      %v1229 = vld [vmem:[#allocation3 + $0x1f1] sm:$0xff]
      %v1230 = vld [vmem:[#allocation3 + $0x249] sm:$0xff]
      %v1231 = vld [vmem:[#allocation3 + $0x251] sm:$0xff]
      %v1232 = vld [vmem:[#allocation3 + $0x269] sm:$0xff]
      %v1233 = vld [vmem:[#allocation3 + $0x271] sm:$0xff]
      %v1234 = vld [vmem:[#allocation3 + $0x289] sm:$0xff]
      %v1235 = vld [vmem:[#allocation3 + $0x291] sm:$0xff]
      %v1236 = vld [vmem:[#allocation3 + $0x2a9] sm:$0xff]
      %v1237 = vld [vmem:[#allocation3 + $0x2b1] sm:$0xff]
      %v1238 = vld [vmem:[#allocation3 + $0x2c9] sm:$0xff]
      %v1239 = vld [vmem:[#allocation3 + $0x2d1] sm:$0xff]
      %v1240 = vld [vmem:[#allocation3 + $0x2e9] sm:$0xff]
      %v1241 = vld [vmem:[#allocation3 + $0x2f1] sm:$0xff]
      %v1242 = vld [vmem:[#allocation3 + $0x309] sm:$0xff]
      %v1243 = vld [vmem:[#allocation3 + $0x311] sm:$0xff]
      %v1244 = vld [vmem:[#allocation3 + $0x329] sm:$0xff]
      %v1245 = vld [vmem:[#allocation3 + $0x331] sm:$0xff]
      %v1246 = vld [vmem:[#allocation3 + $0x349] sm:$0xff]
      %v1247 = vld [vmem:[#allocation3 + $0x351] sm:$0xff]
      %v1248 = vld [vmem:[#allocation3 + $0x369] sm:$0xff]
      %v1249 = vld [vmem:[#allocation3 + $0x371] sm:$0xff]
      %v1250 = vld [vmem:[#allocation3 + $0x389] sm:$0xff]
      %v1251 = vld [vmem:[#allocation3 + $0x391] sm:$0xff]
      %v1252 = vld [vmem:[#allocation3 + $0x3a9] sm:$0xff]
      %v1253 = vld [vmem:[#allocation3 + $0x3b1] sm:$0xff]
      %v1254 = vld [vmem:[#allocation3 + $0x3c9] sm:$0xff]
      %v1255 = vld [vmem:[#allocation3 + $0x3d1] sm:$0xff]
      %v1256 = vld [vmem:[#allocation3 + $0x3e9] sm:$0xff]
      %v1257 = vld [vmem:[#allocation3 + $0x3f1] sm:$0xff]
      %v1258 = vld [vmem:[#allocation3 + $0x409] sm:$0xff]
      %v1259 = vld [vmem:[#allocation3 + $0x411] sm:$0xff]
      %v1260 = vld [vmem:[#allocation3 + $0x429] sm:$0xff]
      %v1261 = vld [vmem:[#allocation3 + $0x431] sm:$0xff]
      %1326 = vrot.lane.b32.xlu0 %v1198, 16
      %v1327 = vpop.permute.xlu0 %1326
      %1328 = vrot.lane.b32.xlu0 %v1199, 16
      %v1329 = vpop.permute.xlu0 %1328
      %1330 = vrot.lane.b32.xlu0 %v1200, 16
      %v1331 = vpop.permute.xlu0 %1330
      %1332 = vrot.lane.b32.xlu0 %v1201, 16
      %v1333 = vpop.permute.xlu0 %1332
      %1334 = vrot.lane.b32.xlu0 %v1202, 16
      %v1335 = vpop.permute.xlu0 %1334
      %1336 = vrot.lane.b32.xlu0 %v1203, 16
      %v1337 = vpop.permute.xlu0 %1336
      %1338 = vrot.lane.b32.xlu0 %v1204, 16
      %v1339 = vpop.permute.xlu0 %1338
      %1340 = vrot.lane.b32.xlu0 %v1205, 16
      %v1341 = vpop.permute.xlu0 %1340
      %1342 = vrot.lane.b32.xlu0 %v1206, 16
      %v1343 = vpop.permute.xlu0 %1342
      %1344 = vrot.lane.b32.xlu0 %v1207, 16
      %v1345 = vpop.permute.xlu0 %1344
      %1346 = vrot.lane.b32.xlu0 %v1208, 16
      %v1347 = vpop.permute.xlu0 %1346
      %1348 = vrot.lane.b32.xlu0 %v1209, 16
      %v1349 = vpop.permute.xlu0 %1348
      %1350 = vrot.lane.b32.xlu0 %v1210, 16
      %v1351 = vpop.permute.xlu0 %1350
      %1352 = vrot.lane.b32.xlu0 %v1211, 16
      %v1353 = vpop.permute.xlu0 %1352
      %1354 = vrot.lane.b32.xlu0 %v1212, 16
      %v1355 = vpop.permute.xlu0 %1354
      %1356 = vrot.lane.b32.xlu0 %v1213, 16
      %v1357 = vpop.permute.xlu0 %1356
      %1358 = vrot.lane.b32.xlu0 %v1214, 16
      %v1359 = vpop.permute.xlu0 %1358
      %1360 = vrot.lane.b32.xlu0 %v1215, 16
      %v1361 = vpop.permute.xlu0 %1360
      %1362 = vrot.lane.b32.xlu0 %v1216, 16
      %v1363 = vpop.permute.xlu0 %1362
      %1364 = vrot.lane.b32.xlu0 %v1217, 16
      %v1365 = vpop.permute.xlu0 %1364
      %1366 = vrot.lane.b32.xlu0 %v1218, 16
      %v1367 = vpop.permute.xlu0 %1366
      %1368 = vrot.lane.b32.xlu0 %v1219, 16
      %v1369 = vpop.permute.xlu0 %1368
      %1370 = vrot.lane.b32.xlu0 %v1220, 16
      %v1371 = vpop.permute.xlu0 %1370
      %1372 = vrot.lane.b32.xlu0 %v1221, 16
      %v1373 = vpop.permute.xlu0 %1372
      %1374 = vrot.lane.b32.xlu0 %v1222, 16
      %v1375 = vpop.permute.xlu0 %1374
      %1376 = vrot.lane.b32.xlu0 %v1223, 16
      %v1377 = vpop.permute.xlu0 %1376
      %1378 = vrot.lane.b32.xlu0 %v1224, 16
      %v1379 = vpop.permute.xlu0 %1378
      %1380 = vrot.lane.b32.xlu0 %v1225, 16
      %v1381 = vpop.permute.xlu0 %1380
      %1382 = vrot.lane.b32.xlu0 %v1226, 16
      %v1383 = vpop.permute.xlu0 %1382
      %1384 = vrot.lane.b32.xlu0 %v1227, 16
      %v1385 = vpop.permute.xlu0 %1384
      %1386 = vrot.lane.b32.xlu0 %v1228, 16
      %v1387 = vpop.permute.xlu0 %1386
      %1388 = vrot.lane.b32.xlu0 %v1229, 16
      %v1389 = vpop.permute.xlu0 %1388
      %1390 = vrot.lane.b32.xlu0 %v1230, 16
      %v1391 = vpop.permute.xlu0 %1390
      %1392 = vrot.lane.b32.xlu0 %v1231, 16
      %v1393 = vpop.permute.xlu0 %1392
      %1394 = vrot.lane.b32.xlu0 %v1232, 16
      %v1395 = vpop.permute.xlu0 %1394
      %1396 = vrot.lane.b32.xlu0 %v1233, 16
      %v1397 = vpop.permute.xlu0 %1396
      %1398 = vrot.lane.b32.xlu0 %v1234, 16
      %v1399 = vpop.permute.xlu0 %1398
      %1400 = vrot.lane.b32.xlu0 %v1235, 16
      %v1401 = vpop.permute.xlu0 %1400
      %1402 = vrot.lane.b32.xlu0 %v1236, 16
      %v1403 = vpop.permute.xlu0 %1402
      %1404 = vrot.lane.b32.xlu0 %v1237, 16
      %v1405 = vpop.permute.xlu0 %1404
      %1406 = vrot.lane.b32.xlu0 %v1238, 16
      %v1407 = vpop.permute.xlu0 %1406
      %1408 = vrot.lane.b32.xlu0 %v1239, 16
      %v1409 = vpop.permute.xlu0 %1408
      %1410 = vrot.lane.b32.xlu0 %v1240, 16
      %v1411 = vpop.permute.xlu0 %1410
      %1412 = vrot.lane.b32.xlu0 %v1241, 16
      %v1413 = vpop.permute.xlu0 %1412
      %1414 = vrot.lane.b32.xlu0 %v1242, 16
      %v1415 = vpop.permute.xlu0 %1414
      %1416 = vrot.lane.b32.xlu0 %v1243, 16
      %v1417 = vpop.permute.xlu0 %1416
      %1418 = vrot.lane.b32.xlu0 %v1244, 16
      %v1419 = vpop.permute.xlu0 %1418
      %1420 = vrot.lane.b32.xlu0 %v1245, 16
      %v1421 = vpop.permute.xlu0 %1420
      %1422 = vrot.lane.b32.xlu0 %v1246, 16
      %v1423 = vpop.permute.xlu0 %1422
      %1424 = vrot.lane.b32.xlu0 %v1247, 16
      %v1425 = vpop.permute.xlu0 %1424
      %1426 = vrot.lane.b32.xlu0 %v1248, 16
      %v1427 = vpop.permute.xlu0 %1426
      %1428 = vrot.lane.b32.xlu0 %v1249, 16
      %v1429 = vpop.permute.xlu0 %1428
      %1430 = vrot.lane.b32.xlu0 %v1250, 16
      %v1431 = vpop.permute.xlu0 %1430
      %1432 = vrot.lane.b32.xlu0 %v1251, 16
      %v1433 = vpop.permute.xlu0 %1432
      %1434 = vrot.lane.b32.xlu0 %v1252, 16
      %v1435 = vpop.permute.xlu0 %1434
      %1436 = vrot.lane.b32.xlu0 %v1253, 16
      %v1437 = vpop.permute.xlu0 %1436
      %1438 = vrot.lane.b32.xlu0 %v1254, 16
      %v1439 = vpop.permute.xlu0 %1438
      %1440 = vrot.lane.b32.xlu0 %v1255, 16
      %v1441 = vpop.permute.xlu0 %1440
      %1442 = vrot.lane.b32.xlu0 %v1256, 16
      %v1443 = vpop.permute.xlu0 %1442
      %1444 = vrot.lane.b32.xlu0 %v1257, 16
      %v1445 = vpop.permute.xlu0 %1444
      %1446 = vrot.lane.b32.xlu0 %v1258, 16
      %v1447 = vpop.permute.xlu0 %1446
      %1448 = vrot.lane.b32.xlu0 %v1259, 16
      %v1449 = vpop.permute.xlu0 %1448
      %1450 = vrot.lane.b32.xlu0 %v1260, 16
      %v1451 = vpop.permute.xlu0 %1450
      %1452 = vrot.lane.b32.xlu0 %v1261, 16
      %v1453 = vpop.permute.xlu0 %1452
      %vm1518 = vcmask 195712
      %1519 = vst.msk [vmem:[#allocation4] sm:$0xff] %vm1518, %v1327
      %1520 = vst.msk [vmem:[#allocation4 + $0x8] sm:$0xff] %vm1518, %v1329
      %1521 = vst.msk [vmem:[#allocation4 + $0x10] sm:$0xff] %vm1518, %v1331
      %1522 = vst.msk [vmem:[#allocation4 + $0x18] sm:$0xff] %vm1518, %v1333
      %1523 = vst.msk [vmem:[#allocation4 + $0x20] sm:$0xff] %vm1518, %v1335
      %1524 = vst.msk [vmem:[#allocation4 + $0x28] sm:$0xff] %vm1518, %v1337
      %1525 = vst.msk [vmem:[#allocation4 + $0x30] sm:$0xff] %vm1518, %v1339
      %1526 = vst.msk [vmem:[#allocation4 + $0x38] sm:$0xff] %vm1518, %v1341
      %1527 = vst.msk [vmem:[#allocation4 + $0x40] sm:$0xff] %vm1518, %v1343
      %1528 = vst.msk [vmem:[#allocation4 + $0x48] sm:$0xff] %vm1518, %v1345
      %1529 = vst.msk [vmem:[#allocation4 + $0x50] sm:$0xff] %vm1518, %v1347
      %1530 = vst.msk [vmem:[#allocation4 + $0x58] sm:$0xff] %vm1518, %v1349
      %1531 = vst.msk [vmem:[#allocation4 + $0x60] sm:$0xff] %vm1518, %v1351
      %1532 = vst.msk [vmem:[#allocation4 + $0x68] sm:$0xff] %vm1518, %v1353
      %1533 = vst.msk [vmem:[#allocation4 + $0x70] sm:$0xff] %vm1518, %v1355
      %1534 = vst.msk [vmem:[#allocation4 + $0x78] sm:$0xff] %vm1518, %v1357
      %1535 = vst.msk [vmem:[#allocation4 + $0x80] sm:$0xff] %vm1518, %v1359
      %1536 = vst.msk [vmem:[#allocation4 + $0x88] sm:$0xff] %vm1518, %v1361
      %1537 = vst.msk [vmem:[#allocation4 + $0x90] sm:$0xff] %vm1518, %v1363
      %1538 = vst.msk [vmem:[#allocation4 + $0x98] sm:$0xff] %vm1518, %v1365
      %1539 = vst.msk [vmem:[#allocation4 + $0xa0] sm:$0xff] %vm1518, %v1367
      %1540 = vst.msk [vmem:[#allocation4 + $0xa8] sm:$0xff] %vm1518, %v1369
      %1541 = vst.msk [vmem:[#allocation4 + $0xb0] sm:$0xff] %vm1518, %v1371
      %1542 = vst.msk [vmem:[#allocation4 + $0xb8] sm:$0xff] %vm1518, %v1373
      %1543 = vst.msk [vmem:[#allocation4 + $0xc0] sm:$0xff] %vm1518, %v1375
      %1544 = vst.msk [vmem:[#allocation4 + $0xc8] sm:$0xff] %vm1518, %v1377
      %1545 = vst.msk [vmem:[#allocation4 + $0xd0] sm:$0xff] %vm1518, %v1379
      %1546 = vst.msk [vmem:[#allocation4 + $0xd8] sm:$0xff] %vm1518, %v1381
      %1547 = vst.msk [vmem:[#allocation4 + $0xe0] sm:$0xff] %vm1518, %v1383
      %1548 = vst.msk [vmem:[#allocation4 + $0xe8] sm:$0xff] %vm1518, %v1385
      %1549 = vst.msk [vmem:[#allocation4 + $0xf0] sm:$0xff] %vm1518, %v1387
      %1550 = vst.msk [vmem:[#allocation4 + $0xf8] sm:$0xff] %vm1518, %v1389
      %1551 = vst.msk [vmem:[#allocation4 + $0x100] sm:$0xff] %vm1518, %v1391
      %1552 = vst.msk [vmem:[#allocation4 + $0x108] sm:$0xff] %vm1518, %v1393
      %1553 = vst.msk [vmem:[#allocation4 + $0x110] sm:$0xff] %vm1518, %v1395
      %1554 = vst.msk [vmem:[#allocation4 + $0x118] sm:$0xff] %vm1518, %v1397
      %1555 = vst.msk [vmem:[#allocation4 + $0x120] sm:$0xff] %vm1518, %v1399
      %1556 = vst.msk [vmem:[#allocation4 + $0x128] sm:$0xff] %vm1518, %v1401
      %1557 = vst.msk [vmem:[#allocation4 + $0x130] sm:$0xff] %vm1518, %v1403
      %1558 = vst.msk [vmem:[#allocation4 + $0x138] sm:$0xff] %vm1518, %v1405
      %1559 = vst.msk [vmem:[#allocation4 + $0x140] sm:$0xff] %vm1518, %v1407
      %1560 = vst.msk [vmem:[#allocation4 + $0x148] sm:$0xff] %vm1518, %v1409
      %1561 = vst.msk [vmem:[#allocation4 + $0x150] sm:$0xff] %vm1518, %v1411
      %1562 = vst.msk [vmem:[#allocation4 + $0x158] sm:$0xff] %vm1518, %v1413
      %1563 = vst.msk [vmem:[#allocation4 + $0x160] sm:$0xff] %vm1518, %v1415
      %1564 = vst.msk [vmem:[#allocation4 + $0x168] sm:$0xff] %vm1518, %v1417
      %1565 = vst.msk [vmem:[#allocation4 + $0x170] sm:$0xff] %vm1518, %v1419
      %1566 = vst.msk [vmem:[#allocation4 + $0x178] sm:$0xff] %vm1518, %v1421
      %1567 = vst.msk [vmem:[#allocation4 + $0x180] sm:$0xff] %vm1518, %v1423
      %1568 = vst.msk [vmem:[#allocation4 + $0x188] sm:$0xff] %vm1518, %v1425
      %1569 = vst.msk [vmem:[#allocation4 + $0x190] sm:$0xff] %vm1518, %v1427
      %1570 = vst.msk [vmem:[#allocation4 + $0x198] sm:$0xff] %vm1518, %v1429
      %1571 = vst.msk [vmem:[#allocation4 + $0x1a0] sm:$0xff] %vm1518, %v1431
      %1572 = vst.msk [vmem:[#allocation4 + $0x1a8] sm:$0xff] %vm1518, %v1433
      %1573 = vst.msk [vmem:[#allocation4 + $0x1b0] sm:$0xff] %vm1518, %v1435
      %1574 = vst.msk [vmem:[#allocation4 + $0x1b8] sm:$0xff] %vm1518, %v1437
      %1575 = vst.msk [vmem:[#allocation4 + $0x1c0] sm:$0xff] %vm1518, %v1439
      %1576 = vst.msk [vmem:[#allocation4 + $0x1c8] sm:$0xff] %vm1518, %v1441
      %1577 = vst.msk [vmem:[#allocation4 + $0x1d0] sm:$0xff] %vm1518, %v1443
      %1578 = vst.msk [vmem:[#allocation4 + $0x1d8] sm:$0xff] %vm1518, %v1445
      %1579 = vst.msk [vmem:[#allocation4 + $0x1e0] sm:$0xff] %vm1518, %v1447
      %1580 = vst.msk [vmem:[#allocation4 + $0x1e8] sm:$0xff] %vm1518, %v1449
      %1581 = vst.msk [vmem:[#allocation4 + $0x1f0] sm:$0xff] %vm1518, %v1451
      %1582 = vst.msk [vmem:[#allocation4 + $0x1f8] sm:$0xff] %vm1518, %v1453
      %v1583 = vld [vmem:[%s619 + $0x7] sm:$0xff]
      %v1584 = vld [vmem:[%s619 + $0xf] sm:$0xff]
      %v1585 = vld [vmem:[%s619 + $0x27] sm:$0xff]
      %v1586 = vld [vmem:[%s619 + $0x2f] sm:$0xff]
      %v1587 = vld [vmem:[%s619 + $0x47] sm:$0xff]
      %v1588 = vld [vmem:[%s619 + $0x4f] sm:$0xff]
      %v1589 = vld [vmem:[%s619 + $0x67] sm:$0xff]
      %v1590 = vld [vmem:[%s619 + $0x6f] sm:$0xff]
      %v1591 = vld [vmem:[%s619 + $0x87] sm:$0xff]
      %v1592 = vld [vmem:[%s619 + $0x8f] sm:$0xff]
      %v1593 = vld [vmem:[%s619 + $0xa7] sm:$0xff]
      %v1594 = vld [vmem:[%s619 + $0xaf] sm:$0xff]
      %v1595 = vld [vmem:[%s619 + $0xc7] sm:$0xff]
      %v1596 = vld [vmem:[%s619 + $0xcf] sm:$0xff]
      %v1597 = vld [vmem:[%s619 + $0xe7] sm:$0xff]
      %v1598 = vld [vmem:[%s619 + $0xef] sm:$0xff]
      %v1599 = vld [vmem:[%s619 + $0x107] sm:$0xff]
      %v1600 = vld [vmem:[%s619 + $0x10f] sm:$0xff]
      %v1601 = vld [vmem:[%s619 + $0x127] sm:$0xff]
      %v1602 = vld [vmem:[%s619 + $0x12f] sm:$0xff]
      %v1603 = vld [vmem:[%s619 + $0x147] sm:$0xff]
      %v1604 = vld [vmem:[%s619 + $0x14f] sm:$0xff]
      %v1605 = vld [vmem:[%s619 + $0x167] sm:$0xff]
      %v1606 = vld [vmem:[%s619 + $0x16f] sm:$0xff]
      %v1607 = vld [vmem:[%s619 + $0x187] sm:$0xff]
      %v1608 = vld [vmem:[%s619 + $0x18f] sm:$0xff]
      %v1609 = vld [vmem:[%s619 + $0x1a7] sm:$0xff]
      %v1610 = vld [vmem:[%s619 + $0x1af] sm:$0xff]
      %v1611 = vld [vmem:[%s619 + $0x1c7] sm:$0xff]
      %v1612 = vld [vmem:[%s619 + $0x1cf] sm:$0xff]
      %v1613 = vld [vmem:[%s619 + $0x1e7] sm:$0xff]
      %v1614 = vld [vmem:[%s619 + $0x1ef] sm:$0xff]
      %v1615 = vld [vmem:[%s619 + $0x247] sm:$0xff]
      %v1616 = vld [vmem:[%s619 + $0x24f] sm:$0xff]
      %v1617 = vld [vmem:[%s619 + $0x267] sm:$0xff]
      %v1618 = vld [vmem:[%s619 + $0x26f] sm:$0xff]
      %v1619 = vld [vmem:[%s619 + $0x287] sm:$0xff]
      %v1620 = vld [vmem:[%s619 + $0x28f] sm:$0xff]
      %v1621 = vld [vmem:[%s619 + $0x2a7] sm:$0xff]
      %v1622 = vld [vmem:[%s619 + $0x2af] sm:$0xff]
      %v1623 = vld [vmem:[%s619 + $0x2c7] sm:$0xff]
      %v1624 = vld [vmem:[%s619 + $0x2cf] sm:$0xff]
      %v1625 = vld [vmem:[%s619 + $0x2e7] sm:$0xff]
      %v1626 = vld [vmem:[%s619 + $0x2ef] sm:$0xff]
      %v1627 = vld [vmem:[%s619 + $0x307] sm:$0xff]
      %v1628 = vld [vmem:[%s619 + $0x30f] sm:$0xff]
      %v1629 = vld [vmem:[%s619 + $0x327] sm:$0xff]
      %v1630 = vld [vmem:[%s619 + $0x32f] sm:$0xff]
      %v1631 = vld [vmem:[%s619 + $0x347] sm:$0xff]
      %v1632 = vld [vmem:[%s619 + $0x34f] sm:$0xff]
      %v1633 = vld [vmem:[%s619 + $0x367] sm:$0xff]
      %v1634 = vld [vmem:[%s619 + $0x36f] sm:$0xff]
      %v1635 = vld [vmem:[%s619 + $0x387] sm:$0xff]
      %v1636 = vld [vmem:[%s619 + $0x38f] sm:$0xff]
      %v1637 = vld [vmem:[%s619 + $0x3a7] sm:$0xff]
      %v1638 = vld [vmem:[%s619 + $0x3af] sm:$0xff]
      %v1639 = vld [vmem:[%s619 + $0x3c7] sm:$0xff]
      %v1640 = vld [vmem:[%s619 + $0x3cf] sm:$0xff]
      %v1641 = vld [vmem:[%s619 + $0x3e7] sm:$0xff]
      %v1642 = vld [vmem:[%s619 + $0x3ef] sm:$0xff]
      %v1643 = vld [vmem:[%s619 + $0x407] sm:$0xff]
      %v1644 = vld [vmem:[%s619 + $0x40f] sm:$0xff]
      %v1645 = vld [vmem:[%s619 + $0x427] sm:$0xff]
      %v1646 = vld [vmem:[%s619 + $0x42f] sm:$0xff]
      %1711 = vrot.lane.b32.xlu0 %v1583, 24
      %v1712 = vpop.permute.xlu0 %1711
      %1713 = vrot.lane.b32.xlu0 %v1584, 24
      %v1714 = vpop.permute.xlu0 %1713
      %1715 = vrot.lane.b32.xlu0 %v1585, 24
      %v1716 = vpop.permute.xlu0 %1715
      %1717 = vrot.lane.b32.xlu0 %v1586, 24
      %v1718 = vpop.permute.xlu0 %1717
      %1719 = vrot.lane.b32.xlu0 %v1587, 24
      %v1720 = vpop.permute.xlu0 %1719
      %1721 = vrot.lane.b32.xlu0 %v1588, 24
      %v1722 = vpop.permute.xlu0 %1721
      %1723 = vrot.lane.b32.xlu0 %v1589, 24
      %v1724 = vpop.permute.xlu0 %1723
      %1725 = vrot.lane.b32.xlu0 %v1590, 24
      %v1726 = vpop.permute.xlu0 %1725
      %1727 = vrot.lane.b32.xlu0 %v1591, 24
      %v1728 = vpop.permute.xlu0 %1727
      %1729 = vrot.lane.b32.xlu0 %v1592, 24
      %v1730 = vpop.permute.xlu0 %1729
      %1731 = vrot.lane.b32.xlu0 %v1593, 24
      %v1732 = vpop.permute.xlu0 %1731
      %1733 = vrot.lane.b32.xlu0 %v1594, 24
      %v1734 = vpop.permute.xlu0 %1733
      %1735 = vrot.lane.b32.xlu0 %v1595, 24
      %v1736 = vpop.permute.xlu0 %1735
      %1737 = vrot.lane.b32.xlu0 %v1596, 24
      %v1738 = vpop.permute.xlu0 %1737
      %1739 = vrot.lane.b32.xlu0 %v1597, 24
      %v1740 = vpop.permute.xlu0 %1739
      %1741 = vrot.lane.b32.xlu0 %v1598, 24
      %v1742 = vpop.permute.xlu0 %1741
      %1743 = vrot.lane.b32.xlu0 %v1599, 24
      %v1744 = vpop.permute.xlu0 %1743
      %1745 = vrot.lane.b32.xlu0 %v1600, 24
      %v1746 = vpop.permute.xlu0 %1745
      %1747 = vrot.lane.b32.xlu0 %v1601, 24
      %v1748 = vpop.permute.xlu0 %1747
      %1749 = vrot.lane.b32.xlu0 %v1602, 24
      %v1750 = vpop.permute.xlu0 %1749
      %1751 = vrot.lane.b32.xlu0 %v1603, 24
      %v1752 = vpop.permute.xlu0 %1751
      %1753 = vrot.lane.b32.xlu0 %v1604, 24
      %v1754 = vpop.permute.xlu0 %1753
      %1755 = vrot.lane.b32.xlu0 %v1605, 24
      %v1756 = vpop.permute.xlu0 %1755
      %1757 = vrot.lane.b32.xlu0 %v1606, 24
      %v1758 = vpop.permute.xlu0 %1757
      %1759 = vrot.lane.b32.xlu0 %v1607, 24
      %v1760 = vpop.permute.xlu0 %1759
      %1761 = vrot.lane.b32.xlu0 %v1608, 24
      %v1762 = vpop.permute.xlu0 %1761
      %1763 = vrot.lane.b32.xlu0 %v1609, 24
      %v1764 = vpop.permute.xlu0 %1763
      %1765 = vrot.lane.b32.xlu0 %v1610, 24
      %v1766 = vpop.permute.xlu0 %1765
      %1767 = vrot.lane.b32.xlu0 %v1611, 24
      %v1768 = vpop.permute.xlu0 %1767
      %1769 = vrot.lane.b32.xlu0 %v1612, 24
      %v1770 = vpop.permute.xlu0 %1769
      %1771 = vrot.lane.b32.xlu0 %v1613, 24
      %v1772 = vpop.permute.xlu0 %1771
      %1773 = vrot.lane.b32.xlu0 %v1614, 24
      %v1774 = vpop.permute.xlu0 %1773
      %1775 = vrot.lane.b32.xlu0 %v1615, 24
      %v1776 = vpop.permute.xlu0 %1775
      %1777 = vrot.lane.b32.xlu0 %v1616, 24
      %v1778 = vpop.permute.xlu0 %1777
      %1779 = vrot.lane.b32.xlu0 %v1617, 24
      %v1780 = vpop.permute.xlu0 %1779
      %1781 = vrot.lane.b32.xlu0 %v1618, 24
      %v1782 = vpop.permute.xlu0 %1781
      %1783 = vrot.lane.b32.xlu0 %v1619, 24
      %v1784 = vpop.permute.xlu0 %1783
      %1785 = vrot.lane.b32.xlu0 %v1620, 24
      %v1786 = vpop.permute.xlu0 %1785
      %1787 = vrot.lane.b32.xlu0 %v1621, 24
      %v1788 = vpop.permute.xlu0 %1787
      %1789 = vrot.lane.b32.xlu0 %v1622, 24
      %v1790 = vpop.permute.xlu0 %1789
      %1791 = vrot.lane.b32.xlu0 %v1623, 24
      %v1792 = vpop.permute.xlu0 %1791
      %1793 = vrot.lane.b32.xlu0 %v1624, 24
      %v1794 = vpop.permute.xlu0 %1793
      %1795 = vrot.lane.b32.xlu0 %v1625, 24
      %v1796 = vpop.permute.xlu0 %1795
      %1797 = vrot.lane.b32.xlu0 %v1626, 24
      %v1798 = vpop.permute.xlu0 %1797
      %1799 = vrot.lane.b32.xlu0 %v1627, 24
      %v1800 = vpop.permute.xlu0 %1799
      %1801 = vrot.lane.b32.xlu0 %v1628, 24
      %v1802 = vpop.permute.xlu0 %1801
      %1803 = vrot.lane.b32.xlu0 %v1629, 24
      %v1804 = vpop.permute.xlu0 %1803
      %1805 = vrot.lane.b32.xlu0 %v1630, 24
      %v1806 = vpop.permute.xlu0 %1805
      %1807 = vrot.lane.b32.xlu0 %v1631, 24
      %v1808 = vpop.permute.xlu0 %1807
      %1809 = vrot.lane.b32.xlu0 %v1632, 24
      %v1810 = vpop.permute.xlu0 %1809
      %1811 = vrot.lane.b32.xlu0 %v1633, 24
      %v1812 = vpop.permute.xlu0 %1811
      %1813 = vrot.lane.b32.xlu0 %v1634, 24
      %v1814 = vpop.permute.xlu0 %1813
      %1815 = vrot.lane.b32.xlu0 %v1635, 24
      %v1816 = vpop.permute.xlu0 %1815
      %1817 = vrot.lane.b32.xlu0 %v1636, 24
      %v1818 = vpop.permute.xlu0 %1817
      %1819 = vrot.lane.b32.xlu0 %v1637, 24
      %v1820 = vpop.permute.xlu0 %1819
      %1821 = vrot.lane.b32.xlu0 %v1638, 24
      %v1822 = vpop.permute.xlu0 %1821
      %1823 = vrot.lane.b32.xlu0 %v1639, 24
      %v1824 = vpop.permute.xlu0 %1823
      %1825 = vrot.lane.b32.xlu0 %v1640, 24
      %v1826 = vpop.permute.xlu0 %1825
      %1827 = vrot.lane.b32.xlu0 %v1641, 24
      %v1828 = vpop.permute.xlu0 %1827
      %1829 = vrot.lane.b32.xlu0 %v1642, 24
      %v1830 = vpop.permute.xlu0 %1829
      %1831 = vrot.lane.b32.xlu0 %v1643, 24
      %v1832 = vpop.permute.xlu0 %1831
      %1833 = vrot.lane.b32.xlu0 %v1644, 24
      %v1834 = vpop.permute.xlu0 %1833
      %1835 = vrot.lane.b32.xlu0 %v1645, 24
      %v1836 = vpop.permute.xlu0 %1835
      %1837 = vrot.lane.b32.xlu0 %v1646, 24
      %v1838 = vpop.permute.xlu0 %1837
      %vm1903 = vcmask 261312
      %1904 = vst.msk [vmem:[#allocation4] sm:$0xff] %vm1903, %v1712
      %1905 = vst.msk [vmem:[#allocation4 + $0x8] sm:$0xff] %vm1903, %v1714
      %1906 = vst.msk [vmem:[#allocation4 + $0x10] sm:$0xff] %vm1903, %v1716
      %1907 = vst.msk [vmem:[#allocation4 + $0x18] sm:$0xff] %vm1903, %v1718
      %1908 = vst.msk [vmem:[#allocation4 + $0x20] sm:$0xff] %vm1903, %v1720
      %1909 = vst.msk [vmem:[#allocation4 + $0x28] sm:$0xff] %vm1903, %v1722
      %1910 = vst.msk [vmem:[#allocation4 + $0x30] sm:$0xff] %vm1903, %v1724
      %1911 = vst.msk [vmem:[#allocation4 + $0x38] sm:$0xff] %vm1903, %v1726
      %1912 = vst.msk [vmem:[#allocation4 + $0x40] sm:$0xff] %vm1903, %v1728
      %1913 = vst.msk [vmem:[#allocation4 + $0x48] sm:$0xff] %vm1903, %v1730
      %1914 = vst.msk [vmem:[#allocation4 + $0x50] sm:$0xff] %vm1903, %v1732
      %1915 = vst.msk [vmem:[#allocation4 + $0x58] sm:$0xff] %vm1903, %v1734
      %1916 = vst.msk [vmem:[#allocation4 + $0x60] sm:$0xff] %vm1903, %v1736
      %1917 = vst.msk [vmem:[#allocation4 + $0x68] sm:$0xff] %vm1903, %v1738
      %1918 = vst.msk [vmem:[#allocation4 + $0x70] sm:$0xff] %vm1903, %v1740
      %1919 = vst.msk [vmem:[#allocation4 + $0x78] sm:$0xff] %vm1903, %v1742
      %1920 = vst.msk [vmem:[#allocation4 + $0x80] sm:$0xff] %vm1903, %v1744
      %1921 = vst.msk [vmem:[#allocation4 + $0x88] sm:$0xff] %vm1903, %v1746
      %1922 = vst.msk [vmem:[#allocation4 + $0x90] sm:$0xff] %vm1903, %v1748
      %1923 = vst.msk [vmem:[#allocation4 + $0x98] sm:$0xff] %vm1903, %v1750
      %1924 = vst.msk [vmem:[#allocation4 + $0xa0] sm:$0xff] %vm1903, %v1752
      %1925 = vst.msk [vmem:[#allocation4 + $0xa8] sm:$0xff] %vm1903, %v1754
      %1926 = vst.msk [vmem:[#allocation4 + $0xb0] sm:$0xff] %vm1903, %v1756
      %1927 = vst.msk [vmem:[#allocation4 + $0xb8] sm:$0xff] %vm1903, %v1758
      %1928 = vst.msk [vmem:[#allocation4 + $0xc0] sm:$0xff] %vm1903, %v1760
      %1929 = vst.msk [vmem:[#allocation4 + $0xc8] sm:$0xff] %vm1903, %v1762
      %1930 = vst.msk [vmem:[#allocation4 + $0xd0] sm:$0xff] %vm1903, %v1764
      %1931 = vst.msk [vmem:[#allocation4 + $0xd8] sm:$0xff] %vm1903, %v1766
      %1932 = vst.msk [vmem:[#allocation4 + $0xe0] sm:$0xff] %vm1903, %v1768
      %1933 = vst.msk [vmem:[#allocation4 + $0xe8] sm:$0xff] %vm1903, %v1770
      %1934 = vst.msk [vmem:[#allocation4 + $0xf0] sm:$0xff] %vm1903, %v1772
      %1935 = vst.msk [vmem:[#allocation4 + $0xf8] sm:$0xff] %vm1903, %v1774
      %1936 = vst.msk [vmem:[#allocation4 + $0x100] sm:$0xff] %vm1903, %v1776
      %1937 = vst.msk [vmem:[#allocation4 + $0x108] sm:$0xff] %vm1903, %v1778
      %1938 = vst.msk [vmem:[#allocation4 + $0x110] sm:$0xff] %vm1903, %v1780
      %1939 = vst.msk [vmem:[#allocation4 + $0x118] sm:$0xff] %vm1903, %v1782
      %1940 = vst.msk [vmem:[#allocation4 + $0x120] sm:$0xff] %vm1903, %v1784
      %1941 = vst.msk [vmem:[#allocation4 + $0x128] sm:$0xff] %vm1903, %v1786
      %1942 = vst.msk [vmem:[#allocation4 + $0x130] sm:$0xff] %vm1903, %v1788
      %1943 = vst.msk [vmem:[#allocation4 + $0x138] sm:$0xff] %vm1903, %v1790
      %1944 = vst.msk [vmem:[#allocation4 + $0x140] sm:$0xff] %vm1903, %v1792
      %1945 = vst.msk [vmem:[#allocation4 + $0x148] sm:$0xff] %vm1903, %v1794
      %1946 = vst.msk [vmem:[#allocation4 + $0x150] sm:$0xff] %vm1903, %v1796
      %1947 = vst.msk [vmem:[#allocation4 + $0x158] sm:$0xff] %vm1903, %v1798
      %1948 = vst.msk [vmem:[#allocation4 + $0x160] sm:$0xff] %vm1903, %v1800
      %1949 = vst.msk [vmem:[#allocation4 + $0x168] sm:$0xff] %vm1903, %v1802
      %1950 = vst.msk [vmem:[#allocation4 + $0x170] sm:$0xff] %vm1903, %v1804
      %1951 = vst.msk [vmem:[#allocation4 + $0x178] sm:$0xff] %vm1903, %v1806
      %1952 = vst.msk [vmem:[#allocation4 + $0x180] sm:$0xff] %vm1903, %v1808
      %1953 = vst.msk [vmem:[#allocation4 + $0x188] sm:$0xff] %vm1903, %v1810
      %1954 = vst.msk [vmem:[#allocation4 + $0x190] sm:$0xff] %vm1903, %v1812
      %1955 = vst.msk [vmem:[#allocation4 + $0x198] sm:$0xff] %vm1903, %v1814
      %1956 = vst.msk [vmem:[#allocation4 + $0x1a0] sm:$0xff] %vm1903, %v1816
      %1957 = vst.msk [vmem:[#allocation4 + $0x1a8] sm:$0xff] %vm1903, %v1818
      %1958 = vst.msk [vmem:[#allocation4 + $0x1b0] sm:$0xff] %vm1903, %v1820
      %1959 = vst.msk [vmem:[#allocation4 + $0x1b8] sm:$0xff] %vm1903, %v1822
      %1960 = vst.msk [vmem:[#allocation4 + $0x1c0] sm:$0xff] %vm1903, %v1824
      %1961 = vst.msk [vmem:[#allocation4 + $0x1c8] sm:$0xff] %vm1903, %v1826
      %1962 = vst.msk [vmem:[#allocation4 + $0x1d0] sm:$0xff] %vm1903, %v1828
      %1963 = vst.msk [vmem:[#allocation4 + $0x1d8] sm:$0xff] %vm1903, %v1830
      %1964 = vst.msk [vmem:[#allocation4 + $0x1e0] sm:$0xff] %vm1903, %v1832
      %1965 = vst.msk [vmem:[#allocation4 + $0x1e8] sm:$0xff] %vm1903, %v1834
      %1966 = vst.msk [vmem:[#allocation4 + $0x1f0] sm:$0xff] %vm1903, %v1836
      %1967 = vst.msk [vmem:[#allocation4 + $0x1f8] sm:$0xff] %vm1903, %v1838
      %v1968 = vld [vmem:[%s619 + $0x8] sm:$0xff]
      %v1969 = vld [vmem:[%s619 + $0x10] sm:$0xff]
      %v1970 = vld [vmem:[%s619 + $0x28] sm:$0xff]
      %v1971 = vld [vmem:[%s619 + $0x30] sm:$0xff]
      %v1972 = vld [vmem:[%s619 + $0x48] sm:$0xff]
      %v1973 = vld [vmem:[%s619 + $0x50] sm:$0xff]
      %v1974 = vld [vmem:[%s619 + $0x68] sm:$0xff]
      %v1975 = vld [vmem:[%s619 + $0x70] sm:$0xff]
      %v1976 = vld [vmem:[%s619 + $0x88] sm:$0xff]
      %v1977 = vld [vmem:[%s619 + $0x90] sm:$0xff]
      %v1978 = vld [vmem:[%s619 + $0xa8] sm:$0xff]
      %v1979 = vld [vmem:[%s619 + $0xb0] sm:$0xff]
      %v1980 = vld [vmem:[%s619 + $0xc8] sm:$0xff]
      %v1981 = vld [vmem:[%s619 + $0xd0] sm:$0xff]
      %v1982 = vld [vmem:[%s619 + $0xe8] sm:$0xff]
      %v1983 = vld [vmem:[%s619 + $0xf0] sm:$0xff]
      %v1984 = vld [vmem:[%s619 + $0x108] sm:$0xff]
      %v1985 = vld [vmem:[%s619 + $0x110] sm:$0xff]
      %v1986 = vld [vmem:[%s619 + $0x128] sm:$0xff]
      %v1987 = vld [vmem:[%s619 + $0x130] sm:$0xff]
      %v1988 = vld [vmem:[%s619 + $0x148] sm:$0xff]
      %v1989 = vld [vmem:[%s619 + $0x150] sm:$0xff]
      %v1990 = vld [vmem:[%s619 + $0x168] sm:$0xff]
      %v1991 = vld [vmem:[%s619 + $0x170] sm:$0xff]
      %v1992 = vld [vmem:[%s619 + $0x188] sm:$0xff]
      %v1993 = vld [vmem:[%s619 + $0x190] sm:$0xff]
      %v1994 = vld [vmem:[%s619 + $0x1a8] sm:$0xff]
      %v1995 = vld [vmem:[%s619 + $0x1b0] sm:$0xff]
      %v1996 = vld [vmem:[%s619 + $0x1c8] sm:$0xff]
      %v1997 = vld [vmem:[%s619 + $0x1d0] sm:$0xff]
      %v1998 = vld [vmem:[%s619 + $0x1e8] sm:$0xff]
      %v1999 = vld [vmem:[%s619 + $0x1f0] sm:$0xff]
      %v2000 = vld [vmem:[%s619 + $0x248] sm:$0xff]
      %v2001 = vld [vmem:[%s619 + $0x250] sm:$0xff]
      %v2002 = vld [vmem:[%s619 + $0x268] sm:$0xff]
      %v2003 = vld [vmem:[%s619 + $0x270] sm:$0xff]
      %v2004 = vld [vmem:[%s619 + $0x288] sm:$0xff]
      %v2005 = vld [vmem:[%s619 + $0x290] sm:$0xff]
      %v2006 = vld [vmem:[%s619 + $0x2a8] sm:$0xff]
      %v2007 = vld [vmem:[%s619 + $0x2b0] sm:$0xff]
      %v2008 = vld [vmem:[%s619 + $0x2c8] sm:$0xff]
      %v2009 = vld [vmem:[%s619 + $0x2d0] sm:$0xff]
      %v2010 = vld [vmem:[%s619 + $0x2e8] sm:$0xff]
      %v2011 = vld [vmem:[%s619 + $0x2f0] sm:$0xff]
      %v2012 = vld [vmem:[%s619 + $0x308] sm:$0xff]
      %v2013 = vld [vmem:[%s619 + $0x310] sm:$0xff]
      %v2014 = vld [vmem:[%s619 + $0x328] sm:$0xff]
      %v2015 = vld [vmem:[%s619 + $0x330] sm:$0xff]
      %v2016 = vld [vmem:[%s619 + $0x348] sm:$0xff]
      %v2017 = vld [vmem:[%s619 + $0x350] sm:$0xff]
      %v2018 = vld [vmem:[%s619 + $0x368] sm:$0xff]
      %v2019 = vld [vmem:[%s619 + $0x370] sm:$0xff]
      %v2020 = vld [vmem:[%s619 + $0x388] sm:$0xff]
      %v2021 = vld [vmem:[%s619 + $0x390] sm:$0xff]
      %v2022 = vld [vmem:[%s619 + $0x3a8] sm:$0xff]
      %v2023 = vld [vmem:[%s619 + $0x3b0] sm:$0xff]
      %v2024 = vld [vmem:[%s619 + $0x3c8] sm:$0xff]
      %v2025 = vld [vmem:[%s619 + $0x3d0] sm:$0xff]
      %v2026 = vld [vmem:[%s619 + $0x3e8] sm:$0xff]
      %v2027 = vld [vmem:[%s619 + $0x3f0] sm:$0xff]
      %v2028 = vld [vmem:[%s619 + $0x408] sm:$0xff]
      %v2029 = vld [vmem:[%s619 + $0x410] sm:$0xff]
      %v2030 = vld [vmem:[%s619 + $0x428] sm:$0xff]
      %v2031 = vld [vmem:[%s619 + $0x430] sm:$0xff]
      %2096 = vrot.lane.b32.xlu0 %v1968, 32
      %v2097 = vpop.permute.xlu0 %2096
      %2098 = vrot.lane.b32.xlu0 %v1969, 32
      %v2099 = vpop.permute.xlu0 %2098
      %2100 = vrot.lane.b32.xlu0 %v1970, 32
      %v2101 = vpop.permute.xlu0 %2100
      %2102 = vrot.lane.b32.xlu0 %v1971, 32
      %v2103 = vpop.permute.xlu0 %2102
      %2104 = vrot.lane.b32.xlu0 %v1972, 32
      %v2105 = vpop.permute.xlu0 %2104
      %2106 = vrot.lane.b32.xlu0 %v1973, 32
      %v2107 = vpop.permute.xlu0 %2106
      %2108 = vrot.lane.b32.xlu0 %v1974, 32
      %v2109 = vpop.permute.xlu0 %2108
      %2110 = vrot.lane.b32.xlu0 %v1975, 32
      %v2111 = vpop.permute.xlu0 %2110
      %2112 = vrot.lane.b32.xlu0 %v1976, 32
      %v2113 = vpop.permute.xlu0 %2112
      %2114 = vrot.lane.b32.xlu0 %v1977, 32
      %v2115 = vpop.permute.xlu0 %2114
      %2116 = vrot.lane.b32.xlu0 %v1978, 32
      %v2117 = vpop.permute.xlu0 %2116
      %2118 = vrot.lane.b32.xlu0 %v1979, 32
      %v2119 = vpop.permute.xlu0 %2118
      %2120 = vrot.lane.b32.xlu0 %v1980, 32
      %v2121 = vpop.permute.xlu0 %2120
      %2122 = vrot.lane.b32.xlu0 %v1981, 32
      %v2123 = vpop.permute.xlu0 %2122
      %2124 = vrot.lane.b32.xlu0 %v1982, 32
      %v2125 = vpop.permute.xlu0 %2124
      %2126 = vrot.lane.b32.xlu0 %v1983, 32
      %v2127 = vpop.permute.xlu0 %2126
      %2128 = vrot.lane.b32.xlu0 %v1984, 32
      %v2129 = vpop.permute.xlu0 %2128
      %2130 = vrot.lane.b32.xlu0 %v1985, 32
      %v2131 = vpop.permute.xlu0 %2130
      %2132 = vrot.lane.b32.xlu0 %v1986, 32
      %v2133 = vpop.permute.xlu0 %2132
      %2134 = vrot.lane.b32.xlu0 %v1987, 32
      %v2135 = vpop.permute.xlu0 %2134
      %2136 = vrot.lane.b32.xlu0 %v1988, 32
      %v2137 = vpop.permute.xlu0 %2136
      %2138 = vrot.lane.b32.xlu0 %v1989, 32
      %v2139 = vpop.permute.xlu0 %2138
      %2140 = vrot.lane.b32.xlu0 %v1990, 32
      %v2141 = vpop.permute.xlu0 %2140
      %2142 = vrot.lane.b32.xlu0 %v1991, 32
      %v2143 = vpop.permute.xlu0 %2142
      %2144 = vrot.lane.b32.xlu0 %v1992, 32
      %v2145 = vpop.permute.xlu0 %2144
      %2146 = vrot.lane.b32.xlu0 %v1993, 32
      %v2147 = vpop.permute.xlu0 %2146
      %2148 = vrot.lane.b32.xlu0 %v1994, 32
      %v2149 = vpop.permute.xlu0 %2148
      %2150 = vrot.lane.b32.xlu0 %v1995, 32
      %v2151 = vpop.permute.xlu0 %2150
      %2152 = vrot.lane.b32.xlu0 %v1996, 32
      %v2153 = vpop.permute.xlu0 %2152
      %2154 = vrot.lane.b32.xlu0 %v1997, 32
      %v2155 = vpop.permute.xlu0 %2154
      %2156 = vrot.lane.b32.xlu0 %v1998, 32
      %v2157 = vpop.permute.xlu0 %2156
      %2158 = vrot.lane.b32.xlu0 %v1999, 32
      %v2159 = vpop.permute.xlu0 %2158
      %2160 = vrot.lane.b32.xlu0 %v2000, 32
      %v2161 = vpop.permute.xlu0 %2160
      %2162 = vrot.lane.b32.xlu0 %v2001, 32
      %v2163 = vpop.permute.xlu0 %2162
      %2164 = vrot.lane.b32.xlu0 %v2002, 32
      %v2165 = vpop.permute.xlu0 %2164
      %2166 = vrot.lane.b32.xlu0 %v2003, 32
      %v2167 = vpop.permute.xlu0 %2166
      %2168 = vrot.lane.b32.xlu0 %v2004, 32
      %v2169 = vpop.permute.xlu0 %2168
      %2170 = vrot.lane.b32.xlu0 %v2005, 32
      %v2171 = vpop.permute.xlu0 %2170
      %2172 = vrot.lane.b32.xlu0 %v2006, 32
      %v2173 = vpop.permute.xlu0 %2172
      %2174 = vrot.lane.b32.xlu0 %v2007, 32
      %v2175 = vpop.permute.xlu0 %2174
      %2176 = vrot.lane.b32.xlu0 %v2008, 32
      %v2177 = vpop.permute.xlu0 %2176
      %2178 = vrot.lane.b32.xlu0 %v2009, 32
      %v2179 = vpop.permute.xlu0 %2178
      %2180 = vrot.lane.b32.xlu0 %v2010, 32
      %v2181 = vpop.permute.xlu0 %2180
      %2182 = vrot.lane.b32.xlu0 %v2011, 32
      %v2183 = vpop.permute.xlu0 %2182
      %2184 = vrot.lane.b32.xlu0 %v2012, 32
      %v2185 = vpop.permute.xlu0 %2184
      %2186 = vrot.lane.b32.xlu0 %v2013, 32
      %v2187 = vpop.permute.xlu0 %2186
      %2188 = vrot.lane.b32.xlu0 %v2014, 32
      %v2189 = vpop.permute.xlu0 %2188
      %2190 = vrot.lane.b32.xlu0 %v2015, 32
      %v2191 = vpop.permute.xlu0 %2190
      %2192 = vrot.lane.b32.xlu0 %v2016, 32
      %v2193 = vpop.permute.xlu0 %2192
      %2194 = vrot.lane.b32.xlu0 %v2017, 32
      %v2195 = vpop.permute.xlu0 %2194
      %2196 = vrot.lane.b32.xlu0 %v2018, 32
      %v2197 = vpop.permute.xlu0 %2196
      %2198 = vrot.lane.b32.xlu0 %v2019, 32
      %v2199 = vpop.permute.xlu0 %2198
      %2200 = vrot.lane.b32.xlu0 %v2020, 32
      %v2201 = vpop.permute.xlu0 %2200
      %2202 = vrot.lane.b32.xlu0 %v2021, 32
      %v2203 = vpop.permute.xlu0 %2202
      %2204 = vrot.lane.b32.xlu0 %v2022, 32
      %v2205 = vpop.permute.xlu0 %2204
      %2206 = vrot.lane.b32.xlu0 %v2023, 32
      %v2207 = vpop.permute.xlu0 %2206
      %2208 = vrot.lane.b32.xlu0 %v2024, 32
      %v2209 = vpop.permute.xlu0 %2208
      %2210 = vrot.lane.b32.xlu0 %v2025, 32
      %v2211 = vpop.permute.xlu0 %2210
      %2212 = vrot.lane.b32.xlu0 %v2026, 32
      %v2213 = vpop.permute.xlu0 %2212
      %2214 = vrot.lane.b32.xlu0 %v2027, 32
      %v2215 = vpop.permute.xlu0 %2214
      %2216 = vrot.lane.b32.xlu0 %v2028, 32
      %v2217 = vpop.permute.xlu0 %2216
      %2218 = vrot.lane.b32.xlu0 %v2029, 32
      %v2219 = vpop.permute.xlu0 %2218
      %2220 = vrot.lane.b32.xlu0 %v2030, 32
      %v2221 = vpop.permute.xlu0 %2220
      %2222 = vrot.lane.b32.xlu0 %v2031, 32
      %v2223 = vpop.permute.xlu0 %2222
      %vm2288 = vcmask 326912
      %2289 = vst.msk [vmem:[#allocation4] sm:$0xff] %vm2288, %v2097
      %2290 = vst.msk [vmem:[#allocation4 + $0x8] sm:$0xff] %vm2288, %v2099
      %2291 = vst.msk [vmem:[#allocation4 + $0x10] sm:$0xff] %vm2288, %v2101
      %2292 = vst.msk [vmem:[#allocation4 + $0x18] sm:$0xff] %vm2288, %v2103
      %2293 = vst.msk [vmem:[#allocation4 + $0x20] sm:$0xff] %vm2288, %v2105
      %2294 = vst.msk [vmem:[#allocation4 + $0x28] sm:$0xff] %vm2288, %v2107
      %2295 = vst.msk [vmem:[#allocation4 + $0x30] sm:$0xff] %vm2288, %v2109
      %2296 = vst.msk [vmem:[#allocation4 + $0x38] sm:$0xff] %vm2288, %v2111
      %2297 = vst.msk [vmem:[#allocation4 + $0x40] sm:$0xff] %vm2288, %v2113
      %2298 = vst.msk [vmem:[#allocation4 + $0x48] sm:$0xff] %vm2288, %v2115
      %2299 = vst.msk [vmem:[#allocation4 + $0x50] sm:$0xff] %vm2288, %v2117
      %2300 = vst.msk [vmem:[#allocation4 + $0x58] sm:$0xff] %vm2288, %v2119
      %2301 = vst.msk [vmem:[#allocation4 + $0x60] sm:$0xff] %vm2288, %v2121
      %2302 = vst.msk [vmem:[#allocation4 + $0x68] sm:$0xff] %vm2288, %v2123
      %2303 = vst.msk [vmem:[#allocation4 + $0x70] sm:$0xff] %vm2288, %v2125
      %2304 = vst.msk [vmem:[#allocation4 + $0x78] sm:$0xff] %vm2288, %v2127
      %2305 = vst.msk [vmem:[#allocation4 + $0x80] sm:$0xff] %vm2288, %v2129
      %2306 = vst.msk [vmem:[#allocation4 + $0x88] sm:$0xff] %vm2288, %v2131
      %2307 = vst.msk [vmem:[#allocation4 + $0x90] sm:$0xff] %vm2288, %v2133
      %2308 = vst.msk [vmem:[#allocation4 + $0x98] sm:$0xff] %vm2288, %v2135
      %2309 = vst.msk [vmem:[#allocation4 + $0xa0] sm:$0xff] %vm2288, %v2137
      %2310 = vst.msk [vmem:[#allocation4 + $0xa8] sm:$0xff] %vm2288, %v2139
      %2311 = vst.msk [vmem:[#allocation4 + $0xb0] sm:$0xff] %vm2288, %v2141
      %2312 = vst.msk [vmem:[#allocation4 + $0xb8] sm:$0xff] %vm2288, %v2143
      %2313 = vst.msk [vmem:[#allocation4 + $0xc0] sm:$0xff] %vm2288, %v2145
      %2314 = vst.msk [vmem:[#allocation4 + $0xc8] sm:$0xff] %vm2288, %v2147
      %2315 = vst.msk [vmem:[#allocation4 + $0xd0] sm:$0xff] %vm2288, %v2149
      %2316 = vst.msk [vmem:[#allocation4 + $0xd8] sm:$0xff] %vm2288, %v2151
      %2317 = vst.msk [vmem:[#allocation4 + $0xe0] sm:$0xff] %vm2288, %v2153
      %2318 = vst.msk [vmem:[#allocation4 + $0xe8] sm:$0xff] %vm2288, %v2155
      %2319 = vst.msk [vmem:[#allocation4 + $0xf0] sm:$0xff] %vm2288, %v2157
      %2320 = vst.msk [vmem:[#allocation4 + $0xf8] sm:$0xff] %vm2288, %v2159
      %2321 = vst.msk [vmem:[#allocation4 + $0x100] sm:$0xff] %vm2288, %v2161
      %2322 = vst.msk [vmem:[#allocation4 + $0x108] sm:$0xff] %vm2288, %v2163
      %2323 = vst.msk [vmem:[#allocation4 + $0x110] sm:$0xff] %vm2288, %v2165
      %2324 = vst.msk [vmem:[#allocation4 + $0x118] sm:$0xff] %vm2288, %v2167
      %2325 = vst.msk [vmem:[#allocation4 + $0x120] sm:$0xff] %vm2288, %v2169
      %2326 = vst.msk [vmem:[#allocation4 + $0x128] sm:$0xff] %vm2288, %v2171
      %2327 = vst.msk [vmem:[#allocation4 + $0x130] sm:$0xff] %vm2288, %v2173
      %2328 = vst.msk [vmem:[#allocation4 + $0x138] sm:$0xff] %vm2288, %v2175
      %2329 = vst.msk [vmem:[#allocation4 + $0x140] sm:$0xff] %vm2288, %v2177
      %2330 = vst.msk [vmem:[#allocation4 + $0x148] sm:$0xff] %vm2288, %v2179
      %2331 = vst.msk [vmem:[#allocation4 + $0x150] sm:$0xff] %vm2288, %v2181
      %2332 = vst.msk [vmem:[#allocation4 + $0x158] sm:$0xff] %vm2288, %v2183
      %2333 = vst.msk [vmem:[#allocation4 + $0x160] sm:$0xff] %vm2288, %v2185
      %2334 = vst.msk [vmem:[#allocation4 + $0x168] sm:$0xff] %vm2288, %v2187
      %2335 = vst.msk [vmem:[#allocation4 + $0x170] sm:$0xff] %vm2288, %v2189
      %2336 = vst.msk [vmem:[#allocation4 + $0x178] sm:$0xff] %vm2288, %v2191
      %2337 = vst.msk [vmem:[#allocation4 + $0x180] sm:$0xff] %vm2288, %v2193
      %2338 = vst.msk [vmem:[#allocation4 + $0x188] sm:$0xff] %vm2288, %v2195
      %2339 = vst.msk [vmem:[#allocation4 + $0x190] sm:$0xff] %vm2288, %v2197
      %2340 = vst.msk [vmem:[#allocation4 + $0x198] sm:$0xff] %vm2288, %v2199
      %2341 = vst.msk [vmem:[#allocation4 + $0x1a0] sm:$0xff] %vm2288, %v2201
      %2342 = vst.msk [vmem:[#allocation4 + $0x1a8] sm:$0xff] %vm2288, %v2203
      %2343 = vst.msk [vmem:[#allocation4 + $0x1b0] sm:$0xff] %vm2288, %v2205
      %2344 = vst.msk [vmem:[#allocation4 + $0x1b8] sm:$0xff] %vm2288, %v2207
      %2345 = vst.msk [vmem:[#allocation4 + $0x1c0] sm:$0xff] %vm2288, %v2209
      %2346 = vst.msk [vmem:[#allocation4 + $0x1c8] sm:$0xff] %vm2288, %v2211
      %2347 = vst.msk [vmem:[#allocation4 + $0x1d0] sm:$0xff] %vm2288, %v2213
      %2348 = vst.msk [vmem:[#allocation4 + $0x1d8] sm:$0xff] %vm2288, %v2215
      %2349 = vst.msk [vmem:[#allocation4 + $0x1e0] sm:$0xff] %vm2288, %v2217
      %2350 = vst.msk [vmem:[#allocation4 + $0x1e8] sm:$0xff] %vm2288, %v2219
      %2351 = vst.msk [vmem:[#allocation4 + $0x1f0] sm:$0xff] %vm2288, %v2221
      %2352 = vst.msk [vmem:[#allocation4 + $0x1f8] sm:$0xff] %vm2288, %v2223
      %v2353 = vld [vmem:[%s619 + $0x9] sm:$0xff]
      %v2354 = vld [vmem:[%s619 + $0x11] sm:$0xff]
      %v2355 = vld [vmem:[%s619 + $0x29] sm:$0xff]
      %v2356 = vld [vmem:[%s619 + $0x31] sm:$0xff]
      %v2357 = vld [vmem:[%s619 + $0x49] sm:$0xff]
      %v2358 = vld [vmem:[%s619 + $0x51] sm:$0xff]
      %v2359 = vld [vmem:[%s619 + $0x69] sm:$0xff]
      %v2360 = vld [vmem:[%s619 + $0x71] sm:$0xff]
      %v2361 = vld [vmem:[%s619 + $0x89] sm:$0xff]
      %v2362 = vld [vmem:[%s619 + $0x91] sm:$0xff]
      %v2363 = vld [vmem:[%s619 + $0xa9] sm:$0xff]
      %v2364 = vld [vmem:[%s619 + $0xb1] sm:$0xff]
      %v2365 = vld [vmem:[%s619 + $0xc9] sm:$0xff]
      %v2366 = vld [vmem:[%s619 + $0xd1] sm:$0xff]
      %v2367 = vld [vmem:[%s619 + $0xe9] sm:$0xff]
      %v2368 = vld [vmem:[%s619 + $0xf1] sm:$0xff]
      %v2369 = vld [vmem:[%s619 + $0x109] sm:$0xff]
      %v2370 = vld [vmem:[%s619 + $0x111] sm:$0xff]
      %v2371 = vld [vmem:[%s619 + $0x129] sm:$0xff]
      %v2372 = vld [vmem:[%s619 + $0x131] sm:$0xff]
      %v2373 = vld [vmem:[%s619 + $0x149] sm:$0xff]
      %v2374 = vld [vmem:[%s619 + $0x151] sm:$0xff]
      %v2375 = vld [vmem:[%s619 + $0x169] sm:$0xff]
      %v2376 = vld [vmem:[%s619 + $0x171] sm:$0xff]
      %v2377 = vld [vmem:[%s619 + $0x189] sm:$0xff]
      %v2378 = vld [vmem:[%s619 + $0x191] sm:$0xff]
      %v2379 = vld [vmem:[%s619 + $0x1a9] sm:$0xff]
      %v2380 = vld [vmem:[%s619 + $0x1b1] sm:$0xff]
      %v2381 = vld [vmem:[%s619 + $0x1c9] sm:$0xff]
      %v2382 = vld [vmem:[%s619 + $0x1d1] sm:$0xff]
      %v2383 = vld [vmem:[%s619 + $0x1e9] sm:$0xff]
      %v2384 = vld [vmem:[%s619 + $0x1f1] sm:$0xff]
      %v2385 = vld [vmem:[%s619 + $0x249] sm:$0xff]
      %v2386 = vld [vmem:[%s619 + $0x251] sm:$0xff]
      %v2387 = vld [vmem:[%s619 + $0x269] sm:$0xff]
      %v2388 = vld [vmem:[%s619 + $0x271] sm:$0xff]
      %v2389 = vld [vmem:[%s619 + $0x289] sm:$0xff]
      %v2390 = vld [vmem:[%s619 + $0x291] sm:$0xff]
      %v2391 = vld [vmem:[%s619 + $0x2a9] sm:$0xff]
      %v2392 = vld [vmem:[%s619 + $0x2b1] sm:$0xff]
      %v2393 = vld [vmem:[%s619 + $0x2c9] sm:$0xff]
      %v2394 = vld [vmem:[%s619 + $0x2d1] sm:$0xff]
      %v2395 = vld [vmem:[%s619 + $0x2e9] sm:$0xff]
      %v2396 = vld [vmem:[%s619 + $0x2f1] sm:$0xff]
      %v2397 = vld [vmem:[%s619 + $0x309] sm:$0xff]
      %v2398 = vld [vmem:[%s619 + $0x311] sm:$0xff]
      %v2399 = vld [vmem:[%s619 + $0x329] sm:$0xff]
      %v2400 = vld [vmem:[%s619 + $0x331] sm:$0xff]
      %v2401 = vld [vmem:[%s619 + $0x349] sm:$0xff]
      %v2402 = vld [vmem:[%s619 + $0x351] sm:$0xff]
      %v2403 = vld [vmem:[%s619 + $0x369] sm:$0xff]
      %v2404 = vld [vmem:[%s619 + $0x371] sm:$0xff]
      %v2405 = vld [vmem:[%s619 + $0x389] sm:$0xff]
      %v2406 = vld [vmem:[%s619 + $0x391] sm:$0xff]
      %v2407 = vld [vmem:[%s619 + $0x3a9] sm:$0xff]
      %v2408 = vld [vmem:[%s619 + $0x3b1] sm:$0xff]
      %v2409 = vld [vmem:[%s619 + $0x3c9] sm:$0xff]
      %v2410 = vld [vmem:[%s619 + $0x3d1] sm:$0xff]
      %v2411 = vld [vmem:[%s619 + $0x3e9] sm:$0xff]
      %v2412 = vld [vmem:[%s619 + $0x3f1] sm:$0xff]
      %v2413 = vld [vmem:[%s619 + $0x409] sm:$0xff]
      %v2414 = vld [vmem:[%s619 + $0x411] sm:$0xff]
      %v2415 = vld [vmem:[%s619 + $0x429] sm:$0xff]
      %v2416 = vld [vmem:[%s619 + $0x431] sm:$0xff]
      %2481 = vrot.lane.b32.xlu0 %v2353, 40
      %v2482 = vpop.permute.xlu0 %2481
      %2483 = vrot.lane.b32.xlu0 %v2354, 40
      %v2484 = vpop.permute.xlu0 %2483
      %2485 = vrot.lane.b32.xlu0 %v2355, 40
      %v2486 = vpop.permute.xlu0 %2485
      %2487 = vrot.lane.b32.xlu0 %v2356, 40
      %v2488 = vpop.permute.xlu0 %2487
      %2489 = vrot.lane.b32.xlu0 %v2357, 40
      %v2490 = vpop.permute.xlu0 %2489
      %2491 = vrot.lane.b32.xlu0 %v2358, 40
      %v2492 = vpop.permute.xlu0 %2491
      %2493 = vrot.lane.b32.xlu0 %v2359, 40
      %v2494 = vpop.permute.xlu0 %2493
      %2495 = vrot.lane.b32.xlu0 %v2360, 40
      %v2496 = vpop.permute.xlu0 %2495
      %2497 = vrot.lane.b32.xlu0 %v2361, 40
      %v2498 = vpop.permute.xlu0 %2497
      %2499 = vrot.lane.b32.xlu0 %v2362, 40
      %v2500 = vpop.permute.xlu0 %2499
      %2501 = vrot.lane.b32.xlu0 %v2363, 40
      %v2502 = vpop.permute.xlu0 %2501
      %2503 = vrot.lane.b32.xlu0 %v2364, 40
      %v2504 = vpop.permute.xlu0 %2503
      %2505 = vrot.lane.b32.xlu0 %v2365, 40
      %v2506 = vpop.permute.xlu0 %2505
      %2507 = vrot.lane.b32.xlu0 %v2366, 40
      %v2508 = vpop.permute.xlu0 %2507
      %2509 = vrot.lane.b32.xlu0 %v2367, 40
      %v2510 = vpop.permute.xlu0 %2509
      %2511 = vrot.lane.b32.xlu0 %v2368, 40
      %v2512 = vpop.permute.xlu0 %2511
      %2513 = vrot.lane.b32.xlu0 %v2369, 40
      %v2514 = vpop.permute.xlu0 %2513
      %2515 = vrot.lane.b32.xlu0 %v2370, 40
      %v2516 = vpop.permute.xlu0 %2515
      %2517 = vrot.lane.b32.xlu0 %v2371, 40
      %v2518 = vpop.permute.xlu0 %2517
      %2519 = vrot.lane.b32.xlu0 %v2372, 40
      %v2520 = vpop.permute.xlu0 %2519
      %2521 = vrot.lane.b32.xlu0 %v2373, 40
      %v2522 = vpop.permute.xlu0 %2521
      %2523 = vrot.lane.b32.xlu0 %v2374, 40
      %v2524 = vpop.permute.xlu0 %2523
      %2525 = vrot.lane.b32.xlu0 %v2375, 40
      %v2526 = vpop.permute.xlu0 %2525
      %2527 = vrot.lane.b32.xlu0 %v2376, 40
      %v2528 = vpop.permute.xlu0 %2527
      %2529 = vrot.lane.b32.xlu0 %v2377, 40
      %v2530 = vpop.permute.xlu0 %2529
      %2531 = vrot.lane.b32.xlu0 %v2378, 40
      %v2532 = vpop.permute.xlu0 %2531
      %2533 = vrot.lane.b32.xlu0 %v2379, 40
      %v2534 = vpop.permute.xlu0 %2533
      %2535 = vrot.lane.b32.xlu0 %v2380, 40
      %v2536 = vpop.permute.xlu0 %2535
      %2537 = vrot.lane.b32.xlu0 %v2381, 40
      %v2538 = vpop.permute.xlu0 %2537
      %2539 = vrot.lane.b32.xlu0 %v2382, 40
      %v2540 = vpop.permute.xlu0 %2539
      %2541 = vrot.lane.b32.xlu0 %v2383, 40
      %v2542 = vpop.permute.xlu0 %2541
      %2543 = vrot.lane.b32.xlu0 %v2384, 40
      %v2544 = vpop.permute.xlu0 %2543
      %2545 = vrot.lane.b32.xlu0 %v2385, 40
      %v2546 = vpop.permute.xlu0 %2545
      %2547 = vrot.lane.b32.xlu0 %v2386, 40
      %v2548 = vpop.permute.xlu0 %2547
      %2549 = vrot.lane.b32.xlu0 %v2387, 40
      %v2550 = vpop.permute.xlu0 %2549
      %2551 = vrot.lane.b32.xlu0 %v2388, 40
      %v2552 = vpop.permute.xlu0 %2551
      %2553 = vrot.lane.b32.xlu0 %v2389, 40
      %v2554 = vpop.permute.xlu0 %2553
      %2555 = vrot.lane.b32.xlu0 %v2390, 40
      %v2556 = vpop.permute.xlu0 %2555
      %2557 = vrot.lane.b32.xlu0 %v2391, 40
      %v2558 = vpop.permute.xlu0 %2557
      %2559 = vrot.lane.b32.xlu0 %v2392, 40
      %v2560 = vpop.permute.xlu0 %2559
      %2561 = vrot.lane.b32.xlu0 %v2393, 40
      %v2562 = vpop.permute.xlu0 %2561
      %2563 = vrot.lane.b32.xlu0 %v2394, 40
      %v2564 = vpop.permute.xlu0 %2563
      %2565 = vrot.lane.b32.xlu0 %v2395, 40
      %v2566 = vpop.permute.xlu0 %2565
      %2567 = vrot.lane.b32.xlu0 %v2396, 40
      %v2568 = vpop.permute.xlu0 %2567
      %2569 = vrot.lane.b32.xlu0 %v2397, 40
      %v2570 = vpop.permute.xlu0 %2569
      %2571 = vrot.lane.b32.xlu0 %v2398, 40
      %v2572 = vpop.permute.xlu0 %2571
      %2573 = vrot.lane.b32.xlu0 %v2399, 40
      %v2574 = vpop.permute.xlu0 %2573
      %2575 = vrot.lane.b32.xlu0 %v2400, 40
      %v2576 = vpop.permute.xlu0 %2575
      %2577 = vrot.lane.b32.xlu0 %v2401, 40
      %v2578 = vpop.permute.xlu0 %2577
      %2579 = vrot.lane.b32.xlu0 %v2402, 40
      %v2580 = vpop.permute.xlu0 %2579
      %2581 = vrot.lane.b32.xlu0 %v2403, 40
      %v2582 = vpop.permute.xlu0 %2581
      %2583 = vrot.lane.b32.xlu0 %v2404, 40
      %v2584 = vpop.permute.xlu0 %2583
      %2585 = vrot.lane.b32.xlu0 %v2405, 40
      %v2586 = vpop.permute.xlu0 %2585
      %2587 = vrot.lane.b32.xlu0 %v2406, 40
      %v2588 = vpop.permute.xlu0 %2587
      %2589 = vrot.lane.b32.xlu0 %v2407, 40
      %v2590 = vpop.permute.xlu0 %2589
      %2591 = vrot.lane.b32.xlu0 %v2408, 40
      %v2592 = vpop.permute.xlu0 %2591
      %2593 = vrot.lane.b32.xlu0 %v2409, 40
      %v2594 = vpop.permute.xlu0 %2593
      %2595 = vrot.lane.b32.xlu0 %v2410, 40
      %v2596 = vpop.permute.xlu0 %2595
      %2597 = vrot.lane.b32.xlu0 %v2411, 40
      %v2598 = vpop.permute.xlu0 %2597
      %2599 = vrot.lane.b32.xlu0 %v2412, 40
      %v2600 = vpop.permute.xlu0 %2599
      %2601 = vrot.lane.b32.xlu0 %v2413, 40
      %v2602 = vpop.permute.xlu0 %2601
      %2603 = vrot.lane.b32.xlu0 %v2414, 40
      %v2604 = vpop.permute.xlu0 %2603
      %2605 = vrot.lane.b32.xlu0 %v2415, 40
      %v2606 = vpop.permute.xlu0 %2605
      %2607 = vrot.lane.b32.xlu0 %v2416, 40
      %v2608 = vpop.permute.xlu0 %2607
      %vm2673 = vcmask 392512
      %2674 = vst.msk [vmem:[#allocation4] sm:$0xff] %vm2673, %v2482
      %2675 = vst.msk [vmem:[#allocation4 + $0x8] sm:$0xff] %vm2673, %v2484
      %2676 = vst.msk [vmem:[#allocation4 + $0x10] sm:$0xff] %vm2673, %v2486
      %2677 = vst.msk [vmem:[#allocation4 + $0x18] sm:$0xff] %vm2673, %v2488
      %2678 = vst.msk [vmem:[#allocation4 + $0x20] sm:$0xff] %vm2673, %v2490
      %2679 = vst.msk [vmem:[#allocation4 + $0x28] sm:$0xff] %vm2673, %v2492
      %2680 = vst.msk [vmem:[#allocation4 + $0x30] sm:$0xff] %vm2673, %v2494
      %2681 = vst.msk [vmem:[#allocation4 + $0x38] sm:$0xff] %vm2673, %v2496
      %2682 = vst.msk [vmem:[#allocation4 + $0x40] sm:$0xff] %vm2673, %v2498
      %2683 = vst.msk [vmem:[#allocation4 + $0x48] sm:$0xff] %vm2673, %v2500
      %2684 = vst.msk [vmem:[#allocation4 + $0x50] sm:$0xff] %vm2673, %v2502
      %2685 = vst.msk [vmem:[#allocation4 + $0x58] sm:$0xff] %vm2673, %v2504
      %2686 = vst.msk [vmem:[#allocation4 + $0x60] sm:$0xff] %vm2673, %v2506
      %2687 = vst.msk [vmem:[#allocation4 + $0x68] sm:$0xff] %vm2673, %v2508
      %2688 = vst.msk [vmem:[#allocation4 + $0x70] sm:$0xff] %vm2673, %v2510
      %2689 = vst.msk [vmem:[#allocation4 + $0x78] sm:$0xff] %vm2673, %v2512
      %2690 = vst.msk [vmem:[#allocation4 + $0x80] sm:$0xff] %vm2673, %v2514
      %2691 = vst.msk [vmem:[#allocation4 + $0x88] sm:$0xff] %vm2673, %v2516
      %2692 = vst.msk [vmem:[#allocation4 + $0x90] sm:$0xff] %vm2673, %v2518
      %2693 = vst.msk [vmem:[#allocation4 + $0x98] sm:$0xff] %vm2673, %v2520
      %2694 = vst.msk [vmem:[#allocation4 + $0xa0] sm:$0xff] %vm2673, %v2522
      %2695 = vst.msk [vmem:[#allocation4 + $0xa8] sm:$0xff] %vm2673, %v2524
      %2696 = vst.msk [vmem:[#allocation4 + $0xb0] sm:$0xff] %vm2673, %v2526
      %2697 = vst.msk [vmem:[#allocation4 + $0xb8] sm:$0xff] %vm2673, %v2528
      %2698 = vst.msk [vmem:[#allocation4 + $0xc0] sm:$0xff] %vm2673, %v2530
      %2699 = vst.msk [vmem:[#allocation4 + $0xc8] sm:$0xff] %vm2673, %v2532
      %2700 = vst.msk [vmem:[#allocation4 + $0xd0] sm:$0xff] %vm2673, %v2534
      %2701 = vst.msk [vmem:[#allocation4 + $0xd8] sm:$0xff] %vm2673, %v2536
      %2702 = vst.msk [vmem:[#allocation4 + $0xe0] sm:$0xff] %vm2673, %v2538
      %2703 = vst.msk [vmem:[#allocation4 + $0xe8] sm:$0xff] %vm2673, %v2540
      %2704 = vst.msk [vmem:[#allocation4 + $0xf0] sm:$0xff] %vm2673, %v2542
      %2705 = vst.msk [vmem:[#allocation4 + $0xf8] sm:$0xff] %vm2673, %v2544
      %2706 = vst.msk [vmem:[#allocation4 + $0x100] sm:$0xff] %vm2673, %v2546
      %2707 = vst.msk [vmem:[#allocation4 + $0x108] sm:$0xff] %vm2673, %v2548
      %2708 = vst.msk [vmem:[#allocation4 + $0x110] sm:$0xff] %vm2673, %v2550
      %2709 = vst.msk [vmem:[#allocation4 + $0x118] sm:$0xff] %vm2673, %v2552
      %2710 = vst.msk [vmem:[#allocation4 + $0x120] sm:$0xff] %vm2673, %v2554
      %2711 = vst.msk [vmem:[#allocation4 + $0x128] sm:$0xff] %vm2673, %v2556
      %2712 = vst.msk [vmem:[#allocation4 + $0x130] sm:$0xff] %vm2673, %v2558
      %2713 = vst.msk [vmem:[#allocation4 + $0x138] sm:$0xff] %vm2673, %v2560
      %2714 = vst.msk [vmem:[#allocation4 + $0x140] sm:$0xff] %vm2673, %v2562
      %2715 = vst.msk [vmem:[#allocation4 + $0x148] sm:$0xff] %vm2673, %v2564
      %2716 = vst.msk [vmem:[#allocation4 + $0x150] sm:$0xff] %vm2673, %v2566
      %2717 = vst.msk [vmem:[#allocation4 + $0x158] sm:$0xff] %vm2673, %v2568
      %2718 = vst.msk [vmem:[#allocation4 + $0x160] sm:$0xff] %vm2673, %v2570
      %2719 = vst.msk [vmem:[#allocation4 + $0x168] sm:$0xff] %vm2673, %v2572
      %2720 = vst.msk [vmem:[#allocation4 + $0x170] sm:$0xff] %vm2673, %v2574
      %2721 = vst.msk [vmem:[#allocation4 + $0x178] sm:$0xff] %vm2673, %v2576
      %2722 = vst.msk [vmem:[#allocation4 + $0x180] sm:$0xff] %vm2673, %v2578
      %2723 = vst.msk [vmem:[#allocation4 + $0x188] sm:$0xff] %vm2673, %v2580
      %2724 = vst.msk [vmem:[#allocation4 + $0x190] sm:$0xff] %vm2673, %v2582
      %2725 = vst.msk [vmem:[#allocation4 + $0x198] sm:$0xff] %vm2673, %v2584
      %2726 = vst.msk [vmem:[#allocation4 + $0x1a0] sm:$0xff] %vm2673, %v2586
      %2727 = vst.msk [vmem:[#allocation4 + $0x1a8] sm:$0xff] %vm2673, %v2588
      %2728 = vst.msk [vmem:[#allocation4 + $0x1b0] sm:$0xff] %vm2673, %v2590
      %2729 = vst.msk [vmem:[#allocation4 + $0x1b8] sm:$0xff] %vm2673, %v2592
      %2730 = vst.msk [vmem:[#allocation4 + $0x1c0] sm:$0xff] %vm2673, %v2594
      %2731 = vst.msk [vmem:[#allocation4 + $0x1c8] sm:$0xff] %vm2673, %v2596
      %2732 = vst.msk [vmem:[#allocation4 + $0x1d0] sm:$0xff] %vm2673, %v2598
      %2733 = vst.msk [vmem:[#allocation4 + $0x1d8] sm:$0xff] %vm2673, %v2600
      %2734 = vst.msk [vmem:[#allocation4 + $0x1e0] sm:$0xff] %vm2673, %v2602
      %2735 = vst.msk [vmem:[#allocation4 + $0x1e8] sm:$0xff] %vm2673, %v2604
      %2736 = vst.msk [vmem:[#allocation4 + $0x1f0] sm:$0xff] %vm2673, %v2606
      %2737 = vst.msk [vmem:[#allocation4 + $0x1f8] sm:$0xff] %vm2673, %v2608
      %s2738 = scalar_lea.vmem [#allocation3], 64
      %v2739 = vld [vmem:[%s2738 + $0x7] sm:$0xff]
      %v2740 = vld [vmem:[%s2738 + $0xf] sm:$0xff]
      %v2741 = vld [vmem:[%s2738 + $0x27] sm:$0xff]
      %v2742 = vld [vmem:[%s2738 + $0x2f] sm:$0xff]
      %v2743 = vld [vmem:[%s2738 + $0x47] sm:$0xff]
      %v2744 = vld [vmem:[%s2738 + $0x4f] sm:$0xff]
      %v2745 = vld [vmem:[%s2738 + $0x67] sm:$0xff]
      %v2746 = vld [vmem:[%s2738 + $0x6f] sm:$0xff]
      %v2747 = vld [vmem:[%s2738 + $0x87] sm:$0xff]
      %v2748 = vld [vmem:[%s2738 + $0x8f] sm:$0xff]
      %v2749 = vld [vmem:[%s2738 + $0xa7] sm:$0xff]
      %v2750 = vld [vmem:[%s2738 + $0xaf] sm:$0xff]
      %v2751 = vld [vmem:[%s2738 + $0xc7] sm:$0xff]
      %v2752 = vld [vmem:[%s2738 + $0xcf] sm:$0xff]
      %v2753 = vld [vmem:[%s2738 + $0xe7] sm:$0xff]
      %v2754 = vld [vmem:[%s2738 + $0xef] sm:$0xff]
      %v2755 = vld [vmem:[%s2738 + $0x107] sm:$0xff]
      %v2756 = vld [vmem:[%s2738 + $0x10f] sm:$0xff]
      %v2757 = vld [vmem:[%s2738 + $0x127] sm:$0xff]
      %v2758 = vld [vmem:[%s2738 + $0x12f] sm:$0xff]
      %v2759 = vld [vmem:[%s2738 + $0x147] sm:$0xff]
      %v2760 = vld [vmem:[%s2738 + $0x14f] sm:$0xff]
      %v2761 = vld [vmem:[%s2738 + $0x167] sm:$0xff]
      %v2762 = vld [vmem:[%s2738 + $0x16f] sm:$0xff]
      %v2763 = vld [vmem:[%s2738 + $0x187] sm:$0xff]
      %v2764 = vld [vmem:[%s2738 + $0x18f] sm:$0xff]
      %v2765 = vld [vmem:[%s2738 + $0x1a7] sm:$0xff]
      %v2766 = vld [vmem:[%s2738 + $0x1af] sm:$0xff]
      %v2767 = vld [vmem:[%s2738 + $0x1c7] sm:$0xff]
      %v2768 = vld [vmem:[%s2738 + $0x1cf] sm:$0xff]
      %v2769 = vld [vmem:[%s2738 + $0x1e7] sm:$0xff]
      %v2770 = vld [vmem:[%s2738 + $0x1ef] sm:$0xff]
      %v2771 = vld [vmem:[%s2738 + $0x247] sm:$0xff]
      %v2772 = vld [vmem:[%s2738 + $0x24f] sm:$0xff]
      %v2773 = vld [vmem:[%s2738 + $0x267] sm:$0xff]
      %v2774 = vld [vmem:[%s2738 + $0x26f] sm:$0xff]
      %v2775 = vld [vmem:[%s2738 + $0x287] sm:$0xff]
      %v2776 = vld [vmem:[%s2738 + $0x28f] sm:$0xff]
      %v2777 = vld [vmem:[%s2738 + $0x2a7] sm:$0xff]
      %v2778 = vld [vmem:[%s2738 + $0x2af] sm:$0xff]
      %v2779 = vld [vmem:[%s2738 + $0x2c7] sm:$0xff]
      %v2780 = vld [vmem:[%s2738 + $0x2cf] sm:$0xff]
      %v2781 = vld [vmem:[%s2738 + $0x2e7] sm:$0xff]
      %v2782 = vld [vmem:[%s2738 + $0x2ef] sm:$0xff]
      %v2783 = vld [vmem:[%s2738 + $0x307] sm:$0xff]
      %v2784 = vld [vmem:[%s2738 + $0x30f] sm:$0xff]
      %v2785 = vld [vmem:[%s2738 + $0x327] sm:$0xff]
      %v2786 = vld [vmem:[%s2738 + $0x32f] sm:$0xff]
      %v2787 = vld [vmem:[%s2738 + $0x347] sm:$0xff]
      %v2788 = vld [vmem:[%s2738 + $0x34f] sm:$0xff]
      %v2789 = vld [vmem:[%s2738 + $0x367] sm:$0xff]
      %v2790 = vld [vmem:[%s2738 + $0x36f] sm:$0xff]
      %v2791 = vld [vmem:[%s2738 + $0x387] sm:$0xff]
      %v2792 = vld [vmem:[%s2738 + $0x38f] sm:$0xff]
      %v2793 = vld [vmem:[%s2738 + $0x3a7] sm:$0xff]
      %v2794 = vld [vmem:[%s2738 + $0x3af] sm:$0xff]
      %v2795 = vld [vmem:[%s2738 + $0x3c7] sm:$0xff]
      %v2796 = vld [vmem:[%s2738 + $0x3cf] sm:$0xff]
      %v2797 = vld [vmem:[%s2738 + $0x3e7] sm:$0xff]
      %v2798 = vld [vmem:[%s2738 + $0x3ef] sm:$0xff]
      %v2799 = vld [vmem:[%s2738 + $0x407] sm:$0xff]
      %v2800 = vld [vmem:[%s2738 + $0x40f] sm:$0xff]
      %v2801 = vld [vmem:[%s2738 + $0x427] sm:$0xff]
      %v2802 = vld [vmem:[%s2738 + $0x42f] sm:$0xff]
      %2867 = vrot.lane.b32.xlu0 %v2739, 48
      %v2868 = vpop.permute.xlu0 %2867
      %2869 = vrot.lane.b32.xlu0 %v2740, 48
      %v2870 = vpop.permute.xlu0 %2869
      %2871 = vrot.lane.b32.xlu0 %v2741, 48
      %v2872 = vpop.permute.xlu0 %2871
      %2873 = vrot.lane.b32.xlu0 %v2742, 48
      %v2874 = vpop.permute.xlu0 %2873
      %2875 = vrot.lane.b32.xlu0 %v2743, 48
      %v2876 = vpop.permute.xlu0 %2875
      %2877 = vrot.lane.b32.xlu0 %v2744, 48
      %v2878 = vpop.permute.xlu0 %2877
      %2879 = vrot.lane.b32.xlu0 %v2745, 48
      %v2880 = vpop.permute.xlu0 %2879
      %2881 = vrot.lane.b32.xlu0 %v2746, 48
      %v2882 = vpop.permute.xlu0 %2881
      %2883 = vrot.lane.b32.xlu0 %v2747, 48
      %v2884 = vpop.permute.xlu0 %2883
      %2885 = vrot.lane.b32.xlu0 %v2748, 48
      %v2886 = vpop.permute.xlu0 %2885
      %2887 = vrot.lane.b32.xlu0 %v2749, 48
      %v2888 = vpop.permute.xlu0 %2887
      %2889 = vrot.lane.b32.xlu0 %v2750, 48
      %v2890 = vpop.permute.xlu0 %2889
      %2891 = vrot.lane.b32.xlu0 %v2751, 48
      %v2892 = vpop.permute.xlu0 %2891
      %2893 = vrot.lane.b32.xlu0 %v2752, 48
      %v2894 = vpop.permute.xlu0 %2893
      %2895 = vrot.lane.b32.xlu0 %v2753, 48
      %v2896 = vpop.permute.xlu0 %2895
      %2897 = vrot.lane.b32.xlu0 %v2754, 48
      %v2898 = vpop.permute.xlu0 %2897
      %2899 = vrot.lane.b32.xlu0 %v2755, 48
      %v2900 = vpop.permute.xlu0 %2899
      %2901 = vrot.lane.b32.xlu0 %v2756, 48
      %v2902 = vpop.permute.xlu0 %2901
      %2903 = vrot.lane.b32.xlu0 %v2757, 48
      %v2904 = vpop.permute.xlu0 %2903
      %2905 = vrot.lane.b32.xlu0 %v2758, 48
      %v2906 = vpop.permute.xlu0 %2905
      %2907 = vrot.lane.b32.xlu0 %v2759, 48
      %v2908 = vpop.permute.xlu0 %2907
      %2909 = vrot.lane.b32.xlu0 %v2760, 48
      %v2910 = vpop.permute.xlu0 %2909
      %2911 = vrot.lane.b32.xlu0 %v2761, 48
      %v2912 = vpop.permute.xlu0 %2911
      %2913 = vrot.lane.b32.xlu0 %v2762, 48
      %v2914 = vpop.permute.xlu0 %2913
      %2915 = vrot.lane.b32.xlu0 %v2763, 48
      %v2916 = vpop.permute.xlu0 %2915
      %2917 = vrot.lane.b32.xlu0 %v2764, 48
      %v2918 = vpop.permute.xlu0 %2917
      %2919 = vrot.lane.b32.xlu0 %v2765, 48
      %v2920 = vpop.permute.xlu0 %2919
      %2921 = vrot.lane.b32.xlu0 %v2766, 48
      %v2922 = vpop.permute.xlu0 %2921
      %2923 = vrot.lane.b32.xlu0 %v2767, 48
      %v2924 = vpop.permute.xlu0 %2923
      %2925 = vrot.lane.b32.xlu0 %v2768, 48
      %v2926 = vpop.permute.xlu0 %2925
      %2927 = vrot.lane.b32.xlu0 %v2769, 48
      %v2928 = vpop.permute.xlu0 %2927
      %2929 = vrot.lane.b32.xlu0 %v2770, 48
      %v2930 = vpop.permute.xlu0 %2929
      %2931 = vrot.lane.b32.xlu0 %v2771, 48
      %v2932 = vpop.permute.xlu0 %2931
      %2933 = vrot.lane.b32.xlu0 %v2772, 48
      %v2934 = vpop.permute.xlu0 %2933
      %2935 = vrot.lane.b32.xlu0 %v2773, 48
      %v2936 = vpop.permute.xlu0 %2935
      %2937 = vrot.lane.b32.xlu0 %v2774, 48
      %v2938 = vpop.permute.xlu0 %2937
      %2939 = vrot.lane.b32.xlu0 %v2775, 48
      %v2940 = vpop.permute.xlu0 %2939
      %2941 = vrot.lane.b32.xlu0 %v2776, 48
      %v2942 = vpop.permute.xlu0 %2941
      %2943 = vrot.lane.b32.xlu0 %v2777, 48
      %v2944 = vpop.permute.xlu0 %2943
      %2945 = vrot.lane.b32.xlu0 %v2778, 48
      %v2946 = vpop.permute.xlu0 %2945
      %2947 = vrot.lane.b32.xlu0 %v2779, 48
      %v2948 = vpop.permute.xlu0 %2947
      %2949 = vrot.lane.b32.xlu0 %v2780, 48
      %v2950 = vpop.permute.xlu0 %2949
      %2951 = vrot.lane.b32.xlu0 %v2781, 48
      %v2952 = vpop.permute.xlu0 %2951
      %2953 = vrot.lane.b32.xlu0 %v2782, 48
      %v2954 = vpop.permute.xlu0 %2953
      %2955 = vrot.lane.b32.xlu0 %v2783, 48
      %v2956 = vpop.permute.xlu0 %2955
      %2957 = vrot.lane.b32.xlu0 %v2784, 48
      %v2958 = vpop.permute.xlu0 %2957
      %2959 = vrot.lane.b32.xlu0 %v2785, 48
      %v2960 = vpop.permute.xlu0 %2959
      %2961 = vrot.lane.b32.xlu0 %v2786, 48
      %v2962 = vpop.permute.xlu0 %2961
      %2963 = vrot.lane.b32.xlu0 %v2787, 48
      %v2964 = vpop.permute.xlu0 %2963
      %2965 = vrot.lane.b32.xlu0 %v2788, 48
      %v2966 = vpop.permute.xlu0 %2965
      %2967 = vrot.lane.b32.xlu0 %v2789, 48
      %v2968 = vpop.permute.xlu0 %2967
      %2969 = vrot.lane.b32.xlu0 %v2790, 48
      %v2970 = vpop.permute.xlu0 %2969
      %2971 = vrot.lane.b32.xlu0 %v2791, 48
      %v2972 = vpop.permute.xlu0 %2971
      %2973 = vrot.lane.b32.xlu0 %v2792, 48
      %v2974 = vpop.permute.xlu0 %2973
      %2975 = vrot.lane.b32.xlu0 %v2793, 48
      %v2976 = vpop.permute.xlu0 %2975
      %2977 = vrot.lane.b32.xlu0 %v2794, 48
      %v2978 = vpop.permute.xlu0 %2977
      %2979 = vrot.lane.b32.xlu0 %v2795, 48
      %v2980 = vpop.permute.xlu0 %2979
      %2981 = vrot.lane.b32.xlu0 %v2796, 48
      %v2982 = vpop.permute.xlu0 %2981
      %2983 = vrot.lane.b32.xlu0 %v2797, 48
      %v2984 = vpop.permute.xlu0 %2983
      %2985 = vrot.lane.b32.xlu0 %v2798, 48
      %v2986 = vpop.permute.xlu0 %2985
      %2987 = vrot.lane.b32.xlu0 %v2799, 48
      %v2988 = vpop.permute.xlu0 %2987
      %2989 = vrot.lane.b32.xlu0 %v2800, 48
      %v2990 = vpop.permute.xlu0 %2989
      %2991 = vrot.lane.b32.xlu0 %v2801, 48
      %v2992 = vpop.permute.xlu0 %2991
      %2993 = vrot.lane.b32.xlu0 %v2802, 48
      %v2994 = vpop.permute.xlu0 %2993
      %vm3059 = vcmask 458112
      %3060 = vst.msk [vmem:[#allocation4] sm:$0xff] %vm3059, %v2868
      %3061 = vst.msk [vmem:[#allocation4 + $0x8] sm:$0xff] %vm3059, %v2870
      %3062 = vst.msk [vmem:[#allocation4 + $0x10] sm:$0xff] %vm3059, %v2872
      %3063 = vst.msk [vmem:[#allocation4 + $0x18] sm:$0xff] %vm3059, %v2874
      %3064 = vst.msk [vmem:[#allocation4 + $0x20] sm:$0xff] %vm3059, %v2876
      %3065 = vst.msk [vmem:[#allocation4 + $0x28] sm:$0xff] %vm3059, %v2878
      %3066 = vst.msk [vmem:[#allocation4 + $0x30] sm:$0xff] %vm3059, %v2880
      %3067 = vst.msk [vmem:[#allocation4 + $0x38] sm:$0xff] %vm3059, %v2882
      %3068 = vst.msk [vmem:[#allocation4 + $0x40] sm:$0xff] %vm3059, %v2884
      %3069 = vst.msk [vmem:[#allocation4 + $0x48] sm:$0xff] %vm3059, %v2886
      %3070 = vst.msk [vmem:[#allocation4 + $0x50] sm:$0xff] %vm3059, %v2888
      %3071 = vst.msk [vmem:[#allocation4 + $0x58] sm:$0xff] %vm3059, %v2890
      %3072 = vst.msk [vmem:[#allocation4 + $0x60] sm:$0xff] %vm3059, %v2892
      %3073 = vst.msk [vmem:[#allocation4 + $0x68] sm:$0xff] %vm3059, %v2894
      %3074 = vst.msk [vmem:[#allocation4 + $0x70] sm:$0xff] %vm3059, %v2896
      %3075 = vst.msk [vmem:[#allocation4 + $0x78] sm:$0xff] %vm3059, %v2898
      %3076 = vst.msk [vmem:[#allocation4 + $0x80] sm:$0xff] %vm3059, %v2900
      %3077 = vst.msk [vmem:[#allocation4 + $0x88] sm:$0xff] %vm3059, %v2902
      %3078 = vst.msk [vmem:[#allocation4 + $0x90] sm:$0xff] %vm3059, %v2904
      %3079 = vst.msk [vmem:[#allocation4 + $0x98] sm:$0xff] %vm3059, %v2906
      %3080 = vst.msk [vmem:[#allocation4 + $0xa0] sm:$0xff] %vm3059, %v2908
      %3081 = vst.msk [vmem:[#allocation4 + $0xa8] sm:$0xff] %vm3059, %v2910
      %3082 = vst.msk [vmem:[#allocation4 + $0xb0] sm:$0xff] %vm3059, %v2912
      %3083 = vst.msk [vmem:[#allocation4 + $0xb8] sm:$0xff] %vm3059, %v2914
      %3084 = vst.msk [vmem:[#allocation4 + $0xc0] sm:$0xff] %vm3059, %v2916
      %3085 = vst.msk [vmem:[#allocation4 + $0xc8] sm:$0xff] %vm3059, %v2918
      %3086 = vst.msk [vmem:[#allocation4 + $0xd0] sm:$0xff] %vm3059, %v2920
      %3087 = vst.msk [vmem:[#allocation4 + $0xd8] sm:$0xff] %vm3059, %v2922
      %3088 = vst.msk [vmem:[#allocation4 + $0xe0] sm:$0xff] %vm3059, %v2924
      %3089 = vst.msk [vmem:[#allocation4 + $0xe8] sm:$0xff] %vm3059, %v2926
      %3090 = vst.msk [vmem:[#allocation4 + $0xf0] sm:$0xff] %vm3059, %v2928
      %3091 = vst.msk [vmem:[#allocation4 + $0xf8] sm:$0xff] %vm3059, %v2930
      %3092 = vst.msk [vmem:[#allocation4 + $0x100] sm:$0xff] %vm3059, %v2932
      %3093 = vst.msk [vmem:[#allocation4 + $0x108] sm:$0xff] %vm3059, %v2934
      %3094 = vst.msk [vmem:[#allocation4 + $0x110] sm:$0xff] %vm3059, %v2936
      %3095 = vst.msk [vmem:[#allocation4 + $0x118] sm:$0xff] %vm3059, %v2938
      %3096 = vst.msk [vmem:[#allocation4 + $0x120] sm:$0xff] %vm3059, %v2940
      %3097 = vst.msk [vmem:[#allocation4 + $0x128] sm:$0xff] %vm3059, %v2942
      %3098 = vst.msk [vmem:[#allocation4 + $0x130] sm:$0xff] %vm3059, %v2944
      %3099 = vst.msk [vmem:[#allocation4 + $0x138] sm:$0xff] %vm3059, %v2946
      %3100 = vst.msk [vmem:[#allocation4 + $0x140] sm:$0xff] %vm3059, %v2948
      %3101 = vst.msk [vmem:[#allocation4 + $0x148] sm:$0xff] %vm3059, %v2950
      %3102 = vst.msk [vmem:[#allocation4 + $0x150] sm:$0xff] %vm3059, %v2952
      %3103 = vst.msk [vmem:[#allocation4 + $0x158] sm:$0xff] %vm3059, %v2954
      %3104 = vst.msk [vmem:[#allocation4 + $0x160] sm:$0xff] %vm3059, %v2956
      %3105 = vst.msk [vmem:[#allocation4 + $0x168] sm:$0xff] %vm3059, %v2958
      %3106 = vst.msk [vmem:[#allocation4 + $0x170] sm:$0xff] %vm3059, %v2960
      %3107 = vst.msk [vmem:[#allocation4 + $0x178] sm:$0xff] %vm3059, %v2962
      %3108 = vst.msk [vmem:[#allocation4 + $0x180] sm:$0xff] %vm3059, %v2964
      %3109 = vst.msk [vmem:[#allocation4 + $0x188] sm:$0xff] %vm3059, %v2966
      %3110 = vst.msk [vmem:[#allocation4 + $0x190] sm:$0xff] %vm3059, %v2968
      %3111 = vst.msk [vmem:[#allocation4 + $0x198] sm:$0xff] %vm3059, %v2970
      %3112 = vst.msk [vmem:[#allocation4 + $0x1a0] sm:$0xff] %vm3059, %v2972
      %3113 = vst.msk [vmem:[#allocation4 + $0x1a8] sm:$0xff] %vm3059, %v2974
      %3114 = vst.msk [vmem:[#allocation4 + $0x1b0] sm:$0xff] %vm3059, %v2976
      %3115 = vst.msk [vmem:[#allocation4 + $0x1b8] sm:$0xff] %vm3059, %v2978
      %3116 = vst.msk [vmem:[#allocation4 + $0x1c0] sm:$0xff] %vm3059, %v2980
      %3117 = vst.msk [vmem:[#allocation4 + $0x1c8] sm:$0xff] %vm3059, %v2982
      %3118 = vst.msk [vmem:[#allocation4 + $0x1d0] sm:$0xff] %vm3059, %v2984
      %3119 = vst.msk [vmem:[#allocation4 + $0x1d8] sm:$0xff] %vm3059, %v2986
      %3120 = vst.msk [vmem:[#allocation4 + $0x1e0] sm:$0xff] %vm3059, %v2988
      %3121 = vst.msk [vmem:[#allocation4 + $0x1e8] sm:$0xff] %vm3059, %v2990
      %3122 = vst.msk [vmem:[#allocation4 + $0x1f0] sm:$0xff] %vm3059, %v2992
      %3123 = vst.msk [vmem:[#allocation4 + $0x1f8] sm:$0xff] %vm3059, %v2994
      %v3124 = vld [vmem:[%s2738 + $0x8] sm:$0xff]
      %v3125 = vld [vmem:[%s2738 + $0x10] sm:$0xff]
      %v3126 = vld [vmem:[%s2738 + $0x28] sm:$0xff]
      %v3127 = vld [vmem:[%s2738 + $0x30] sm:$0xff]
      %v3128 = vld [vmem:[%s2738 + $0x48] sm:$0xff]
      %v3129 = vld [vmem:[%s2738 + $0x50] sm:$0xff]
      %v3130 = vld [vmem:[%s2738 + $0x68] sm:$0xff]
      %v3131 = vld [vmem:[%s2738 + $0x70] sm:$0xff]
      %v3132 = vld [vmem:[%s2738 + $0x88] sm:$0xff]
      %v3133 = vld [vmem:[%s2738 + $0x90] sm:$0xff]
      %v3134 = vld [vmem:[%s2738 + $0xa8] sm:$0xff]
      %v3135 = vld [vmem:[%s2738 + $0xb0] sm:$0xff]
      %v3136 = vld [vmem:[%s2738 + $0xc8] sm:$0xff]
      %v3137 = vld [vmem:[%s2738 + $0xd0] sm:$0xff]
      %v3138 = vld [vmem:[%s2738 + $0xe8] sm:$0xff]
      %v3139 = vld [vmem:[%s2738 + $0xf0] sm:$0xff]
      %v3140 = vld [vmem:[%s2738 + $0x108] sm:$0xff]
      %v3141 = vld [vmem:[%s2738 + $0x110] sm:$0xff]
      %v3142 = vld [vmem:[%s2738 + $0x128] sm:$0xff]
      %v3143 = vld [vmem:[%s2738 + $0x130] sm:$0xff]
      %v3144 = vld [vmem:[%s2738 + $0x148] sm:$0xff]
      %v3145 = vld [vmem:[%s2738 + $0x150] sm:$0xff]
      %v3146 = vld [vmem:[%s2738 + $0x168] sm:$0xff]
      %v3147 = vld [vmem:[%s2738 + $0x170] sm:$0xff]
      %v3148 = vld [vmem:[%s2738 + $0x188] sm:$0xff]
      %v3149 = vld [vmem:[%s2738 + $0x190] sm:$0xff]
      %v3150 = vld [vmem:[%s2738 + $0x1a8] sm:$0xff]
      %v3151 = vld [vmem:[%s2738 + $0x1b0] sm:$0xff]
      %v3152 = vld [vmem:[%s2738 + $0x1c8] sm:$0xff]
      %v3153 = vld [vmem:[%s2738 + $0x1d0] sm:$0xff]
      %v3154 = vld [vmem:[%s2738 + $0x1e8] sm:$0xff]
      %v3155 = vld [vmem:[%s2738 + $0x1f0] sm:$0xff]
      %v3156 = vld [vmem:[%s2738 + $0x248] sm:$0xff]
      %v3157 = vld [vmem:[%s2738 + $0x250] sm:$0xff]
      %v3158 = vld [vmem:[%s2738 + $0x268] sm:$0xff]
      %v3159 = vld [vmem:[%s2738 + $0x270] sm:$0xff]
      %v3160 = vld [vmem:[%s2738 + $0x288] sm:$0xff]
      %v3161 = vld [vmem:[%s2738 + $0x290] sm:$0xff]
      %v3162 = vld [vmem:[%s2738 + $0x2a8] sm:$0xff]
      %v3163 = vld [vmem:[%s2738 + $0x2b0] sm:$0xff]
      %v3164 = vld [vmem:[%s2738 + $0x2c8] sm:$0xff]
      %v3165 = vld [vmem:[%s2738 + $0x2d0] sm:$0xff]
      %v3166 = vld [vmem:[%s2738 + $0x2e8] sm:$0xff]
      %v3167 = vld [vmem:[%s2738 + $0x2f0] sm:$0xff]
      %v3168 = vld [vmem:[%s2738 + $0x308] sm:$0xff]
      %v3169 = vld [vmem:[%s2738 + $0x310] sm:$0xff]
      %v3170 = vld [vmem:[%s2738 + $0x328] sm:$0xff]
      %v3171 = vld [vmem:[%s2738 + $0x330] sm:$0xff]
      %v3172 = vld [vmem:[%s2738 + $0x348] sm:$0xff]
      %v3173 = vld [vmem:[%s2738 + $0x350] sm:$0xff]
      %v3174 = vld [vmem:[%s2738 + $0x368] sm:$0xff]
      %v3175 = vld [vmem:[%s2738 + $0x370] sm:$0xff]
      %v3176 = vld [vmem:[%s2738 + $0x388] sm:$0xff]
      %v3177 = vld [vmem:[%s2738 + $0x390] sm:$0xff]
      %v3178 = vld [vmem:[%s2738 + $0x3a8] sm:$0xff]
      %v3179 = vld [vmem:[%s2738 + $0x3b0] sm:$0xff]
      %v3180 = vld [vmem:[%s2738 + $0x3c8] sm:$0xff]
      %v3181 = vld [vmem:[%s2738 + $0x3d0] sm:$0xff]
      %v3182 = vld [vmem:[%s2738 + $0x3e8] sm:$0xff]
      %v3183 = vld [vmem:[%s2738 + $0x3f0] sm:$0xff]
      %v3184 = vld [vmem:[%s2738 + $0x408] sm:$0xff]
      %v3185 = vld [vmem:[%s2738 + $0x410] sm:$0xff]
      %v3186 = vld [vmem:[%s2738 + $0x428] sm:$0xff]
      %v3187 = vld [vmem:[%s2738 + $0x430] sm:$0xff]
      %3252 = vrot.lane.b32.xlu0 %v3124, 56
      %v3253 = vpop.permute.xlu0 %3252
      %3254 = vrot.lane.b32.xlu0 %v3125, 56
      %v3255 = vpop.permute.xlu0 %3254
      %3256 = vrot.lane.b32.xlu0 %v3126, 56
      %v3257 = vpop.permute.xlu0 %3256
      %3258 = vrot.lane.b32.xlu0 %v3127, 56
      %v3259 = vpop.permute.xlu0 %3258
      %3260 = vrot.lane.b32.xlu0 %v3128, 56
      %v3261 = vpop.permute.xlu0 %3260
      %3262 = vrot.lane.b32.xlu0 %v3129, 56
      %v3263 = vpop.permute.xlu0 %3262
      %3264 = vrot.lane.b32.xlu0 %v3130, 56
      %v3265 = vpop.permute.xlu0 %3264
      %3266 = vrot.lane.b32.xlu0 %v3131, 56
      %v3267 = vpop.permute.xlu0 %3266
      %3268 = vrot.lane.b32.xlu0 %v3132, 56
      %v3269 = vpop.permute.xlu0 %3268
      %3270 = vrot.lane.b32.xlu0 %v3133, 56
      %v3271 = vpop.permute.xlu0 %3270
      %3272 = vrot.lane.b32.xlu0 %v3134, 56
      %v3273 = vpop.permute.xlu0 %3272
      %3274 = vrot.lane.b32.xlu0 %v3135, 56
      %v3275 = vpop.permute.xlu0 %3274
      %3276 = vrot.lane.b32.xlu0 %v3136, 56
      %v3277 = vpop.permute.xlu0 %3276
      %3278 = vrot.lane.b32.xlu0 %v3137, 56
      %v3279 = vpop.permute.xlu0 %3278
      %3280 = vrot.lane.b32.xlu0 %v3138, 56
      %v3281 = vpop.permute.xlu0 %3280
      %3282 = vrot.lane.b32.xlu0 %v3139, 56
      %v3283 = vpop.permute.xlu0 %3282
      %3284 = vrot.lane.b32.xlu0 %v3140, 56
      %v3285 = vpop.permute.xlu0 %3284
      %3286 = vrot.lane.b32.xlu0 %v3141, 56
      %v3287 = vpop.permute.xlu0 %3286
      %3288 = vrot.lane.b32.xlu0 %v3142, 56
      %v3289 = vpop.permute.xlu0 %3288
      %3290 = vrot.lane.b32.xlu0 %v3143, 56
      %v3291 = vpop.permute.xlu0 %3290
      %3292 = vrot.lane.b32.xlu0 %v3144, 56
      %v3293 = vpop.permute.xlu0 %3292
      %3294 = vrot.lane.b32.xlu0 %v3145, 56
      %v3295 = vpop.permute.xlu0 %3294
      %3296 = vrot.lane.b32.xlu0 %v3146, 56
      %v3297 = vpop.permute.xlu0 %3296
      %3298 = vrot.lane.b32.xlu0 %v3147, 56
      %v3299 = vpop.permute.xlu0 %3298
      %3300 = vrot.lane.b32.xlu0 %v3148, 56
      %v3301 = vpop.permute.xlu0 %3300
      %3302 = vrot.lane.b32.xlu0 %v3149, 56
      %v3303 = vpop.permute.xlu0 %3302
      %3304 = vrot.lane.b32.xlu0 %v3150, 56
      %v3305 = vpop.permute.xlu0 %3304
      %3306 = vrot.lane.b32.xlu0 %v3151, 56
      %v3307 = vpop.permute.xlu0 %3306
      %3308 = vrot.lane.b32.xlu0 %v3152, 56
      %v3309 = vpop.permute.xlu0 %3308
      %3310 = vrot.lane.b32.xlu0 %v3153, 56
      %v3311 = vpop.permute.xlu0 %3310
      %3312 = vrot.lane.b32.xlu0 %v3154, 56
      %v3313 = vpop.permute.xlu0 %3312
      %3314 = vrot.lane.b32.xlu0 %v3155, 56
      %v3315 = vpop.permute.xlu0 %3314
      %3316 = vrot.lane.b32.xlu0 %v3156, 56
      %v3317 = vpop.permute.xlu0 %3316
      %3318 = vrot.lane.b32.xlu0 %v3157, 56
      %v3319 = vpop.permute.xlu0 %3318
      %3320 = vrot.lane.b32.xlu0 %v3158, 56
      %v3321 = vpop.permute.xlu0 %3320
      %3322 = vrot.lane.b32.xlu0 %v3159, 56
      %v3323 = vpop.permute.xlu0 %3322
      %3324 = vrot.lane.b32.xlu0 %v3160, 56
      %v3325 = vpop.permute.xlu0 %3324
      %3326 = vrot.lane.b32.xlu0 %v3161, 56
      %v3327 = vpop.permute.xlu0 %3326
      %3328 = vrot.lane.b32.xlu0 %v3162, 56
      %v3329 = vpop.permute.xlu0 %3328
      %3330 = vrot.lane.b32.xlu0 %v3163, 56
      %v3331 = vpop.permute.xlu0 %3330
      %3332 = vrot.lane.b32.xlu0 %v3164, 56
      %v3333 = vpop.permute.xlu0 %3332
      %3334 = vrot.lane.b32.xlu0 %v3165, 56
      %v3335 = vpop.permute.xlu0 %3334
      %3336 = vrot.lane.b32.xlu0 %v3166, 56
      %v3337 = vpop.permute.xlu0 %3336
      %3338 = vrot.lane.b32.xlu0 %v3167, 56
      %v3339 = vpop.permute.xlu0 %3338
      %3340 = vrot.lane.b32.xlu0 %v3168, 56
      %v3341 = vpop.permute.xlu0 %3340
      %3342 = vrot.lane.b32.xlu0 %v3169, 56
      %v3343 = vpop.permute.xlu0 %3342
      %3344 = vrot.lane.b32.xlu0 %v3170, 56
      %v3345 = vpop.permute.xlu0 %3344
      %3346 = vrot.lane.b32.xlu0 %v3171, 56
      %v3347 = vpop.permute.xlu0 %3346
      %3348 = vrot.lane.b32.xlu0 %v3172, 56
      %v3349 = vpop.permute.xlu0 %3348
      %3350 = vrot.lane.b32.xlu0 %v3173, 56
      %v3351 = vpop.permute.xlu0 %3350
      %3352 = vrot.lane.b32.xlu0 %v3174, 56
      %v3353 = vpop.permute.xlu0 %3352
      %3354 = vrot.lane.b32.xlu0 %v3175, 56
      %v3355 = vpop.permute.xlu0 %3354
      %3356 = vrot.lane.b32.xlu0 %v3176, 56
      %v3357 = vpop.permute.xlu0 %3356
      %3358 = vrot.lane.b32.xlu0 %v3177, 56
      %v3359 = vpop.permute.xlu0 %3358
      %3360 = vrot.lane.b32.xlu0 %v3178, 56
      %v3361 = vpop.permute.xlu0 %3360
      %3362 = vrot.lane.b32.xlu0 %v3179, 56
      %v3363 = vpop.permute.xlu0 %3362
      %3364 = vrot.lane.b32.xlu0 %v3180, 56
      %v3365 = vpop.permute.xlu0 %3364
      %3366 = vrot.lane.b32.xlu0 %v3181, 56
      %v3367 = vpop.permute.xlu0 %3366
      %3368 = vrot.lane.b32.xlu0 %v3182, 56
      %v3369 = vpop.permute.xlu0 %3368
      %3370 = vrot.lane.b32.xlu0 %v3183, 56
      %v3371 = vpop.permute.xlu0 %3370
      %3372 = vrot.lane.b32.xlu0 %v3184, 56
      %v3373 = vpop.permute.xlu0 %3372
      %3374 = vrot.lane.b32.xlu0 %v3185, 56
      %v3375 = vpop.permute.xlu0 %3374
      %3376 = vrot.lane.b32.xlu0 %v3186, 56
      %v3377 = vpop.permute.xlu0 %3376
      %3378 = vrot.lane.b32.xlu0 %v3187, 56
      %v3379 = vpop.permute.xlu0 %3378
      %vm3444 = vcmask 523712
      %3445 = vst.msk [vmem:[#allocation4] sm:$0xff] %vm3444, %v3253
      %3446 = vst.msk [vmem:[#allocation4 + $0x8] sm:$0xff] %vm3444, %v3255
      %3447 = vst.msk [vmem:[#allocation4 + $0x10] sm:$0xff] %vm3444, %v3257
      %3448 = vst.msk [vmem:[#allocation4 + $0x18] sm:$0xff] %vm3444, %v3259
      %3449 = vst.msk [vmem:[#allocation4 + $0x20] sm:$0xff] %vm3444, %v3261
      %3450 = vst.msk [vmem:[#allocation4 + $0x28] sm:$0xff] %vm3444, %v3263
      %3451 = vst.msk [vmem:[#allocation4 + $0x30] sm:$0xff] %vm3444, %v3265
      %3452 = vst.msk [vmem:[#allocation4 + $0x38] sm:$0xff] %vm3444, %v3267
      %3453 = vst.msk [vmem:[#allocation4 + $0x40] sm:$0xff] %vm3444, %v3269
      %3454 = vst.msk [vmem:[#allocation4 + $0x48] sm:$0xff] %vm3444, %v3271
      %3455 = vst.msk [vmem:[#allocation4 + $0x50] sm:$0xff] %vm3444, %v3273
      %3456 = vst.msk [vmem:[#allocation4 + $0x58] sm:$0xff] %vm3444, %v3275
      %3457 = vst.msk [vmem:[#allocation4 + $0x60] sm:$0xff] %vm3444, %v3277
      %3458 = vst.msk [vmem:[#allocation4 + $0x68] sm:$0xff] %vm3444, %v3279
      %3459 = vst.msk [vmem:[#allocation4 + $0x70] sm:$0xff] %vm3444, %v3281
      %3460 = vst.msk [vmem:[#allocation4 + $0x78] sm:$0xff] %vm3444, %v3283
      %3461 = vst.msk [vmem:[#allocation4 + $0x80] sm:$0xff] %vm3444, %v3285
      %3462 = vst.msk [vmem:[#allocation4 + $0x88] sm:$0xff] %vm3444, %v3287
      %3463 = vst.msk [vmem:[#allocation4 + $0x90] sm:$0xff] %vm3444, %v3289
      %3464 = vst.msk [vmem:[#allocation4 + $0x98] sm:$0xff] %vm3444, %v3291
      %3465 = vst.msk [vmem:[#allocation4 + $0xa0] sm:$0xff] %vm3444, %v3293
      %3466 = vst.msk [vmem:[#allocation4 + $0xa8] sm:$0xff] %vm3444, %v3295
      %3467 = vst.msk [vmem:[#allocation4 + $0xb0] sm:$0xff] %vm3444, %v3297
      %3468 = vst.msk [vmem:[#allocation4 + $0xb8] sm:$0xff] %vm3444, %v3299
      %3469 = vst.msk [vmem:[#allocation4 + $0xc0] sm:$0xff] %vm3444, %v3301
      %3470 = vst.msk [vmem:[#allocation4 + $0xc8] sm:$0xff] %vm3444, %v3303
      %3471 = vst.msk [vmem:[#allocation4 + $0xd0] sm:$0xff] %vm3444, %v3305
      %3472 = vst.msk [vmem:[#allocation4 + $0xd8] sm:$0xff] %vm3444, %v3307
      %3473 = vst.msk [vmem:[#allocation4 + $0xe0] sm:$0xff] %vm3444, %v3309
      %3474 = vst.msk [vmem:[#allocation4 + $0xe8] sm:$0xff] %vm3444, %v3311
      %3475 = vst.msk [vmem:[#allocation4 + $0xf0] sm:$0xff] %vm3444, %v3313
      %3476 = vst.msk [vmem:[#allocation4 + $0xf8] sm:$0xff] %vm3444, %v3315
      %3477 = vst.msk [vmem:[#allocation4 + $0x100] sm:$0xff] %vm3444, %v3317
      %3478 = vst.msk [vmem:[#allocation4 + $0x108] sm:$0xff] %vm3444, %v3319
      %3479 = vst.msk [vmem:[#allocation4 + $0x110] sm:$0xff] %vm3444, %v3321
      %3480 = vst.msk [vmem:[#allocation4 + $0x118] sm:$0xff] %vm3444, %v3323
      %3481 = vst.msk [vmem:[#allocation4 + $0x120] sm:$0xff] %vm3444, %v3325
      %3482 = vst.msk [vmem:[#allocation4 + $0x128] sm:$0xff] %vm3444, %v3327
      %3483 = vst.msk [vmem:[#allocation4 + $0x130] sm:$0xff] %vm3444, %v3329
      %3484 = vst.msk [vmem:[#allocation4 + $0x138] sm:$0xff] %vm3444, %v3331
      %3485 = vst.msk [vmem:[#allocation4 + $0x140] sm:$0xff] %vm3444, %v3333
      %3486 = vst.msk [vmem:[#allocation4 + $0x148] sm:$0xff] %vm3444, %v3335
      %3487 = vst.msk [vmem:[#allocation4 + $0x150] sm:$0xff] %vm3444, %v3337
      %3488 = vst.msk [vmem:[#allocation4 + $0x158] sm:$0xff] %vm3444, %v3339
      %3489 = vst.msk [vmem:[#allocation4 + $0x160] sm:$0xff] %vm3444, %v3341
      %3490 = vst.msk [vmem:[#allocation4 + $0x168] sm:$0xff] %vm3444, %v3343
      %3491 = vst.msk [vmem:[#allocation4 + $0x170] sm:$0xff] %vm3444, %v3345
      %3492 = vst.msk [vmem:[#allocation4 + $0x178] sm:$0xff] %vm3444, %v3347
      %3493 = vst.msk [vmem:[#allocation4 + $0x180] sm:$0xff] %vm3444, %v3349
      %3494 = vst.msk [vmem:[#allocation4 + $0x188] sm:$0xff] %vm3444, %v3351
      %3495 = vst.msk [vmem:[#allocation4 + $0x190] sm:$0xff] %vm3444, %v3353
      %3496 = vst.msk [vmem:[#allocation4 + $0x198] sm:$0xff] %vm3444, %v3355
      %3497 = vst.msk [vmem:[#allocation4 + $0x1a0] sm:$0xff] %vm3444, %v3357
      %3498 = vst.msk [vmem:[#allocation4 + $0x1a8] sm:$0xff] %vm3444, %v3359
      %3499 = vst.msk [vmem:[#allocation4 + $0x1b0] sm:$0xff] %vm3444, %v3361
      %3500 = vst.msk [vmem:[#allocation4 + $0x1b8] sm:$0xff] %vm3444, %v3363
      %3501 = vst.msk [vmem:[#allocation4 + $0x1c0] sm:$0xff] %vm3444, %v3365
      %3502 = vst.msk [vmem:[#allocation4 + $0x1c8] sm:$0xff] %vm3444, %v3367
      %3503 = vst.msk [vmem:[#allocation4 + $0x1d0] sm:$0xff] %vm3444, %v3369
      %3504 = vst.msk [vmem:[#allocation4 + $0x1d8] sm:$0xff] %vm3444, %v3371
      %3505 = vst.msk [vmem:[#allocation4 + $0x1e0] sm:$0xff] %vm3444, %v3373
      %3506 = vst.msk [vmem:[#allocation4 + $0x1e8] sm:$0xff] %vm3444, %v3375
      %3507 = vst.msk [vmem:[#allocation4 + $0x1f0] sm:$0xff] %vm3444, %v3377
      %3508 = vst.msk [vmem:[#allocation4 + $0x1f8] sm:$0xff] %vm3444, %v3379
      %v3509 = vld [vmem:[%s2738 + $0x9] sm:$0xff]
      %v3510 = vld [vmem:[%s2738 + $0x11] sm:$0xff]
      %v3511 = vld [vmem:[%s2738 + $0x29] sm:$0xff]
      %v3512 = vld [vmem:[%s2738 + $0x31] sm:$0xff]
      %v3513 = vld [vmem:[%s2738 + $0x49] sm:$0xff]
      %v3514 = vld [vmem:[%s2738 + $0x51] sm:$0xff]
      %v3515 = vld [vmem:[%s2738 + $0x69] sm:$0xff]
      %v3516 = vld [vmem:[%s2738 + $0x71] sm:$0xff]
      %v3517 = vld [vmem:[%s2738 + $0x89] sm:$0xff]
      %v3518 = vld [vmem:[%s2738 + $0x91] sm:$0xff]
      %v3519 = vld [vmem:[%s2738 + $0xa9] sm:$0xff]
      %v3520 = vld [vmem:[%s2738 + $0xb1] sm:$0xff]
      %v3521 = vld [vmem:[%s2738 + $0xc9] sm:$0xff]
      %v3522 = vld [vmem:[%s2738 + $0xd1] sm:$0xff]
      %v3523 = vld [vmem:[%s2738 + $0xe9] sm:$0xff]
      %v3524 = vld [vmem:[%s2738 + $0xf1] sm:$0xff]
      %v3525 = vld [vmem:[%s2738 + $0x109] sm:$0xff]
      %v3526 = vld [vmem:[%s2738 + $0x111] sm:$0xff]
      %v3527 = vld [vmem:[%s2738 + $0x129] sm:$0xff]
      %v3528 = vld [vmem:[%s2738 + $0x131] sm:$0xff]
      %v3529 = vld [vmem:[%s2738 + $0x149] sm:$0xff]
      %v3530 = vld [vmem:[%s2738 + $0x151] sm:$0xff]
      %v3531 = vld [vmem:[%s2738 + $0x169] sm:$0xff]
      %v3532 = vld [vmem:[%s2738 + $0x171] sm:$0xff]
      %v3533 = vld [vmem:[%s2738 + $0x189] sm:$0xff]
      %v3534 = vld [vmem:[%s2738 + $0x191] sm:$0xff]
      %v3535 = vld [vmem:[%s2738 + $0x1a9] sm:$0xff]
      %v3536 = vld [vmem:[%s2738 + $0x1b1] sm:$0xff]
      %v3537 = vld [vmem:[%s2738 + $0x1c9] sm:$0xff]
      %v3538 = vld [vmem:[%s2738 + $0x1d1] sm:$0xff]
      %v3539 = vld [vmem:[%s2738 + $0x1e9] sm:$0xff]
      %v3540 = vld [vmem:[%s2738 + $0x1f1] sm:$0xff]
      %v3541 = vld [vmem:[%s2738 + $0x249] sm:$0xff]
      %v3542 = vld [vmem:[%s2738 + $0x251] sm:$0xff]
      %v3543 = vld [vmem:[%s2738 + $0x269] sm:$0xff]
      %v3544 = vld [vmem:[%s2738 + $0x271] sm:$0xff]
      %v3545 = vld [vmem:[%s2738 + $0x289] sm:$0xff]
      %v3546 = vld [vmem:[%s2738 + $0x291] sm:$0xff]
      %v3547 = vld [vmem:[%s2738 + $0x2a9] sm:$0xff]
      %v3548 = vld [vmem:[%s2738 + $0x2b1] sm:$0xff]
      %v3549 = vld [vmem:[%s2738 + $0x2c9] sm:$0xff]
      %v3550 = vld [vmem:[%s2738 + $0x2d1] sm:$0xff]
      %v3551 = vld [vmem:[%s2738 + $0x2e9] sm:$0xff]
      %v3552 = vld [vmem:[%s2738 + $0x2f1] sm:$0xff]
      %v3553 = vld [vmem:[%s2738 + $0x309] sm:$0xff]
      %v3554 = vld [vmem:[%s2738 + $0x311] sm:$0xff]
      %v3555 = vld [vmem:[%s2738 + $0x329] sm:$0xff]
      %v3556 = vld [vmem:[%s2738 + $0x331] sm:$0xff]
      %v3557 = vld [vmem:[%s2738 + $0x349] sm:$0xff]
      %v3558 = vld [vmem:[%s2738 + $0x351] sm:$0xff]
      %v3559 = vld [vmem:[%s2738 + $0x369] sm:$0xff]
      %v3560 = vld [vmem:[%s2738 + $0x371] sm:$0xff]
      %v3561 = vld [vmem:[%s2738 + $0x389] sm:$0xff]
      %v3562 = vld [vmem:[%s2738 + $0x391] sm:$0xff]
      %v3563 = vld [vmem:[%s2738 + $0x3a9] sm:$0xff]
      %v3564 = vld [vmem:[%s2738 + $0x3b1] sm:$0xff]
      %v3565 = vld [vmem:[%s2738 + $0x3c9] sm:$0xff]
      %v3566 = vld [vmem:[%s2738 + $0x3d1] sm:$0xff]
      %v3567 = vld [vmem:[%s2738 + $0x3e9] sm:$0xff]
      %v3568 = vld [vmem:[%s2738 + $0x3f1] sm:$0xff]
      %v3569 = vld [vmem:[%s2738 + $0x409] sm:$0xff]
      %v3570 = vld [vmem:[%s2738 + $0x411] sm:$0xff]
      %v3571 = vld [vmem:[%s2738 + $0x429] sm:$0xff]
      %v3572 = vld [vmem:[%s2738 + $0x431] sm:$0xff]
      %3637 = vrot.lane.b32.xlu0 %v3509, 64
      %v3638 = vpop.permute.xlu0 %3637
      %3639 = vrot.lane.b32.xlu0 %v3510, 64
      %v3640 = vpop.permute.xlu0 %3639
      %3641 = vrot.lane.b32.xlu0 %v3511, 64
      %v3642 = vpop.permute.xlu0 %3641
      %3643 = vrot.lane.b32.xlu0 %v3512, 64
      %v3644 = vpop.permute.xlu0 %3643
      %3645 = vrot.lane.b32.xlu0 %v3513, 64
      %v3646 = vpop.permute.xlu0 %3645
      %3647 = vrot.lane.b32.xlu0 %v3514, 64
      %v3648 = vpop.permute.xlu0 %3647
      %3649 = vrot.lane.b32.xlu0 %v3515, 64
      %v3650 = vpop.permute.xlu0 %3649
      %3651 = vrot.lane.b32.xlu0 %v3516, 64
      %v3652 = vpop.permute.xlu0 %3651
      %3653 = vrot.lane.b32.xlu0 %v3517, 64
      %v3654 = vpop.permute.xlu0 %3653
      %3655 = vrot.lane.b32.xlu0 %v3518, 64
      %v3656 = vpop.permute.xlu0 %3655
      %3657 = vrot.lane.b32.xlu0 %v3519, 64
      %v3658 = vpop.permute.xlu0 %3657
      %3659 = vrot.lane.b32.xlu0 %v3520, 64
      %v3660 = vpop.permute.xlu0 %3659
      %3661 = vrot.lane.b32.xlu0 %v3521, 64
      %v3662 = vpop.permute.xlu0 %3661
      %3663 = vrot.lane.b32.xlu0 %v3522, 64
      %v3664 = vpop.permute.xlu0 %3663
      %3665 = vrot.lane.b32.xlu0 %v3523, 64
      %v3666 = vpop.permute.xlu0 %3665
      %3667 = vrot.lane.b32.xlu0 %v3524, 64
      %v3668 = vpop.permute.xlu0 %3667
      %3669 = vrot.lane.b32.xlu0 %v3525, 64
      %v3670 = vpop.permute.xlu0 %3669
      %3671 = vrot.lane.b32.xlu0 %v3526, 64
      %v3672 = vpop.permute.xlu0 %3671
      %3673 = vrot.lane.b32.xlu0 %v3527, 64
      %v3674 = vpop.permute.xlu0 %3673
      %3675 = vrot.lane.b32.xlu0 %v3528, 64
      %v3676 = vpop.permute.xlu0 %3675
      %3677 = vrot.lane.b32.xlu0 %v3529, 64
      %v3678 = vpop.permute.xlu0 %3677
      %3679 = vrot.lane.b32.xlu0 %v3530, 64
      %v3680 = vpop.permute.xlu0 %3679
      %3681 = vrot.lane.b32.xlu0 %v3531, 64
      %v3682 = vpop.permute.xlu0 %3681
      %3683 = vrot.lane.b32.xlu0 %v3532, 64
      %v3684 = vpop.permute.xlu0 %3683
      %3685 = vrot.lane.b32.xlu0 %v3533, 64
      %v3686 = vpop.permute.xlu0 %3685
      %3687 = vrot.lane.b32.xlu0 %v3534, 64
      %v3688 = vpop.permute.xlu0 %3687
      %3689 = vrot.lane.b32.xlu0 %v3535, 64
      %v3690 = vpop.permute.xlu0 %3689
      %3691 = vrot.lane.b32.xlu0 %v3536, 64
      %v3692 = vpop.permute.xlu0 %3691
      %3693 = vrot.lane.b32.xlu0 %v3537, 64
      %v3694 = vpop.permute.xlu0 %3693
      %3695 = vrot.lane.b32.xlu0 %v3538, 64
      %v3696 = vpop.permute.xlu0 %3695
      %3697 = vrot.lane.b32.xlu0 %v3539, 64
      %v3698 = vpop.permute.xlu0 %3697
      %3699 = vrot.lane.b32.xlu0 %v3540, 64
      %v3700 = vpop.permute.xlu0 %3699
      %3701 = vrot.lane.b32.xlu0 %v3541, 64
      %v3702 = vpop.permute.xlu0 %3701
      %3703 = vrot.lane.b32.xlu0 %v3542, 64
      %v3704 = vpop.permute.xlu0 %3703
      %3705 = vrot.lane.b32.xlu0 %v3543, 64
      %v3706 = vpop.permute.xlu0 %3705
      %3707 = vrot.lane.b32.xlu0 %v3544, 64
      %v3708 = vpop.permute.xlu0 %3707
      %3709 = vrot.lane.b32.xlu0 %v3545, 64
      %v3710 = vpop.permute.xlu0 %3709
      %3711 = vrot.lane.b32.xlu0 %v3546, 64
      %v3712 = vpop.permute.xlu0 %3711
      %3713 = vrot.lane.b32.xlu0 %v3547, 64
      %v3714 = vpop.permute.xlu0 %3713
      %3715 = vrot.lane.b32.xlu0 %v3548, 64
      %v3716 = vpop.permute.xlu0 %3715
      %3717 = vrot.lane.b32.xlu0 %v3549, 64
      %v3718 = vpop.permute.xlu0 %3717
      %3719 = vrot.lane.b32.xlu0 %v3550, 64
      %v3720 = vpop.permute.xlu0 %3719
      %3721 = vrot.lane.b32.xlu0 %v3551, 64
      %v3722 = vpop.permute.xlu0 %3721
      %3723 = vrot.lane.b32.xlu0 %v3552, 64
      %v3724 = vpop.permute.xlu0 %3723
      %3725 = vrot.lane.b32.xlu0 %v3553, 64
      %v3726 = vpop.permute.xlu0 %3725
      %3727 = vrot.lane.b32.xlu0 %v3554, 64
      %v3728 = vpop.permute.xlu0 %3727
      %3729 = vrot.lane.b32.xlu0 %v3555, 64
      %v3730 = vpop.permute.xlu0 %3729
      %3731 = vrot.lane.b32.xlu0 %v3556, 64
      %v3732 = vpop.permute.xlu0 %3731
      %3733 = vrot.lane.b32.xlu0 %v3557, 64
      %v3734 = vpop.permute.xlu0 %3733
      %3735 = vrot.lane.b32.xlu0 %v3558, 64
      %v3736 = vpop.permute.xlu0 %3735
      %3737 = vrot.lane.b32.xlu0 %v3559, 64
      %v3738 = vpop.permute.xlu0 %3737
      %3739 = vrot.lane.b32.xlu0 %v3560, 64
      %v3740 = vpop.permute.xlu0 %3739
      %3741 = vrot.lane.b32.xlu0 %v3561, 64
      %v3742 = vpop.permute.xlu0 %3741
      %3743 = vrot.lane.b32.xlu0 %v3562, 64
      %v3744 = vpop.permute.xlu0 %3743
      %3745 = vrot.lane.b32.xlu0 %v3563, 64
      %v3746 = vpop.permute.xlu0 %3745
      %3747 = vrot.lane.b32.xlu0 %v3564, 64
      %v3748 = vpop.permute.xlu0 %3747
      %3749 = vrot.lane.b32.xlu0 %v3565, 64
      %v3750 = vpop.permute.xlu0 %3749
      %3751 = vrot.lane.b32.xlu0 %v3566, 64
      %v3752 = vpop.permute.xlu0 %3751
      %3753 = vrot.lane.b32.xlu0 %v3567, 64
      %v3754 = vpop.permute.xlu0 %3753
      %3755 = vrot.lane.b32.xlu0 %v3568, 64
      %v3756 = vpop.permute.xlu0 %3755
      %3757 = vrot.lane.b32.xlu0 %v3569, 64
      %v3758 = vpop.permute.xlu0 %3757
      %3759 = vrot.lane.b32.xlu0 %v3570, 64
      %v3760 = vpop.permute.xlu0 %3759
      %3761 = vrot.lane.b32.xlu0 %v3571, 64
      %v3762 = vpop.permute.xlu0 %3761
      %3763 = vrot.lane.b32.xlu0 %v3572, 64
      %v3764 = vpop.permute.xlu0 %3763
      %vm3829 = vcmask 589312
      %3830 = vst.msk [vmem:[#allocation4] sm:$0xff] %vm3829, %v3638
      %3831 = vst.msk [vmem:[#allocation4 + $0x8] sm:$0xff] %vm3829, %v3640
      %3832 = vst.msk [vmem:[#allocation4 + $0x10] sm:$0xff] %vm3829, %v3642
      %3833 = vst.msk [vmem:[#allocation4 + $0x18] sm:$0xff] %vm3829, %v3644
      %3834 = vst.msk [vmem:[#allocation4 + $0x20] sm:$0xff] %vm3829, %v3646
      %3835 = vst.msk [vmem:[#allocation4 + $0x28] sm:$0xff] %vm3829, %v3648
      %3836 = vst.msk [vmem:[#allocation4 + $0x30] sm:$0xff] %vm3829, %v3650
      %3837 = vst.msk [vmem:[#allocation4 + $0x38] sm:$0xff] %vm3829, %v3652
      %3838 = vst.msk [vmem:[#allocation4 + $0x40] sm:$0xff] %vm3829, %v3654
      %3839 = vst.msk [vmem:[#allocation4 + $0x48] sm:$0xff] %vm3829, %v3656
      %3840 = vst.msk [vmem:[#allocation4 + $0x50] sm:$0xff] %vm3829, %v3658
      %3841 = vst.msk [vmem:[#allocation4 + $0x58] sm:$0xff] %vm3829, %v3660
      %3842 = vst.msk [vmem:[#allocation4 + $0x60] sm:$0xff] %vm3829, %v3662
      %3843 = vst.msk [vmem:[#allocation4 + $0x68] sm:$0xff] %vm3829, %v3664
      %3844 = vst.msk [vmem:[#allocation4 + $0x70] sm:$0xff] %vm3829, %v3666
      %3845 = vst.msk [vmem:[#allocation4 + $0x78] sm:$0xff] %vm3829, %v3668
      %3846 = vst.msk [vmem:[#allocation4 + $0x80] sm:$0xff] %vm3829, %v3670
      %3847 = vst.msk [vmem:[#allocation4 + $0x88] sm:$0xff] %vm3829, %v3672
      %3848 = vst.msk [vmem:[#allocation4 + $0x90] sm:$0xff] %vm3829, %v3674
      %3849 = vst.msk [vmem:[#allocation4 + $0x98] sm:$0xff] %vm3829, %v3676
      %3850 = vst.msk [vmem:[#allocation4 + $0xa0] sm:$0xff] %vm3829, %v3678
      %3851 = vst.msk [vmem:[#allocation4 + $0xa8] sm:$0xff] %vm3829, %v3680
      %3852 = vst.msk [vmem:[#allocation4 + $0xb0] sm:$0xff] %vm3829, %v3682
      %3853 = vst.msk [vmem:[#allocation4 + $0xb8] sm:$0xff] %vm3829, %v3684
      %3854 = vst.msk [vmem:[#allocation4 + $0xc0] sm:$0xff] %vm3829, %v3686
      %3855 = vst.msk [vmem:[#allocation4 + $0xc8] sm:$0xff] %vm3829, %v3688
      %3856 = vst.msk [vmem:[#allocation4 + $0xd0] sm:$0xff] %vm3829, %v3690
      %3857 = vst.msk [vmem:[#allocation4 + $0xd8] sm:$0xff] %vm3829, %v3692
      %3858 = vst.msk [vmem:[#allocation4 + $0xe0] sm:$0xff] %vm3829, %v3694
      %3859 = vst.msk [vmem:[#allocation4 + $0xe8] sm:$0xff] %vm3829, %v3696
      %3860 = vst.msk [vmem:[#allocation4 + $0xf0] sm:$0xff] %vm3829, %v3698
      %3861 = vst.msk [vmem:[#allocation4 + $0xf8] sm:$0xff] %vm3829, %v3700
      %3862 = vst.msk [vmem:[#allocation4 + $0x100] sm:$0xff] %vm3829, %v3702
      %3863 = vst.msk [vmem:[#allocation4 + $0x108] sm:$0xff] %vm3829, %v3704
      %3864 = vst.msk [vmem:[#allocation4 + $0x110] sm:$0xff] %vm3829, %v3706
      %3865 = vst.msk [vmem:[#allocation4 + $0x118] sm:$0xff] %vm3829, %v3708
      %3866 = vst.msk [vmem:[#allocation4 + $0x120] sm:$0xff] %vm3829, %v3710
      %3867 = vst.msk [vmem:[#allocation4 + $0x128] sm:$0xff] %vm3829, %v3712
      %3868 = vst.msk [vmem:[#allocation4 + $0x130] sm:$0xff] %vm3829, %v3714
      %3869 = vst.msk [vmem:[#allocation4 + $0x138] sm:$0xff] %vm3829, %v3716
      %3870 = vst.msk [vmem:[#allocation4 + $0x140] sm:$0xff] %vm3829, %v3718
      %3871 = vst.msk [vmem:[#allocation4 + $0x148] sm:$0xff] %vm3829, %v3720
      %3872 = vst.msk [vmem:[#allocation4 + $0x150] sm:$0xff] %vm3829, %v3722
      %3873 = vst.msk [vmem:[#allocation4 + $0x158] sm:$0xff] %vm3829, %v3724
      %3874 = vst.msk [vmem:[#allocation4 + $0x160] sm:$0xff] %vm3829, %v3726
      %3875 = vst.msk [vmem:[#allocation4 + $0x168] sm:$0xff] %vm3829, %v3728
      %3876 = vst.msk [vmem:[#allocation4 + $0x170] sm:$0xff] %vm3829, %v3730
      %3877 = vst.msk [vmem:[#allocation4 + $0x178] sm:$0xff] %vm3829, %v3732
      %3878 = vst.msk [vmem:[#allocation4 + $0x180] sm:$0xff] %vm3829, %v3734
      %3879 = vst.msk [vmem:[#allocation4 + $0x188] sm:$0xff] %vm3829, %v3736
      %3880 = vst.msk [vmem:[#allocation4 + $0x190] sm:$0xff] %vm3829, %v3738
      %3881 = vst.msk [vmem:[#allocation4 + $0x198] sm:$0xff] %vm3829, %v3740
      %3882 = vst.msk [vmem:[#allocation4 + $0x1a0] sm:$0xff] %vm3829, %v3742
      %3883 = vst.msk [vmem:[#allocation4 + $0x1a8] sm:$0xff] %vm3829, %v3744
      %3884 = vst.msk [vmem:[#allocation4 + $0x1b0] sm:$0xff] %vm3829, %v3746
      %3885 = vst.msk [vmem:[#allocation4 + $0x1b8] sm:$0xff] %vm3829, %v3748
      %3886 = vst.msk [vmem:[#allocation4 + $0x1c0] sm:$0xff] %vm3829, %v3750
      %3887 = vst.msk [vmem:[#allocation4 + $0x1c8] sm:$0xff] %vm3829, %v3752
      %3888 = vst.msk [vmem:[#allocation4 + $0x1d0] sm:$0xff] %vm3829, %v3754
      %3889 = vst.msk [vmem:[#allocation4 + $0x1d8] sm:$0xff] %vm3829, %v3756
      %3890 = vst.msk [vmem:[#allocation4 + $0x1e0] sm:$0xff] %vm3829, %v3758
      %3891 = vst.msk [vmem:[#allocation4 + $0x1e8] sm:$0xff] %vm3829, %v3760
      %3892 = vst.msk [vmem:[#allocation4 + $0x1f0] sm:$0xff] %vm3829, %v3762
      %3893 = vst.msk [vmem:[#allocation4 + $0x1f8] sm:$0xff] %vm3829, %v3764
      %v3894 = vld [vmem:[#allocation4] sm:$0xff]
      %v3895 = vld [vmem:[#allocation4 + $0x8] sm:$0xff]
      %v3896 = vld [vmem:[#allocation4 + $0x10] sm:$0xff]
      %v3897 = vld [vmem:[#allocation4 + $0x18] sm:$0xff]
      %v3898 = vld [vmem:[#allocation4 + $0x20] sm:$0xff]
      %v3899 = vld [vmem:[#allocation4 + $0x28] sm:$0xff]
      %v3900 = vld [vmem:[#allocation4 + $0x30] sm:$0xff]
      %v3901 = vld [vmem:[#allocation4 + $0x38] sm:$0xff]
      %v3902 = vld [vmem:[#allocation4 + $0x40] sm:$0xff]
      %v3903 = vld [vmem:[#allocation4 + $0x48] sm:$0xff]
      %v3904 = vld [vmem:[#allocation4 + $0x50] sm:$0xff]
      %v3905 = vld [vmem:[#allocation4 + $0x58] sm:$0xff]
      %v3906 = vld [vmem:[#allocation4 + $0x60] sm:$0xff]
      %v3907 = vld [vmem:[#allocation4 + $0x68] sm:$0xff]
      %v3908 = vld [vmem:[#allocation4 + $0x70] sm:$0xff]
      %v3909 = vld [vmem:[#allocation4 + $0x78] sm:$0xff]
      %v3910 = vld [vmem:[#allocation4 + $0x80] sm:$0xff]
      %v3911 = vld [vmem:[#allocation4 + $0x88] sm:$0xff]
      %v3912 = vld [vmem:[#allocation4 + $0x90] sm:$0xff]
      %v3913 = vld [vmem:[#allocation4 + $0x98] sm:$0xff]
      %v3914 = vld [vmem:[#allocation4 + $0xa0] sm:$0xff]
      %v3915 = vld [vmem:[#allocation4 + $0xa8] sm:$0xff]
      %v3916 = vld [vmem:[#allocation4 + $0xb0] sm:$0xff]
      %v3917 = vld [vmem:[#allocation4 + $0xb8] sm:$0xff]
      %v3918 = vld [vmem:[#allocation4 + $0xc0] sm:$0xff]
      %v3919 = vld [vmem:[#allocation4 + $0xc8] sm:$0xff]
      %v3920 = vld [vmem:[#allocation4 + $0xd0] sm:$0xff]
      %v3921 = vld [vmem:[#allocation4 + $0xd8] sm:$0xff]
      %v3922 = vld [vmem:[#allocation4 + $0xe0] sm:$0xff]
      %v3923 = vld [vmem:[#allocation4 + $0xe8] sm:$0xff]
      %v3924 = vld [vmem:[#allocation4 + $0xf0] sm:$0xff]
      %v3925 = vld [vmem:[#allocation4 + $0xf8] sm:$0xff]
      %v3926 = vld [vmem:[#allocation4 + $0x100] sm:$0xff]
      %v3927 = vld [vmem:[#allocation4 + $0x108] sm:$0xff]
      %v3928 = vld [vmem:[#allocation4 + $0x110] sm:$0xff]
      %v3929 = vld [vmem:[#allocation4 + $0x118] sm:$0xff]
      %v3930 = vld [vmem:[#allocation4 + $0x120] sm:$0xff]
      %v3931 = vld [vmem:[#allocation4 + $0x128] sm:$0xff]
      %v3932 = vld [vmem:[#allocation4 + $0x130] sm:$0xff]
      %v3933 = vld [vmem:[#allocation4 + $0x138] sm:$0xff]
      %v3934 = vld [vmem:[#allocation4 + $0x140] sm:$0xff]
      %v3935 = vld [vmem:[#allocation4 + $0x148] sm:$0xff]
      %v3936 = vld [vmem:[#allocation4 + $0x150] sm:$0xff]
      %v3937 = vld [vmem:[#allocation4 + $0x158] sm:$0xff]
      %v3938 = vld [vmem:[#allocation4 + $0x160] sm:$0xff]
      %v3939 = vld [vmem:[#allocation4 + $0x168] sm:$0xff]
      %v3940 = vld [vmem:[#allocation4 + $0x170] sm:$0xff]
      %v3941 = vld [vmem:[#allocation4 + $0x178] sm:$0xff]
      %v3942 = vld [vmem:[#allocation4 + $0x180] sm:$0xff]
      %v3943 = vld [vmem:[#allocation4 + $0x188] sm:$0xff]
      %v3944 = vld [vmem:[#allocation4 + $0x190] sm:$0xff]
      %v3945 = vld [vmem:[#allocation4 + $0x198] sm:$0xff]
      %v3946 = vld [vmem:[#allocation4 + $0x1a0] sm:$0xff]
      %v3947 = vld [vmem:[#allocation4 + $0x1a8] sm:$0xff]
      %v3948 = vld [vmem:[#allocation4 + $0x1b0] sm:$0xff]
      %v3949 = vld [vmem:[#allocation4 + $0x1b8] sm:$0xff]
      %v3950 = vld [vmem:[#allocation4 + $0x1c0] sm:$0xff]
      %v3951 = vld [vmem:[#allocation4 + $0x1c8] sm:$0xff]
      %v3952 = vld [vmem:[#allocation4 + $0x1d0] sm:$0xff]
      %v3953 = vld [vmem:[#allocation4 + $0x1d8] sm:$0xff]
      %v3954 = vld [vmem:[#allocation4 + $0x1e0] sm:$0xff]
      %v3955 = vld [vmem:[#allocation4 + $0x1e8] sm:$0xff]
      %v3956 = vld [vmem:[#allocation4 + $0x1f0] sm:$0xff]
      %v3957 = vld [vmem:[#allocation4 + $0x1f8] sm:$0xff]
      %v3958 = vlaneseq
      %v3959 = vshrl.u32 %v3958, 7
      %v3960 = vsub.s32 0, %v3959
      %v3961 = vrot.slane %v618, %v3960
      %vm3962 = vcmask 588800
      %v3964 = vsel %vm3962, %v3894, 0
      %v3967 = vsel %vm3962, %v3895, 0
      %v3970 = vsel %vm3962, %v3896, 0
      %v3973 = vsel %vm3962, %v3897, 0
      %v3976 = vsel %vm3962, %v3898, 0
      %v3979 = vsel %vm3962, %v3899, 0
      %v3982 = vsel %vm3962, %v3900, 0
      %v3985 = vsel %vm3962, %v3901, 0
      %v3988 = vsel %vm3962, %v3902, 0
      %v3991 = vsel %vm3962, %v3903, 0
      %v3994 = vsel %vm3962, %v3904, 0
      %v3997 = vsel %vm3962, %v3905, 0
      %v4000 = vsel %vm3962, %v3906, 0
      %v4003 = vsel %vm3962, %v3907, 0
      %v4006 = vsel %vm3962, %v3908, 0
      %v4009 = vsel %vm3962, %v3909, 0
      %v4012 = vsel %vm3962, %v3910, 0
      %v4015 = vsel %vm3962, %v3911, 0
      %v4018 = vsel %vm3962, %v3912, 0
      %v4021 = vsel %vm3962, %v3913, 0
      %v4024 = vsel %vm3962, %v3914, 0
      %v4027 = vsel %vm3962, %v3915, 0
      %v4030 = vsel %vm3962, %v3916, 0
      %v4033 = vsel %vm3962, %v3917, 0
      %v4036 = vsel %vm3962, %v3918, 0
      %v4039 = vsel %vm3962, %v3919, 0
      %v4042 = vsel %vm3962, %v3920, 0
      %v4045 = vsel %vm3962, %v3921, 0
      %v4048 = vsel %vm3962, %v3922, 0
      %v4051 = vsel %vm3962, %v3923, 0
      %v4054 = vsel %vm3962, %v3924, 0
      %v4057 = vsel %vm3962, %v3925, 0
      %v4060 = vsel %vm3962, %v3926, 0
      %v4063 = vsel %vm3962, %v3927, 0
      %v4066 = vsel %vm3962, %v3928, 0
      %v4069 = vsel %vm3962, %v3929, 0
      %v4072 = vsel %vm3962, %v3930, 0
      %v4075 = vsel %vm3962, %v3931, 0
      %v4078 = vsel %vm3962, %v3932, 0
      %v4081 = vsel %vm3962, %v3933, 0
      %v4084 = vsel %vm3962, %v3934, 0
      %v4087 = vsel %vm3962, %v3935, 0
      %v4090 = vsel %vm3962, %v3936, 0
      %v4093 = vsel %vm3962, %v3937, 0
      %v4096 = vsel %vm3962, %v3938, 0
      %v4099 = vsel %vm3962, %v3939, 0
      %v4102 = vsel %vm3962, %v3940, 0
      %v4105 = vsel %vm3962, %v3941, 0
      %v4108 = vsel %vm3962, %v3942, 0
      %v4111 = vsel %vm3962, %v3943, 0
      %v4114 = vsel %vm3962, %v3944, 0
      %v4117 = vsel %vm3962, %v3945, 0
      %v4120 = vsel %vm3962, %v3946, 0
      %v4123 = vsel %vm3962, %v3947, 0
      %v4126 = vsel %vm3962, %v3948, 0
      %v4129 = vsel %vm3962, %v3949, 0
      %v4132 = vsel %vm3962, %v3950, 0
      %v4135 = vsel %vm3962, %v3951, 0
      %v4138 = vsel %vm3962, %v3952, 0
      %v4141 = vsel %vm3962, %v3953, 0
      %v4144 = vsel %vm3962, %v3954, 0
      %v4147 = vsel %vm3962, %v3955, 0
      %v4150 = vsel %vm3962, %v3956, 0
      %v4153 = vsel %vm3962, %v3957, 0
      %4155 = vmatprep.subr.mxu0 0.0
      %4156 = vmatpush1.msra.mxu0 %v600
      %4157 = vmatprep.subr.mxu0 0.0
      %4158 = vmatpush1.msra.mxu0 %v601
      %4159 = vmatprep.subr.mxu0 0.0
      %4160 = vmatpush1.msra.mxu0 %v602
      %4161 = vmatprep.subr.mxu0 0.0
      %4162 = vmatpush1.msra.mxu0 %v603
      %4163 = vmatprep.subr.mxu0 0.0
      %4164 = vmatpush1.msra.mxu0 %v604
      %4165 = vmatprep.subr.mxu0 0.0
      %4166 = vmatpush1.msra.mxu0 %v605
      %4167 = vmatprep.subr.mxu0 0.0
      %4168 = vmatpush1.msra.mxu0 %v606
      %4169 = vmatprep.subr.mxu0 0.0
      %4170 = vmatpush1.msra.mxu0 %v607
      %4171 = vmatprep.subr.mxu0 0.0
      %4172 = vmatpush1.msra.mxu0 %v608
      %4173 = vmatprep.subr.mxu0 0.0
      %4174 = vmatpush1.msra.mxu0 0.0
      %4175 = vmatprep.subr.mxu0 0.0
      %4176 = vmatpush1.msra.mxu0 0.0
      %4177 = vmatprep.subr.mxu0 0.0
      %4178 = vmatpush1.msra.mxu0 0.0
      %4179 = vmatprep.subr.mxu0 0.0
      %4180 = vmatpush1.msra.mxu0 0.0
      %4181 = vmatprep.subr.mxu0 0.0
      %4182 = vmatpush1.msra.mxu0 0.0
      %4183 = vmatprep.subr.mxu0 0.0
      %4184 = vmatpush1.msra.mxu0 0.0
      %4185 = vmatprep.subr.mxu0 0.0
      %4186 = vmatpush1.msra.mxu0 0.0
      %4187 = vmatprep.subr.mxu0 0.0
      %4188 = vmatpush1.msra.mxu0 0.0
      %4189 = vmatprep.subr.mxu0 0.0
      %4190 = vmatpush1.msra.mxu0 0.0
      %4191 = vmatprep.subr.mxu0 0.0
      %4192 = vmatpush1.msra.mxu0 0.0
      %4193 = vmatprep.subr.mxu0 0.0
      %4194 = vmatpush1.msra.mxu0 0.0
      %4195 = vmatprep.subr.mxu0 0.0
      %4196 = vmatpush1.msra.mxu0 0.0
      %4197 = vmatprep.subr.mxu0 0.0
      %4198 = vmatpush1.msra.mxu0 0.0
      %4199 = vmatprep.subr.mxu0 0.0
      %4200 = vmatpush1.msra.mxu0 0.0
      %4201 = vmatprep.subr.mxu0 0.0
      %4202 = vmatpush1.msra.mxu0 0.0
      %4203 = vmatprep.subr.mxu0 0.0
      %4204 = vmatpush1.msra.mxu0 0.0
      %4205 = vmatprep.subr.mxu0 0.0
      %4206 = vmatpush1.msra.mxu0 0.0
      %4207 = vmatprep.subr.mxu0 0.0
      %4208 = vmatpush1.msra.mxu0 0.0
      %4209 = vmatprep.subr.mxu0 0.0
      %4210 = vmatpush1.msra.mxu0 0.0
      %4211 = vmatprep.subr.mxu0 0.0
      %4212 = vmatpush1.msra.mxu0 0.0
      %4213 = vmatprep.subr.mxu0 0.0
      %4214 = vmatpush1.msra.mxu0 0.0
      %4215 = vmatprep.subr.mxu0 0.0
      %4216 = vmatpush1.msra.mxu0 0.0
      %4217 = vmatprep.subr.mxu0 0.0
      %4218 = vmatpush1.msra.mxu0 0.0
      %4219 = vmatprep.mubr.f32.mxu0 0.0
      %4220 = vmatmul.mubr.f32.gmra.mrb[0].mxu0 %v3964
      %v4221 = vpop.f32.mrb[0].mxu0
      %v4222 = vadd.f32 %v3961, %v4221
      %v4223 = vpop.f32.mrb[0].mxu0
      %4224 = vmatprep.mubr.f32.mxu0 0.0
      %4225 = vmatmul.mubr.f32.gmra.mrb[0].mxu0 %v3967
      %v4226 = vpop.f32.mrb[0].mxu0
      %v4227 = vadd.f32 %v3961, %v4226
      %v4228 = vpop.f32.mrb[0].mxu0
      %4229 = vmatprep.mubr.f32.mxu0 0.0
      %4230 = vmatmul.mubr.f32.gmra.mrb[0].mxu0 %v3970
      %v4231 = vpop.f32.mrb[0].mxu0
      %v4232 = vadd.f32 %v3961, %v4231
      %v4233 = vpop.f32.mrb[0].mxu0
      %4234 = vmatprep.mubr.f32.mxu0 0.0
      %4235 = vmatmul.mubr.f32.gmra.mrb[0].mxu0 %v3973
      %v4236 = vpop.f32.mrb[0].mxu0
      %v4237 = vadd.f32 %v3961, %v4236
      %v4238 = vpop.f32.mrb[0].mxu0
      %4239 = vmatprep.mubr.f32.mxu0 0.0
      %4240 = vmatmul.mubr.f32.gmra.mrb[0].mxu0 %v3976
      %v4241 = vpop.f32.mrb[0].mxu0
      %v4242 = vadd.f32 %v3961, %v4241
      %v4243 = vpop.f32.mrb[0].mxu0
      %4244 = vmatprep.mubr.f32.mxu0 0.0
      %4245 = vmatmul.mubr.f32.gmra.mrb[0].mxu0 %v3979
      %v4246 = vpop.f32.mrb[0].mxu0
      %v4247 = vadd.f32 %v3961, %v4246
      %v4248 = vpop.f32.mrb[0].mxu0
      %4249 = vmatprep.mubr.f32.mxu0 0.0
      %4250 = vmatmul.mubr.f32.gmra.mrb[0].mxu0 %v3982
      %v4251 = vpop.f32.mrb[0].mxu0
      %v4252 = vadd.f32 %v3961, %v4251
      %v4253 = vpop.f32.mrb[0].mxu0
      %4254 = vmatprep.mubr.f32.mxu0 0.0
      %4255 = vmatmul.mubr.f32.gmra.mrb[0].mxu0 %v3985
      %v4256 = vpop.f32.mrb[0].mxu0
      %v4257 = vadd.f32 %v3961, %v4256
      %v4258 = vpop.f32.mrb[0].mxu0
      %4259 = vmatprep.mubr.f32.mxu0 0.0
      %4260 = vmatmul.mubr.f32.gmra.mrb[0].mxu0 %v3988
      %v4261 = vpop.f32.mrb[0].mxu0
      %v4262 = vadd.f32 %v3961, %v4261
      %v4263 = vpop.f32.mrb[0].mxu0
      %4264 = vmatprep.mubr.f32.mxu0 0.0
      %4265 = vmatmul.mubr.f32.gmra.mrb[0].mxu0 %v3991
      %v4266 = vpop.f32.mrb[0].mxu0
      %v4267 = vadd.f32 %v3961, %v4266
      %v4268 = vpop.f32.mrb[0].mxu0
      %4269 = vmatprep.mubr.f32.mxu0 0.0
      %4270 = vmatmul.mubr.f32.gmra.mrb[0].mxu0 %v3994
      %v4271 = vpop.f32.mrb[0].mxu0
      %v4272 = vadd.f32 %v3961, %v4271
      %v4273 = vpop.f32.mrb[0].mxu0
      %4274 = vmatprep.mubr.f32.mxu0 0.0
      %4275 = vmatmul.mubr.f32.gmra.mrb[0].mxu0 %v3997
      %v4276 = vpop.f32.mrb[0].mxu0
      %v4277 = vadd.f32 %v3961, %v4276
      %v4278 = vpop.f32.mrb[0].mxu0
      %4279 = vmatprep.mubr.f32.mxu0 0.0
      %4280 = vmatmul.mubr.f32.gmra.mrb[0].mxu0 %v4000
      %v4281 = vpop.f32.mrb[0].mxu0
      %v4282 = vadd.f32 %v3961, %v4281
      %v4283 = vpop.f32.mrb[0].mxu0
      %4284 = vmatprep.mubr.f32.mxu0 0.0
      %4285 = vmatmul.mubr.f32.gmra.mrb[0].mxu0 %v4003
      %v4286 = vpop.f32.mrb[0].mxu0
      %v4287 = vadd.f32 %v3961, %v4286
      %v4288 = vpop.f32.mrb[0].mxu0
      %4289 = vmatprep.mubr.f32.mxu0 0.0
      %4290 = vmatmul.mubr.f32.gmra.mrb[0].mxu0 %v4006
      %v4291 = vpop.f32.mrb[0].mxu0
      %v4292 = vadd.f32 %v3961, %v4291
      %v4293 = vpop.f32.mrb[0].mxu0
      %4294 = vmatprep.mubr.f32.mxu0 0.0
      %4295 = vmatmul.mubr.f32.gmra.mrb[0].mxu0 %v4009
      %v4296 = vpop.f32.mrb[0].mxu0
      %v4297 = vadd.f32 %v3961, %v4296
      %v4298 = vpop.f32.mrb[0].mxu0
      %4299 = vmatprep.mubr.f32.mxu0 0.0
      %4300 = vmatmul.mubr.f32.gmra.mrb[0].mxu0 %v4012
      %v4301 = vpop.f32.mrb[0].mxu0
      %v4302 = vadd.f32 %v3961, %v4301
      %v4303 = vpop.f32.mrb[0].mxu0
      %4304 = vmatprep.mubr.f32.mxu0 0.0
      %4305 = vmatmul.mubr.f32.gmra.mrb[0].mxu0 %v4015
      %v4306 = vpop.f32.mrb[0].mxu0
      %v4307 = vadd.f32 %v3961, %v4306
      %v4308 = vpop.f32.mrb[0].mxu0
      %4309 = vmatprep.mubr.f32.mxu0 0.0
      %4310 = vmatmul.mubr.f32.gmra.mrb[0].mxu0 %v4018
      %v4311 = vpop.f32.mrb[0].mxu0
      %v4312 = vadd.f32 %v3961, %v4311
      %v4313 = vpop.f32.mrb[0].mxu0
      %4314 = vmatprep.mubr.f32.mxu0 0.0
      %4315 = vmatmul.mubr.f32.gmra.mrb[0].mxu0 %v4021
      %v4316 = vpop.f32.mrb[0].mxu0
      %v4317 = vadd.f32 %v3961, %v4316
      %v4318 = vpop.f32.mrb[0].mxu0
      %4319 = vmatprep.mubr.f32.mxu0 0.0
      %4320 = vmatmul.mubr.f32.gmra.mrb[0].mxu0 %v4024
      %v4321 = vpop.f32.mrb[0].mxu0
      %v4322 = vadd.f32 %v3961, %v4321
      %v4323 = vpop.f32.mrb[0].mxu0
      %4324 = vmatprep.mubr.f32.mxu0 0.0
      %4325 = vmatmul.mubr.f32.gmra.mrb[0].mxu0 %v4027
      %v4326 = vpop.f32.mrb[0].mxu0
      %v4327 = vadd.f32 %v3961, %v4326
      %v4328 = vpop.f32.mrb[0].mxu0
      %4329 = vmatprep.mubr.f32.mxu0 0.0
      %4330 = vmatmul.mubr.f32.gmra.mrb[0].mxu0 %v4030
      %v4331 = vpop.f32.mrb[0].mxu0
      %v4332 = vadd.f32 %v3961, %v4331
      %v4333 = vpop.f32.mrb[0].mxu0
      %4334 = vmatprep.mubr.f32.mxu0 0.0
      %4335 = vmatmul.mubr.f32.gmra.mrb[0].mxu0 %v4033
      %v4336 = vpop.f32.mrb[0].mxu0
      %v4337 = vadd.f32 %v3961, %v4336
      %v4338 = vpop.f32.mrb[0].mxu0
      %4339 = vmatprep.mubr.f32.mxu0 0.0
      %4340 = vmatmul.mubr.f32.gmra.mrb[0].mxu0 %v4036
      %v4341 = vpop.f32.mrb[0].mxu0
      %v4342 = vadd.f32 %v3961, %v4341
      %v4343 = vpop.f32.mrb[0].mxu0
      %4344 = vmatprep.mubr.f32.mxu0 0.0
      %4345 = vmatmul.mubr.f32.gmra.mrb[0].mxu0 %v4039
      %v4346 = vpop.f32.mrb[0].mxu0
      %v4347 = vadd.f32 %v3961, %v4346
      %v4348 = vpop.f32.mrb[0].mxu0
      %4349 = vmatprep.mubr.f32.mxu0 0.0
      %4350 = vmatmul.mubr.f32.gmra.mrb[0].mxu0 %v4042
      %v4351 = vpop.f32.mrb[0].mxu0
      %v4352 = vadd.f32 %v3961, %v4351
      %v4353 = vpop.f32.mrb[0].mxu0
      %4354 = vmatprep.mubr.f32.mxu0 0.0
      %4355 = vmatmul.mubr.f32.gmra.mrb[0].mxu0 %v4045
      %v4356 = vpop.f32.mrb[0].mxu0
      %v4357 = vadd.f32 %v3961, %v4356
      %v4358 = vpop.f32.mrb[0].mxu0
      %4359 = vmatprep.mubr.f32.mxu0 0.0
      %4360 = vmatmul.mubr.f32.gmra.mrb[0].mxu0 %v4048
      %v4361 = vpop.f32.mrb[0].mxu0
      %v4362 = vadd.f32 %v3961, %v4361
      %v4363 = vpop.f32.mrb[0].mxu0
      %4364 = vmatprep.mubr.f32.mxu0 0.0
      %4365 = vmatmul.mubr.f32.gmra.mrb[0].mxu0 %v4051
      %v4366 = vpop.f32.mrb[0].mxu0
      %v4367 = vadd.f32 %v3961, %v4366
      %v4368 = vpop.f32.mrb[0].mxu0
      %4369 = vmatprep.mubr.f32.mxu0 0.0
      %4370 = vmatmul.mubr.f32.gmra.mrb[0].mxu0 %v4054
      %v4371 = vpop.f32.mrb[0].mxu0
      %v4372 = vadd.f32 %v3961, %v4371
      %v4373 = vpop.f32.mrb[0].mxu0
      %4374 = vmatprep.mubr.f32.mxu0 0.0
      %4375 = vmatmul.mubr.f32.gmra.mrb[0].mxu0 %v4057
      %v4376 = vpop.f32.mrb[0].mxu0
      %v4377 = vadd.f32 %v3961, %v4376
      %v4378 = vpop.f32.mrb[0].mxu0
      %4379 = vmatprep.mubr.f32.mxu0 0.0
      %4380 = vmatmul.mubr.f32.gmra.mrb[0].mxu0 %v4060
      %v4381 = vpop.f32.mrb[0].mxu0
      %v4382 = vadd.f32 %v3961, %v4381
      %v4383 = vpop.f32.mrb[0].mxu0
      %4384 = vmatprep.mubr.f32.mxu0 0.0
      %4385 = vmatmul.mubr.f32.gmra.mrb[0].mxu0 %v4063
      %v4386 = vpop.f32.mrb[0].mxu0
      %v4387 = vadd.f32 %v3961, %v4386
      %v4388 = vpop.f32.mrb[0].mxu0
      %4389 = vmatprep.mubr.f32.mxu0 0.0
      %4390 = vmatmul.mubr.f32.gmra.mrb[0].mxu0 %v4066
      %v4391 = vpop.f32.mrb[0].mxu0
      %v4392 = vadd.f32 %v3961, %v4391
      %v4393 = vpop.f32.mrb[0].mxu0
      %4394 = vmatprep.mubr.f32.mxu0 0.0
      %4395 = vmatmul.mubr.f32.gmra.mrb[0].mxu0 %v4069
      %v4396 = vpop.f32.mrb[0].mxu0
      %v4397 = vadd.f32 %v3961, %v4396
      %v4398 = vpop.f32.mrb[0].mxu0
      %4399 = vmatprep.mubr.f32.mxu0 0.0
      %4400 = vmatmul.mubr.f32.gmra.mrb[0].mxu0 %v4072
      %v4401 = vpop.f32.mrb[0].mxu0
      %v4402 = vadd.f32 %v3961, %v4401
      %v4403 = vpop.f32.mrb[0].mxu0
      %4404 = vmatprep.mubr.f32.mxu0 0.0
      %4405 = vmatmul.mubr.f32.gmra.mrb[0].mxu0 %v4075
      %v4406 = vpop.f32.mrb[0].mxu0
      %v4407 = vadd.f32 %v3961, %v4406
      %v4408 = vpop.f32.mrb[0].mxu0
      %4409 = vmatprep.mubr.f32.mxu0 0.0
      %4410 = vmatmul.mubr.f32.gmra.mrb[0].mxu0 %v4078
      %v4411 = vpop.f32.mrb[0].mxu0
      %v4412 = vadd.f32 %v3961, %v4411
      %v4413 = vpop.f32.mrb[0].mxu0
      %4414 = vmatprep.mubr.f32.mxu0 0.0
      %4415 = vmatmul.mubr.f32.gmra.mrb[0].mxu0 %v4081
      %v4416 = vpop.f32.mrb[0].mxu0
      %v4417 = vadd.f32 %v3961, %v4416
      %v4418 = vpop.f32.mrb[0].mxu0
      %4419 = vmatprep.mubr.f32.mxu0 0.0
      %4420 = vmatmul.mubr.f32.gmra.mrb[0].mxu0 %v4084
      %v4421 = vpop.f32.mrb[0].mxu0
      %v4422 = vadd.f32 %v3961, %v4421
      %v4423 = vpop.f32.mrb[0].mxu0
      %4424 = vmatprep.mubr.f32.mxu0 0.0
      %4425 = vmatmul.mubr.f32.gmra.mrb[0].mxu0 %v4087
      %v4426 = vpop.f32.mrb[0].mxu0
      %v4427 = vadd.f32 %v3961, %v4426
      %v4428 = vpop.f32.mrb[0].mxu0
      %4429 = vmatprep.mubr.f32.mxu0 0.0
      %4430 = vmatmul.mubr.f32.gmra.mrb[0].mxu0 %v4090
      %v4431 = vpop.f32.mrb[0].mxu0
      %v4432 = vadd.f32 %v3961, %v4431
      %v4433 = vpop.f32.mrb[0].mxu0
      %4434 = vmatprep.mubr.f32.mxu0 0.0
      %4435 = vmatmul.mubr.f32.gmra.mrb[0].mxu0 %v4093
      %v4436 = vpop.f32.mrb[0].mxu0
      %v4437 = vadd.f32 %v3961, %v4436
      %v4438 = vpop.f32.mrb[0].mxu0
      %4439 = vmatprep.mubr.f32.mxu0 0.0
      %4440 = vmatmul.mubr.f32.gmra.mrb[0].mxu0 %v4096
      %v4441 = vpop.f32.mrb[0].mxu0
      %v4442 = vadd.f32 %v3961, %v4441
      %v4443 = vpop.f32.mrb[0].mxu0
      %4444 = vmatprep.mubr.f32.mxu0 0.0
      %4445 = vmatmul.mubr.f32.gmra.mrb[0].mxu0 %v4099
      %v4446 = vpop.f32.mrb[0].mxu0
      %v4447 = vadd.f32 %v3961, %v4446
      %v4448 = vpop.f32.mrb[0].mxu0
      %4449 = vmatprep.mubr.f32.mxu0 0.0
      %4450 = vmatmul.mubr.f32.gmra.mrb[0].mxu0 %v4102
      %v4451 = vpop.f32.mrb[0].mxu0
      %v4452 = vadd.f32 %v3961, %v4451
      %v4453 = vpop.f32.mrb[0].mxu0
      %4454 = vmatprep.mubr.f32.mxu0 0.0
      %4455 = vmatmul.mubr.f32.gmra.mrb[0].mxu0 %v4105
      %v4456 = vpop.f32.mrb[0].mxu0
      %v4457 = vadd.f32 %v3961, %v4456
      %v4458 = vpop.f32.mrb[0].mxu0
      %4459 = vmatprep.mubr.f32.mxu0 0.0
      %4460 = vmatmul.mubr.f32.gmra.mrb[0].mxu0 %v4108
      %v4461 = vpop.f32.mrb[0].mxu0
      %v4462 = vadd.f32 %v3961, %v4461
      %v4463 = vpop.f32.mrb[0].mxu0
      %4464 = vmatprep.mubr.f32.mxu0 0.0
      %4465 = vmatmul.mubr.f32.gmra.mrb[0].mxu0 %v4111
      %v4466 = vpop.f32.mrb[0].mxu0
      %v4467 = vadd.f32 %v3961, %v4466
      %v4468 = vpop.f32.mrb[0].mxu0
      %4469 = vmatprep.mubr.f32.mxu0 0.0
      %4470 = vmatmul.mubr.f32.gmra.mrb[0].mxu0 %v4114
      %v4471 = vpop.f32.mrb[0].mxu0
      %v4472 = vadd.f32 %v3961, %v4471
      %v4473 = vpop.f32.mrb[0].mxu0
      %4474 = vmatprep.mubr.f32.mxu0 0.0
      %4475 = vmatmul.mubr.f32.gmra.mrb[0].mxu0 %v4117
      %v4476 = vpop.f32.mrb[0].mxu0
      %v4477 = vadd.f32 %v3961, %v4476
      %v4478 = vpop.f32.mrb[0].mxu0
      %4479 = vmatprep.mubr.f32.mxu0 0.0
      %4480 = vmatmul.mubr.f32.gmra.mrb[0].mxu0 %v4120
      %v4481 = vpop.f32.mrb[0].mxu0
      %v4482 = vadd.f32 %v3961, %v4481
      %v4483 = vpop.f32.mrb[0].mxu0
      %4484 = vmatprep.mubr.f32.mxu0 0.0
      %4485 = vmatmul.mubr.f32.gmra.mrb[0].mxu0 %v4123
      %v4486 = vpop.f32.mrb[0].mxu0
      %v4487 = vadd.f32 %v3961, %v4486
      %v4488 = vpop.f32.mrb[0].mxu0
      %4489 = vmatprep.mubr.f32.mxu0 0.0
      %4490 = vmatmul.mubr.f32.gmra.mrb[0].mxu0 %v4126
      %v4491 = vpop.f32.mrb[0].mxu0
      %v4492 = vadd.f32 %v3961, %v4491
      %v4493 = vpop.f32.mrb[0].mxu0
      %4494 = vmatprep.mubr.f32.mxu0 0.0
      %4495 = vmatmul.mubr.f32.gmra.mrb[0].mxu0 %v4129
      %v4496 = vpop.f32.mrb[0].mxu0
      %v4497 = vadd.f32 %v3961, %v4496
      %v4498 = vpop.f32.mrb[0].mxu0
      %4499 = vmatprep.mubr.f32.mxu0 0.0
      %4500 = vmatmul.mubr.f32.gmra.mrb[0].mxu0 %v4132
      %v4501 = vpop.f32.mrb[0].mxu0
      %v4502 = vadd.f32 %v3961, %v4501
      %v4503 = vpop.f32.mrb[0].mxu0
      %4504 = vmatprep.mubr.f32.mxu0 0.0
      %4505 = vmatmul.mubr.f32.gmra.mrb[0].mxu0 %v4135
      %v4506 = vpop.f32.mrb[0].mxu0
      %v4507 = vadd.f32 %v3961, %v4506
      %v4508 = vpop.f32.mrb[0].mxu0
      %4509 = vmatprep.mubr.f32.mxu0 0.0
      %4510 = vmatmul.mubr.f32.gmra.mrb[0].mxu0 %v4138
      %v4511 = vpop.f32.mrb[0].mxu0
      %v4512 = vadd.f32 %v3961, %v4511
      %v4513 = vpop.f32.mrb[0].mxu0
      %4514 = vmatprep.mubr.f32.mxu0 0.0
      %4515 = vmatmul.mubr.f32.gmra.mrb[0].mxu0 %v4141
      %v4516 = vpop.f32.mrb[0].mxu0
      %v4517 = vadd.f32 %v3961, %v4516
      %v4518 = vpop.f32.mrb[0].mxu0
      %4519 = vmatprep.mubr.f32.mxu0 0.0
      %4520 = vmatmul.mubr.f32.gmra.mrb[0].mxu0 %v4144
      %v4521 = vpop.f32.mrb[0].mxu0
      %v4522 = vadd.f32 %v3961, %v4521
      %v4523 = vpop.f32.mrb[0].mxu0
      %4524 = vmatprep.mubr.f32.mxu0 0.0
      %4525 = vmatmul.mubr.f32.gmra.mrb[0].mxu0 %v4147
      %v4526 = vpop.f32.mrb[0].mxu0
      %v4527 = vadd.f32 %v3961, %v4526
      %v4528 = vpop.f32.mrb[0].mxu0
      %4529 = vmatprep.mubr.f32.mxu0 0.0
      %4530 = vmatmul.mubr.f32.gmra.mrb[0].mxu0 %v4150
      %v4531 = vpop.f32.mrb[0].mxu0
      %v4532 = vadd.f32 %v3961, %v4531
      %v4533 = vpop.f32.mrb[0].mxu0
      %4534 = vmatprep.mubr.f32.mxu0 0.0
      %4535 = vmatmul.mubr.f32.gmra.mrb[0].mxu0 %v4153
      %v4536 = vpop.f32.mrb[0].mxu0
      %v4537 = vadd.f32 %v3961, %v4536
      %v4538 = vpop.f32.mrb[0].mxu0
      %4539 = vdwg.mxu0
      %v4540 = vmax.f32 %v4222, 0.0
      %v4541 = vmax.f32 %v4227, 0.0
      %v4542 = vmax.f32 %v4232, 0.0
      %v4543 = vmax.f32 %v4237, 0.0
      %v4544 = vmax.f32 %v4242, 0.0
      %v4545 = vmax.f32 %v4247, 0.0
      %v4546 = vmax.f32 %v4252, 0.0
      %v4547 = vmax.f32 %v4257, 0.0
      %v4548 = vmax.f32 %v4262, 0.0
      %v4549 = vmax.f32 %v4267, 0.0
      %v4550 = vmax.f32 %v4272, 0.0
      %v4551 = vmax.f32 %v4277, 0.0
      %v4552 = vmax.f32 %v4282, 0.0
      %v4553 = vmax.f32 %v4287, 0.0
      %v4554 = vmax.f32 %v4292, 0.0
      %v4555 = vmax.f32 %v4297, 0.0
      %v4556 = vmax.f32 %v4302, 0.0
      %v4557 = vmax.f32 %v4307, 0.0
      %v4558 = vmax.f32 %v4312, 0.0
      %v4559 = vmax.f32 %v4317, 0.0
      %v4560 = vmax.f32 %v4322, 0.0
      %v4561 = vmax.f32 %v4327, 0.0
      %v4562 = vmax.f32 %v4332, 0.0
      %v4563 = vmax.f32 %v4337, 0.0
      %v4564 = vmax.f32 %v4342, 0.0
      %v4565 = vmax.f32 %v4347, 0.0
      %v4566 = vmax.f32 %v4352, 0.0
      %v4567 = vmax.f32 %v4357, 0.0
      %v4568 = vmax.f32 %v4362, 0.0
      %v4569 = vmax.f32 %v4367, 0.0
      %v4570 = vmax.f32 %v4372, 0.0
      %v4571 = vmax.f32 %v4377, 0.0
      %v4572 = vmax.f32 %v4382, 0.0
      %v4573 = vmax.f32 %v4387, 0.0
      %v4574 = vmax.f32 %v4392, 0.0
      %v4575 = vmax.f32 %v4397, 0.0
      %v4576 = vmax.f32 %v4402, 0.0
      %v4577 = vmax.f32 %v4407, 0.0
      %v4578 = vmax.f32 %v4412, 0.0
      %v4579 = vmax.f32 %v4417, 0.0
      %v4580 = vmax.f32 %v4422, 0.0
      %v4581 = vmax.f32 %v4427, 0.0
      %v4582 = vmax.f32 %v4432, 0.0
      %v4583 = vmax.f32 %v4437, 0.0
      %v4584 = vmax.f32 %v4442, 0.0
      %v4585 = vmax.f32 %v4447, 0.0
      %v4586 = vmax.f32 %v4452, 0.0
      %v4587 = vmax.f32 %v4457, 0.0
      %v4588 = vmax.f32 %v4462, 0.0
      %v4589 = vmax.f32 %v4467, 0.0
      %v4590 = vmax.f32 %v4472, 0.0
      %v4591 = vmax.f32 %v4477, 0.0
      %v4592 = vmax.f32 %v4482, 0.0
      %v4593 = vmax.f32 %v4487, 0.0
      %v4594 = vmax.f32 %v4492, 0.0
      %v4595 = vmax.f32 %v4497, 0.0
      %v4596 = vmax.f32 %v4502, 0.0
      %v4597 = vmax.f32 %v4507, 0.0
      %v4598 = vmax.f32 %v4512, 0.0
      %v4599 = vmax.f32 %v4517, 0.0
      %v4600 = vmax.f32 %v4522, 0.0
      %v4601 = vmax.f32 %v4527, 0.0
      %v4602 = vmax.f32 %v4532, 0.0
      %v4603 = vmax.f32 %v4537, 0.0
      %4604 = vst.msk [vmem:[%s619 + $0x8] sm:$0xff] %vm620, %v4540
      %4605 = vst.msk [vmem:[%s619 + $0x10] sm:$0xff] %vm620, %v4541
      %4606 = vst.msk [vmem:[%s619 + $0x28] sm:$0xff] %vm620, %v4542
      %4607 = vst.msk [vmem:[%s619 + $0x30] sm:$0xff] %vm620, %v4543
      %4608 = vst.msk [vmem:[%s619 + $0x48] sm:$0xff] %vm620, %v4544
      %4609 = vst.msk [vmem:[%s619 + $0x50] sm:$0xff] %vm620, %v4545
      %4610 = vst.msk [vmem:[%s619 + $0x68] sm:$0xff] %vm620, %v4546
      %4611 = vst.msk [vmem:[%s619 + $0x70] sm:$0xff] %vm620, %v4547
      %4612 = vst.msk [vmem:[%s619 + $0x88] sm:$0xff] %vm620, %v4548
      %4613 = vst.msk [vmem:[%s619 + $0x90] sm:$0xff] %vm620, %v4549
      %4614 = vst.msk [vmem:[%s619 + $0xa8] sm:$0xff] %vm620, %v4550
      %4615 = vst.msk [vmem:[%s619 + $0xb0] sm:$0xff] %vm620, %v4551
      %4616 = vst.msk [vmem:[%s619 + $0xc8] sm:$0xff] %vm620, %v4552
      %4617 = vst.msk [vmem:[%s619 + $0xd0] sm:$0xff] %vm620, %v4553
      %4618 = vst.msk [vmem:[%s619 + $0xe8] sm:$0xff] %vm620, %v4554
      %4619 = vst.msk [vmem:[%s619 + $0xf0] sm:$0xff] %vm620, %v4555
      %4620 = vst.msk [vmem:[%s619 + $0x108] sm:$0xff] %vm620, %v4556
      %4621 = vst.msk [vmem:[%s619 + $0x110] sm:$0xff] %vm620, %v4557
      %4622 = vst.msk [vmem:[%s619 + $0x128] sm:$0xff] %vm620, %v4558
      %4623 = vst.msk [vmem:[%s619 + $0x130] sm:$0xff] %vm620, %v4559
      %4624 = vst.msk [vmem:[%s619 + $0x148] sm:$0xff] %vm620, %v4560
      %4625 = vst.msk [vmem:[%s619 + $0x150] sm:$0xff] %vm620, %v4561
      %4626 = vst.msk [vmem:[%s619 + $0x168] sm:$0xff] %vm620, %v4562
      %4627 = vst.msk [vmem:[%s619 + $0x170] sm:$0xff] %vm620, %v4563
      %4628 = vst.msk [vmem:[%s619 + $0x188] sm:$0xff] %vm620, %v4564
      %4629 = vst.msk [vmem:[%s619 + $0x190] sm:$0xff] %vm620, %v4565
      %4630 = vst.msk [vmem:[%s619 + $0x1a8] sm:$0xff] %vm620, %v4566
      %4631 = vst.msk [vmem:[%s619 + $0x1b0] sm:$0xff] %vm620, %v4567
      %4632 = vst.msk [vmem:[%s619 + $0x1c8] sm:$0xff] %vm620, %v4568
      %4633 = vst.msk [vmem:[%s619 + $0x1d0] sm:$0xff] %vm620, %v4569
      %4634 = vst.msk [vmem:[%s619 + $0x1e8] sm:$0xff] %vm620, %v4570
      %4635 = vst.msk [vmem:[%s619 + $0x1f0] sm:$0xff] %vm620, %v4571
      %4636 = vst.msk [vmem:[%s619 + $0x248] sm:$0xff] %vm620, %v4572
      %4637 = vst.msk [vmem:[%s619 + $0x250] sm:$0xff] %vm620, %v4573
      %4638 = vst.msk [vmem:[%s619 + $0x268] sm:$0xff] %vm620, %v4574
      %4639 = vst.msk [vmem:[%s619 + $0x270] sm:$0xff] %vm620, %v4575
      %4640 = vst.msk [vmem:[%s619 + $0x288] sm:$0xff] %vm620, %v4576
      %4641 = vst.msk [vmem:[%s619 + $0x290] sm:$0xff] %vm620, %v4577
      %4642 = vst.msk [vmem:[%s619 + $0x2a8] sm:$0xff] %vm620, %v4578
      %4643 = vst.msk [vmem:[%s619 + $0x2b0] sm:$0xff] %vm620, %v4579
      %4644 = vst.msk [vmem:[%s619 + $0x2c8] sm:$0xff] %vm620, %v4580
      %4645 = vst.msk [vmem:[%s619 + $0x2d0] sm:$0xff] %vm620, %v4581
      %4646 = vst.msk [vmem:[%s619 + $0x2e8] sm:$0xff] %vm620, %v4582
      %4647 = vst.msk [vmem:[%s619 + $0x2f0] sm:$0xff] %vm620, %v4583
      %4648 = vst.msk [vmem:[%s619 + $0x308] sm:$0xff] %vm620, %v4584
      %4649 = vst.msk [vmem:[%s619 + $0x310] sm:$0xff] %vm620, %v4585
      %4650 = vst.msk [vmem:[%s619 + $0x328] sm:$0xff] %vm620, %v4586
      %4651 = vst.msk [vmem:[%s619 + $0x330] sm:$0xff] %vm620, %v4587
      %4652 = vst.msk [vmem:[%s619 + $0x348] sm:$0xff] %vm620, %v4588
      %4653 = vst.msk [vmem:[%s619 + $0x350] sm:$0xff] %vm620, %v4589
      %4654 = vst.msk [vmem:[%s619 + $0x368] sm:$0xff] %vm620, %v4590
      %4655 = vst.msk [vmem:[%s619 + $0x370] sm:$0xff] %vm620, %v4591
      %4656 = vst.msk [vmem:[%s619 + $0x388] sm:$0xff] %vm620, %v4592
      %4657 = vst.msk [vmem:[%s619 + $0x390] sm:$0xff] %vm620, %v4593
      %4658 = vst.msk [vmem:[%s619 + $0x3a8] sm:$0xff] %vm620, %v4594
      %4659 = vst.msk [vmem:[%s619 + $0x3b0] sm:$0xff] %vm620, %v4595
      %4660 = vst.msk [vmem:[%s619 + $0x3c8] sm:$0xff] %vm620, %v4596
      %4661 = vst.msk [vmem:[%s619 + $0x3d0] sm:$0xff] %vm620, %v4597
      %4662 = vst.msk [vmem:[%s619 + $0x3e8] sm:$0xff] %vm620, %v4598
      %4663 = vst.msk [vmem:[%s619 + $0x3f0] sm:$0xff] %vm620, %v4599
      %4664 = vst.msk [vmem:[%s619 + $0x408] sm:$0xff] %vm620, %v4600
      %4665 = vst.msk [vmem:[%s619 + $0x410] sm:$0xff] %vm620, %v4601
      %4666 = vst.msk [vmem:[%s619 + $0x428] sm:$0xff] %vm620, %v4602
      %4667 = vst.msk [vmem:[%s619 + $0x430] sm:$0xff] %vm620, %v4603
      %v4668 = vld [vmem:[#allocation3 + $0x7] sm:$0xff]
      %v4669 = vld [vmem:[#allocation3 + $0xf] sm:$0xff]
      %v4670 = vld [vmem:[#allocation3 + $0x27] sm:$0xff]
      %v4671 = vld [vmem:[#allocation3 + $0x2f] sm:$0xff]
      %v4672 = vld [vmem:[#allocation3 + $0x47] sm:$0xff]
      %v4673 = vld [vmem:[#allocation3 + $0x4f] sm:$0xff]
      %v4674 = vld [vmem:[#allocation3 + $0x67] sm:$0xff]
      %v4675 = vld [vmem:[#allocation3 + $0x6f] sm:$0xff]
      %v4676 = vld [vmem:[#allocation3 + $0x87] sm:$0xff]
      %v4677 = vld [vmem:[#allocation3 + $0x8f] sm:$0xff]
      %v4678 = vld [vmem:[#allocation3 + $0xa7] sm:$0xff]
      %v4679 = vld [vmem:[#allocation3 + $0xaf] sm:$0xff]
      %v4680 = vld [vmem:[#allocation3 + $0xc7] sm:$0xff]
      %v4681 = vld [vmem:[#allocation3 + $0xcf] sm:$0xff]
      %v4682 = vld [vmem:[#allocation3 + $0xe7] sm:$0xff]
      %v4683 = vld [vmem:[#allocation3 + $0xef] sm:$0xff]
      %v4684 = vld [vmem:[#allocation3 + $0x107] sm:$0xff]
      %v4685 = vld [vmem:[#allocation3 + $0x10f] sm:$0xff]
      %v4686 = vld [vmem:[#allocation3 + $0x127] sm:$0xff]
      %v4687 = vld [vmem:[#allocation3 + $0x12f] sm:$0xff]
      %v4688 = vld [vmem:[#allocation3 + $0x147] sm:$0xff]
      %v4689 = vld [vmem:[#allocation3 + $0x14f] sm:$0xff]
      %v4690 = vld [vmem:[#allocation3 + $0x167] sm:$0xff]
      %v4691 = vld [vmem:[#allocation3 + $0x16f] sm:$0xff]
      %v4692 = vld [vmem:[#allocation3 + $0x187] sm:$0xff]
      %v4693 = vld [vmem:[#allocation3 + $0x18f] sm:$0xff]
      %v4694 = vld [vmem:[#allocation3 + $0x1a7] sm:$0xff]
      %v4695 = vld [vmem:[#allocation3 + $0x1af] sm:$0xff]
      %v4696 = vld [vmem:[#allocation3 + $0x1c7] sm:$0xff]
      %v4697 = vld [vmem:[#allocation3 + $0x1cf] sm:$0xff]
      %v4698 = vld [vmem:[#allocation3 + $0x1e7] sm:$0xff]
      %v4699 = vld [vmem:[#allocation3 + $0x1ef] sm:$0xff]
      %v4700 = vld [vmem:[#allocation3 + $0x247] sm:$0xff]
      %v4701 = vld [vmem:[#allocation3 + $0x24f] sm:$0xff]
      %v4702 = vld [vmem:[#allocation3 + $0x267] sm:$0xff]
      %v4703 = vld [vmem:[#allocation3 + $0x26f] sm:$0xff]
      %v4704 = vld [vmem:[#allocation3 + $0x287] sm:$0xff]
      %v4705 = vld [vmem:[#allocation3 + $0x28f] sm:$0xff]
      %v4706 = vld [vmem:[#allocation3 + $0x2a7] sm:$0xff]
      %v4707 = vld [vmem:[#allocation3 + $0x2af] sm:$0xff]
      %v4708 = vld [vmem:[#allocation3 + $0x2c7] sm:$0xff]
      %v4709 = vld [vmem:[#allocation3 + $0x2cf] sm:$0xff]
      %v4710 = vld [vmem:[#allocation3 + $0x2e7] sm:$0xff]
      %v4711 = vld [vmem:[#allocation3 + $0x2ef] sm:$0xff]
      %v4712 = vld [vmem:[#allocation3 + $0x307] sm:$0xff]
      %v4713 = vld [vmem:[#allocation3 + $0x30f] sm:$0xff]
      %v4714 = vld [vmem:[#allocation3 + $0x327] sm:$0xff]
      %v4715 = vld [vmem:[#allocation3 + $0x32f] sm:$0xff]
      %v4716 = vld [vmem:[#allocation3 + $0x347] sm:$0xff]
      %v4717 = vld [vmem:[#allocation3 + $0x34f] sm:$0xff]
      %v4718 = vld [vmem:[#allocation3 + $0x367] sm:$0xff]
      %v4719 = vld [vmem:[#allocation3 + $0x36f] sm:$0xff]
      %v4720 = vld [vmem:[#allocation3 + $0x387] sm:$0xff]
      %v4721 = vld [vmem:[#allocation3 + $0x38f] sm:$0xff]
      %v4722 = vld [vmem:[#allocation3 + $0x3a7] sm:$0xff]
      %v4723 = vld [vmem:[#allocation3 + $0x3af] sm:$0xff]
      %v4724 = vld [vmem:[#allocation3 + $0x3c7] sm:$0xff]
      %v4725 = vld [vmem:[#allocation3 + $0x3cf] sm:$0xff]
      %v4726 = vld [vmem:[#allocation3 + $0x3e7] sm:$0xff]
      %v4727 = vld [vmem:[#allocation3 + $0x3ef] sm:$0xff]
      %v4728 = vld [vmem:[#allocation3 + $0x407] sm:$0xff]
      %v4729 = vld [vmem:[#allocation3 + $0x40f] sm:$0xff]
      %v4730 = vld [vmem:[#allocation3 + $0x427] sm:$0xff]
      %v4731 = vld [vmem:[#allocation3 + $0x42f] sm:$0xff]
      %4732 = vst.msk [vmem:[#allocation4] sm:$0xff] %vm620, %v4668
      %4733 = vst.msk [vmem:[#allocation4 + $0x8] sm:$0xff] %vm620, %v4669
      %4734 = vst.msk [vmem:[#allocation4 + $0x10] sm:$0xff] %vm620, %v4670
      %4735 = vst.msk [vmem:[#allocation4 + $0x18] sm:$0xff] %vm620, %v4671
      %4736 = vst.msk [vmem:[#allocation4 + $0x20] sm:$0xff] %vm620, %v4672
      %4737 = vst.msk [vmem:[#allocation4 + $0x28] sm:$0xff] %vm620, %v4673
      %4738 = vst.msk [vmem:[#allocation4 + $0x30] sm:$0xff] %vm620, %v4674
      %4739 = vst.msk [vmem:[#allocation4 + $0x38] sm:$0xff] %vm620, %v4675
      %4740 = vst.msk [vmem:[#allocation4 + $0x40] sm:$0xff] %vm620, %v4676
      %4741 = vst.msk [vmem:[#allocation4 + $0x48] sm:$0xff] %vm620, %v4677
      %4742 = vst.msk [vmem:[#allocation4 + $0x50] sm:$0xff] %vm620, %v4678
      %4743 = vst.msk [vmem:[#allocation4 + $0x58] sm:$0xff] %vm620, %v4679
      %4744 = vst.msk [vmem:[#allocation4 + $0x60] sm:$0xff] %vm620, %v4680
      %4745 = vst.msk [vmem:[#allocation4 + $0x68] sm:$0xff] %vm620, %v4681
      %4746 = vst.msk [vmem:[#allocation4 + $0x70] sm:$0xff] %vm620, %v4682
      %4747 = vst.msk [vmem:[#allocation4 + $0x78] sm:$0xff] %vm620, %v4683
      %4748 = vst.msk [vmem:[#allocation4 + $0x80] sm:$0xff] %vm620, %v4684
      %4749 = vst.msk [vmem:[#allocation4 + $0x88] sm:$0xff] %vm620, %v4685
      %4750 = vst.msk [vmem:[#allocation4 + $0x90] sm:$0xff] %vm620, %v4686
      %4751 = vst.msk [vmem:[#allocation4 + $0x98] sm:$0xff] %vm620, %v4687
      %4752 = vst.msk [vmem:[#allocation4 + $0xa0] sm:$0xff] %vm620, %v4688
      %4753 = vst.msk [vmem:[#allocation4 + $0xa8] sm:$0xff] %vm620, %v4689
      %4754 = vst.msk [vmem:[#allocation4 + $0xb0] sm:$0xff] %vm620, %v4690
      %4755 = vst.msk [vmem:[#allocation4 + $0xb8] sm:$0xff] %vm620, %v4691
      %4756 = vst.msk [vmem:[#allocation4 + $0xc0] sm:$0xff] %vm620, %v4692
      %4757 = vst.msk [vmem:[#allocation4 + $0xc8] sm:$0xff] %vm620, %v4693
      %4758 = vst.msk [vmem:[#allocation4 + $0xd0] sm:$0xff] %vm620, %v4694
      %4759 = vst.msk [vmem:[#allocation4 + $0xd8] sm:$0xff] %vm620, %v4695
      %4760 = vst.msk [vmem:[#allocation4 + $0xe0] sm:$0xff] %vm620, %v4696
      %4761 = vst.msk [vmem:[#allocation4 + $0xe8] sm:$0xff] %vm620, %v4697
      %4762 = vst.msk [vmem:[#allocation4 + $0xf0] sm:$0xff] %vm620, %v4698
      %4763 = vst.msk [vmem:[#allocation4 + $0xf8] sm:$0xff] %vm620, %v4699
      %4764 = vst.msk [vmem:[#allocation4 + $0x100] sm:$0xff] %vm620, %v4700
      %4765 = vst.msk [vmem:[#allocation4 + $0x108] sm:$0xff] %vm620, %v4701
      %4766 = vst.msk [vmem:[#allocation4 + $0x110] sm:$0xff] %vm620, %v4702
      %4767 = vst.msk [vmem:[#allocation4 + $0x118] sm:$0xff] %vm620, %v4703
      %4768 = vst.msk [vmem:[#allocation4 + $0x120] sm:$0xff] %vm620, %v4704
      %4769 = vst.msk [vmem:[#allocation4 + $0x128] sm:$0xff] %vm620, %v4705
      %4770 = vst.msk [vmem:[#allocation4 + $0x130] sm:$0xff] %vm620, %v4706
      %4771 = vst.msk [vmem:[#allocation4 + $0x138] sm:$0xff] %vm620, %v4707
      %4772 = vst.msk [vmem:[#allocation4 + $0x140] sm:$0xff] %vm620, %v4708
      %4773 = vst.msk [vmem:[#allocation4 + $0x148] sm:$0xff] %vm620, %v4709
      %4774 = vst.msk [vmem:[#allocation4 + $0x150] sm:$0xff] %vm620, %v4710
      %4775 = vst.msk [vmem:[#allocation4 + $0x158] sm:$0xff] %vm620, %v4711
      %4776 = vst.msk [vmem:[#allocation4 + $0x160] sm:$0xff] %vm620, %v4712
      %4777 = vst.msk [vmem:[#allocation4 + $0x168] sm:$0xff] %vm620, %v4713
      %4778 = vst.msk [vmem:[#allocation4 + $0x170] sm:$0xff] %vm620, %v4714
      %4779 = vst.msk [vmem:[#allocation4 + $0x178] sm:$0xff] %vm620, %v4715
      %4780 = vst.msk [vmem:[#allocation4 + $0x180] sm:$0xff] %vm620, %v4716
      %4781 = vst.msk [vmem:[#allocation4 + $0x188] sm:$0xff] %vm620, %v4717
      %4782 = vst.msk [vmem:[#allocation4 + $0x190] sm:$0xff] %vm620, %v4718
      %4783 = vst.msk [vmem:[#allocation4 + $0x198] sm:$0xff] %vm620, %v4719
      %4784 = vst.msk [vmem:[#allocation4 + $0x1a0] sm:$0xff] %vm620, %v4720
      %4785 = vst.msk [vmem:[#allocation4 + $0x1a8] sm:$0xff] %vm620, %v4721
      %4786 = vst.msk [vmem:[#allocation4 + $0x1b0] sm:$0xff] %vm620, %v4722
      %4787 = vst.msk [vmem:[#allocation4 + $0x1b8] sm:$0xff] %vm620, %v4723
      %4788 = vst.msk [vmem:[#allocation4 + $0x1c0] sm:$0xff] %vm620, %v4724
      %4789 = vst.msk [vmem:[#allocation4 + $0x1c8] sm:$0xff] %vm620, %v4725
      %4790 = vst.msk [vmem:[#allocation4 + $0x1d0] sm:$0xff] %vm620, %v4726
      %4791 = vst.msk [vmem:[#allocation4 + $0x1d8] sm:$0xff] %vm620, %v4727
      %4792 = vst.msk [vmem:[#allocation4 + $0x1e0] sm:$0xff] %vm620, %v4728
      %4793 = vst.msk [vmem:[#allocation4 + $0x1e8] sm:$0xff] %vm620, %v4729
      %4794 = vst.msk [vmem:[#allocation4 + $0x1f0] sm:$0xff] %vm620, %v4730
      %4795 = vst.msk [vmem:[#allocation4 + $0x1f8] sm:$0xff] %vm620, %v4731
      %v4796 = vld [vmem:[#allocation3 + $0x8] sm:$0xff]
      %v4797 = vld [vmem:[#allocation3 + $0x10] sm:$0xff]
      %v4798 = vld [vmem:[#allocation3 + $0x28] sm:$0xff]
      %v4799 = vld [vmem:[#allocation3 + $0x30] sm:$0xff]
      %v4800 = vld [vmem:[#allocation3 + $0x48] sm:$0xff]
      %v4801 = vld [vmem:[#allocation3 + $0x50] sm:$0xff]
      %v4802 = vld [vmem:[#allocation3 + $0x68] sm:$0xff]
      %v4803 = vld [vmem:[#allocation3 + $0x70] sm:$0xff]
      %v4804 = vld [vmem:[#allocation3 + $0x88] sm:$0xff]
      %v4805 = vld [vmem:[#allocation3 + $0x90] sm:$0xff]
      %v4806 = vld [vmem:[#allocation3 + $0xa8] sm:$0xff]
      %v4807 = vld [vmem:[#allocation3 + $0xb0] sm:$0xff]
      %v4808 = vld [vmem:[#allocation3 + $0xc8] sm:$0xff]
      %v4809 = vld [vmem:[#allocation3 + $0xd0] sm:$0xff]
      %v4810 = vld [vmem:[#allocation3 + $0xe8] sm:$0xff]
      %v4811 = vld [vmem:[#allocation3 + $0xf0] sm:$0xff]
      %v4812 = vld [vmem:[#allocation3 + $0x108] sm:$0xff]
      %v4813 = vld [vmem:[#allocation3 + $0x110] sm:$0xff]
      %v4814 = vld [vmem:[#allocation3 + $0x128] sm:$0xff]
      %v4815 = vld [vmem:[#allocation3 + $0x130] sm:$0xff]
      %v4816 = vld [vmem:[#allocation3 + $0x148] sm:$0xff]
      %v4817 = vld [vmem:[#allocation3 + $0x150] sm:$0xff]
      %v4818 = vld [vmem:[#allocation3 + $0x168] sm:$0xff]
      %v4819 = vld [vmem:[#allocation3 + $0x170] sm:$0xff]
      %v4820 = vld [vmem:[#allocation3 + $0x188] sm:$0xff]
      %v4821 = vld [vmem:[#allocation3 + $0x190] sm:$0xff]
      %v4822 = vld [vmem:[#allocation3 + $0x1a8] sm:$0xff]
      %v4823 = vld [vmem:[#allocation3 + $0x1b0] sm:$0xff]
      %v4824 = vld [vmem:[#allocation3 + $0x1c8] sm:$0xff]
      %v4825 = vld [vmem:[#allocation3 + $0x1d0] sm:$0xff]
      %v4826 = vld [vmem:[#allocation3 + $0x1e8] sm:$0xff]
      %v4827 = vld [vmem:[#allocation3 + $0x1f0] sm:$0xff]
      %v4828 = vld [vmem:[#allocation3 + $0x248] sm:$0xff]
      %v4829 = vld [vmem:[#allocation3 + $0x250] sm:$0xff]
      %v4830 = vld [vmem:[#allocation3 + $0x268] sm:$0xff]
      %v4831 = vld [vmem:[#allocation3 + $0x270] sm:$0xff]
      %v4832 = vld [vmem:[#allocation3 + $0x288] sm:$0xff]
      %v4833 = vld [vmem:[#allocation3 + $0x290] sm:$0xff]
      %v4834 = vld [vmem:[#allocation3 + $0x2a8] sm:$0xff]
      %v4835 = vld [vmem:[#allocation3 + $0x2b0] sm:$0xff]
      %v4836 = vld [vmem:[#allocation3 + $0x2c8] sm:$0xff]
      %v4837 = vld [vmem:[#allocation3 + $0x2d0] sm:$0xff]
      %v4838 = vld [vmem:[#allocation3 + $0x2e8] sm:$0xff]
      %v4839 = vld [vmem:[#allocation3 + $0x2f0] sm:$0xff]
      %v4840 = vld [vmem:[#allocation3 + $0x308] sm:$0xff]
      %v4841 = vld [vmem:[#allocation3 + $0x310] sm:$0xff]
      %v4842 = vld [vmem:[#allocation3 + $0x328] sm:$0xff]
      %v4843 = vld [vmem:[#allocation3 + $0x330] sm:$0xff]
      %v4844 = vld [vmem:[#allocation3 + $0x348] sm:$0xff]
      %v4845 = vld [vmem:[#allocation3 + $0x350] sm:$0xff]
      %v4846 = vld [vmem:[#allocation3 + $0x368] sm:$0xff]
      %v4847 = vld [vmem:[#allocation3 + $0x370] sm:$0xff]
      %v4848 = vld [vmem:[#allocation3 + $0x388] sm:$0xff]
      %v4849 = vld [vmem:[#allocation3 + $0x390] sm:$0xff]
      %v4850 = vld [vmem:[#allocation3 + $0x3a8] sm:$0xff]
      %v4851 = vld [vmem:[#allocation3 + $0x3b0] sm:$0xff]
      %v4852 = vld [vmem:[#allocation3 + $0x3c8] sm:$0xff]
      %v4853 = vld [vmem:[#allocation3 + $0x3d0] sm:$0xff]
      %v4854 = vld [vmem:[#allocation3 + $0x3e8] sm:$0xff]
      %v4855 = vld [vmem:[#allocation3 + $0x3f0] sm:$0xff]
      %v4856 = vld [vmem:[#allocation3 + $0x408] sm:$0xff]
      %v4857 = vld [vmem:[#allocation3 + $0x410] sm:$0xff]
      %v4858 = vld [vmem:[#allocation3 + $0x428] sm:$0xff]
      %v4859 = vld [vmem:[#allocation3 + $0x430] sm:$0xff]
      %4924 = vrot.lane.b32.xlu0 %v4796, 8
      %v4925 = vpop.permute.xlu0 %4924
      %4926 = vrot.lane.b32.xlu0 %v4797, 8
      %v4927 = vpop.permute.xlu0 %4926
      %4928 = vrot.lane.b32.xlu0 %v4798, 8
      %v4929 = vpop.permute.xlu0 %4928
      %4930 = vrot.lane.b32.xlu0 %v4799, 8
      %v4931 = vpop.permute.xlu0 %4930
      %4932 = vrot.lane.b32.xlu0 %v4800, 8
      %v4933 = vpop.permute.xlu0 %4932
      %4934 = vrot.lane.b32.xlu0 %v4801, 8
      %v4935 = vpop.permute.xlu0 %4934
      %4936 = vrot.lane.b32.xlu0 %v4802, 8
      %v4937 = vpop.permute.xlu0 %4936
      %4938 = vrot.lane.b32.xlu0 %v4803, 8
      %v4939 = vpop.permute.xlu0 %4938
      %4940 = vrot.lane.b32.xlu0 %v4804, 8
      %v4941 = vpop.permute.xlu0 %4940
      %4942 = vrot.lane.b32.xlu0 %v4805, 8
      %v4943 = vpop.permute.xlu0 %4942
      %4944 = vrot.lane.b32.xlu0 %v4806, 8
      %v4945 = vpop.permute.xlu0 %4944
      %4946 = vrot.lane.b32.xlu0 %v4807, 8
      %v4947 = vpop.permute.xlu0 %4946
      %4948 = vrot.lane.b32.xlu0 %v4808, 8
      %v4949 = vpop.permute.xlu0 %4948
      %4950 = vrot.lane.b32.xlu0 %v4809, 8
      %v4951 = vpop.permute.xlu0 %4950
      %4952 = vrot.lane.b32.xlu0 %v4810, 8
      %v4953 = vpop.permute.xlu0 %4952
      %4954 = vrot.lane.b32.xlu0 %v4811, 8
      %v4955 = vpop.permute.xlu0 %4954
      %4956 = vrot.lane.b32.xlu0 %v4812, 8
      %v4957 = vpop.permute.xlu0 %4956
      %4958 = vrot.lane.b32.xlu0 %v4813, 8
      %v4959 = vpop.permute.xlu0 %4958
      %4960 = vrot.lane.b32.xlu0 %v4814, 8
      %v4961 = vpop.permute.xlu0 %4960
      %4962 = vrot.lane.b32.xlu0 %v4815, 8
      %v4963 = vpop.permute.xlu0 %4962
      %4964 = vrot.lane.b32.xlu0 %v4816, 8
      %v4965 = vpop.permute.xlu0 %4964
      %4966 = vrot.lane.b32.xlu0 %v4817, 8
      %v4967 = vpop.permute.xlu0 %4966
      %4968 = vrot.lane.b32.xlu0 %v4818, 8
      %v4969 = vpop.permute.xlu0 %4968
      %4970 = vrot.lane.b32.xlu0 %v4819, 8
      %v4971 = vpop.permute.xlu0 %4970
      %4972 = vrot.lane.b32.xlu0 %v4820, 8
      %v4973 = vpop.permute.xlu0 %4972
      %4974 = vrot.lane.b32.xlu0 %v4821, 8
      %v4975 = vpop.permute.xlu0 %4974
      %4976 = vrot.lane.b32.xlu0 %v4822, 8
      %v4977 = vpop.permute.xlu0 %4976
      %4978 = vrot.lane.b32.xlu0 %v4823, 8
      %v4979 = vpop.permute.xlu0 %4978
      %4980 = vrot.lane.b32.xlu0 %v4824, 8
      %v4981 = vpop.permute.xlu0 %4980
      %4982 = vrot.lane.b32.xlu0 %v4825, 8
      %v4983 = vpop.permute.xlu0 %4982
      %4984 = vrot.lane.b32.xlu0 %v4826, 8
      %v4985 = vpop.permute.xlu0 %4984
      %4986 = vrot.lane.b32.xlu0 %v4827, 8
      %v4987 = vpop.permute.xlu0 %4986
      %4988 = vrot.lane.b32.xlu0 %v4828, 8
      %v4989 = vpop.permute.xlu0 %4988
      %4990 = vrot.lane.b32.xlu0 %v4829, 8
      %v4991 = vpop.permute.xlu0 %4990
      %4992 = vrot.lane.b32.xlu0 %v4830, 8
      %v4993 = vpop.permute.xlu0 %4992
      %4994 = vrot.lane.b32.xlu0 %v4831, 8
      %v4995 = vpop.permute.xlu0 %4994
      %4996 = vrot.lane.b32.xlu0 %v4832, 8
      %v4997 = vpop.permute.xlu0 %4996
      %4998 = vrot.lane.b32.xlu0 %v4833, 8
      %v4999 = vpop.permute.xlu0 %4998
      %5000 = vrot.lane.b32.xlu0 %v4834, 8
      %v5001 = vpop.permute.xlu0 %5000
      %5002 = vrot.lane.b32.xlu0 %v4835, 8
      %v5003 = vpop.permute.xlu0 %5002
      %5004 = vrot.lane.b32.xlu0 %v4836, 8
      %v5005 = vpop.permute.xlu0 %5004
      %5006 = vrot.lane.b32.xlu0 %v4837, 8
      %v5007 = vpop.permute.xlu0 %5006
      %5008 = vrot.lane.b32.xlu0 %v4838, 8
      %v5009 = vpop.permute.xlu0 %5008
      %5010 = vrot.lane.b32.xlu0 %v4839, 8
      %v5011 = vpop.permute.xlu0 %5010
      %5012 = vrot.lane.b32.xlu0 %v4840, 8
      %v5013 = vpop.permute.xlu0 %5012
      %5014 = vrot.lane.b32.xlu0 %v4841, 8
      %v5015 = vpop.permute.xlu0 %5014
      %5016 = vrot.lane.b32.xlu0 %v4842, 8
      %v5017 = vpop.permute.xlu0 %5016
      %5018 = vrot.lane.b32.xlu0 %v4843, 8
      %v5019 = vpop.permute.xlu0 %5018
      %5020 = vrot.lane.b32.xlu0 %v4844, 8
      %v5021 = vpop.permute.xlu0 %5020
      %5022 = vrot.lane.b32.xlu0 %v4845, 8
      %v5023 = vpop.permute.xlu0 %5022
      %5024 = vrot.lane.b32.xlu0 %v4846, 8
      %v5025 = vpop.permute.xlu0 %5024
      %5026 = vrot.lane.b32.xlu0 %v4847, 8
      %v5027 = vpop.permute.xlu0 %5026
      %5028 = vrot.lane.b32.xlu0 %v4848, 8
      %v5029 = vpop.permute.xlu0 %5028
      %5030 = vrot.lane.b32.xlu0 %v4849, 8
      %v5031 = vpop.permute.xlu0 %5030
      %5032 = vrot.lane.b32.xlu0 %v4850, 8
      %v5033 = vpop.permute.xlu0 %5032
      %5034 = vrot.lane.b32.xlu0 %v4851, 8
      %v5035 = vpop.permute.xlu0 %5034
      %5036 = vrot.lane.b32.xlu0 %v4852, 8
      %v5037 = vpop.permute.xlu0 %5036
      %5038 = vrot.lane.b32.xlu0 %v4853, 8
      %v5039 = vpop.permute.xlu0 %5038
      %5040 = vrot.lane.b32.xlu0 %v4854, 8
      %v5041 = vpop.permute.xlu0 %5040
      %5042 = vrot.lane.b32.xlu0 %v4855, 8
      %v5043 = vpop.permute.xlu0 %5042
      %5044 = vrot.lane.b32.xlu0 %v4856, 8
      %v5045 = vpop.permute.xlu0 %5044
      %5046 = vrot.lane.b32.xlu0 %v4857, 8
      %v5047 = vpop.permute.xlu0 %5046
      %5048 = vrot.lane.b32.xlu0 %v4858, 8
      %v5049 = vpop.permute.xlu0 %5048
      %5050 = vrot.lane.b32.xlu0 %v4859, 8
      %v5051 = vpop.permute.xlu0 %5050
      %5116 = vst.msk [vmem:[#allocation4] sm:$0xff] %vm1133, %v4925
      %5117 = vst.msk [vmem:[#allocation4 + $0x8] sm:$0xff] %vm1133, %v4927
      %5118 = vst.msk [vmem:[#allocation4 + $0x10] sm:$0xff] %vm1133, %v4929
      %5119 = vst.msk [vmem:[#allocation4 + $0x18] sm:$0xff] %vm1133, %v4931
      %5120 = vst.msk [vmem:[#allocation4 + $0x20] sm:$0xff] %vm1133, %v4933
      %5121 = vst.msk [vmem:[#allocation4 + $0x28] sm:$0xff] %vm1133, %v4935
      %5122 = vst.msk [vmem:[#allocation4 + $0x30] sm:$0xff] %vm1133, %v4937
      %5123 = vst.msk [vmem:[#allocation4 + $0x38] sm:$0xff] %vm1133, %v4939
      %5124 = vst.msk [vmem:[#allocation4 + $0x40] sm:$0xff] %vm1133, %v4941
      %5125 = vst.msk [vmem:[#allocation4 + $0x48] sm:$0xff] %vm1133, %v4943
      %5126 = vst.msk [vmem:[#allocation4 + $0x50] sm:$0xff] %vm1133, %v4945
      %5127 = vst.msk [vmem:[#allocation4 + $0x58] sm:$0xff] %vm1133, %v4947
      %5128 = vst.msk [vmem:[#allocation4 + $0x60] sm:$0xff] %vm1133, %v4949
      %5129 = vst.msk [vmem:[#allocation4 + $0x68] sm:$0xff] %vm1133, %v4951
      %5130 = vst.msk [vmem:[#allocation4 + $0x70] sm:$0xff] %vm1133, %v4953
      %5131 = vst.msk [vmem:[#allocation4 + $0x78] sm:$0xff] %vm1133, %v4955
      %5132 = vst.msk [vmem:[#allocation4 + $0x80] sm:$0xff] %vm1133, %v4957
      %5133 = vst.msk [vmem:[#allocation4 + $0x88] sm:$0xff] %vm1133, %v4959
      %5134 = vst.msk [vmem:[#allocation4 + $0x90] sm:$0xff] %vm1133, %v4961
      %5135 = vst.msk [vmem:[#allocation4 + $0x98] sm:$0xff] %vm1133, %v4963
      %5136 = vst.msk [vmem:[#allocation4 + $0xa0] sm:$0xff] %vm1133, %v4965
      %5137 = vst.msk [vmem:[#allocation4 + $0xa8] sm:$0xff] %vm1133, %v4967
      %5138 = vst.msk [vmem:[#allocation4 + $0xb0] sm:$0xff] %vm1133, %v4969
      %5139 = vst.msk [vmem:[#allocation4 + $0xb8] sm:$0xff] %vm1133, %v4971
      %5140 = vst.msk [vmem:[#allocation4 + $0xc0] sm:$0xff] %vm1133, %v4973
      %5141 = vst.msk [vmem:[#allocation4 + $0xc8] sm:$0xff] %vm1133, %v4975
      %5142 = vst.msk [vmem:[#allocation4 + $0xd0] sm:$0xff] %vm1133, %v4977
      %5143 = vst.msk [vmem:[#allocation4 + $0xd8] sm:$0xff] %vm1133, %v4979
      %5144 = vst.msk [vmem:[#allocation4 + $0xe0] sm:$0xff] %vm1133, %v4981
      %5145 = vst.msk [vmem:[#allocation4 + $0xe8] sm:$0xff] %vm1133, %v4983
      %5146 = vst.msk [vmem:[#allocation4 + $0xf0] sm:$0xff] %vm1133, %v4985
      %5147 = vst.msk [vmem:[#allocation4 + $0xf8] sm:$0xff] %vm1133, %v4987
      %5148 = vst.msk [vmem:[#allocation4 + $0x100] sm:$0xff] %vm1133, %v4989
      %5149 = vst.msk [vmem:[#allocation4 + $0x108] sm:$0xff] %vm1133, %v4991
      %5150 = vst.msk [vmem:[#allocation4 + $0x110] sm:$0xff] %vm1133, %v4993
      %5151 = vst.msk [vmem:[#allocation4 + $0x118] sm:$0xff] %vm1133, %v4995
      %5152 = vst.msk [vmem:[#allocation4 + $0x120] sm:$0xff] %vm1133, %v4997
      %5153 = vst.msk [vmem:[#allocation4 + $0x128] sm:$0xff] %vm1133, %v4999
      %5154 = vst.msk [vmem:[#allocation4 + $0x130] sm:$0xff] %vm1133, %v5001
      %5155 = vst.msk [vmem:[#allocation4 + $0x138] sm:$0xff] %vm1133, %v5003
      %5156 = vst.msk [vmem:[#allocation4 + $0x140] sm:$0xff] %vm1133, %v5005
      %5157 = vst.msk [vmem:[#allocation4 + $0x148] sm:$0xff] %vm1133, %v5007
      %5158 = vst.msk [vmem:[#allocation4 + $0x150] sm:$0xff] %vm1133, %v5009
      %5159 = vst.msk [vmem:[#allocation4 + $0x158] sm:$0xff] %vm1133, %v5011
      %5160 = vst.msk [vmem:[#allocation4 + $0x160] sm:$0xff] %vm1133, %v5013
      %5161 = vst.msk [vmem:[#allocation4 + $0x168] sm:$0xff] %vm1133, %v5015
      %5162 = vst.msk [vmem:[#allocation4 + $0x170] sm:$0xff] %vm1133, %v5017
      %5163 = vst.msk [vmem:[#allocation4 + $0x178] sm:$0xff] %vm1133, %v5019
      %5164 = vst.msk [vmem:[#allocation4 + $0x180] sm:$0xff] %vm1133, %v5021
      %5165 = vst.msk [vmem:[#allocation4 + $0x188] sm:$0xff] %vm1133, %v5023
      %5166 = vst.msk [vmem:[#allocation4 + $0x190] sm:$0xff] %vm1133, %v5025
      %5167 = vst.msk [vmem:[#allocation4 + $0x198] sm:$0xff] %vm1133, %v5027
      %5168 = vst.msk [vmem:[#allocation4 + $0x1a0] sm:$0xff] %vm1133, %v5029
      %5169 = vst.msk [vmem:[#allocation4 + $0x1a8] sm:$0xff] %vm1133, %v5031
      %5170 = vst.msk [vmem:[#allocation4 + $0x1b0] sm:$0xff] %vm1133, %v5033
      %5171 = vst.msk [vmem:[#allocation4 + $0x1b8] sm:$0xff] %vm1133, %v5035
      %5172 = vst.msk [vmem:[#allocation4 + $0x1c0] sm:$0xff] %vm1133, %v5037
      %5173 = vst.msk [vmem:[#allocation4 + $0x1c8] sm:$0xff] %vm1133, %v5039
      %5174 = vst.msk [vmem:[#allocation4 + $0x1d0] sm:$0xff] %vm1133, %v5041
      %5175 = vst.msk [vmem:[#allocation4 + $0x1d8] sm:$0xff] %vm1133, %v5043
      %5176 = vst.msk [vmem:[#allocation4 + $0x1e0] sm:$0xff] %vm1133, %v5045
      %5177 = vst.msk [vmem:[#allocation4 + $0x1e8] sm:$0xff] %vm1133, %v5047
      %5178 = vst.msk [vmem:[#allocation4 + $0x1f0] sm:$0xff] %vm1133, %v5049
      %5179 = vst.msk [vmem:[#allocation4 + $0x1f8] sm:$0xff] %vm1133, %v5051
      %v5180 = vld [vmem:[#allocation3 + $0x9] sm:$0xff]
      %v5181 = vld [vmem:[#allocation3 + $0x11] sm:$0xff]
      %v5182 = vld [vmem:[#allocation3 + $0x29] sm:$0xff]
      %v5183 = vld [vmem:[#allocation3 + $0x31] sm:$0xff]
      %v5184 = vld [vmem:[#allocation3 + $0x49] sm:$0xff]
      %v5185 = vld [vmem:[#allocation3 + $0x51] sm:$0xff]
      %v5186 = vld [vmem:[#allocation3 + $0x69] sm:$0xff]
      %v5187 = vld [vmem:[#allocation3 + $0x71] sm:$0xff]
      %v5188 = vld [vmem:[#allocation3 + $0x89] sm:$0xff]
      %v5189 = vld [vmem:[#allocation3 + $0x91] sm:$0xff]
      %v5190 = vld [vmem:[#allocation3 + $0xa9] sm:$0xff]
      %v5191 = vld [vmem:[#allocation3 + $0xb1] sm:$0xff]
      %v5192 = vld [vmem:[#allocation3 + $0xc9] sm:$0xff]
      %v5193 = vld [vmem:[#allocation3 + $0xd1] sm:$0xff]
      %v5194 = vld [vmem:[#allocation3 + $0xe9] sm:$0xff]
      %v5195 = vld [vmem:[#allocation3 + $0xf1] sm:$0xff]
      %v5196 = vld [vmem:[#allocation3 + $0x109] sm:$0xff]
      %v5197 = vld [vmem:[#allocation3 + $0x111] sm:$0xff]
      %v5198 = vld [vmem:[#allocation3 + $0x129] sm:$0xff]
      %v5199 = vld [vmem:[#allocation3 + $0x131] sm:$0xff]
      %v5200 = vld [vmem:[#allocation3 + $0x149] sm:$0xff]
      %v5201 = vld [vmem:[#allocation3 + $0x151] sm:$0xff]
      %v5202 = vld [vmem:[#allocation3 + $0x169] sm:$0xff]
      %v5203 = vld [vmem:[#allocation3 + $0x171] sm:$0xff]
      %v5204 = vld [vmem:[#allocation3 + $0x189] sm:$0xff]
      %v5205 = vld [vmem:[#allocation3 + $0x191] sm:$0xff]
      %v5206 = vld [vmem:[#allocation3 + $0x1a9] sm:$0xff]
      %v5207 = vld [vmem:[#allocation3 + $0x1b1] sm:$0xff]
      %v5208 = vld [vmem:[#allocation3 + $0x1c9] sm:$0xff]
      %v5209 = vld [vmem:[#allocation3 + $0x1d1] sm:$0xff]
      %v5210 = vld [vmem:[#allocation3 + $0x1e9] sm:$0xff]
      %v5211 = vld [vmem:[#allocation3 + $0x1f1] sm:$0xff]
      %v5212 = vld [vmem:[#allocation3 + $0x249] sm:$0xff]
      %v5213 = vld [vmem:[#allocation3 + $0x251] sm:$0xff]
      %v5214 = vld [vmem:[#allocation3 + $0x269] sm:$0xff]
      %v5215 = vld [vmem:[#allocation3 + $0x271] sm:$0xff]
      %v5216 = vld [vmem:[#allocation3 + $0x289] sm:$0xff]
      %v5217 = vld [vmem:[#allocation3 + $0x291] sm:$0xff]
      %v5218 = vld [vmem:[#allocation3 + $0x2a9] sm:$0xff]
      %v5219 = vld [vmem:[#allocation3 + $0x2b1] sm:$0xff]
      %v5220 = vld [vmem:[#allocation3 + $0x2c9] sm:$0xff]
      %v5221 = vld [vmem:[#allocation3 + $0x2d1] sm:$0xff]
      %v5222 = vld [vmem:[#allocation3 + $0x2e9] sm:$0xff]
      %v5223 = vld [vmem:[#allocation3 + $0x2f1] sm:$0xff]
      %v5224 = vld [vmem:[#allocation3 + $0x309] sm:$0xff]
      %v5225 = vld [vmem:[#allocation3 + $0x311] sm:$0xff]
      %v5226 = vld [vmem:[#allocation3 + $0x329] sm:$0xff]
      %v5227 = vld [vmem:[#allocation3 + $0x331] sm:$0xff]
      %v5228 = vld [vmem:[#allocation3 + $0x349] sm:$0xff]
      %v5229 = vld [vmem:[#allocation3 + $0x351] sm:$0xff]
      %v5230 = vld [vmem:[#allocation3 + $0x369] sm:$0xff]
      %v5231 = vld [vmem:[#allocation3 + $0x371] sm:$0xff]
      %v5232 = vld [vmem:[#allocation3 + $0x389] sm:$0xff]
      %v5233 = vld [vmem:[#allocation3 + $0x391] sm:$0xff]
      %v5234 = vld [vmem:[#allocation3 + $0x3a9] sm:$0xff]
      %v5235 = vld [vmem:[#allocation3 + $0x3b1] sm:$0xff]
      %v5236 = vld [vmem:[#allocation3 + $0x3c9] sm:$0xff]
      %v5237 = vld [vmem:[#allocation3 + $0x3d1] sm:$0xff]
      %v5238 = vld [vmem:[#allocation3 + $0x3e9] sm:$0xff]
      %v5239 = vld [vmem:[#allocation3 + $0x3f1] sm:$0xff]
      %v5240 = vld [vmem:[#allocation3 + $0x409] sm:$0xff]
      %v5241 = vld [vmem:[#allocation3 + $0x411] sm:$0xff]
      %v5242 = vld [vmem:[#allocation3 + $0x429] sm:$0xff]
      %v5243 = vld [vmem:[#allocation3 + $0x431] sm:$0xff]
      %5308 = vrot.lane.b32.xlu0 %v5180, 16
      %v5309 = vpop.permute.xlu0 %5308
      %5310 = vrot.lane.b32.xlu0 %v5181, 16
      %v5311 = vpop.permute.xlu0 %5310
      %5312 = vrot.lane.b32.xlu0 %v5182, 16
      %v5313 = vpop.permute.xlu0 %5312
      %5314 = vrot.lane.b32.xlu0 %v5183, 16
      %v5315 = vpop.permute.xlu0 %5314
      %5316 = vrot.lane.b32.xlu0 %v5184, 16
      %v5317 = vpop.permute.xlu0 %5316
      %5318 = vrot.lane.b32.xlu0 %v5185, 16
      %v5319 = vpop.permute.xlu0 %5318
      %5320 = vrot.lane.b32.xlu0 %v5186, 16
      %v5321 = vpop.permute.xlu0 %5320
      %5322 = vrot.lane.b32.xlu0 %v5187, 16
      %v5323 = vpop.permute.xlu0 %5322
      %5324 = vrot.lane.b32.xlu0 %v5188, 16
      %v5325 = vpop.permute.xlu0 %5324
      %5326 = vrot.lane.b32.xlu0 %v5189, 16
      %v5327 = vpop.permute.xlu0 %5326
      %5328 = vrot.lane.b32.xlu0 %v5190, 16
      %v5329 = vpop.permute.xlu0 %5328
      %5330 = vrot.lane.b32.xlu0 %v5191, 16
      %v5331 = vpop.permute.xlu0 %5330
      %5332 = vrot.lane.b32.xlu0 %v5192, 16
      %v5333 = vpop.permute.xlu0 %5332
      %5334 = vrot.lane.b32.xlu0 %v5193, 16
      %v5335 = vpop.permute.xlu0 %5334
      %5336 = vrot.lane.b32.xlu0 %v5194, 16
      %v5337 = vpop.permute.xlu0 %5336
      %5338 = vrot.lane.b32.xlu0 %v5195, 16
      %v5339 = vpop.permute.xlu0 %5338
      %5340 = vrot.lane.b32.xlu0 %v5196, 16
      %v5341 = vpop.permute.xlu0 %5340
      %5342 = vrot.lane.b32.xlu0 %v5197, 16
      %v5343 = vpop.permute.xlu0 %5342
      %5344 = vrot.lane.b32.xlu0 %v5198, 16
      %v5345 = vpop.permute.xlu0 %5344
      %5346 = vrot.lane.b32.xlu0 %v5199, 16
      %v5347 = vpop.permute.xlu0 %5346
      %5348 = vrot.lane.b32.xlu0 %v5200, 16
      %v5349 = vpop.permute.xlu0 %5348
      %5350 = vrot.lane.b32.xlu0 %v5201, 16
      %v5351 = vpop.permute.xlu0 %5350
      %5352 = vrot.lane.b32.xlu0 %v5202, 16
      %v5353 = vpop.permute.xlu0 %5352
      %5354 = vrot.lane.b32.xlu0 %v5203, 16
      %v5355 = vpop.permute.xlu0 %5354
      %5356 = vrot.lane.b32.xlu0 %v5204, 16
      %v5357 = vpop.permute.xlu0 %5356
      %5358 = vrot.lane.b32.xlu0 %v5205, 16
      %v5359 = vpop.permute.xlu0 %5358
      %5360 = vrot.lane.b32.xlu0 %v5206, 16
      %v5361 = vpop.permute.xlu0 %5360
      %5362 = vrot.lane.b32.xlu0 %v5207, 16
      %v5363 = vpop.permute.xlu0 %5362
      %5364 = vrot.lane.b32.xlu0 %v5208, 16
      %v5365 = vpop.permute.xlu0 %5364
      %5366 = vrot.lane.b32.xlu0 %v5209, 16
      %v5367 = vpop.permute.xlu0 %5366
      %5368 = vrot.lane.b32.xlu0 %v5210, 16
      %v5369 = vpop.permute.xlu0 %5368
      %5370 = vrot.lane.b32.xlu0 %v5211, 16
      %v5371 = vpop.permute.xlu0 %5370
      %5372 = vrot.lane.b32.xlu0 %v5212, 16
      %v5373 = vpop.permute.xlu0 %5372
      %5374 = vrot.lane.b32.xlu0 %v5213, 16
      %v5375 = vpop.permute.xlu0 %5374
      %5376 = vrot.lane.b32.xlu0 %v5214, 16
      %v5377 = vpop.permute.xlu0 %5376
      %5378 = vrot.lane.b32.xlu0 %v5215, 16
      %v5379 = vpop.permute.xlu0 %5378
      %5380 = vrot.lane.b32.xlu0 %v5216, 16
      %v5381 = vpop.permute.xlu0 %5380
      %5382 = vrot.lane.b32.xlu0 %v5217, 16
      %v5383 = vpop.permute.xlu0 %5382
      %5384 = vrot.lane.b32.xlu0 %v5218, 16
      %v5385 = vpop.permute.xlu0 %5384
      %5386 = vrot.lane.b32.xlu0 %v5219, 16
      %v5387 = vpop.permute.xlu0 %5386
      %5388 = vrot.lane.b32.xlu0 %v5220, 16
      %v5389 = vpop.permute.xlu0 %5388
      %5390 = vrot.lane.b32.xlu0 %v5221, 16
      %v5391 = vpop.permute.xlu0 %5390
      %5392 = vrot.lane.b32.xlu0 %v5222, 16
      %v5393 = vpop.permute.xlu0 %5392
      %5394 = vrot.lane.b32.xlu0 %v5223, 16
      %v5395 = vpop.permute.xlu0 %5394
      %5396 = vrot.lane.b32.xlu0 %v5224, 16
      %v5397 = vpop.permute.xlu0 %5396
      %5398 = vrot.lane.b32.xlu0 %v5225, 16
      %v5399 = vpop.permute.xlu0 %5398
      %5400 = vrot.lane.b32.xlu0 %v5226, 16
      %v5401 = vpop.permute.xlu0 %5400
      %5402 = vrot.lane.b32.xlu0 %v5227, 16
      %v5403 = vpop.permute.xlu0 %5402
      %5404 = vrot.lane.b32.xlu0 %v5228, 16
      %v5405 = vpop.permute.xlu0 %5404
      %5406 = vrot.lane.b32.xlu0 %v5229, 16
      %v5407 = vpop.permute.xlu0 %5406
      %5408 = vrot.lane.b32.xlu0 %v5230, 16
      %v5409 = vpop.permute.xlu0 %5408
      %5410 = vrot.lane.b32.xlu0 %v5231, 16
      %v5411 = vpop.permute.xlu0 %5410
      %5412 = vrot.lane.b32.xlu0 %v5232, 16
      %v5413 = vpop.permute.xlu0 %5412
      %5414 = vrot.lane.b32.xlu0 %v5233, 16
      %v5415 = vpop.permute.xlu0 %5414
      %5416 = vrot.lane.b32.xlu0 %v5234, 16
      %v5417 = vpop.permute.xlu0 %5416
      %5418 = vrot.lane.b32.xlu0 %v5235, 16
      %v5419 = vpop.permute.xlu0 %5418
      %5420 = vrot.lane.b32.xlu0 %v5236, 16
      %v5421 = vpop.permute.xlu0 %5420
      %5422 = vrot.lane.b32.xlu0 %v5237, 16
      %v5423 = vpop.permute.xlu0 %5422
      %5424 = vrot.lane.b32.xlu0 %v5238, 16
      %v5425 = vpop.permute.xlu0 %5424
      %5426 = vrot.lane.b32.xlu0 %v5239, 16
      %v5427 = vpop.permute.xlu0 %5426
      %5428 = vrot.lane.b32.xlu0 %v5240, 16
      %v5429 = vpop.permute.xlu0 %5428
      %5430 = vrot.lane.b32.xlu0 %v5241, 16
      %v5431 = vpop.permute.xlu0 %5430
      %5432 = vrot.lane.b32.xlu0 %v5242, 16
      %v5433 = vpop.permute.xlu0 %5432
      %5434 = vrot.lane.b32.xlu0 %v5243, 16
      %v5435 = vpop.permute.xlu0 %5434
      %5500 = vst.msk [vmem:[#allocation4] sm:$0xff] %vm1518, %v5309
      %5501 = vst.msk [vmem:[#allocation4 + $0x8] sm:$0xff] %vm1518, %v5311
      %5502 = vst.msk [vmem:[#allocation4 + $0x10] sm:$0xff] %vm1518, %v5313
      %5503 = vst.msk [vmem:[#allocation4 + $0x18] sm:$0xff] %vm1518, %v5315
      %5504 = vst.msk [vmem:[#allocation4 + $0x20] sm:$0xff] %vm1518, %v5317
      %5505 = vst.msk [vmem:[#allocation4 + $0x28] sm:$0xff] %vm1518, %v5319
      %5506 = vst.msk [vmem:[#allocation4 + $0x30] sm:$0xff] %vm1518, %v5321
      %5507 = vst.msk [vmem:[#allocation4 + $0x38] sm:$0xff] %vm1518, %v5323
      %5508 = vst.msk [vmem:[#allocation4 + $0x40] sm:$0xff] %vm1518, %v5325
      %5509 = vst.msk [vmem:[#allocation4 + $0x48] sm:$0xff] %vm1518, %v5327
      %5510 = vst.msk [vmem:[#allocation4 + $0x50] sm:$0xff] %vm1518, %v5329
      %5511 = vst.msk [vmem:[#allocation4 + $0x58] sm:$0xff] %vm1518, %v5331
      %5512 = vst.msk [vmem:[#allocation4 + $0x60] sm:$0xff] %vm1518, %v5333
      %5513 = vst.msk [vmem:[#allocation4 + $0x68] sm:$0xff] %vm1518, %v5335
      %5514 = vst.msk [vmem:[#allocation4 + $0x70] sm:$0xff] %vm1518, %v5337
      %5515 = vst.msk [vmem:[#allocation4 + $0x78] sm:$0xff] %vm1518, %v5339
      %5516 = vst.msk [vmem:[#allocation4 + $0x80] sm:$0xff] %vm1518, %v5341
      %5517 = vst.msk [vmem:[#allocation4 + $0x88] sm:$0xff] %vm1518, %v5343
      %5518 = vst.msk [vmem:[#allocation4 + $0x90] sm:$0xff] %vm1518, %v5345
      %5519 = vst.msk [vmem:[#allocation4 + $0x98] sm:$0xff] %vm1518, %v5347
      %5520 = vst.msk [vmem:[#allocation4 + $0xa0] sm:$0xff] %vm1518, %v5349
      %5521 = vst.msk [vmem:[#allocation4 + $0xa8] sm:$0xff] %vm1518, %v5351
      %5522 = vst.msk [vmem:[#allocation4 + $0xb0] sm:$0xff] %vm1518, %v5353
      %5523 = vst.msk [vmem:[#allocation4 + $0xb8] sm:$0xff] %vm1518, %v5355
      %5524 = vst.msk [vmem:[#allocation4 + $0xc0] sm:$0xff] %vm1518, %v5357
      %5525 = vst.msk [vmem:[#allocation4 + $0xc8] sm:$0xff] %vm1518, %v5359
      %5526 = vst.msk [vmem:[#allocation4 + $0xd0] sm:$0xff] %vm1518, %v5361
      %5527 = vst.msk [vmem:[#allocation4 + $0xd8] sm:$0xff] %vm1518, %v5363
      %5528 = vst.msk [vmem:[#allocation4 + $0xe0] sm:$0xff] %vm1518, %v5365
      %5529 = vst.msk [vmem:[#allocation4 + $0xe8] sm:$0xff] %vm1518, %v5367
      %5530 = vst.msk [vmem:[#allocation4 + $0xf0] sm:$0xff] %vm1518, %v5369
      %5531 = vst.msk [vmem:[#allocation4 + $0xf8] sm:$0xff] %vm1518, %v5371
      %5532 = vst.msk [vmem:[#allocation4 + $0x100] sm:$0xff] %vm1518, %v5373
      %5533 = vst.msk [vmem:[#allocation4 + $0x108] sm:$0xff] %vm1518, %v5375
      %5534 = vst.msk [vmem:[#allocation4 + $0x110] sm:$0xff] %vm1518, %v5377
      %5535 = vst.msk [vmem:[#allocation4 + $0x118] sm:$0xff] %vm1518, %v5379
      %5536 = vst.msk [vmem:[#allocation4 + $0x120] sm:$0xff] %vm1518, %v5381
      %5537 = vst.msk [vmem:[#allocation4 + $0x128] sm:$0xff] %vm1518, %v5383
      %5538 = vst.msk [vmem:[#allocation4 + $0x130] sm:$0xff] %vm1518, %v5385
      %5539 = vst.msk [vmem:[#allocation4 + $0x138] sm:$0xff] %vm1518, %v5387
      %5540 = vst.msk [vmem:[#allocation4 + $0x140] sm:$0xff] %vm1518, %v5389
      %5541 = vst.msk [vmem:[#allocation4 + $0x148] sm:$0xff] %vm1518, %v5391
      %5542 = vst.msk [vmem:[#allocation4 + $0x150] sm:$0xff] %vm1518, %v5393
      %5543 = vst.msk [vmem:[#allocation4 + $0x158] sm:$0xff] %vm1518, %v5395
      %5544 = vst.msk [vmem:[#allocation4 + $0x160] sm:$0xff] %vm1518, %v5397
      %5545 = vst.msk [vmem:[#allocation4 + $0x168] sm:$0xff] %vm1518, %v5399
      %5546 = vst.msk [vmem:[#allocation4 + $0x170] sm:$0xff] %vm1518, %v5401
      %5547 = vst.msk [vmem:[#allocation4 + $0x178] sm:$0xff] %vm1518, %v5403
      %5548 = vst.msk [vmem:[#allocation4 + $0x180] sm:$0xff] %vm1518, %v5405
      %5549 = vst.msk [vmem:[#allocation4 + $0x188] sm:$0xff] %vm1518, %v5407
      %5550 = vst.msk [vmem:[#allocation4 + $0x190] sm:$0xff] %vm1518, %v5409
      %5551 = vst.msk [vmem:[#allocation4 + $0x198] sm:$0xff] %vm1518, %v5411
      %5552 = vst.msk [vmem:[#allocation4 + $0x1a0] sm:$0xff] %vm1518, %v5413
      %5553 = vst.msk [vmem:[#allocation4 + $0x1a8] sm:$0xff] %vm1518, %v5415
      %5554 = vst.msk [vmem:[#allocation4 + $0x1b0] sm:$0xff] %vm1518, %v5417
      %5555 = vst.msk [vmem:[#allocation4 + $0x1b8] sm:$0xff] %vm1518, %v5419
      %5556 = vst.msk [vmem:[#allocation4 + $0x1c0] sm:$0xff] %vm1518, %v5421
      %5557 = vst.msk [vmem:[#allocation4 + $0x1c8] sm:$0xff] %vm1518, %v5423
      %5558 = vst.msk [vmem:[#allocation4 + $0x1d0] sm:$0xff] %vm1518, %v5425
      %5559 = vst.msk [vmem:[#allocation4 + $0x1d8] sm:$0xff] %vm1518, %v5427
      %5560 = vst.msk [vmem:[#allocation4 + $0x1e0] sm:$0xff] %vm1518, %v5429
      %5561 = vst.msk [vmem:[#allocation4 + $0x1e8] sm:$0xff] %vm1518, %v5431
      %5562 = vst.msk [vmem:[#allocation4 + $0x1f0] sm:$0xff] %vm1518, %v5433
      %5563 = vst.msk [vmem:[#allocation4 + $0x1f8] sm:$0xff] %vm1518, %v5435
      %v5564 = vld [vmem:[%s619 + $0x7] sm:$0xff]
      %v5565 = vld [vmem:[%s619 + $0xf] sm:$0xff]
      %v5566 = vld [vmem:[%s619 + $0x27] sm:$0xff]
      %v5567 = vld [vmem:[%s619 + $0x2f] sm:$0xff]
      %v5568 = vld [vmem:[%s619 + $0x47] sm:$0xff]
      %v5569 = vld [vmem:[%s619 + $0x4f] sm:$0xff]
      %v5570 = vld [vmem:[%s619 + $0x67] sm:$0xff]
      %v5571 = vld [vmem:[%s619 + $0x6f] sm:$0xff]
      %v5572 = vld [vmem:[%s619 + $0x87] sm:$0xff]
      %v5573 = vld [vmem:[%s619 + $0x8f] sm:$0xff]
      %v5574 = vld [vmem:[%s619 + $0xa7] sm:$0xff]
      %v5575 = vld [vmem:[%s619 + $0xaf] sm:$0xff]
      %v5576 = vld [vmem:[%s619 + $0xc7] sm:$0xff]
      %v5577 = vld [vmem:[%s619 + $0xcf] sm:$0xff]
      %v5578 = vld [vmem:[%s619 + $0xe7] sm:$0xff]
      %v5579 = vld [vmem:[%s619 + $0xef] sm:$0xff]
      %v5580 = vld [vmem:[%s619 + $0x107] sm:$0xff]
      %v5581 = vld [vmem:[%s619 + $0x10f] sm:$0xff]
      %v5582 = vld [vmem:[%s619 + $0x127] sm:$0xff]
      %v5583 = vld [vmem:[%s619 + $0x12f] sm:$0xff]
      %v5584 = vld [vmem:[%s619 + $0x147] sm:$0xff]
      %v5585 = vld [vmem:[%s619 + $0x14f] sm:$0xff]
      %v5586 = vld [vmem:[%s619 + $0x167] sm:$0xff]
      %v5587 = vld [vmem:[%s619 + $0x16f] sm:$0xff]
      %v5588 = vld [vmem:[%s619 + $0x187] sm:$0xff]
      %v5589 = vld [vmem:[%s619 + $0x18f] sm:$0xff]
      %v5590 = vld [vmem:[%s619 + $0x1a7] sm:$0xff]
      %v5591 = vld [vmem:[%s619 + $0x1af] sm:$0xff]
      %v5592 = vld [vmem:[%s619 + $0x1c7] sm:$0xff]
      %v5593 = vld [vmem:[%s619 + $0x1cf] sm:$0xff]
      %v5594 = vld [vmem:[%s619 + $0x1e7] sm:$0xff]
      %v5595 = vld [vmem:[%s619 + $0x1ef] sm:$0xff]
      %v5596 = vld [vmem:[%s619 + $0x247] sm:$0xff]
      %v5597 = vld [vmem:[%s619 + $0x24f] sm:$0xff]
      %v5598 = vld [vmem:[%s619 + $0x267] sm:$0xff]
      %v5599 = vld [vmem:[%s619 + $0x26f] sm:$0xff]
      %v5600 = vld [vmem:[%s619 + $0x287] sm:$0xff]
      %v5601 = vld [vmem:[%s619 + $0x28f] sm:$0xff]
      %v5602 = vld [vmem:[%s619 + $0x2a7] sm:$0xff]
      %v5603 = vld [vmem:[%s619 + $0x2af] sm:$0xff]
      %v5604 = vld [vmem:[%s619 + $0x2c7] sm:$0xff]
      %v5605 = vld [vmem:[%s619 + $0x2cf] sm:$0xff]
      %v5606 = vld [vmem:[%s619 + $0x2e7] sm:$0xff]
      %v5607 = vld [vmem:[%s619 + $0x2ef] sm:$0xff]
      %v5608 = vld [vmem:[%s619 + $0x307] sm:$0xff]
      %v5609 = vld [vmem:[%s619 + $0x30f] sm:$0xff]
      %v5610 = vld [vmem:[%s619 + $0x327] sm:$0xff]
      %v5611 = vld [vmem:[%s619 + $0x32f] sm:$0xff]
      %v5612 = vld [vmem:[%s619 + $0x347] sm:$0xff]
      %v5613 = vld [vmem:[%s619 + $0x34f] sm:$0xff]
      %v5614 = vld [vmem:[%s619 + $0x367] sm:$0xff]
      %v5615 = vld [vmem:[%s619 + $0x36f] sm:$0xff]
      %v5616 = vld [vmem:[%s619 + $0x387] sm:$0xff]
      %v5617 = vld [vmem:[%s619 + $0x38f] sm:$0xff]
      %v5618 = vld [vmem:[%s619 + $0x3a7] sm:$0xff]
      %v5619 = vld [vmem:[%s619 + $0x3af] sm:$0xff]
      %v5620 = vld [vmem:[%s619 + $0x3c7] sm:$0xff]
      %v5621 = vld [vmem:[%s619 + $0x3cf] sm:$0xff]
      %v5622 = vld [vmem:[%s619 + $0x3e7] sm:$0xff]
      %v5623 = vld [vmem:[%s619 + $0x3ef] sm:$0xff]
      %v5624 = vld [vmem:[%s619 + $0x407] sm:$0xff]
      %v5625 = vld [vmem:[%s619 + $0x40f] sm:$0xff]
      %v5626 = vld [vmem:[%s619 + $0x427] sm:$0xff]
      %v5627 = vld [vmem:[%s619 + $0x42f] sm:$0xff]
      %5692 = vrot.lane.b32.xlu0 %v5564, 24
      %v5693 = vpop.permute.xlu0 %5692
      %5694 = vrot.lane.b32.xlu0 %v5565, 24
      %v5695 = vpop.permute.xlu0 %5694
      %5696 = vrot.lane.b32.xlu0 %v5566, 24
      %v5697 = vpop.permute.xlu0 %5696
      %5698 = vrot.lane.b32.xlu0 %v5567, 24
      %v5699 = vpop.permute.xlu0 %5698
      %5700 = vrot.lane.b32.xlu0 %v5568, 24
      %v5701 = vpop.permute.xlu0 %5700
      %5702 = vrot.lane.b32.xlu0 %v5569, 24
      %v5703 = vpop.permute.xlu0 %5702
      %5704 = vrot.lane.b32.xlu0 %v5570, 24
      %v5705 = vpop.permute.xlu0 %5704
      %5706 = vrot.lane.b32.xlu0 %v5571, 24
      %v5707 = vpop.permute.xlu0 %5706
      %5708 = vrot.lane.b32.xlu0 %v5572, 24
      %v5709 = vpop.permute.xlu0 %5708
      %5710 = vrot.lane.b32.xlu0 %v5573, 24
      %v5711 = vpop.permute.xlu0 %5710
      %5712 = vrot.lane.b32.xlu0 %v5574, 24
      %v5713 = vpop.permute.xlu0 %5712
      %5714 = vrot.lane.b32.xlu0 %v5575, 24
      %v5715 = vpop.permute.xlu0 %5714
      %5716 = vrot.lane.b32.xlu0 %v5576, 24
      %v5717 = vpop.permute.xlu0 %5716
      %5718 = vrot.lane.b32.xlu0 %v5577, 24
      %v5719 = vpop.permute.xlu0 %5718
      %5720 = vrot.lane.b32.xlu0 %v5578, 24
      %v5721 = vpop.permute.xlu0 %5720
      %5722 = vrot.lane.b32.xlu0 %v5579, 24
      %v5723 = vpop.permute.xlu0 %5722
      %5724 = vrot.lane.b32.xlu0 %v5580, 24
      %v5725 = vpop.permute.xlu0 %5724
      %5726 = vrot.lane.b32.xlu0 %v5581, 24
      %v5727 = vpop.permute.xlu0 %5726
      %5728 = vrot.lane.b32.xlu0 %v5582, 24
      %v5729 = vpop.permute.xlu0 %5728
      %5730 = vrot.lane.b32.xlu0 %v5583, 24
      %v5731 = vpop.permute.xlu0 %5730
      %5732 = vrot.lane.b32.xlu0 %v5584, 24
      %v5733 = vpop.permute.xlu0 %5732
      %5734 = vrot.lane.b32.xlu0 %v5585, 24
      %v5735 = vpop.permute.xlu0 %5734
      %5736 = vrot.lane.b32.xlu0 %v5586, 24
      %v5737 = vpop.permute.xlu0 %5736
      %5738 = vrot.lane.b32.xlu0 %v5587, 24
      %v5739 = vpop.permute.xlu0 %5738
      %5740 = vrot.lane.b32.xlu0 %v5588, 24
      %v5741 = vpop.permute.xlu0 %5740
      %5742 = vrot.lane.b32.xlu0 %v5589, 24
      %v5743 = vpop.permute.xlu0 %5742
      %5744 = vrot.lane.b32.xlu0 %v5590, 24
      %v5745 = vpop.permute.xlu0 %5744
      %5746 = vrot.lane.b32.xlu0 %v5591, 24
      %v5747 = vpop.permute.xlu0 %5746
      %5748 = vrot.lane.b32.xlu0 %v5592, 24
      %v5749 = vpop.permute.xlu0 %5748
      %5750 = vrot.lane.b32.xlu0 %v5593, 24
      %v5751 = vpop.permute.xlu0 %5750
      %5752 = vrot.lane.b32.xlu0 %v5594, 24
      %v5753 = vpop.permute.xlu0 %5752
      %5754 = vrot.lane.b32.xlu0 %v5595, 24
      %v5755 = vpop.permute.xlu0 %5754
      %5756 = vrot.lane.b32.xlu0 %v5596, 24
      %v5757 = vpop.permute.xlu0 %5756
      %5758 = vrot.lane.b32.xlu0 %v5597, 24
      %v5759 = vpop.permute.xlu0 %5758
      %5760 = vrot.lane.b32.xlu0 %v5598, 24
      %v5761 = vpop.permute.xlu0 %5760
      %5762 = vrot.lane.b32.xlu0 %v5599, 24
      %v5763 = vpop.permute.xlu0 %5762
      %5764 = vrot.lane.b32.xlu0 %v5600, 24
      %v5765 = vpop.permute.xlu0 %5764
      %5766 = vrot.lane.b32.xlu0 %v5601, 24
      %v5767 = vpop.permute.xlu0 %5766
      %5768 = vrot.lane.b32.xlu0 %v5602, 24
      %v5769 = vpop.permute.xlu0 %5768
      %5770 = vrot.lane.b32.xlu0 %v5603, 24
      %v5771 = vpop.permute.xlu0 %5770
      %5772 = vrot.lane.b32.xlu0 %v5604, 24
      %v5773 = vpop.permute.xlu0 %5772
      %5774 = vrot.lane.b32.xlu0 %v5605, 24
      %v5775 = vpop.permute.xlu0 %5774
      %5776 = vrot.lane.b32.xlu0 %v5606, 24
      %v5777 = vpop.permute.xlu0 %5776
      %5778 = vrot.lane.b32.xlu0 %v5607, 24
      %v5779 = vpop.permute.xlu0 %5778
      %5780 = vrot.lane.b32.xlu0 %v5608, 24
      %v5781 = vpop.permute.xlu0 %5780
      %5782 = vrot.lane.b32.xlu0 %v5609, 24
      %v5783 = vpop.permute.xlu0 %5782
      %5784 = vrot.lane.b32.xlu0 %v5610, 24
      %v5785 = vpop.permute.xlu0 %5784
      %5786 = vrot.lane.b32.xlu0 %v5611, 24
      %v5787 = vpop.permute.xlu0 %5786
      %5788 = vrot.lane.b32.xlu0 %v5612, 24
      %v5789 = vpop.permute.xlu0 %5788
      %5790 = vrot.lane.b32.xlu0 %v5613, 24
      %v5791 = vpop.permute.xlu0 %5790
      %5792 = vrot.lane.b32.xlu0 %v5614, 24
      %v5793 = vpop.permute.xlu0 %5792
      %5794 = vrot.lane.b32.xlu0 %v5615, 24
      %v5795 = vpop.permute.xlu0 %5794
      %5796 = vrot.lane.b32.xlu0 %v5616, 24
      %v5797 = vpop.permute.xlu0 %5796
      %5798 = vrot.lane.b32.xlu0 %v5617, 24
      %v5799 = vpop.permute.xlu0 %5798
      %5800 = vrot.lane.b32.xlu0 %v5618, 24
      %v5801 = vpop.permute.xlu0 %5800
      %5802 = vrot.lane.b32.xlu0 %v5619, 24
      %v5803 = vpop.permute.xlu0 %5802
      %5804 = vrot.lane.b32.xlu0 %v5620, 24
      %v5805 = vpop.permute.xlu0 %5804
      %5806 = vrot.lane.b32.xlu0 %v5621, 24
      %v5807 = vpop.permute.xlu0 %5806
      %5808 = vrot.lane.b32.xlu0 %v5622, 24
      %v5809 = vpop.permute.xlu0 %5808
      %5810 = vrot.lane.b32.xlu0 %v5623, 24
      %v5811 = vpop.permute.xlu0 %5810
      %5812 = vrot.lane.b32.xlu0 %v5624, 24
      %v5813 = vpop.permute.xlu0 %5812
      %5814 = vrot.lane.b32.xlu0 %v5625, 24
      %v5815 = vpop.permute.xlu0 %5814
      %5816 = vrot.lane.b32.xlu0 %v5626, 24
      %v5817 = vpop.permute.xlu0 %5816
      %5818 = vrot.lane.b32.xlu0 %v5627, 24
      %v5819 = vpop.permute.xlu0 %5818
      %5884 = vst.msk [vmem:[#allocation4] sm:$0xff] %vm1903, %v5693
      %5885 = vst.msk [vmem:[#allocation4 + $0x8] sm:$0xff] %vm1903, %v5695
      %5886 = vst.msk [vmem:[#allocation4 + $0x10] sm:$0xff] %vm1903, %v5697
      %5887 = vst.msk [vmem:[#allocation4 + $0x18] sm:$0xff] %vm1903, %v5699
      %5888 = vst.msk [vmem:[#allocation4 + $0x20] sm:$0xff] %vm1903, %v5701
      %5889 = vst.msk [vmem:[#allocation4 + $0x28] sm:$0xff] %vm1903, %v5703
      %5890 = vst.msk [vmem:[#allocation4 + $0x30] sm:$0xff] %vm1903, %v5705
      %5891 = vst.msk [vmem:[#allocation4 + $0x38] sm:$0xff] %vm1903, %v5707
      %5892 = vst.msk [vmem:[#allocation4 + $0x40] sm:$0xff] %vm1903, %v5709
      %5893 = vst.msk [vmem:[#allocation4 + $0x48] sm:$0xff] %vm1903, %v5711
      %5894 = vst.msk [vmem:[#allocation4 + $0x50] sm:$0xff] %vm1903, %v5713
      %5895 = vst.msk [vmem:[#allocation4 + $0x58] sm:$0xff] %vm1903, %v5715
      %5896 = vst.msk [vmem:[#allocation4 + $0x60] sm:$0xff] %vm1903, %v5717
      %5897 = vst.msk [vmem:[#allocation4 + $0x68] sm:$0xff] %vm1903, %v5719
      %5898 = vst.msk [vmem:[#allocation4 + $0x70] sm:$0xff] %vm1903, %v5721
      %5899 = vst.msk [vmem:[#allocation4 + $0x78] sm:$0xff] %vm1903, %v5723
      %5900 = vst.msk [vmem:[#allocation4 + $0x80] sm:$0xff] %vm1903, %v5725
      %5901 = vst.msk [vmem:[#allocation4 + $0x88] sm:$0xff] %vm1903, %v5727
      %5902 = vst.msk [vmem:[#allocation4 + $0x90] sm:$0xff] %vm1903, %v5729
      %5903 = vst.msk [vmem:[#allocation4 + $0x98] sm:$0xff] %vm1903, %v5731
      %5904 = vst.msk [vmem:[#allocation4 + $0xa0] sm:$0xff] %vm1903, %v5733
      %5905 = vst.msk [vmem:[#allocation4 + $0xa8] sm:$0xff] %vm1903, %v5735
      %5906 = vst.msk [vmem:[#allocation4 + $0xb0] sm:$0xff] %vm1903, %v5737
      %5907 = vst.msk [vmem:[#allocation4 + $0xb8] sm:$0xff] %vm1903, %v5739
      %5908 = vst.msk [vmem:[#allocation4 + $0xc0] sm:$0xff] %vm1903, %v5741
      %5909 = vst.msk [vmem:[#allocation4 + $0xc8] sm:$0xff] %vm1903, %v5743
      %5910 = vst.msk [vmem:[#allocation4 + $0xd0] sm:$0xff] %vm1903, %v5745
      %5911 = vst.msk [vmem:[#allocation4 + $0xd8] sm:$0xff] %vm1903, %v5747
      %5912 = vst.msk [vmem:[#allocation4 + $0xe0] sm:$0xff] %vm1903, %v5749
      %5913 = vst.msk [vmem:[#allocation4 + $0xe8] sm:$0xff] %vm1903, %v5751
      %5914 = vst.msk [vmem:[#allocation4 + $0xf0] sm:$0xff] %vm1903, %v5753
      %5915 = vst.msk [vmem:[#allocation4 + $0xf8] sm:$0xff] %vm1903, %v5755
      %5916 = vst.msk [vmem:[#allocation4 + $0x100] sm:$0xff] %vm1903, %v5757
      %5917 = vst.msk [vmem:[#allocation4 + $0x108] sm:$0xff] %vm1903, %v5759
      %5918 = vst.msk [vmem:[#allocation4 + $0x110] sm:$0xff] %vm1903, %v5761
      %5919 = vst.msk [vmem:[#allocation4 + $0x118] sm:$0xff] %vm1903, %v5763
      %5920 = vst.msk [vmem:[#allocation4 + $0x120] sm:$0xff] %vm1903, %v5765
      %5921 = vst.msk [vmem:[#allocation4 + $0x128] sm:$0xff] %vm1903, %v5767
      %5922 = vst.msk [vmem:[#allocation4 + $0x130] sm:$0xff] %vm1903, %v5769
      %5923 = vst.msk [vmem:[#allocation4 + $0x138] sm:$0xff] %vm1903, %v5771
      %5924 = vst.msk [vmem:[#allocation4 + $0x140] sm:$0xff] %vm1903, %v5773
      %5925 = vst.msk [vmem:[#allocation4 + $0x148] sm:$0xff] %vm1903, %v5775
      %5926 = vst.msk [vmem:[#allocation4 + $0x150] sm:$0xff] %vm1903, %v5777
      %5927 = vst.msk [vmem:[#allocation4 + $0x158] sm:$0xff] %vm1903, %v5779
      %5928 = vst.msk [vmem:[#allocation4 + $0x160] sm:$0xff] %vm1903, %v5781
      %5929 = vst.msk [vmem:[#allocation4 + $0x168] sm:$0xff] %vm1903, %v5783
      %5930 = vst.msk [vmem:[#allocation4 + $0x170] sm:$0xff] %vm1903, %v5785
      %5931 = vst.msk [vmem:[#allocation4 + $0x178] sm:$0xff] %vm1903, %v5787
      %5932 = vst.msk [vmem:[#allocation4 + $0x180] sm:$0xff] %vm1903, %v5789
      %5933 = vst.msk [vmem:[#allocation4 + $0x188] sm:$0xff] %vm1903, %v5791
      %5934 = vst.msk [vmem:[#allocation4 + $0x190] sm:$0xff] %vm1903, %v5793
      %5935 = vst.msk [vmem:[#allocation4 + $0x198] sm:$0xff] %vm1903, %v5795
      %5936 = vst.msk [vmem:[#allocation4 + $0x1a0] sm:$0xff] %vm1903, %v5797
      %5937 = vst.msk [vmem:[#allocation4 + $0x1a8] sm:$0xff] %vm1903, %v5799
      %5938 = vst.msk [vmem:[#allocation4 + $0x1b0] sm:$0xff] %vm1903, %v5801
      %5939 = vst.msk [vmem:[#allocation4 + $0x1b8] sm:$0xff] %vm1903, %v5803
      %5940 = vst.msk [vmem:[#allocation4 + $0x1c0] sm:$0xff] %vm1903, %v5805
      %5941 = vst.msk [vmem:[#allocation4 + $0x1c8] sm:$0xff] %vm1903, %v5807
      %5942 = vst.msk [vmem:[#allocation4 + $0x1d0] sm:$0xff] %vm1903, %v5809
      %5943 = vst.msk [vmem:[#allocation4 + $0x1d8] sm:$0xff] %vm1903, %v5811
      %5944 = vst.msk [vmem:[#allocation4 + $0x1e0] sm:$0xff] %vm1903, %v5813
      %5945 = vst.msk [vmem:[#allocation4 + $0x1e8] sm:$0xff] %vm1903, %v5815
      %5946 = vst.msk [vmem:[#allocation4 + $0x1f0] sm:$0xff] %vm1903, %v5817
      %5947 = vst.msk [vmem:[#allocation4 + $0x1f8] sm:$0xff] %vm1903, %v5819
      %v5948 = vld [vmem:[%s619 + $0x8] sm:$0xff]
      %v5949 = vld [vmem:[%s619 + $0x10] sm:$0xff]
      %v5950 = vld [vmem:[%s619 + $0x28] sm:$0xff]
      %v5951 = vld [vmem:[%s619 + $0x30] sm:$0xff]
      %v5952 = vld [vmem:[%s619 + $0x48] sm:$0xff]
      %v5953 = vld [vmem:[%s619 + $0x50] sm:$0xff]
      %v5954 = vld [vmem:[%s619 + $0x68] sm:$0xff]
      %v5955 = vld [vmem:[%s619 + $0x70] sm:$0xff]
      %v5956 = vld [vmem:[%s619 + $0x88] sm:$0xff]
      %v5957 = vld [vmem:[%s619 + $0x90] sm:$0xff]
      %v5958 = vld [vmem:[%s619 + $0xa8] sm:$0xff]
      %v5959 = vld [vmem:[%s619 + $0xb0] sm:$0xff]
      %v5960 = vld [vmem:[%s619 + $0xc8] sm:$0xff]
      %v5961 = vld [vmem:[%s619 + $0xd0] sm:$0xff]
      %v5962 = vld [vmem:[%s619 + $0xe8] sm:$0xff]
      %v5963 = vld [vmem:[%s619 + $0xf0] sm:$0xff]
      %v5964 = vld [vmem:[%s619 + $0x108] sm:$0xff]
      %v5965 = vld [vmem:[%s619 + $0x110] sm:$0xff]
      %v5966 = vld [vmem:[%s619 + $0x128] sm:$0xff]
      %v5967 = vld [vmem:[%s619 + $0x130] sm:$0xff]
      %v5968 = vld [vmem:[%s619 + $0x148] sm:$0xff]
      %v5969 = vld [vmem:[%s619 + $0x150] sm:$0xff]
      %v5970 = vld [vmem:[%s619 + $0x168] sm:$0xff]
      %v5971 = vld [vmem:[%s619 + $0x170] sm:$0xff]
      %v5972 = vld [vmem:[%s619 + $0x188] sm:$0xff]
      %v5973 = vld [vmem:[%s619 + $0x190] sm:$0xff]
      %v5974 = vld [vmem:[%s619 + $0x1a8] sm:$0xff]
      %v5975 = vld [vmem:[%s619 + $0x1b0] sm:$0xff]
      %v5976 = vld [vmem:[%s619 + $0x1c8] sm:$0xff]
      %v5977 = vld [vmem:[%s619 + $0x1d0] sm:$0xff]
      %v5978 = vld [vmem:[%s619 + $0x1e8] sm:$0xff]
      %v5979 = vld [vmem:[%s619 + $0x1f0] sm:$0xff]
      %v5980 = vld [vmem:[%s619 + $0x248] sm:$0xff]
      %v5981 = vld [vmem:[%s619 + $0x250] sm:$0xff]
      %v5982 = vld [vmem:[%s619 + $0x268] sm:$0xff]
      %v5983 = vld [vmem:[%s619 + $0x270] sm:$0xff]
      %v5984 = vld [vmem:[%s619 + $0x288] sm:$0xff]
      %v5985 = vld [vmem:[%s619 + $0x290] sm:$0xff]
      %v5986 = vld [vmem:[%s619 + $0x2a8] sm:$0xff]
      %v5987 = vld [vmem:[%s619 + $0x2b0] sm:$0xff]
      %v5988 = vld [vmem:[%s619 + $0x2c8] sm:$0xff]
      %v5989 = vld [vmem:[%s619 + $0x2d0] sm:$0xff]
      %v5990 = vld [vmem:[%s619 + $0x2e8] sm:$0xff]
      %v5991 = vld [vmem:[%s619 + $0x2f0] sm:$0xff]
      %v5992 = vld [vmem:[%s619 + $0x308] sm:$0xff]
      %v5993 = vld [vmem:[%s619 + $0x310] sm:$0xff]
      %v5994 = vld [vmem:[%s619 + $0x328] sm:$0xff]
      %v5995 = vld [vmem:[%s619 + $0x330] sm:$0xff]
      %v5996 = vld [vmem:[%s619 + $0x348] sm:$0xff]
      %v5997 = vld [vmem:[%s619 + $0x350] sm:$0xff]
      %v5998 = vld [vmem:[%s619 + $0x368] sm:$0xff]
      %v5999 = vld [vmem:[%s619 + $0x370] sm:$0xff]
      %v6000 = vld [vmem:[%s619 + $0x388] sm:$0xff]
      %v6001 = vld [vmem:[%s619 + $0x390] sm:$0xff]
      %v6002 = vld [vmem:[%s619 + $0x3a8] sm:$0xff]
      %v6003 = vld [vmem:[%s619 + $0x3b0] sm:$0xff]
      %v6004 = vld [vmem:[%s619 + $0x3c8] sm:$0xff]
      %v6005 = vld [vmem:[%s619 + $0x3d0] sm:$0xff]
      %v6006 = vld [vmem:[%s619 + $0x3e8] sm:$0xff]
      %v6007 = vld [vmem:[%s619 + $0x3f0] sm:$0xff]
      %v6008 = vld [vmem:[%s619 + $0x408] sm:$0xff]
      %v6009 = vld [vmem:[%s619 + $0x410] sm:$0xff]
      %v6010 = vld [vmem:[%s619 + $0x428] sm:$0xff]
      %v6011 = vld [vmem:[%s619 + $0x430] sm:$0xff]
      %6076 = vrot.lane.b32.xlu0 %v5948, 32
      %v6077 = vpop.permute.xlu0 %6076
      %6078 = vrot.lane.b32.xlu0 %v5949, 32
      %v6079 = vpop.permute.xlu0 %6078
      %6080 = vrot.lane.b32.xlu0 %v5950, 32
      %v6081 = vpop.permute.xlu0 %6080
      %6082 = vrot.lane.b32.xlu0 %v5951, 32
      %v6083 = vpop.permute.xlu0 %6082
      %6084 = vrot.lane.b32.xlu0 %v5952, 32
      %v6085 = vpop.permute.xlu0 %6084
      %6086 = vrot.lane.b32.xlu0 %v5953, 32
      %v6087 = vpop.permute.xlu0 %6086
      %6088 = vrot.lane.b32.xlu0 %v5954, 32
      %v6089 = vpop.permute.xlu0 %6088
      %6090 = vrot.lane.b32.xlu0 %v5955, 32
      %v6091 = vpop.permute.xlu0 %6090
      %6092 = vrot.lane.b32.xlu0 %v5956, 32
      %v6093 = vpop.permute.xlu0 %6092
      %6094 = vrot.lane.b32.xlu0 %v5957, 32
      %v6095 = vpop.permute.xlu0 %6094
      %6096 = vrot.lane.b32.xlu0 %v5958, 32
      %v6097 = vpop.permute.xlu0 %6096
      %6098 = vrot.lane.b32.xlu0 %v5959, 32
      %v6099 = vpop.permute.xlu0 %6098
      %6100 = vrot.lane.b32.xlu0 %v5960, 32
      %v6101 = vpop.permute.xlu0 %6100
      %6102 = vrot.lane.b32.xlu0 %v5961, 32
      %v6103 = vpop.permute.xlu0 %6102
      %6104 = vrot.lane.b32.xlu0 %v5962, 32
      %v6105 = vpop.permute.xlu0 %6104
      %6106 = vrot.lane.b32.xlu0 %v5963, 32
      %v6107 = vpop.permute.xlu0 %6106
      %6108 = vrot.lane.b32.xlu0 %v5964, 32
      %v6109 = vpop.permute.xlu0 %6108
      %6110 = vrot.lane.b32.xlu0 %v5965, 32
      %v6111 = vpop.permute.xlu0 %6110
      %6112 = vrot.lane.b32.xlu0 %v5966, 32
      %v6113 = vpop.permute.xlu0 %6112
      %6114 = vrot.lane.b32.xlu0 %v5967, 32
      %v6115 = vpop.permute.xlu0 %6114
      %6116 = vrot.lane.b32.xlu0 %v5968, 32
      %v6117 = vpop.permute.xlu0 %6116
      %6118 = vrot.lane.b32.xlu0 %v5969, 32
      %v6119 = vpop.permute.xlu0 %6118
      %6120 = vrot.lane.b32.xlu0 %v5970, 32
      %v6121 = vpop.permute.xlu0 %6120
      %6122 = vrot.lane.b32.xlu0 %v5971, 32
      %v6123 = vpop.permute.xlu0 %6122
      %6124 = vrot.lane.b32.xlu0 %v5972, 32
      %v6125 = vpop.permute.xlu0 %6124
      %6126 = vrot.lane.b32.xlu0 %v5973, 32
      %v6127 = vpop.permute.xlu0 %6126
      %6128 = vrot.lane.b32.xlu0 %v5974, 32
      %v6129 = vpop.permute.xlu0 %6128
      %6130 = vrot.lane.b32.xlu0 %v5975, 32
      %v6131 = vpop.permute.xlu0 %6130
      %6132 = vrot.lane.b32.xlu0 %v5976, 32
      %v6133 = vpop.permute.xlu0 %6132
      %6134 = vrot.lane.b32.xlu0 %v5977, 32
      %v6135 = vpop.permute.xlu0 %6134
      %6136 = vrot.lane.b32.xlu0 %v5978, 32
      %v6137 = vpop.permute.xlu0 %6136
      %6138 = vrot.lane.b32.xlu0 %v5979, 32
      %v6139 = vpop.permute.xlu0 %6138
      %6140 = vrot.lane.b32.xlu0 %v5980, 32
      %v6141 = vpop.permute.xlu0 %6140
      %6142 = vrot.lane.b32.xlu0 %v5981, 32
      %v6143 = vpop.permute.xlu0 %6142
      %6144 = vrot.lane.b32.xlu0 %v5982, 32
      %v6145 = vpop.permute.xlu0 %6144
      %6146 = vrot.lane.b32.xlu0 %v5983, 32
      %v6147 = vpop.permute.xlu0 %6146
      %6148 = vrot.lane.b32.xlu0 %v5984, 32
      %v6149 = vpop.permute.xlu0 %6148
      %6150 = vrot.lane.b32.xlu0 %v5985, 32
      %v6151 = vpop.permute.xlu0 %6150
      %6152 = vrot.lane.b32.xlu0 %v5986, 32
      %v6153 = vpop.permute.xlu0 %6152
      %6154 = vrot.lane.b32.xlu0 %v5987, 32
      %v6155 = vpop.permute.xlu0 %6154
      %6156 = vrot.lane.b32.xlu0 %v5988, 32
      %v6157 = vpop.permute.xlu0 %6156
      %6158 = vrot.lane.b32.xlu0 %v5989, 32
      %v6159 = vpop.permute.xlu0 %6158
      %6160 = vrot.lane.b32.xlu0 %v5990, 32
      %v6161 = vpop.permute.xlu0 %6160
      %6162 = vrot.lane.b32.xlu0 %v5991, 32
      %v6163 = vpop.permute.xlu0 %6162
      %6164 = vrot.lane.b32.xlu0 %v5992, 32
      %v6165 = vpop.permute.xlu0 %6164
      %6166 = vrot.lane.b32.xlu0 %v5993, 32
      %v6167 = vpop.permute.xlu0 %6166
      %6168 = vrot.lane.b32.xlu0 %v5994, 32
      %v6169 = vpop.permute.xlu0 %6168
      %6170 = vrot.lane.b32.xlu0 %v5995, 32
      %v6171 = vpop.permute.xlu0 %6170
      %6172 = vrot.lane.b32.xlu0 %v5996, 32
      %v6173 = vpop.permute.xlu0 %6172
      %6174 = vrot.lane.b32.xlu0 %v5997, 32
      %v6175 = vpop.permute.xlu0 %6174
      %6176 = vrot.lane.b32.xlu0 %v5998, 32
      %v6177 = vpop.permute.xlu0 %6176
      %6178 = vrot.lane.b32.xlu0 %v5999, 32
      %v6179 = vpop.permute.xlu0 %6178
      %6180 = vrot.lane.b32.xlu0 %v6000, 32
      %v6181 = vpop.permute.xlu0 %6180
      %6182 = vrot.lane.b32.xlu0 %v6001, 32
      %v6183 = vpop.permute.xlu0 %6182
      %6184 = vrot.lane.b32.xlu0 %v6002, 32
      %v6185 = vpop.permute.xlu0 %6184
      %6186 = vrot.lane.b32.xlu0 %v6003, 32
      %v6187 = vpop.permute.xlu0 %6186
      %6188 = vrot.lane.b32.xlu0 %v6004, 32
      %v6189 = vpop.permute.xlu0 %6188
      %6190 = vrot.lane.b32.xlu0 %v6005, 32
      %v6191 = vpop.permute.xlu0 %6190
      %6192 = vrot.lane.b32.xlu0 %v6006, 32
      %v6193 = vpop.permute.xlu0 %6192
      %6194 = vrot.lane.b32.xlu0 %v6007, 32
      %v6195 = vpop.permute.xlu0 %6194
      %6196 = vrot.lane.b32.xlu0 %v6008, 32
      %v6197 = vpop.permute.xlu0 %6196
      %6198 = vrot.lane.b32.xlu0 %v6009, 32
      %v6199 = vpop.permute.xlu0 %6198
      %6200 = vrot.lane.b32.xlu0 %v6010, 32
      %v6201 = vpop.permute.xlu0 %6200
      %6202 = vrot.lane.b32.xlu0 %v6011, 32
      %v6203 = vpop.permute.xlu0 %6202
      %6268 = vst.msk [vmem:[#allocation4] sm:$0xff] %vm2288, %v6077
      %6269 = vst.msk [vmem:[#allocation4 + $0x8] sm:$0xff] %vm2288, %v6079
      %6270 = vst.msk [vmem:[#allocation4 + $0x10] sm:$0xff] %vm2288, %v6081
      %6271 = vst.msk [vmem:[#allocation4 + $0x18] sm:$0xff] %vm2288, %v6083
      %6272 = vst.msk [vmem:[#allocation4 + $0x20] sm:$0xff] %vm2288, %v6085
      %6273 = vst.msk [vmem:[#allocation4 + $0x28] sm:$0xff] %vm2288, %v6087
      %6274 = vst.msk [vmem:[#allocation4 + $0x30] sm:$0xff] %vm2288, %v6089
      %6275 = vst.msk [vmem:[#allocation4 + $0x38] sm:$0xff] %vm2288, %v6091
      %6276 = vst.msk [vmem:[#allocation4 + $0x40] sm:$0xff] %vm2288, %v6093
      %6277 = vst.msk [vmem:[#allocation4 + $0x48] sm:$0xff] %vm2288, %v6095
      %6278 = vst.msk [vmem:[#allocation4 + $0x50] sm:$0xff] %vm2288, %v6097
      %6279 = vst.msk [vmem:[#allocation4 + $0x58] sm:$0xff] %vm2288, %v6099
      %6280 = vst.msk [vmem:[#allocation4 + $0x60] sm:$0xff] %vm2288, %v6101
      %6281 = vst.msk [vmem:[#allocation4 + $0x68] sm:$0xff] %vm2288, %v6103
      %6282 = vst.msk [vmem:[#allocation4 + $0x70] sm:$0xff] %vm2288, %v6105
      %6283 = vst.msk [vmem:[#allocation4 + $0x78] sm:$0xff] %vm2288, %v6107
      %6284 = vst.msk [vmem:[#allocation4 + $0x80] sm:$0xff] %vm2288, %v6109
      %6285 = vst.msk [vmem:[#allocation4 + $0x88] sm:$0xff] %vm2288, %v6111
      %6286 = vst.msk [vmem:[#allocation4 + $0x90] sm:$0xff] %vm2288, %v6113
      %6287 = vst.msk [vmem:[#allocation4 + $0x98] sm:$0xff] %vm2288, %v6115
      %6288 = vst.msk [vmem:[#allocation4 + $0xa0] sm:$0xff] %vm2288, %v6117
      %6289 = vst.msk [vmem:[#allocation4 + $0xa8] sm:$0xff] %vm2288, %v6119
      %6290 = vst.msk [vmem:[#allocation4 + $0xb0] sm:$0xff] %vm2288, %v6121
      %6291 = vst.msk [vmem:[#allocation4 + $0xb8] sm:$0xff] %vm2288, %v6123
      %6292 = vst.msk [vmem:[#allocation4 + $0xc0] sm:$0xff] %vm2288, %v6125
      %6293 = vst.msk [vmem:[#allocation4 + $0xc8] sm:$0xff] %vm2288, %v6127
      %6294 = vst.msk [vmem:[#allocation4 + $0xd0] sm:$0xff] %vm2288, %v6129
      %6295 = vst.msk [vmem:[#allocation4 + $0xd8] sm:$0xff] %vm2288, %v6131
      %6296 = vst.msk [vmem:[#allocation4 + $0xe0] sm:$0xff] %vm2288, %v6133
      %6297 = vst.msk [vmem:[#allocation4 + $0xe8] sm:$0xff] %vm2288, %v6135
      %6298 = vst.msk [vmem:[#allocation4 + $0xf0] sm:$0xff] %vm2288, %v6137
      %6299 = vst.msk [vmem:[#allocation4 + $0xf8] sm:$0xff] %vm2288, %v6139
      %6300 = vst.msk [vmem:[#allocation4 + $0x100] sm:$0xff] %vm2288, %v6141
      %6301 = vst.msk [vmem:[#allocation4 + $0x108] sm:$0xff] %vm2288, %v6143
      %6302 = vst.msk [vmem:[#allocation4 + $0x110] sm:$0xff] %vm2288, %v6145
      %6303 = vst.msk [vmem:[#allocation4 + $0x118] sm:$0xff] %vm2288, %v6147
      %6304 = vst.msk [vmem:[#allocation4 + $0x120] sm:$0xff] %vm2288, %v6149
      %6305 = vst.msk [vmem:[#allocation4 + $0x128] sm:$0xff] %vm2288, %v6151
      %6306 = vst.msk [vmem:[#allocation4 + $0x130] sm:$0xff] %vm2288, %v6153
      %6307 = vst.msk [vmem:[#allocation4 + $0x138] sm:$0xff] %vm2288, %v6155
      %6308 = vst.msk [vmem:[#allocation4 + $0x140] sm:$0xff] %vm2288, %v6157
      %6309 = vst.msk [vmem:[#allocation4 + $0x148] sm:$0xff] %vm2288, %v6159
      %6310 = vst.msk [vmem:[#allocation4 + $0x150] sm:$0xff] %vm2288, %v6161
      %6311 = vst.msk [vmem:[#allocation4 + $0x158] sm:$0xff] %vm2288, %v6163
      %6312 = vst.msk [vmem:[#allocation4 + $0x160] sm:$0xff] %vm2288, %v6165
      %6313 = vst.msk [vmem:[#allocation4 + $0x168] sm:$0xff] %vm2288, %v6167
      %6314 = vst.msk [vmem:[#allocation4 + $0x170] sm:$0xff] %vm2288, %v6169
      %6315 = vst.msk [vmem:[#allocation4 + $0x178] sm:$0xff] %vm2288, %v6171
      %6316 = vst.msk [vmem:[#allocation4 + $0x180] sm:$0xff] %vm2288, %v6173
      %6317 = vst.msk [vmem:[#allocation4 + $0x188] sm:$0xff] %vm2288, %v6175
      %6318 = vst.msk [vmem:[#allocation4 + $0x190] sm:$0xff] %vm2288, %v6177
      %6319 = vst.msk [vmem:[#allocation4 + $0x198] sm:$0xff] %vm2288, %v6179
      %6320 = vst.msk [vmem:[#allocation4 + $0x1a0] sm:$0xff] %vm2288, %v6181
      %6321 = vst.msk [vmem:[#allocation4 + $0x1a8] sm:$0xff] %vm2288, %v6183
      %6322 = vst.msk [vmem:[#allocation4 + $0x1b0] sm:$0xff] %vm2288, %v6185
      %6323 = vst.msk [vmem:[#allocation4 + $0x1b8] sm:$0xff] %vm2288, %v6187
      %6324 = vst.msk [vmem:[#allocation4 + $0x1c0] sm:$0xff] %vm2288, %v6189
      %6325 = vst.msk [vmem:[#allocation4 + $0x1c8] sm:$0xff] %vm2288, %v6191
      %6326 = vst.msk [vmem:[#allocation4 + $0x1d0] sm:$0xff] %vm2288, %v6193
      %6327 = vst.msk [vmem:[#allocation4 + $0x1d8] sm:$0xff] %vm2288, %v6195
      %6328 = vst.msk [vmem:[#allocation4 + $0x1e0] sm:$0xff] %vm2288, %v6197
      %6329 = vst.msk [vmem:[#allocation4 + $0x1e8] sm:$0xff] %vm2288, %v6199
      %6330 = vst.msk [vmem:[#allocation4 + $0x1f0] sm:$0xff] %vm2288, %v6201
      %6331 = vst.msk [vmem:[#allocation4 + $0x1f8] sm:$0xff] %vm2288, %v6203
      %v6332 = vld [vmem:[%s619 + $0x9] sm:$0xff]
      %v6333 = vld [vmem:[%s619 + $0x11] sm:$0xff]
      %v6334 = vld [vmem:[%s619 + $0x29] sm:$0xff]
      %v6335 = vld [vmem:[%s619 + $0x31] sm:$0xff]
      %v6336 = vld [vmem:[%s619 + $0x49] sm:$0xff]
      %v6337 = vld [vmem:[%s619 + $0x51] sm:$0xff]
      %v6338 = vld [vmem:[%s619 + $0x69] sm:$0xff]
      %v6339 = vld [vmem:[%s619 + $0x71] sm:$0xff]
      %v6340 = vld [vmem:[%s619 + $0x89] sm:$0xff]
      %v6341 = vld [vmem:[%s619 + $0x91] sm:$0xff]
      %v6342 = vld [vmem:[%s619 + $0xa9] sm:$0xff]
      %v6343 = vld [vmem:[%s619 + $0xb1] sm:$0xff]
      %v6344 = vld [vmem:[%s619 + $0xc9] sm:$0xff]
      %v6345 = vld [vmem:[%s619 + $0xd1] sm:$0xff]
      %v6346 = vld [vmem:[%s619 + $0xe9] sm:$0xff]
      %v6347 = vld [vmem:[%s619 + $0xf1] sm:$0xff]
      %v6348 = vld [vmem:[%s619 + $0x109] sm:$0xff]
      %v6349 = vld [vmem:[%s619 + $0x111] sm:$0xff]
      %v6350 = vld [vmem:[%s619 + $0x129] sm:$0xff]
      %v6351 = vld [vmem:[%s619 + $0x131] sm:$0xff]
      %v6352 = vld [vmem:[%s619 + $0x149] sm:$0xff]
      %v6353 = vld [vmem:[%s619 + $0x151] sm:$0xff]
      %v6354 = vld [vmem:[%s619 + $0x169] sm:$0xff]
      %v6355 = vld [vmem:[%s619 + $0x171] sm:$0xff]
      %v6356 = vld [vmem:[%s619 + $0x189] sm:$0xff]
      %v6357 = vld [vmem:[%s619 + $0x191] sm:$0xff]
      %v6358 = vld [vmem:[%s619 + $0x1a9] sm:$0xff]
      %v6359 = vld [vmem:[%s619 + $0x1b1] sm:$0xff]
      %v6360 = vld [vmem:[%s619 + $0x1c9] sm:$0xff]
      %v6361 = vld [vmem:[%s619 + $0x1d1] sm:$0xff]
      %v6362 = vld [vmem:[%s619 + $0x1e9] sm:$0xff]
      %v6363 = vld [vmem:[%s619 + $0x1f1] sm:$0xff]
      %v6364 = vld [vmem:[%s619 + $0x249] sm:$0xff]
      %v6365 = vld [vmem:[%s619 + $0x251] sm:$0xff]
      %v6366 = vld [vmem:[%s619 + $0x269] sm:$0xff]
      %v6367 = vld [vmem:[%s619 + $0x271] sm:$0xff]
      %v6368 = vld [vmem:[%s619 + $0x289] sm:$0xff]
      %v6369 = vld [vmem:[%s619 + $0x291] sm:$0xff]
      %v6370 = vld [vmem:[%s619 + $0x2a9] sm:$0xff]
      %v6371 = vld [vmem:[%s619 + $0x2b1] sm:$0xff]
      %v6372 = vld [vmem:[%s619 + $0x2c9] sm:$0xff]
      %v6373 = vld [vmem:[%s619 + $0x2d1] sm:$0xff]
      %v6374 = vld [vmem:[%s619 + $0x2e9] sm:$0xff]
      %v6375 = vld [vmem:[%s619 + $0x2f1] sm:$0xff]
      %v6376 = vld [vmem:[%s619 + $0x309] sm:$0xff]
      %v6377 = vld [vmem:[%s619 + $0x311] sm:$0xff]
      %v6378 = vld [vmem:[%s619 + $0x329] sm:$0xff]
      %v6379 = vld [vmem:[%s619 + $0x331] sm:$0xff]
      %v6380 = vld [vmem:[%s619 + $0x349] sm:$0xff]
      %v6381 = vld [vmem:[%s619 + $0x351] sm:$0xff]
      %v6382 = vld [vmem:[%s619 + $0x369] sm:$0xff]
      %v6383 = vld [vmem:[%s619 + $0x371] sm:$0xff]
      %v6384 = vld [vmem:[%s619 + $0x389] sm:$0xff]
      %v6385 = vld [vmem:[%s619 + $0x391] sm:$0xff]
      %v6386 = vld [vmem:[%s619 + $0x3a9] sm:$0xff]
      %v6387 = vld [vmem:[%s619 + $0x3b1] sm:$0xff]
      %v6388 = vld [vmem:[%s619 + $0x3c9] sm:$0xff]
      %v6389 = vld [vmem:[%s619 + $0x3d1] sm:$0xff]
      %v6390 = vld [vmem:[%s619 + $0x3e9] sm:$0xff]
      %v6391 = vld [vmem:[%s619 + $0x3f1] sm:$0xff]
      %v6392 = vld [vmem:[%s619 + $0x409] sm:$0xff]
      %v6393 = vld [vmem:[%s619 + $0x411] sm:$0xff]
      %v6394 = vld [vmem:[%s619 + $0x429] sm:$0xff]
      %v6395 = vld [vmem:[%s619 + $0x431] sm:$0xff]
      %6460 = vrot.lane.b32.xlu0 %v6332, 40
      %v6461 = vpop.permute.xlu0 %6460
      %6462 = vrot.lane.b32.xlu0 %v6333, 40
      %v6463 = vpop.permute.xlu0 %6462
      %6464 = vrot.lane.b32.xlu0 %v6334, 40
      %v6465 = vpop.permute.xlu0 %6464
      %6466 = vrot.lane.b32.xlu0 %v6335, 40
      %v6467 = vpop.permute.xlu0 %6466
      %6468 = vrot.lane.b32.xlu0 %v6336, 40
      %v6469 = vpop.permute.xlu0 %6468
      %6470 = vrot.lane.b32.xlu0 %v6337, 40
      %v6471 = vpop.permute.xlu0 %6470
      %6472 = vrot.lane.b32.xlu0 %v6338, 40
      %v6473 = vpop.permute.xlu0 %6472
      %6474 = vrot.lane.b32.xlu0 %v6339, 40
      %v6475 = vpop.permute.xlu0 %6474
      %6476 = vrot.lane.b32.xlu0 %v6340, 40
      %v6477 = vpop.permute.xlu0 %6476
      %6478 = vrot.lane.b32.xlu0 %v6341, 40
      %v6479 = vpop.permute.xlu0 %6478
      %6480 = vrot.lane.b32.xlu0 %v6342, 40
      %v6481 = vpop.permute.xlu0 %6480
      %6482 = vrot.lane.b32.xlu0 %v6343, 40
      %v6483 = vpop.permute.xlu0 %6482
      %6484 = vrot.lane.b32.xlu0 %v6344, 40
      %v6485 = vpop.permute.xlu0 %6484
      %6486 = vrot.lane.b32.xlu0 %v6345, 40
      %v6487 = vpop.permute.xlu0 %6486
      %6488 = vrot.lane.b32.xlu0 %v6346, 40
      %v6489 = vpop.permute.xlu0 %6488
      %6490 = vrot.lane.b32.xlu0 %v6347, 40
      %v6491 = vpop.permute.xlu0 %6490
      %6492 = vrot.lane.b32.xlu0 %v6348, 40
      %v6493 = vpop.permute.xlu0 %6492
      %6494 = vrot.lane.b32.xlu0 %v6349, 40
      %v6495 = vpop.permute.xlu0 %6494
      %6496 = vrot.lane.b32.xlu0 %v6350, 40
      %v6497 = vpop.permute.xlu0 %6496
      %6498 = vrot.lane.b32.xlu0 %v6351, 40
      %v6499 = vpop.permute.xlu0 %6498
      %6500 = vrot.lane.b32.xlu0 %v6352, 40
      %v6501 = vpop.permute.xlu0 %6500
      %6502 = vrot.lane.b32.xlu0 %v6353, 40
      %v6503 = vpop.permute.xlu0 %6502
      %6504 = vrot.lane.b32.xlu0 %v6354, 40
      %v6505 = vpop.permute.xlu0 %6504
      %6506 = vrot.lane.b32.xlu0 %v6355, 40
      %v6507 = vpop.permute.xlu0 %6506
      %6508 = vrot.lane.b32.xlu0 %v6356, 40
      %v6509 = vpop.permute.xlu0 %6508
      %6510 = vrot.lane.b32.xlu0 %v6357, 40
      %v6511 = vpop.permute.xlu0 %6510
      %6512 = vrot.lane.b32.xlu0 %v6358, 40
      %v6513 = vpop.permute.xlu0 %6512
      %6514 = vrot.lane.b32.xlu0 %v6359, 40
      %v6515 = vpop.permute.xlu0 %6514
      %6516 = vrot.lane.b32.xlu0 %v6360, 40
      %v6517 = vpop.permute.xlu0 %6516
      %6518 = vrot.lane.b32.xlu0 %v6361, 40
      %v6519 = vpop.permute.xlu0 %6518
      %6520 = vrot.lane.b32.xlu0 %v6362, 40
      %v6521 = vpop.permute.xlu0 %6520
      %6522 = vrot.lane.b32.xlu0 %v6363, 40
      %v6523 = vpop.permute.xlu0 %6522
      %6524 = vrot.lane.b32.xlu0 %v6364, 40
      %v6525 = vpop.permute.xlu0 %6524
      %6526 = vrot.lane.b32.xlu0 %v6365, 40
      %v6527 = vpop.permute.xlu0 %6526
      %6528 = vrot.lane.b32.xlu0 %v6366, 40
      %v6529 = vpop.permute.xlu0 %6528
      %6530 = vrot.lane.b32.xlu0 %v6367, 40
      %v6531 = vpop.permute.xlu0 %6530
      %6532 = vrot.lane.b32.xlu0 %v6368, 40
      %v6533 = vpop.permute.xlu0 %6532
      %6534 = vrot.lane.b32.xlu0 %v6369, 40
      %v6535 = vpop.permute.xlu0 %6534
      %6536 = vrot.lane.b32.xlu0 %v6370, 40
      %v6537 = vpop.permute.xlu0 %6536
      %6538 = vrot.lane.b32.xlu0 %v6371, 40
      %v6539 = vpop.permute.xlu0 %6538
      %6540 = vrot.lane.b32.xlu0 %v6372, 40
      %v6541 = vpop.permute.xlu0 %6540
      %6542 = vrot.lane.b32.xlu0 %v6373, 40
      %v6543 = vpop.permute.xlu0 %6542
      %6544 = vrot.lane.b32.xlu0 %v6374, 40
      %v6545 = vpop.permute.xlu0 %6544
      %6546 = vrot.lane.b32.xlu0 %v6375, 40
      %v6547 = vpop.permute.xlu0 %6546
      %6548 = vrot.lane.b32.xlu0 %v6376, 40
      %v6549 = vpop.permute.xlu0 %6548
      %6550 = vrot.lane.b32.xlu0 %v6377, 40
      %v6551 = vpop.permute.xlu0 %6550
      %6552 = vrot.lane.b32.xlu0 %v6378, 40
      %v6553 = vpop.permute.xlu0 %6552
      %6554 = vrot.lane.b32.xlu0 %v6379, 40
      %v6555 = vpop.permute.xlu0 %6554
      %6556 = vrot.lane.b32.xlu0 %v6380, 40
      %v6557 = vpop.permute.xlu0 %6556
      %6558 = vrot.lane.b32.xlu0 %v6381, 40
      %v6559 = vpop.permute.xlu0 %6558
      %6560 = vrot.lane.b32.xlu0 %v6382, 40
      %v6561 = vpop.permute.xlu0 %6560
      %6562 = vrot.lane.b32.xlu0 %v6383, 40
      %v6563 = vpop.permute.xlu0 %6562
      %6564 = vrot.lane.b32.xlu0 %v6384, 40
      %v6565 = vpop.permute.xlu0 %6564
      %6566 = vrot.lane.b32.xlu0 %v6385, 40
      %v6567 = vpop.permute.xlu0 %6566
      %6568 = vrot.lane.b32.xlu0 %v6386, 40
      %v6569 = vpop.permute.xlu0 %6568
      %6570 = vrot.lane.b32.xlu0 %v6387, 40
      %v6571 = vpop.permute.xlu0 %6570
      %6572 = vrot.lane.b32.xlu0 %v6388, 40
      %v6573 = vpop.permute.xlu0 %6572
      %6574 = vrot.lane.b32.xlu0 %v6389, 40
      %v6575 = vpop.permute.xlu0 %6574
      %6576 = vrot.lane.b32.xlu0 %v6390, 40
      %v6577 = vpop.permute.xlu0 %6576
      %6578 = vrot.lane.b32.xlu0 %v6391, 40
      %v6579 = vpop.permute.xlu0 %6578
      %6580 = vrot.lane.b32.xlu0 %v6392, 40
      %v6581 = vpop.permute.xlu0 %6580
      %6582 = vrot.lane.b32.xlu0 %v6393, 40
      %v6583 = vpop.permute.xlu0 %6582
      %6584 = vrot.lane.b32.xlu0 %v6394, 40
      %v6585 = vpop.permute.xlu0 %6584
      %6586 = vrot.lane.b32.xlu0 %v6395, 40
      %v6587 = vpop.permute.xlu0 %6586
      %6652 = vst.msk [vmem:[#allocation4] sm:$0xff] %vm2673, %v6461
      %6653 = vst.msk [vmem:[#allocation4 + $0x8] sm:$0xff] %vm2673, %v6463
      %6654 = vst.msk [vmem:[#allocation4 + $0x10] sm:$0xff] %vm2673, %v6465
      %6655 = vst.msk [vmem:[#allocation4 + $0x18] sm:$0xff] %vm2673, %v6467
      %6656 = vst.msk [vmem:[#allocation4 + $0x20] sm:$0xff] %vm2673, %v6469
      %6657 = vst.msk [vmem:[#allocation4 + $0x28] sm:$0xff] %vm2673, %v6471
      %6658 = vst.msk [vmem:[#allocation4 + $0x30] sm:$0xff] %vm2673, %v6473
      %6659 = vst.msk [vmem:[#allocation4 + $0x38] sm:$0xff] %vm2673, %v6475
      %6660 = vst.msk [vmem:[#allocation4 + $0x40] sm:$0xff] %vm2673, %v6477
      %6661 = vst.msk [vmem:[#allocation4 + $0x48] sm:$0xff] %vm2673, %v6479
      %6662 = vst.msk [vmem:[#allocation4 + $0x50] sm:$0xff] %vm2673, %v6481
      %6663 = vst.msk [vmem:[#allocation4 + $0x58] sm:$0xff] %vm2673, %v6483
      %6664 = vst.msk [vmem:[#allocation4 + $0x60] sm:$0xff] %vm2673, %v6485
      %6665 = vst.msk [vmem:[#allocation4 + $0x68] sm:$0xff] %vm2673, %v6487
      %6666 = vst.msk [vmem:[#allocation4 + $0x70] sm:$0xff] %vm2673, %v6489
      %6667 = vst.msk [vmem:[#allocation4 + $0x78] sm:$0xff] %vm2673, %v6491
      %6668 = vst.msk [vmem:[#allocation4 + $0x80] sm:$0xff] %vm2673, %v6493
      %6669 = vst.msk [vmem:[#allocation4 + $0x88] sm:$0xff] %vm2673, %v6495
      %6670 = vst.msk [vmem:[#allocation4 + $0x90] sm:$0xff] %vm2673, %v6497
      %6671 = vst.msk [vmem:[#allocation4 + $0x98] sm:$0xff] %vm2673, %v6499
      %6672 = vst.msk [vmem:[#allocation4 + $0xa0] sm:$0xff] %vm2673, %v6501
      %6673 = vst.msk [vmem:[#allocation4 + $0xa8] sm:$0xff] %vm2673, %v6503
      %6674 = vst.msk [vmem:[#allocation4 + $0xb0] sm:$0xff] %vm2673, %v6505
      %6675 = vst.msk [vmem:[#allocation4 + $0xb8] sm:$0xff] %vm2673, %v6507
      %6676 = vst.msk [vmem:[#allocation4 + $0xc0] sm:$0xff] %vm2673, %v6509
      %6677 = vst.msk [vmem:[#allocation4 + $0xc8] sm:$0xff] %vm2673, %v6511
      %6678 = vst.msk [vmem:[#allocation4 + $0xd0] sm:$0xff] %vm2673, %v6513
      %6679 = vst.msk [vmem:[#allocation4 + $0xd8] sm:$0xff] %vm2673, %v6515
      %6680 = vst.msk [vmem:[#allocation4 + $0xe0] sm:$0xff] %vm2673, %v6517
      %6681 = vst.msk [vmem:[#allocation4 + $0xe8] sm:$0xff] %vm2673, %v6519
      %6682 = vst.msk [vmem:[#allocation4 + $0xf0] sm:$0xff] %vm2673, %v6521
      %6683 = vst.msk [vmem:[#allocation4 + $0xf8] sm:$0xff] %vm2673, %v6523
      %6684 = vst.msk [vmem:[#allocation4 + $0x100] sm:$0xff] %vm2673, %v6525
      %6685 = vst.msk [vmem:[#allocation4 + $0x108] sm:$0xff] %vm2673, %v6527
      %6686 = vst.msk [vmem:[#allocation4 + $0x110] sm:$0xff] %vm2673, %v6529
      %6687 = vst.msk [vmem:[#allocation4 + $0x118] sm:$0xff] %vm2673, %v6531
      %6688 = vst.msk [vmem:[#allocation4 + $0x120] sm:$0xff] %vm2673, %v6533
      %6689 = vst.msk [vmem:[#allocation4 + $0x128] sm:$0xff] %vm2673, %v6535
      %6690 = vst.msk [vmem:[#allocation4 + $0x130] sm:$0xff] %vm2673, %v6537
      %6691 = vst.msk [vmem:[#allocation4 + $0x138] sm:$0xff] %vm2673, %v6539
      %6692 = vst.msk [vmem:[#allocation4 + $0x140] sm:$0xff] %vm2673, %v6541
      %6693 = vst.msk [vmem:[#allocation4 + $0x148] sm:$0xff] %vm2673, %v6543
      %6694 = vst.msk [vmem:[#allocation4 + $0x150] sm:$0xff] %vm2673, %v6545
      %6695 = vst.msk [vmem:[#allocation4 + $0x158] sm:$0xff] %vm2673, %v6547
      %6696 = vst.msk [vmem:[#allocation4 + $0x160] sm:$0xff] %vm2673, %v6549
      %6697 = vst.msk [vmem:[#allocation4 + $0x168] sm:$0xff] %vm2673, %v6551
      %6698 = vst.msk [vmem:[#allocation4 + $0x170] sm:$0xff] %vm2673, %v6553
      %6699 = vst.msk [vmem:[#allocation4 + $0x178] sm:$0xff] %vm2673, %v6555
      %6700 = vst.msk [vmem:[#allocation4 + $0x180] sm:$0xff] %vm2673, %v6557
      %6701 = vst.msk [vmem:[#allocation4 + $0x188] sm:$0xff] %vm2673, %v6559
      %6702 = vst.msk [vmem:[#allocation4 + $0x190] sm:$0xff] %vm2673, %v6561
      %6703 = vst.msk [vmem:[#allocation4 + $0x198] sm:$0xff] %vm2673, %v6563
      %6704 = vst.msk [vmem:[#allocation4 + $0x1a0] sm:$0xff] %vm2673, %v6565
      %6705 = vst.msk [vmem:[#allocation4 + $0x1a8] sm:$0xff] %vm2673, %v6567
      %6706 = vst.msk [vmem:[#allocation4 + $0x1b0] sm:$0xff] %vm2673, %v6569
      %6707 = vst.msk [vmem:[#allocation4 + $0x1b8] sm:$0xff] %vm2673, %v6571
      %6708 = vst.msk [vmem:[#allocation4 + $0x1c0] sm:$0xff] %vm2673, %v6573
      %6709 = vst.msk [vmem:[#allocation4 + $0x1c8] sm:$0xff] %vm2673, %v6575
      %6710 = vst.msk [vmem:[#allocation4 + $0x1d0] sm:$0xff] %vm2673, %v6577
      %6711 = vst.msk [vmem:[#allocation4 + $0x1d8] sm:$0xff] %vm2673, %v6579
      %6712 = vst.msk [vmem:[#allocation4 + $0x1e0] sm:$0xff] %vm2673, %v6581
      %6713 = vst.msk [vmem:[#allocation4 + $0x1e8] sm:$0xff] %vm2673, %v6583
      %6714 = vst.msk [vmem:[#allocation4 + $0x1f0] sm:$0xff] %vm2673, %v6585
      %6715 = vst.msk [vmem:[#allocation4 + $0x1f8] sm:$0xff] %vm2673, %v6587
      %v6716 = vld [vmem:[%s2738 + $0x7] sm:$0xff]
      %v6717 = vld [vmem:[%s2738 + $0xf] sm:$0xff]
      %v6718 = vld [vmem:[%s2738 + $0x27] sm:$0xff]
      %v6719 = vld [vmem:[%s2738 + $0x2f] sm:$0xff]
      %v6720 = vld [vmem:[%s2738 + $0x47] sm:$0xff]
      %v6721 = vld [vmem:[%s2738 + $0x4f] sm:$0xff]
      %v6722 = vld [vmem:[%s2738 + $0x67] sm:$0xff]
      %v6723 = vld [vmem:[%s2738 + $0x6f] sm:$0xff]
      %v6724 = vld [vmem:[%s2738 + $0x87] sm:$0xff]
      %v6725 = vld [vmem:[%s2738 + $0x8f] sm:$0xff]
      %v6726 = vld [vmem:[%s2738 + $0xa7] sm:$0xff]
      %v6727 = vld [vmem:[%s2738 + $0xaf] sm:$0xff]
      %v6728 = vld [vmem:[%s2738 + $0xc7] sm:$0xff]
      %v6729 = vld [vmem:[%s2738 + $0xcf] sm:$0xff]
      %v6730 = vld [vmem:[%s2738 + $0xe7] sm:$0xff]
      %v6731 = vld [vmem:[%s2738 + $0xef] sm:$0xff]
      %v6732 = vld [vmem:[%s2738 + $0x107] sm:$0xff]
      %v6733 = vld [vmem:[%s2738 + $0x10f] sm:$0xff]
      %v6734 = vld [vmem:[%s2738 + $0x127] sm:$0xff]
      %v6735 = vld [vmem:[%s2738 + $0x12f] sm:$0xff]
      %v6736 = vld [vmem:[%s2738 + $0x147] sm:$0xff]
      %v6737 = vld [vmem:[%s2738 + $0x14f] sm:$0xff]
      %v6738 = vld [vmem:[%s2738 + $0x167] sm:$0xff]
      %v6739 = vld [vmem:[%s2738 + $0x16f] sm:$0xff]
      %v6740 = vld [vmem:[%s2738 + $0x187] sm:$0xff]
      %v6741 = vld [vmem:[%s2738 + $0x18f] sm:$0xff]
      %v6742 = vld [vmem:[%s2738 + $0x1a7] sm:$0xff]
      %v6743 = vld [vmem:[%s2738 + $0x1af] sm:$0xff]
      %v6744 = vld [vmem:[%s2738 + $0x1c7] sm:$0xff]
      %v6745 = vld [vmem:[%s2738 + $0x1cf] sm:$0xff]
      %v6746 = vld [vmem:[%s2738 + $0x1e7] sm:$0xff]
      %v6747 = vld [vmem:[%s2738 + $0x1ef] sm:$0xff]
      %v6748 = vld [vmem:[%s2738 + $0x247] sm:$0xff]
      %v6749 = vld [vmem:[%s2738 + $0x24f] sm:$0xff]
      %v6750 = vld [vmem:[%s2738 + $0x267] sm:$0xff]
      %v6751 = vld [vmem:[%s2738 + $0x26f] sm:$0xff]
      %v6752 = vld [vmem:[%s2738 + $0x287] sm:$0xff]
      %v6753 = vld [vmem:[%s2738 + $0x28f] sm:$0xff]
      %v6754 = vld [vmem:[%s2738 + $0x2a7] sm:$0xff]
      %v6755 = vld [vmem:[%s2738 + $0x2af] sm:$0xff]
      %v6756 = vld [vmem:[%s2738 + $0x2c7] sm:$0xff]
      %v6757 = vld [vmem:[%s2738 + $0x2cf] sm:$0xff]
      %v6758 = vld [vmem:[%s2738 + $0x2e7] sm:$0xff]
      %v6759 = vld [vmem:[%s2738 + $0x2ef] sm:$0xff]
      %v6760 = vld [vmem:[%s2738 + $0x307] sm:$0xff]
      %v6761 = vld [vmem:[%s2738 + $0x30f] sm:$0xff]
      %v6762 = vld [vmem:[%s2738 + $0x327] sm:$0xff]
      %v6763 = vld [vmem:[%s2738 + $0x32f] sm:$0xff]
      %v6764 = vld [vmem:[%s2738 + $0x347] sm:$0xff]
      %v6765 = vld [vmem:[%s2738 + $0x34f] sm:$0xff]
      %v6766 = vld [vmem:[%s2738 + $0x367] sm:$0xff]
      %v6767 = vld [vmem:[%s2738 + $0x36f] sm:$0xff]
      %v6768 = vld [vmem:[%s2738 + $0x387] sm:$0xff]
      %v6769 = vld [vmem:[%s2738 + $0x38f] sm:$0xff]
      %v6770 = vld [vmem:[%s2738 + $0x3a7] sm:$0xff]
      %v6771 = vld [vmem:[%s2738 + $0x3af] sm:$0xff]
      %v6772 = vld [vmem:[%s2738 + $0x3c7] sm:$0xff]
      %v6773 = vld [vmem:[%s2738 + $0x3cf] sm:$0xff]
      %v6774 = vld [vmem:[%s2738 + $0x3e7] sm:$0xff]
      %v6775 = vld [vmem:[%s2738 + $0x3ef] sm:$0xff]
      %v6776 = vld [vmem:[%s2738 + $0x407] sm:$0xff]
      %v6777 = vld [vmem:[%s2738 + $0x40f] sm:$0xff]
      %v6778 = vld [vmem:[%s2738 + $0x427] sm:$0xff]
      %v6779 = vld [vmem:[%s2738 + $0x42f] sm:$0xff]
      %6844 = vrot.lane.b32.xlu0 %v6716, 48
      %v6845 = vpop.permute.xlu0 %6844
      %6846 = vrot.lane.b32.xlu0 %v6717, 48
      %v6847 = vpop.permute.xlu0 %6846
      %6848 = vrot.lane.b32.xlu0 %v6718, 48
      %v6849 = vpop.permute.xlu0 %6848
      %6850 = vrot.lane.b32.xlu0 %v6719, 48
      %v6851 = vpop.permute.xlu0 %6850
      %6852 = vrot.lane.b32.xlu0 %v6720, 48
      %v6853 = vpop.permute.xlu0 %6852
      %6854 = vrot.lane.b32.xlu0 %v6721, 48
      %v6855 = vpop.permute.xlu0 %6854
      %6856 = vrot.lane.b32.xlu0 %v6722, 48
      %v6857 = vpop.permute.xlu0 %6856
      %6858 = vrot.lane.b32.xlu0 %v6723, 48
      %v6859 = vpop.permute.xlu0 %6858
      %6860 = vrot.lane.b32.xlu0 %v6724, 48
      %v6861 = vpop.permute.xlu0 %6860
      %6862 = vrot.lane.b32.xlu0 %v6725, 48
      %v6863 = vpop.permute.xlu0 %6862
      %6864 = vrot.lane.b32.xlu0 %v6726, 48
      %v6865 = vpop.permute.xlu0 %6864
      %6866 = vrot.lane.b32.xlu0 %v6727, 48
      %v6867 = vpop.permute.xlu0 %6866
      %6868 = vrot.lane.b32.xlu0 %v6728, 48
      %v6869 = vpop.permute.xlu0 %6868
      %6870 = vrot.lane.b32.xlu0 %v6729, 48
      %v6871 = vpop.permute.xlu0 %6870
      %6872 = vrot.lane.b32.xlu0 %v6730, 48
      %v6873 = vpop.permute.xlu0 %6872
      %6874 = vrot.lane.b32.xlu0 %v6731, 48
      %v6875 = vpop.permute.xlu0 %6874
      %6876 = vrot.lane.b32.xlu0 %v6732, 48
      %v6877 = vpop.permute.xlu0 %6876
      %6878 = vrot.lane.b32.xlu0 %v6733, 48
      %v6879 = vpop.permute.xlu0 %6878
      %6880 = vrot.lane.b32.xlu0 %v6734, 48
      %v6881 = vpop.permute.xlu0 %6880
      %6882 = vrot.lane.b32.xlu0 %v6735, 48
      %v6883 = vpop.permute.xlu0 %6882
      %6884 = vrot.lane.b32.xlu0 %v6736, 48
      %v6885 = vpop.permute.xlu0 %6884
      %6886 = vrot.lane.b32.xlu0 %v6737, 48
      %v6887 = vpop.permute.xlu0 %6886
      %6888 = vrot.lane.b32.xlu0 %v6738, 48
      %v6889 = vpop.permute.xlu0 %6888
      %6890 = vrot.lane.b32.xlu0 %v6739, 48
      %v6891 = vpop.permute.xlu0 %6890
      %6892 = vrot.lane.b32.xlu0 %v6740, 48
      %v6893 = vpop.permute.xlu0 %6892
      %6894 = vrot.lane.b32.xlu0 %v6741, 48
      %v6895 = vpop.permute.xlu0 %6894
      %6896 = vrot.lane.b32.xlu0 %v6742, 48
      %v6897 = vpop.permute.xlu0 %6896
      %6898 = vrot.lane.b32.xlu0 %v6743, 48
      %v6899 = vpop.permute.xlu0 %6898
      %6900 = vrot.lane.b32.xlu0 %v6744, 48
      %v6901 = vpop.permute.xlu0 %6900
      %6902 = vrot.lane.b32.xlu0 %v6745, 48
      %v6903 = vpop.permute.xlu0 %6902
      %6904 = vrot.lane.b32.xlu0 %v6746, 48
      %v6905 = vpop.permute.xlu0 %6904
      %6906 = vrot.lane.b32.xlu0 %v6747, 48
      %v6907 = vpop.permute.xlu0 %6906
      %6908 = vrot.lane.b32.xlu0 %v6748, 48
      %v6909 = vpop.permute.xlu0 %6908
      %6910 = vrot.lane.b32.xlu0 %v6749, 48
      %v6911 = vpop.permute.xlu0 %6910
      %6912 = vrot.lane.b32.xlu0 %v6750, 48
      %v6913 = vpop.permute.xlu0 %6912
      %6914 = vrot.lane.b32.xlu0 %v6751, 48
      %v6915 = vpop.permute.xlu0 %6914
      %6916 = vrot.lane.b32.xlu0 %v6752, 48
      %v6917 = vpop.permute.xlu0 %6916
      %6918 = vrot.lane.b32.xlu0 %v6753, 48
      %v6919 = vpop.permute.xlu0 %6918
      %6920 = vrot.lane.b32.xlu0 %v6754, 48
      %v6921 = vpop.permute.xlu0 %6920
      %6922 = vrot.lane.b32.xlu0 %v6755, 48
      %v6923 = vpop.permute.xlu0 %6922
      %6924 = vrot.lane.b32.xlu0 %v6756, 48
      %v6925 = vpop.permute.xlu0 %6924
      %6926 = vrot.lane.b32.xlu0 %v6757, 48
      %v6927 = vpop.permute.xlu0 %6926
      %6928 = vrot.lane.b32.xlu0 %v6758, 48
      %v6929 = vpop.permute.xlu0 %6928
      %6930 = vrot.lane.b32.xlu0 %v6759, 48
      %v6931 = vpop.permute.xlu0 %6930
      %6932 = vrot.lane.b32.xlu0 %v6760, 48
      %v6933 = vpop.permute.xlu0 %6932
      %6934 = vrot.lane.b32.xlu0 %v6761, 48
      %v6935 = vpop.permute.xlu0 %6934
      %6936 = vrot.lane.b32.xlu0 %v6762, 48
      %v6937 = vpop.permute.xlu0 %6936
      %6938 = vrot.lane.b32.xlu0 %v6763, 48
      %v6939 = vpop.permute.xlu0 %6938
      %6940 = vrot.lane.b32.xlu0 %v6764, 48
      %v6941 = vpop.permute.xlu0 %6940
      %6942 = vrot.lane.b32.xlu0 %v6765, 48
      %v6943 = vpop.permute.xlu0 %6942
      %6944 = vrot.lane.b32.xlu0 %v6766, 48
      %v6945 = vpop.permute.xlu0 %6944
      %6946 = vrot.lane.b32.xlu0 %v6767, 48
      %v6947 = vpop.permute.xlu0 %6946
      %6948 = vrot.lane.b32.xlu0 %v6768, 48
      %v6949 = vpop.permute.xlu0 %6948
      %6950 = vrot.lane.b32.xlu0 %v6769, 48
      %v6951 = vpop.permute.xlu0 %6950
      %6952 = vrot.lane.b32.xlu0 %v6770, 48
      %v6953 = vpop.permute.xlu0 %6952
      %6954 = vrot.lane.b32.xlu0 %v6771, 48
      %v6955 = vpop.permute.xlu0 %6954
      %6956 = vrot.lane.b32.xlu0 %v6772, 48
      %v6957 = vpop.permute.xlu0 %6956
      %6958 = vrot.lane.b32.xlu0 %v6773, 48
      %v6959 = vpop.permute.xlu0 %6958
      %6960 = vrot.lane.b32.xlu0 %v6774, 48
      %v6961 = vpop.permute.xlu0 %6960
      %6962 = vrot.lane.b32.xlu0 %v6775, 48
      %v6963 = vpop.permute.xlu0 %6962
      %6964 = vrot.lane.b32.xlu0 %v6776, 48
      %v6965 = vpop.permute.xlu0 %6964
      %6966 = vrot.lane.b32.xlu0 %v6777, 48
      %v6967 = vpop.permute.xlu0 %6966
      %6968 = vrot.lane.b32.xlu0 %v6778, 48
      %v6969 = vpop.permute.xlu0 %6968
      %6970 = vrot.lane.b32.xlu0 %v6779, 48
      %v6971 = vpop.permute.xlu0 %6970
      %7036 = vst.msk [vmem:[#allocation4] sm:$0xff] %vm3059, %v6845
      %7037 = vst.msk [vmem:[#allocation4 + $0x8] sm:$0xff] %vm3059, %v6847
      %7038 = vst.msk [vmem:[#allocation4 + $0x10] sm:$0xff] %vm3059, %v6849
      %7039 = vst.msk [vmem:[#allocation4 + $0x18] sm:$0xff] %vm3059, %v6851
      %7040 = vst.msk [vmem:[#allocation4 + $0x20] sm:$0xff] %vm3059, %v6853
      %7041 = vst.msk [vmem:[#allocation4 + $0x28] sm:$0xff] %vm3059, %v6855
      %7042 = vst.msk [vmem:[#allocation4 + $0x30] sm:$0xff] %vm3059, %v6857
      %7043 = vst.msk [vmem:[#allocation4 + $0x38] sm:$0xff] %vm3059, %v6859
      %7044 = vst.msk [vmem:[#allocation4 + $0x40] sm:$0xff] %vm3059, %v6861
      %7045 = vst.msk [vmem:[#allocation4 + $0x48] sm:$0xff] %vm3059, %v6863
      %7046 = vst.msk [vmem:[#allocation4 + $0x50] sm:$0xff] %vm3059, %v6865
      %7047 = vst.msk [vmem:[#allocation4 + $0x58] sm:$0xff] %vm3059, %v6867
      %7048 = vst.msk [vmem:[#allocation4 + $0x60] sm:$0xff] %vm3059, %v6869
      %7049 = vst.msk [vmem:[#allocation4 + $0x68] sm:$0xff] %vm3059, %v6871
      %7050 = vst.msk [vmem:[#allocation4 + $0x70] sm:$0xff] %vm3059, %v6873
      %7051 = vst.msk [vmem:[#allocation4 + $0x78] sm:$0xff] %vm3059, %v6875
      %7052 = vst.msk [vmem:[#allocation4 + $0x80] sm:$0xff] %vm3059, %v6877
      %7053 = vst.msk [vmem:[#allocation4 + $0x88] sm:$0xff] %vm3059, %v6879
      %7054 = vst.msk [vmem:[#allocation4 + $0x90] sm:$0xff] %vm3059, %v6881
      %7055 = vst.msk [vmem:[#allocation4 + $0x98] sm:$0xff] %vm3059, %v6883
      %7056 = vst.msk [vmem:[#allocation4 + $0xa0] sm:$0xff] %vm3059, %v6885
      %7057 = vst.msk [vmem:[#allocation4 + $0xa8] sm:$0xff] %vm3059, %v6887
      %7058 = vst.msk [vmem:[#allocation4 + $0xb0] sm:$0xff] %vm3059, %v6889
      %7059 = vst.msk [vmem:[#allocation4 + $0xb8] sm:$0xff] %vm3059, %v6891
      %7060 = vst.msk [vmem:[#allocation4 + $0xc0] sm:$0xff] %vm3059, %v6893
      %7061 = vst.msk [vmem:[#allocation4 + $0xc8] sm:$0xff] %vm3059, %v6895
      %7062 = vst.msk [vmem:[#allocation4 + $0xd0] sm:$0xff] %vm3059, %v6897
      %7063 = vst.msk [vmem:[#allocation4 + $0xd8] sm:$0xff] %vm3059, %v6899
      %7064 = vst.msk [vmem:[#allocation4 + $0xe0] sm:$0xff] %vm3059, %v6901
      %7065 = vst.msk [vmem:[#allocation4 + $0xe8] sm:$0xff] %vm3059, %v6903
      %7066 = vst.msk [vmem:[#allocation4 + $0xf0] sm:$0xff] %vm3059, %v6905
      %7067 = vst.msk [vmem:[#allocation4 + $0xf8] sm:$0xff] %vm3059, %v6907
      %7068 = vst.msk [vmem:[#allocation4 + $0x100] sm:$0xff] %vm3059, %v6909
      %7069 = vst.msk [vmem:[#allocation4 + $0x108] sm:$0xff] %vm3059, %v6911
      %7070 = vst.msk [vmem:[#allocation4 + $0x110] sm:$0xff] %vm3059, %v6913
      %7071 = vst.msk [vmem:[#allocation4 + $0x118] sm:$0xff] %vm3059, %v6915
      %7072 = vst.msk [vmem:[#allocation4 + $0x120] sm:$0xff] %vm3059, %v6917
      %7073 = vst.msk [vmem:[#allocation4 + $0x128] sm:$0xff] %vm3059, %v6919
      %7074 = vst.msk [vmem:[#allocation4 + $0x130] sm:$0xff] %vm3059, %v6921
      %7075 = vst.msk [vmem:[#allocation4 + $0x138] sm:$0xff] %vm3059, %v6923
      %7076 = vst.msk [vmem:[#allocation4 + $0x140] sm:$0xff] %vm3059, %v6925
      %7077 = vst.msk [vmem:[#allocation4 + $0x148] sm:$0xff] %vm3059, %v6927
      %7078 = vst.msk [vmem:[#allocation4 + $0x150] sm:$0xff] %vm3059, %v6929
      %7079 = vst.msk [vmem:[#allocation4 + $0x158] sm:$0xff] %vm3059, %v6931
      %7080 = vst.msk [vmem:[#allocation4 + $0x160] sm:$0xff] %vm3059, %v6933
      %7081 = vst.msk [vmem:[#allocation4 + $0x168] sm:$0xff] %vm3059, %v6935
      %7082 = vst.msk [vmem:[#allocation4 + $0x170] sm:$0xff] %vm3059, %v6937
      %7083 = vst.msk [vmem:[#allocation4 + $0x178] sm:$0xff] %vm3059, %v6939
      %7084 = vst.msk [vmem:[#allocation4 + $0x180] sm:$0xff] %vm3059, %v6941
      %7085 = vst.msk [vmem:[#allocation4 + $0x188] sm:$0xff] %vm3059, %v6943
      %7086 = vst.msk [vmem:[#allocation4 + $0x190] sm:$0xff] %vm3059, %v6945
      %7087 = vst.msk [vmem:[#allocation4 + $0x198] sm:$0xff] %vm3059, %v6947
      %7088 = vst.msk [vmem:[#allocation4 + $0x1a0] sm:$0xff] %vm3059, %v6949
      %7089 = vst.msk [vmem:[#allocation4 + $0x1a8] sm:$0xff] %vm3059, %v6951
      %7090 = vst.msk [vmem:[#allocation4 + $0x1b0] sm:$0xff] %vm3059, %v6953
      %7091 = vst.msk [vmem:[#allocation4 + $0x1b8] sm:$0xff] %vm3059, %v6955
      %7092 = vst.msk [vmem:[#allocation4 + $0x1c0] sm:$0xff] %vm3059, %v6957
      %7093 = vst.msk [vmem:[#allocation4 + $0x1c8] sm:$0xff] %vm3059, %v6959
      %7094 = vst.msk [vmem:[#allocation4 + $0x1d0] sm:$0xff] %vm3059, %v6961
      %7095 = vst.msk [vmem:[#allocation4 + $0x1d8] sm:$0xff] %vm3059, %v6963
      %7096 = vst.msk [vmem:[#allocation4 + $0x1e0] sm:$0xff] %vm3059, %v6965
      %7097 = vst.msk [vmem:[#allocation4 + $0x1e8] sm:$0xff] %vm3059, %v6967
      %7098 = vst.msk [vmem:[#allocation4 + $0x1f0] sm:$0xff] %vm3059, %v6969
      %7099 = vst.msk [vmem:[#allocation4 + $0x1f8] sm:$0xff] %vm3059, %v6971
      %v7100 = vld [vmem:[%s2738 + $0x8] sm:$0xff]
      %v7101 = vld [vmem:[%s2738 + $0x10] sm:$0xff]
      %v7102 = vld [vmem:[%s2738 + $0x28] sm:$0xff]
      %v7103 = vld [vmem:[%s2738 + $0x30] sm:$0xff]
      %v7104 = vld [vmem:[%s2738 + $0x48] sm:$0xff]
      %v7105 = vld [vmem:[%s2738 + $0x50] sm:$0xff]
      %v7106 = vld [vmem:[%s2738 + $0x68] sm:$0xff]
      %v7107 = vld [vmem:[%s2738 + $0x70] sm:$0xff]
      %v7108 = vld [vmem:[%s2738 + $0x88] sm:$0xff]
      %v7109 = vld [vmem:[%s2738 + $0x90] sm:$0xff]
      %v7110 = vld [vmem:[%s2738 + $0xa8] sm:$0xff]
      %v7111 = vld [vmem:[%s2738 + $0xb0] sm:$0xff]
      %v7112 = vld [vmem:[%s2738 + $0xc8] sm:$0xff]
      %v7113 = vld [vmem:[%s2738 + $0xd0] sm:$0xff]
      %v7114 = vld [vmem:[%s2738 + $0xe8] sm:$0xff]
      %v7115 = vld [vmem:[%s2738 + $0xf0] sm:$0xff]
      %v7116 = vld [vmem:[%s2738 + $0x108] sm:$0xff]
      %v7117 = vld [vmem:[%s2738 + $0x110] sm:$0xff]
      %v7118 = vld [vmem:[%s2738 + $0x128] sm:$0xff]
      %v7119 = vld [vmem:[%s2738 + $0x130] sm:$0xff]
      %v7120 = vld [vmem:[%s2738 + $0x148] sm:$0xff]
      %v7121 = vld [vmem:[%s2738 + $0x150] sm:$0xff]
      %v7122 = vld [vmem:[%s2738 + $0x168] sm:$0xff]
      %v7123 = vld [vmem:[%s2738 + $0x170] sm:$0xff]
      %v7124 = vld [vmem:[%s2738 + $0x188] sm:$0xff]
      %v7125 = vld [vmem:[%s2738 + $0x190] sm:$0xff]
      %v7126 = vld [vmem:[%s2738 + $0x1a8] sm:$0xff]
      %v7127 = vld [vmem:[%s2738 + $0x1b0] sm:$0xff]
      %v7128 = vld [vmem:[%s2738 + $0x1c8] sm:$0xff]
      %v7129 = vld [vmem:[%s2738 + $0x1d0] sm:$0xff]
      %v7130 = vld [vmem:[%s2738 + $0x1e8] sm:$0xff]
      %v7131 = vld [vmem:[%s2738 + $0x1f0] sm:$0xff]
      %v7132 = vld [vmem:[%s2738 + $0x248] sm:$0xff]
      %v7133 = vld [vmem:[%s2738 + $0x250] sm:$0xff]
      %v7134 = vld [vmem:[%s2738 + $0x268] sm:$0xff]
      %v7135 = vld [vmem:[%s2738 + $0x270] sm:$0xff]
      %v7136 = vld [vmem:[%s2738 + $0x288] sm:$0xff]
      %v7137 = vld [vmem:[%s2738 + $0x290] sm:$0xff]
      %v7138 = vld [vmem:[%s2738 + $0x2a8] sm:$0xff]
      %v7139 = vld [vmem:[%s2738 + $0x2b0] sm:$0xff]
      %v7140 = vld [vmem:[%s2738 + $0x2c8] sm:$0xff]
      %v7141 = vld [vmem:[%s2738 + $0x2d0] sm:$0xff]
      %v7142 = vld [vmem:[%s2738 + $0x2e8] sm:$0xff]
      %v7143 = vld [vmem:[%s2738 + $0x2f0] sm:$0xff]
      %v7144 = vld [vmem:[%s2738 + $0x308] sm:$0xff]
      %v7145 = vld [vmem:[%s2738 + $0x310] sm:$0xff]
      %v7146 = vld [vmem:[%s2738 + $0x328] sm:$0xff]
      %v7147 = vld [vmem:[%s2738 + $0x330] sm:$0xff]
      %v7148 = vld [vmem:[%s2738 + $0x348] sm:$0xff]
      %v7149 = vld [vmem:[%s2738 + $0x350] sm:$0xff]
      %v7150 = vld [vmem:[%s2738 + $0x368] sm:$0xff]
      %v7151 = vld [vmem:[%s2738 + $0x370] sm:$0xff]
      %v7152 = vld [vmem:[%s2738 + $0x388] sm:$0xff]
      %v7153 = vld [vmem:[%s2738 + $0x390] sm:$0xff]
      %v7154 = vld [vmem:[%s2738 + $0x3a8] sm:$0xff]
      %v7155 = vld [vmem:[%s2738 + $0x3b0] sm:$0xff]
      %v7156 = vld [vmem:[%s2738 + $0x3c8] sm:$0xff]
      %v7157 = vld [vmem:[%s2738 + $0x3d0] sm:$0xff]
      %v7158 = vld [vmem:[%s2738 + $0x3e8] sm:$0xff]
      %v7159 = vld [vmem:[%s2738 + $0x3f0] sm:$0xff]
      %v7160 = vld [vmem:[%s2738 + $0x408] sm:$0xff]
      %v7161 = vld [vmem:[%s2738 + $0x410] sm:$0xff]
      %v7162 = vld [vmem:[%s2738 + $0x428] sm:$0xff]
      %v7163 = vld [vmem:[%s2738 + $0x430] sm:$0xff]
      %7228 = vrot.lane.b32.xlu0 %v7100, 56
      %v7229 = vpop.permute.xlu0 %7228
      %7230 = vrot.lane.b32.xlu0 %v7101, 56
      %v7231 = vpop.permute.xlu0 %7230
      %7232 = vrot.lane.b32.xlu0 %v7102, 56
      %v7233 = vpop.permute.xlu0 %7232
      %7234 = vrot.lane.b32.xlu0 %v7103, 56
      %v7235 = vpop.permute.xlu0 %7234
      %7236 = vrot.lane.b32.xlu0 %v7104, 56
      %v7237 = vpop.permute.xlu0 %7236
      %7238 = vrot.lane.b32.xlu0 %v7105, 56
      %v7239 = vpop.permute.xlu0 %7238
      %7240 = vrot.lane.b32.xlu0 %v7106, 56
      %v7241 = vpop.permute.xlu0 %7240
      %7242 = vrot.lane.b32.xlu0 %v7107, 56
      %v7243 = vpop.permute.xlu0 %7242
      %7244 = vrot.lane.b32.xlu0 %v7108, 56
      %v7245 = vpop.permute.xlu0 %7244
      %7246 = vrot.lane.b32.xlu0 %v7109, 56
      %v7247 = vpop.permute.xlu0 %7246
      %7248 = vrot.lane.b32.xlu0 %v7110, 56
      %v7249 = vpop.permute.xlu0 %7248
      %7250 = vrot.lane.b32.xlu0 %v7111, 56
      %v7251 = vpop.permute.xlu0 %7250
      %7252 = vrot.lane.b32.xlu0 %v7112, 56
      %v7253 = vpop.permute.xlu0 %7252
      %7254 = vrot.lane.b32.xlu0 %v7113, 56
      %v7255 = vpop.permute.xlu0 %7254
      %7256 = vrot.lane.b32.xlu0 %v7114, 56
      %v7257 = vpop.permute.xlu0 %7256
      %7258 = vrot.lane.b32.xlu0 %v7115, 56
      %v7259 = vpop.permute.xlu0 %7258
      %7260 = vrot.lane.b32.xlu0 %v7116, 56
      %v7261 = vpop.permute.xlu0 %7260
      %7262 = vrot.lane.b32.xlu0 %v7117, 56
      %v7263 = vpop.permute.xlu0 %7262
      %7264 = vrot.lane.b32.xlu0 %v7118, 56
      %v7265 = vpop.permute.xlu0 %7264
      %7266 = vrot.lane.b32.xlu0 %v7119, 56
      %v7267 = vpop.permute.xlu0 %7266
      %7268 = vrot.lane.b32.xlu0 %v7120, 56
      %v7269 = vpop.permute.xlu0 %7268
      %7270 = vrot.lane.b32.xlu0 %v7121, 56
      %v7271 = vpop.permute.xlu0 %7270
      %7272 = vrot.lane.b32.xlu0 %v7122, 56
      %v7273 = vpop.permute.xlu0 %7272
      %7274 = vrot.lane.b32.xlu0 %v7123, 56
      %v7275 = vpop.permute.xlu0 %7274
      %7276 = vrot.lane.b32.xlu0 %v7124, 56
      %v7277 = vpop.permute.xlu0 %7276
      %7278 = vrot.lane.b32.xlu0 %v7125, 56
      %v7279 = vpop.permute.xlu0 %7278
      %7280 = vrot.lane.b32.xlu0 %v7126, 56
      %v7281 = vpop.permute.xlu0 %7280
      %7282 = vrot.lane.b32.xlu0 %v7127, 56
      %v7283 = vpop.permute.xlu0 %7282
      %7284 = vrot.lane.b32.xlu0 %v7128, 56
      %v7285 = vpop.permute.xlu0 %7284
      %7286 = vrot.lane.b32.xlu0 %v7129, 56
      %v7287 = vpop.permute.xlu0 %7286
      %7288 = vrot.lane.b32.xlu0 %v7130, 56
      %v7289 = vpop.permute.xlu0 %7288
      %7290 = vrot.lane.b32.xlu0 %v7131, 56
      %v7291 = vpop.permute.xlu0 %7290
      %7292 = vrot.lane.b32.xlu0 %v7132, 56
      %v7293 = vpop.permute.xlu0 %7292
      %7294 = vrot.lane.b32.xlu0 %v7133, 56
      %v7295 = vpop.permute.xlu0 %7294
      %7296 = vrot.lane.b32.xlu0 %v7134, 56
      %v7297 = vpop.permute.xlu0 %7296
      %7298 = vrot.lane.b32.xlu0 %v7135, 56
      %v7299 = vpop.permute.xlu0 %7298
      %7300 = vrot.lane.b32.xlu0 %v7136, 56
      %v7301 = vpop.permute.xlu0 %7300
      %7302 = vrot.lane.b32.xlu0 %v7137, 56
      %v7303 = vpop.permute.xlu0 %7302
      %7304 = vrot.lane.b32.xlu0 %v7138, 56
      %v7305 = vpop.permute.xlu0 %7304
      %7306 = vrot.lane.b32.xlu0 %v7139, 56
      %v7307 = vpop.permute.xlu0 %7306
      %7308 = vrot.lane.b32.xlu0 %v7140, 56
      %v7309 = vpop.permute.xlu0 %7308
      %7310 = vrot.lane.b32.xlu0 %v7141, 56
      %v7311 = vpop.permute.xlu0 %7310
      %7312 = vrot.lane.b32.xlu0 %v7142, 56
      %v7313 = vpop.permute.xlu0 %7312
      %7314 = vrot.lane.b32.xlu0 %v7143, 56
      %v7315 = vpop.permute.xlu0 %7314
      %7316 = vrot.lane.b32.xlu0 %v7144, 56
      %v7317 = vpop.permute.xlu0 %7316
      %7318 = vrot.lane.b32.xlu0 %v7145, 56
      %v7319 = vpop.permute.xlu0 %7318
      %7320 = vrot.lane.b32.xlu0 %v7146, 56
      %v7321 = vpop.permute.xlu0 %7320
      %7322 = vrot.lane.b32.xlu0 %v7147, 56
      %v7323 = vpop.permute.xlu0 %7322
      %7324 = vrot.lane.b32.xlu0 %v7148, 56
      %v7325 = vpop.permute.xlu0 %7324
      %7326 = vrot.lane.b32.xlu0 %v7149, 56
      %v7327 = vpop.permute.xlu0 %7326
      %7328 = vrot.lane.b32.xlu0 %v7150, 56
      %v7329 = vpop.permute.xlu0 %7328
      %7330 = vrot.lane.b32.xlu0 %v7151, 56
      %v7331 = vpop.permute.xlu0 %7330
      %7332 = vrot.lane.b32.xlu0 %v7152, 56
      %v7333 = vpop.permute.xlu0 %7332
      %7334 = vrot.lane.b32.xlu0 %v7153, 56
      %v7335 = vpop.permute.xlu0 %7334
      %7336 = vrot.lane.b32.xlu0 %v7154, 56
      %v7337 = vpop.permute.xlu0 %7336
      %7338 = vrot.lane.b32.xlu0 %v7155, 56
      %v7339 = vpop.permute.xlu0 %7338
      %7340 = vrot.lane.b32.xlu0 %v7156, 56
      %v7341 = vpop.permute.xlu0 %7340
      %7342 = vrot.lane.b32.xlu0 %v7157, 56
      %v7343 = vpop.permute.xlu0 %7342
      %7344 = vrot.lane.b32.xlu0 %v7158, 56
      %v7345 = vpop.permute.xlu0 %7344
      %7346 = vrot.lane.b32.xlu0 %v7159, 56
      %v7347 = vpop.permute.xlu0 %7346
      %7348 = vrot.lane.b32.xlu0 %v7160, 56
      %v7349 = vpop.permute.xlu0 %7348
      %7350 = vrot.lane.b32.xlu0 %v7161, 56
      %v7351 = vpop.permute.xlu0 %7350
      %7352 = vrot.lane.b32.xlu0 %v7162, 56
      %v7353 = vpop.permute.xlu0 %7352
      %7354 = vrot.lane.b32.xlu0 %v7163, 56
      %v7355 = vpop.permute.xlu0 %7354
      %7420 = vst.msk [vmem:[#allocation4] sm:$0xff] %vm3444, %v7229
      %7421 = vst.msk [vmem:[#allocation4 + $0x8] sm:$0xff] %vm3444, %v7231
      %7422 = vst.msk [vmem:[#allocation4 + $0x10] sm:$0xff] %vm3444, %v7233
      %7423 = vst.msk [vmem:[#allocation4 + $0x18] sm:$0xff] %vm3444, %v7235
      %7424 = vst.msk [vmem:[#allocation4 + $0x20] sm:$0xff] %vm3444, %v7237
      %7425 = vst.msk [vmem:[#allocation4 + $0x28] sm:$0xff] %vm3444, %v7239
      %7426 = vst.msk [vmem:[#allocation4 + $0x30] sm:$0xff] %vm3444, %v7241
      %7427 = vst.msk [vmem:[#allocation4 + $0x38] sm:$0xff] %vm3444, %v7243
      %7428 = vst.msk [vmem:[#allocation4 + $0x40] sm:$0xff] %vm3444, %v7245
      %7429 = vst.msk [vmem:[#allocation4 + $0x48] sm:$0xff] %vm3444, %v7247
      %7430 = vst.msk [vmem:[#allocation4 + $0x50] sm:$0xff] %vm3444, %v7249
      %7431 = vst.msk [vmem:[#allocation4 + $0x58] sm:$0xff] %vm3444, %v7251
      %7432 = vst.msk [vmem:[#allocation4 + $0x60] sm:$0xff] %vm3444, %v7253
      %7433 = vst.msk [vmem:[#allocation4 + $0x68] sm:$0xff] %vm3444, %v7255
      %7434 = vst.msk [vmem:[#allocation4 + $0x70] sm:$0xff] %vm3444, %v7257
      %7435 = vst.msk [vmem:[#allocation4 + $0x78] sm:$0xff] %vm3444, %v7259
      %7436 = vst.msk [vmem:[#allocation4 + $0x80] sm:$0xff] %vm3444, %v7261
      %7437 = vst.msk [vmem:[#allocation4 + $0x88] sm:$0xff] %vm3444, %v7263
      %7438 = vst.msk [vmem:[#allocation4 + $0x90] sm:$0xff] %vm3444, %v7265
      %7439 = vst.msk [vmem:[#allocation4 + $0x98] sm:$0xff] %vm3444, %v7267
      %7440 = vst.msk [vmem:[#allocation4 + $0xa0] sm:$0xff] %vm3444, %v7269
      %7441 = vst.msk [vmem:[#allocation4 + $0xa8] sm:$0xff] %vm3444, %v7271
      %7442 = vst.msk [vmem:[#allocation4 + $0xb0] sm:$0xff] %vm3444, %v7273
      %7443 = vst.msk [vmem:[#allocation4 + $0xb8] sm:$0xff] %vm3444, %v7275
      %7444 = vst.msk [vmem:[#allocation4 + $0xc0] sm:$0xff] %vm3444, %v7277
      %7445 = vst.msk [vmem:[#allocation4 + $0xc8] sm:$0xff] %vm3444, %v7279
      %7446 = vst.msk [vmem:[#allocation4 + $0xd0] sm:$0xff] %vm3444, %v7281
      %7447 = vst.msk [vmem:[#allocation4 + $0xd8] sm:$0xff] %vm3444, %v7283
      %7448 = vst.msk [vmem:[#allocation4 + $0xe0] sm:$0xff] %vm3444, %v7285
      %7449 = vst.msk [vmem:[#allocation4 + $0xe8] sm:$0xff] %vm3444, %v7287
      %7450 = vst.msk [vmem:[#allocation4 + $0xf0] sm:$0xff] %vm3444, %v7289
      %7451 = vst.msk [vmem:[#allocation4 + $0xf8] sm:$0xff] %vm3444, %v7291
      %7452 = vst.msk [vmem:[#allocation4 + $0x100] sm:$0xff] %vm3444, %v7293
      %7453 = vst.msk [vmem:[#allocation4 + $0x108] sm:$0xff] %vm3444, %v7295
      %7454 = vst.msk [vmem:[#allocation4 + $0x110] sm:$0xff] %vm3444, %v7297
      %7455 = vst.msk [vmem:[#allocation4 + $0x118] sm:$0xff] %vm3444, %v7299
      %7456 = vst.msk [vmem:[#allocation4 + $0x120] sm:$0xff] %vm3444, %v7301
      %7457 = vst.msk [vmem:[#allocation4 + $0x128] sm:$0xff] %vm3444, %v7303
      %7458 = vst.msk [vmem:[#allocation4 + $0x130] sm:$0xff] %vm3444, %v7305
      %7459 = vst.msk [vmem:[#allocation4 + $0x138] sm:$0xff] %vm3444, %v7307
      %7460 = vst.msk [vmem:[#allocation4 + $0x140] sm:$0xff] %vm3444, %v7309
      %7461 = vst.msk [vmem:[#allocation4 + $0x148] sm:$0xff] %vm3444, %v7311
      %7462 = vst.msk [vmem:[#allocation4 + $0x150] sm:$0xff] %vm3444, %v7313
      %7463 = vst.msk [vmem:[#allocation4 + $0x158] sm:$0xff] %vm3444, %v7315
      %7464 = vst.msk [vmem:[#allocation4 + $0x160] sm:$0xff] %vm3444, %v7317
      %7465 = vst.msk [vmem:[#allocation4 + $0x168] sm:$0xff] %vm3444, %v7319
      %7466 = vst.msk [vmem:[#allocation4 + $0x170] sm:$0xff] %vm3444, %v7321
      %7467 = vst.msk [vmem:[#allocation4 + $0x178] sm:$0xff] %vm3444, %v7323
      %7468 = vst.msk [vmem:[#allocation4 + $0x180] sm:$0xff] %vm3444, %v7325
      %7469 = vst.msk [vmem:[#allocation4 + $0x188] sm:$0xff] %vm3444, %v7327
      %7470 = vst.msk [vmem:[#allocation4 + $0x190] sm:$0xff] %vm3444, %v7329
      %7471 = vst.msk [vmem:[#allocation4 + $0x198] sm:$0xff] %vm3444, %v7331
      %7472 = vst.msk [vmem:[#allocation4 + $0x1a0] sm:$0xff] %vm3444, %v7333
      %7473 = vst.msk [vmem:[#allocation4 + $0x1a8] sm:$0xff] %vm3444, %v7335
      %7474 = vst.msk [vmem:[#allocation4 + $0x1b0] sm:$0xff] %vm3444, %v7337
      %7475 = vst.msk [vmem:[#allocation4 + $0x1b8] sm:$0xff] %vm3444, %v7339
      %7476 = vst.msk [vmem:[#allocation4 + $0x1c0] sm:$0xff] %vm3444, %v7341
      %7477 = vst.msk [vmem:[#allocation4 + $0x1c8] sm:$0xff] %vm3444, %v7343
      %7478 = vst.msk [vmem:[#allocation4 + $0x1d0] sm:$0xff] %vm3444, %v7345
      %7479 = vst.msk [vmem:[#allocation4 + $0x1d8] sm:$0xff] %vm3444, %v7347
      %7480 = vst.msk [vmem:[#allocation4 + $0x1e0] sm:$0xff] %vm3444, %v7349
      %7481 = vst.msk [vmem:[#allocation4 + $0x1e8] sm:$0xff] %vm3444, %v7351
      %7482 = vst.msk [vmem:[#allocation4 + $0x1f0] sm:$0xff] %vm3444, %v7353
      %7483 = vst.msk [vmem:[#allocation4 + $0x1f8] sm:$0xff] %vm3444, %v7355
      %v7484 = vld [vmem:[%s2738 + $0x9] sm:$0xff]
      %v7485 = vld [vmem:[%s2738 + $0x11] sm:$0xff]
      %v7486 = vld [vmem:[%s2738 + $0x29] sm:$0xff]
      %v7487 = vld [vmem:[%s2738 + $0x31] sm:$0xff]
      %v7488 = vld [vmem:[%s2738 + $0x49] sm:$0xff]
      %v7489 = vld [vmem:[%s2738 + $0x51] sm:$0xff]
      %v7490 = vld [vmem:[%s2738 + $0x69] sm:$0xff]
      %v7491 = vld [vmem:[%s2738 + $0x71] sm:$0xff]
      %v7492 = vld [vmem:[%s2738 + $0x89] sm:$0xff]
      %v7493 = vld [vmem:[%s2738 + $0x91] sm:$0xff]
      %v7494 = vld [vmem:[%s2738 + $0xa9] sm:$0xff]
      %v7495 = vld [vmem:[%s2738 + $0xb1] sm:$0xff]
      %v7496 = vld [vmem:[%s2738 + $0xc9] sm:$0xff]
      %v7497 = vld [vmem:[%s2738 + $0xd1] sm:$0xff]
      %v7498 = vld [vmem:[%s2738 + $0xe9] sm:$0xff]
      %v7499 = vld [vmem:[%s2738 + $0xf1] sm:$0xff]
      %v7500 = vld [vmem:[%s2738 + $0x109] sm:$0xff]
      %v7501 = vld [vmem:[%s2738 + $0x111] sm:$0xff]
      %v7502 = vld [vmem:[%s2738 + $0x129] sm:$0xff]
      %v7503 = vld [vmem:[%s2738 + $0x131] sm:$0xff]
      %v7504 = vld [vmem:[%s2738 + $0x149] sm:$0xff]
      %v7505 = vld [vmem:[%s2738 + $0x151] sm:$0xff]
      %v7506 = vld [vmem:[%s2738 + $0x169] sm:$0xff]
      %v7507 = vld [vmem:[%s2738 + $0x171] sm:$0xff]
      %v7508 = vld [vmem:[%s2738 + $0x189] sm:$0xff]
      %v7509 = vld [vmem:[%s2738 + $0x191] sm:$0xff]
      %v7510 = vld [vmem:[%s2738 + $0x1a9] sm:$0xff]
      %v7511 = vld [vmem:[%s2738 + $0x1b1] sm:$0xff]
      %v7512 = vld [vmem:[%s2738 + $0x1c9] sm:$0xff]
      %v7513 = vld [vmem:[%s2738 + $0x1d1] sm:$0xff]
      %v7514 = vld [vmem:[%s2738 + $0x1e9] sm:$0xff]
      %v7515 = vld [vmem:[%s2738 + $0x1f1] sm:$0xff]
      %v7516 = vld [vmem:[%s2738 + $0x249] sm:$0xff]
      %v7517 = vld [vmem:[%s2738 + $0x251] sm:$0xff]
      %v7518 = vld [vmem:[%s2738 + $0x269] sm:$0xff]
      %v7519 = vld [vmem:[%s2738 + $0x271] sm:$0xff]
      %v7520 = vld [vmem:[%s2738 + $0x289] sm:$0xff]
      %v7521 = vld [vmem:[%s2738 + $0x291] sm:$0xff]
      %v7522 = vld [vmem:[%s2738 + $0x2a9] sm:$0xff]
      %v7523 = vld [vmem:[%s2738 + $0x2b1] sm:$0xff]
      %v7524 = vld [vmem:[%s2738 + $0x2c9] sm:$0xff]
      %v7525 = vld [vmem:[%s2738 + $0x2d1] sm:$0xff]
      %v7526 = vld [vmem:[%s2738 + $0x2e9] sm:$0xff]
      %v7527 = vld [vmem:[%s2738 + $0x2f1] sm:$0xff]
      %v7528 = vld [vmem:[%s2738 + $0x309] sm:$0xff]
      %v7529 = vld [vmem:[%s2738 + $0x311] sm:$0xff]
      %v7530 = vld [vmem:[%s2738 + $0x329] sm:$0xff]
      %v7531 = vld [vmem:[%s2738 + $0x331] sm:$0xff]
      %v7532 = vld [vmem:[%s2738 + $0x349] sm:$0xff]
      %v7533 = vld [vmem:[%s2738 + $0x351] sm:$0xff]
      %v7534 = vld [vmem:[%s2738 + $0x369] sm:$0xff]
      %v7535 = vld [vmem:[%s2738 + $0x371] sm:$0xff]
      %v7536 = vld [vmem:[%s2738 + $0x389] sm:$0xff]
      %v7537 = vld [vmem:[%s2738 + $0x391] sm:$0xff]
      %v7538 = vld [vmem:[%s2738 + $0x3a9] sm:$0xff]
      %v7539 = vld [vmem:[%s2738 + $0x3b1] sm:$0xff]
      %v7540 = vld [vmem:[%s2738 + $0x3c9] sm:$0xff]
      %v7541 = vld [vmem:[%s2738 + $0x3d1] sm:$0xff]
      %v7542 = vld [vmem:[%s2738 + $0x3e9] sm:$0xff]
      %v7543 = vld [vmem:[%s2738 + $0x3f1] sm:$0xff]
      %v7544 = vld [vmem:[%s2738 + $0x409] sm:$0xff]
      %v7545 = vld [vmem:[%s2738 + $0x411] sm:$0xff]
      %v7546 = vld [vmem:[%s2738 + $0x429] sm:$0xff]
      %v7547 = vld [vmem:[%s2738 + $0x431] sm:$0xff]
      %7612 = vrot.lane.b32.xlu0 %v7484, 64
      %v7613 = vpop.permute.xlu0 %7612
      %7614 = vrot.lane.b32.xlu0 %v7485, 64
      %v7615 = vpop.permute.xlu0 %7614
      %7616 = vrot.lane.b32.xlu0 %v7486, 64
      %v7617 = vpop.permute.xlu0 %7616
      %7618 = vrot.lane.b32.xlu0 %v7487, 64
      %v7619 = vpop.permute.xlu0 %7618
      %7620 = vrot.lane.b32.xlu0 %v7488, 64
      %v7621 = vpop.permute.xlu0 %7620
      %7622 = vrot.lane.b32.xlu0 %v7489, 64
      %v7623 = vpop.permute.xlu0 %7622
      %7624 = vrot.lane.b32.xlu0 %v7490, 64
      %v7625 = vpop.permute.xlu0 %7624
      %7626 = vrot.lane.b32.xlu0 %v7491, 64
      %v7627 = vpop.permute.xlu0 %7626
      %7628 = vrot.lane.b32.xlu0 %v7492, 64
      %v7629 = vpop.permute.xlu0 %7628
      %7630 = vrot.lane.b32.xlu0 %v7493, 64
      %v7631 = vpop.permute.xlu0 %7630
      %7632 = vrot.lane.b32.xlu0 %v7494, 64
      %v7633 = vpop.permute.xlu0 %7632
      %7634 = vrot.lane.b32.xlu0 %v7495, 64
      %v7635 = vpop.permute.xlu0 %7634
      %7636 = vrot.lane.b32.xlu0 %v7496, 64
      %v7637 = vpop.permute.xlu0 %7636
      %7638 = vrot.lane.b32.xlu0 %v7497, 64
      %v7639 = vpop.permute.xlu0 %7638
      %7640 = vrot.lane.b32.xlu0 %v7498, 64
      %v7641 = vpop.permute.xlu0 %7640
      %7642 = vrot.lane.b32.xlu0 %v7499, 64
      %v7643 = vpop.permute.xlu0 %7642
      %7644 = vrot.lane.b32.xlu0 %v7500, 64
      %v7645 = vpop.permute.xlu0 %7644
      %7646 = vrot.lane.b32.xlu0 %v7501, 64
      %v7647 = vpop.permute.xlu0 %7646
      %7648 = vrot.lane.b32.xlu0 %v7502, 64
      %v7649 = vpop.permute.xlu0 %7648
      %7650 = vrot.lane.b32.xlu0 %v7503, 64
      %v7651 = vpop.permute.xlu0 %7650
      %7652 = vrot.lane.b32.xlu0 %v7504, 64
      %v7653 = vpop.permute.xlu0 %7652
      %7654 = vrot.lane.b32.xlu0 %v7505, 64
      %v7655 = vpop.permute.xlu0 %7654
      %7656 = vrot.lane.b32.xlu0 %v7506, 64
      %v7657 = vpop.permute.xlu0 %7656
      %7658 = vrot.lane.b32.xlu0 %v7507, 64
      %v7659 = vpop.permute.xlu0 %7658
      %7660 = vrot.lane.b32.xlu0 %v7508, 64
      %v7661 = vpop.permute.xlu0 %7660
      %7662 = vrot.lane.b32.xlu0 %v7509, 64
      %v7663 = vpop.permute.xlu0 %7662
      %7664 = vrot.lane.b32.xlu0 %v7510, 64
      %v7665 = vpop.permute.xlu0 %7664
      %7666 = vrot.lane.b32.xlu0 %v7511, 64
      %v7667 = vpop.permute.xlu0 %7666
      %7668 = vrot.lane.b32.xlu0 %v7512, 64
      %v7669 = vpop.permute.xlu0 %7668
      %7670 = vrot.lane.b32.xlu0 %v7513, 64
      %v7671 = vpop.permute.xlu0 %7670
      %7672 = vrot.lane.b32.xlu0 %v7514, 64
      %v7673 = vpop.permute.xlu0 %7672
      %7674 = vrot.lane.b32.xlu0 %v7515, 64
      %v7675 = vpop.permute.xlu0 %7674
      %7676 = vrot.lane.b32.xlu0 %v7516, 64
      %v7677 = vpop.permute.xlu0 %7676
      %7678 = vrot.lane.b32.xlu0 %v7517, 64
      %v7679 = vpop.permute.xlu0 %7678
      %7680 = vrot.lane.b32.xlu0 %v7518, 64
      %v7681 = vpop.permute.xlu0 %7680
      %7682 = vrot.lane.b32.xlu0 %v7519, 64
      %v7683 = vpop.permute.xlu0 %7682
      %7684 = vrot.lane.b32.xlu0 %v7520, 64
      %v7685 = vpop.permute.xlu0 %7684
      %7686 = vrot.lane.b32.xlu0 %v7521, 64
      %v7687 = vpop.permute.xlu0 %7686
      %7688 = vrot.lane.b32.xlu0 %v7522, 64
      %v7689 = vpop.permute.xlu0 %7688
      %7690 = vrot.lane.b32.xlu0 %v7523, 64
      %v7691 = vpop.permute.xlu0 %7690
      %7692 = vrot.lane.b32.xlu0 %v7524, 64
      %v7693 = vpop.permute.xlu0 %7692
      %7694 = vrot.lane.b32.xlu0 %v7525, 64
      %v7695 = vpop.permute.xlu0 %7694
      %7696 = vrot.lane.b32.xlu0 %v7526, 64
      %v7697 = vpop.permute.xlu0 %7696
      %7698 = vrot.lane.b32.xlu0 %v7527, 64
      %v7699 = vpop.permute.xlu0 %7698
      %7700 = vrot.lane.b32.xlu0 %v7528, 64
      %v7701 = vpop.permute.xlu0 %7700
      %7702 = vrot.lane.b32.xlu0 %v7529, 64
      %v7703 = vpop.permute.xlu0 %7702
      %7704 = vrot.lane.b32.xlu0 %v7530, 64
      %v7705 = vpop.permute.xlu0 %7704
      %7706 = vrot.lane.b32.xlu0 %v7531, 64
      %v7707 = vpop.permute.xlu0 %7706
      %7708 = vrot.lane.b32.xlu0 %v7532, 64
      %v7709 = vpop.permute.xlu0 %7708
      %7710 = vrot.lane.b32.xlu0 %v7533, 64
      %v7711 = vpop.permute.xlu0 %7710
      %7712 = vrot.lane.b32.xlu0 %v7534, 64
      %v7713 = vpop.permute.xlu0 %7712
      %7714 = vrot.lane.b32.xlu0 %v7535, 64
      %v7715 = vpop.permute.xlu0 %7714
      %7716 = vrot.lane.b32.xlu0 %v7536, 64
      %v7717 = vpop.permute.xlu0 %7716
      %7718 = vrot.lane.b32.xlu0 %v7537, 64
      %v7719 = vpop.permute.xlu0 %7718
      %7720 = vrot.lane.b32.xlu0 %v7538, 64
      %v7721 = vpop.permute.xlu0 %7720
      %7722 = vrot.lane.b32.xlu0 %v7539, 64
      %v7723 = vpop.permute.xlu0 %7722
      %7724 = vrot.lane.b32.xlu0 %v7540, 64
      %v7725 = vpop.permute.xlu0 %7724
      %7726 = vrot.lane.b32.xlu0 %v7541, 64
      %v7727 = vpop.permute.xlu0 %7726
      %7728 = vrot.lane.b32.xlu0 %v7542, 64
      %v7729 = vpop.permute.xlu0 %7728
      %7730 = vrot.lane.b32.xlu0 %v7543, 64
      %v7731 = vpop.permute.xlu0 %7730
      %7732 = vrot.lane.b32.xlu0 %v7544, 64
      %v7733 = vpop.permute.xlu0 %7732
      %7734 = vrot.lane.b32.xlu0 %v7545, 64
      %v7735 = vpop.permute.xlu0 %7734
      %7736 = vrot.lane.b32.xlu0 %v7546, 64
      %v7737 = vpop.permute.xlu0 %7736
      %7738 = vrot.lane.b32.xlu0 %v7547, 64
      %v7739 = vpop.permute.xlu0 %7738
      %7804 = vst.msk [vmem:[#allocation4] sm:$0xff] %vm3829, %v7613
      %7805 = vst.msk [vmem:[#allocation4 + $0x8] sm:$0xff] %vm3829, %v7615
      %7806 = vst.msk [vmem:[#allocation4 + $0x10] sm:$0xff] %vm3829, %v7617
      %7807 = vst.msk [vmem:[#allocation4 + $0x18] sm:$0xff] %vm3829, %v7619
      %7808 = vst.msk [vmem:[#allocation4 + $0x20] sm:$0xff] %vm3829, %v7621
      %7809 = vst.msk [vmem:[#allocation4 + $0x28] sm:$0xff] %vm3829, %v7623
      %7810 = vst.msk [vmem:[#allocation4 + $0x30] sm:$0xff] %vm3829, %v7625
      %7811 = vst.msk [vmem:[#allocation4 + $0x38] sm:$0xff] %vm3829, %v7627
      %7812 = vst.msk [vmem:[#allocation4 + $0x40] sm:$0xff] %vm3829, %v7629
      %7813 = vst.msk [vmem:[#allocation4 + $0x48] sm:$0xff] %vm3829, %v7631
      %7814 = vst.msk [vmem:[#allocation4 + $0x50] sm:$0xff] %vm3829, %v7633
      %7815 = vst.msk [vmem:[#allocation4 + $0x58] sm:$0xff] %vm3829, %v7635
      %7816 = vst.msk [vmem:[#allocation4 + $0x60] sm:$0xff] %vm3829, %v7637
      %7817 = vst.msk [vmem:[#allocation4 + $0x68] sm:$0xff] %vm3829, %v7639
      %7818 = vst.msk [vmem:[#allocation4 + $0x70] sm:$0xff] %vm3829, %v7641
      %7819 = vst.msk [vmem:[#allocation4 + $0x78] sm:$0xff] %vm3829, %v7643
      %7820 = vst.msk [vmem:[#allocation4 + $0x80] sm:$0xff] %vm3829, %v7645
      %7821 = vst.msk [vmem:[#allocation4 + $0x88] sm:$0xff] %vm3829, %v7647
      %7822 = vst.msk [vmem:[#allocation4 + $0x90] sm:$0xff] %vm3829, %v7649
      %7823 = vst.msk [vmem:[#allocation4 + $0x98] sm:$0xff] %vm3829, %v7651
      %7824 = vst.msk [vmem:[#allocation4 + $0xa0] sm:$0xff] %vm3829, %v7653
      %7825 = vst.msk [vmem:[#allocation4 + $0xa8] sm:$0xff] %vm3829, %v7655
      %7826 = vst.msk [vmem:[#allocation4 + $0xb0] sm:$0xff] %vm3829, %v7657
      %7827 = vst.msk [vmem:[#allocation4 + $0xb8] sm:$0xff] %vm3829, %v7659
      %7828 = vst.msk [vmem:[#allocation4 + $0xc0] sm:$0xff] %vm3829, %v7661
      %7829 = vst.msk [vmem:[#allocation4 + $0xc8] sm:$0xff] %vm3829, %v7663
      %7830 = vst.msk [vmem:[#allocation4 + $0xd0] sm:$0xff] %vm3829, %v7665
      %7831 = vst.msk [vmem:[#allocation4 + $0xd8] sm:$0xff] %vm3829, %v7667
      %7832 = vst.msk [vmem:[#allocation4 + $0xe0] sm:$0xff] %vm3829, %v7669
      %7833 = vst.msk [vmem:[#allocation4 + $0xe8] sm:$0xff] %vm3829, %v7671
      %7834 = vst.msk [vmem:[#allocation4 + $0xf0] sm:$0xff] %vm3829, %v7673
      %7835 = vst.msk [vmem:[#allocation4 + $0xf8] sm:$0xff] %vm3829, %v7675
      %7836 = vst.msk [vmem:[#allocation4 + $0x100] sm:$0xff] %vm3829, %v7677
      %7837 = vst.msk [vmem:[#allocation4 + $0x108] sm:$0xff] %vm3829, %v7679
      %7838 = vst.msk [vmem:[#allocation4 + $0x110] sm:$0xff] %vm3829, %v7681
      %7839 = vst.msk [vmem:[#allocation4 + $0x118] sm:$0xff] %vm3829, %v7683
      %7840 = vst.msk [vmem:[#allocation4 + $0x120] sm:$0xff] %vm3829, %v7685
      %7841 = vst.msk [vmem:[#allocation4 + $0x128] sm:$0xff] %vm3829, %v7687
      %7842 = vst.msk [vmem:[#allocation4 + $0x130] sm:$0xff] %vm3829, %v7689
      %7843 = vst.msk [vmem:[#allocation4 + $0x138] sm:$0xff] %vm3829, %v7691
      %7844 = vst.msk [vmem:[#allocation4 + $0x140] sm:$0xff] %vm3829, %v7693
      %7845 = vst.msk [vmem:[#allocation4 + $0x148] sm:$0xff] %vm3829, %v7695
      %7846 = vst.msk [vmem:[#allocation4 + $0x150] sm:$0xff] %vm3829, %v7697
      %7847 = vst.msk [vmem:[#allocation4 + $0x158] sm:$0xff] %vm3829, %v7699
      %7848 = vst.msk [vmem:[#allocation4 + $0x160] sm:$0xff] %vm3829, %v7701
      %7849 = vst.msk [vmem:[#allocation4 + $0x168] sm:$0xff] %vm3829, %v7703
      %7850 = vst.msk [vmem:[#allocation4 + $0x170] sm:$0xff] %vm3829, %v7705
      %7851 = vst.msk [vmem:[#allocation4 + $0x178] sm:$0xff] %vm3829, %v7707
      %7852 = vst.msk [vmem:[#allocation4 + $0x180] sm:$0xff] %vm3829, %v7709
      %7853 = vst.msk [vmem:[#allocation4 + $0x188] sm:$0xff] %vm3829, %v7711
      %7854 = vst.msk [vmem:[#allocation4 + $0x190] sm:$0xff] %vm3829, %v7713
      %7855 = vst.msk [vmem:[#allocation4 + $0x198] sm:$0xff] %vm3829, %v7715
      %7856 = vst.msk [vmem:[#allocation4 + $0x1a0] sm:$0xff] %vm3829, %v7717
      %7857 = vst.msk [vmem:[#allocation4 + $0x1a8] sm:$0xff] %vm3829, %v7719
      %7858 = vst.msk [vmem:[#allocation4 + $0x1b0] sm:$0xff] %vm3829, %v7721
      %7859 = vst.msk [vmem:[#allocation4 + $0x1b8] sm:$0xff] %vm3829, %v7723
      %7860 = vst.msk [vmem:[#allocation4 + $0x1c0] sm:$0xff] %vm3829, %v7725
      %7861 = vst.msk [vmem:[#allocation4 + $0x1c8] sm:$0xff] %vm3829, %v7727
      %7862 = vst.msk [vmem:[#allocation4 + $0x1d0] sm:$0xff] %vm3829, %v7729
      %7863 = vst.msk [vmem:[#allocation4 + $0x1d8] sm:$0xff] %vm3829, %v7731
      %7864 = vst.msk [vmem:[#allocation4 + $0x1e0] sm:$0xff] %vm3829, %v7733
      %7865 = vst.msk [vmem:[#allocation4 + $0x1e8] sm:$0xff] %vm3829, %v7735
      %7866 = vst.msk [vmem:[#allocation4 + $0x1f0] sm:$0xff] %vm3829, %v7737
      %7867 = vst.msk [vmem:[#allocation4 + $0x1f8] sm:$0xff] %vm3829, %v7739
      %v7868 = vld [vmem:[#allocation4] sm:$0xff]
      %v7869 = vld [vmem:[#allocation4 + $0x8] sm:$0xff]
      %v7870 = vld [vmem:[#allocation4 + $0x10] sm:$0xff]
      %v7871 = vld [vmem:[#allocation4 + $0x18] sm:$0xff]
      %v7872 = vld [vmem:[#allocation4 + $0x20] sm:$0xff]
      %v7873 = vld [vmem:[#allocation4 + $0x28] sm:$0xff]
      %v7874 = vld [vmem:[#allocation4 + $0x30] sm:$0xff]
      %v7875 = vld [vmem:[#allocation4 + $0x38] sm:$0xff]
      %v7876 = vld [vmem:[#allocation4 + $0x40] sm:$0xff]
      %v7877 = vld [vmem:[#allocation4 + $0x48] sm:$0xff]
      %v7878 = vld [vmem:[#allocation4 + $0x50] sm:$0xff]
      %v7879 = vld [vmem:[#allocation4 + $0x58] sm:$0xff]
      %v7880 = vld [vmem:[#allocation4 + $0x60] sm:$0xff]
      %v7881 = vld [vmem:[#allocation4 + $0x68] sm:$0xff]
      %v7882 = vld [vmem:[#allocation4 + $0x70] sm:$0xff]
      %v7883 = vld [vmem:[#allocation4 + $0x78] sm:$0xff]
      %v7884 = vld [vmem:[#allocation4 + $0x80] sm:$0xff]
      %v7885 = vld [vmem:[#allocation4 + $0x88] sm:$0xff]
      %v7886 = vld [vmem:[#allocation4 + $0x90] sm:$0xff]
      %v7887 = vld [vmem:[#allocation4 + $0x98] sm:$0xff]
      %v7888 = vld [vmem:[#allocation4 + $0xa0] sm:$0xff]
      %v7889 = vld [vmem:[#allocation4 + $0xa8] sm:$0xff]
      %v7890 = vld [vmem:[#allocation4 + $0xb0] sm:$0xff]
      %v7891 = vld [vmem:[#allocation4 + $0xb8] sm:$0xff]
      %v7892 = vld [vmem:[#allocation4 + $0xc0] sm:$0xff]
      %v7893 = vld [vmem:[#allocation4 + $0xc8] sm:$0xff]
      %v7894 = vld [vmem:[#allocation4 + $0xd0] sm:$0xff]
      %v7895 = vld [vmem:[#allocation4 + $0xd8] sm:$0xff]
      %v7896 = vld [vmem:[#allocation4 + $0xe0] sm:$0xff]
      %v7897 = vld [vmem:[#allocation4 + $0xe8] sm:$0xff]
      %v7898 = vld [vmem:[#allocation4 + $0xf0] sm:$0xff]
      %v7899 = vld [vmem:[#allocation4 + $0xf8] sm:$0xff]
      %v7900 = vld [vmem:[#allocation4 + $0x100] sm:$0xff]
      %v7901 = vld [vmem:[#allocation4 + $0x108] sm:$0xff]
      %v7902 = vld [vmem:[#allocation4 + $0x110] sm:$0xff]
      %v7903 = vld [vmem:[#allocation4 + $0x118] sm:$0xff]
      %v7904 = vld [vmem:[#allocation4 + $0x120] sm:$0xff]
      %v7905 = vld [vmem:[#allocation4 + $0x128] sm:$0xff]
      %v7906 = vld [vmem:[#allocation4 + $0x130] sm:$0xff]
      %v7907 = vld [vmem:[#allocation4 + $0x138] sm:$0xff]
      %v7908 = vld [vmem:[#allocation4 + $0x140] sm:$0xff]
      %v7909 = vld [vmem:[#allocation4 + $0x148] sm:$0xff]
      %v7910 = vld [vmem:[#allocation4 + $0x150] sm:$0xff]
      %v7911 = vld [vmem:[#allocation4 + $0x158] sm:$0xff]
      %v7912 = vld [vmem:[#allocation4 + $0x160] sm:$0xff]
      %v7913 = vld [vmem:[#allocation4 + $0x168] sm:$0xff]
      %v7914 = vld [vmem:[#allocation4 + $0x170] sm:$0xff]
      %v7915 = vld [vmem:[#allocation4 + $0x178] sm:$0xff]
      %v7916 = vld [vmem:[#allocation4 + $0x180] sm:$0xff]
      %v7917 = vld [vmem:[#allocation4 + $0x188] sm:$0xff]
      %v7918 = vld [vmem:[#allocation4 + $0x190] sm:$0xff]
      %v7919 = vld [vmem:[#allocation4 + $0x198] sm:$0xff]
      %v7920 = vld [vmem:[#allocation4 + $0x1a0] sm:$0xff]
      %v7921 = vld [vmem:[#allocation4 + $0x1a8] sm:$0xff]
      %v7922 = vld [vmem:[#allocation4 + $0x1b0] sm:$0xff]
      %v7923 = vld [vmem:[#allocation4 + $0x1b8] sm:$0xff]
      %v7924 = vld [vmem:[#allocation4 + $0x1c0] sm:$0xff]
      %v7925 = vld [vmem:[#allocation4 + $0x1c8] sm:$0xff]
      %v7926 = vld [vmem:[#allocation4 + $0x1d0] sm:$0xff]
      %v7927 = vld [vmem:[#allocation4 + $0x1d8] sm:$0xff]
      %v7928 = vld [vmem:[#allocation4 + $0x1e0] sm:$0xff]
      %v7929 = vld [vmem:[#allocation4 + $0x1e8] sm:$0xff]
      %v7930 = vld [vmem:[#allocation4 + $0x1f0] sm:$0xff]
      %v7931 = vld [vmem:[#allocation4 + $0x1f8] sm:$0xff]
      %v7932 = vlaneseq
      %v7933 = vshrl.u32 %v7932, 7
      %v7934 = vsub.s32 1, %v7933
      %v7935 = vrot.slane %v618, %v7934
      %v7937 = vsel %vm3962, %v7868, 0
      %v7940 = vsel %vm3962, %v7869, 0
      %v7943 = vsel %vm3962, %v7870, 0
      %v7946 = vsel %vm3962, %v7871, 0
      %v7949 = vsel %vm3962, %v7872, 0
      %v7952 = vsel %vm3962, %v7873, 0
      %v7955 = vsel %vm3962, %v7874, 0
      %v7958 = vsel %vm3962, %v7875, 0
      %v7961 = vsel %vm3962, %v7876, 0
      %v7964 = vsel %vm3962, %v7877, 0
      %v7967 = vsel %vm3962, %v7878, 0
      %v7970 = vsel %vm3962, %v7879, 0
      %v7973 = vsel %vm3962, %v7880, 0
      %v7976 = vsel %vm3962, %v7881, 0
      %v7979 = vsel %vm3962, %v7882, 0
      %v7982 = vsel %vm3962, %v7883, 0
      %v7985 = vsel %vm3962, %v7884, 0
      %v7988 = vsel %vm3962, %v7885, 0
      %v7991 = vsel %vm3962, %v7886, 0
      %v7994 = vsel %vm3962, %v7887, 0
      %v7997 = vsel %vm3962, %v7888, 0
      %v8000 = vsel %vm3962, %v7889, 0
      %v8003 = vsel %vm3962, %v7890, 0
      %v8006 = vsel %vm3962, %v7891, 0
      %v8009 = vsel %vm3962, %v7892, 0
      %v8012 = vsel %vm3962, %v7893, 0
      %v8015 = vsel %vm3962, %v7894, 0
      %v8018 = vsel %vm3962, %v7895, 0
      %v8021 = vsel %vm3962, %v7896, 0
      %v8024 = vsel %vm3962, %v7897, 0
      %v8027 = vsel %vm3962, %v7898, 0
      %v8030 = vsel %vm3962, %v7899, 0
      %v8033 = vsel %vm3962, %v7900, 0
      %v8036 = vsel %vm3962, %v7901, 0
      %v8039 = vsel %vm3962, %v7902, 0
      %v8042 = vsel %vm3962, %v7903, 0
      %v8045 = vsel %vm3962, %v7904, 0
      %v8048 = vsel %vm3962, %v7905, 0
      %v8051 = vsel %vm3962, %v7906, 0
      %v8054 = vsel %vm3962, %v7907, 0
      %v8057 = vsel %vm3962, %v7908, 0
      %v8060 = vsel %vm3962, %v7909, 0
      %v8063 = vsel %vm3962, %v7910, 0
      %v8066 = vsel %vm3962, %v7911, 0
      %v8069 = vsel %vm3962, %v7912, 0
      %v8072 = vsel %vm3962, %v7913, 0
      %v8075 = vsel %vm3962, %v7914, 0
      %v8078 = vsel %vm3962, %v7915, 0
      %v8081 = vsel %vm3962, %v7916, 0
      %v8084 = vsel %vm3962, %v7917, 0
      %v8087 = vsel %vm3962, %v7918, 0
      %v8090 = vsel %vm3962, %v7919, 0
      %v8093 = vsel %vm3962, %v7920, 0
      %v8096 = vsel %vm3962, %v7921, 0
      %v8099 = vsel %vm3962, %v7922, 0
      %v8102 = vsel %vm3962, %v7923, 0
      %v8105 = vsel %vm3962, %v7924, 0
      %v8108 = vsel %vm3962, %v7925, 0
      %v8111 = vsel %vm3962, %v7926, 0
      %v8114 = vsel %vm3962, %v7927, 0
      %v8117 = vsel %vm3962, %v7928, 0
      %v8120 = vsel %vm3962, %v7929, 0
      %v8123 = vsel %vm3962, %v7930, 0
      %v8126 = vsel %vm3962, %v7931, 0
      %8128 = vmatprep.subr.mxu0 0.0
      %8129 = vmatpush1.msra.mxu0 %v609
      %8130 = vmatprep.subr.mxu0 0.0
      %8131 = vmatpush1.msra.mxu0 %v610
      %8132 = vmatprep.subr.mxu0 0.0
      %8133 = vmatpush1.msra.mxu0 %v611
      %8134 = vmatprep.subr.mxu0 0.0
      %8135 = vmatpush1.msra.mxu0 %v612
      %8136 = vmatprep.subr.mxu0 0.0
      %8137 = vmatpush1.msra.mxu0 %v613
      %8138 = vmatprep.subr.mxu0 0.0
      %8139 = vmatpush1.msra.mxu0 %v614
      %8140 = vmatprep.subr.mxu0 0.0
      %8141 = vmatpush1.msra.mxu0 %v615
      %8142 = vmatprep.subr.mxu0 0.0
      %8143 = vmatpush1.msra.mxu0 %v616
      %8144 = vmatprep.subr.mxu0 0.0
      %8145 = vmatpush1.msra.mxu0 %v617
      %8146 = vmatprep.subr.mxu0 0.0
      %8147 = vmatpush1.msra.mxu0 0.0
      %8148 = vmatprep.subr.mxu0 0.0
      %8149 = vmatpush1.msra.mxu0 0.0
      %8150 = vmatprep.subr.mxu0 0.0
      %8151 = vmatpush1.msra.mxu0 0.0
      %8152 = vmatprep.subr.mxu0 0.0
      %8153 = vmatpush1.msra.mxu0 0.0
      %8154 = vmatprep.subr.mxu0 0.0
      %8155 = vmatpush1.msra.mxu0 0.0
      %8156 = vmatprep.subr.mxu0 0.0
      %8157 = vmatpush1.msra.mxu0 0.0
      %8158 = vmatprep.subr.mxu0 0.0
      %8159 = vmatpush1.msra.mxu0 0.0
      %8160 = vmatprep.subr.mxu0 0.0
      %8161 = vmatpush1.msra.mxu0 0.0
      %8162 = vmatprep.subr.mxu0 0.0
      %8163 = vmatpush1.msra.mxu0 0.0
      %8164 = vmatprep.subr.mxu0 0.0
      %8165 = vmatpush1.msra.mxu0 0.0
      %8166 = vmatprep.subr.mxu0 0.0
      %8167 = vmatpush1.msra.mxu0 0.0
      %8168 = vmatprep.subr.mxu0 0.0
      %8169 = vmatpush1.msra.mxu0 0.0
      %8170 = vmatprep.subr.mxu0 0.0
      %8171 = vmatpush1.msra.mxu0 0.0
      %8172 = vmatprep.subr.mxu0 0.0
      %8173 = vmatpush1.msra.mxu0 0.0
      %8174 = vmatprep.subr.mxu0 0.0
      %8175 = vmatpush1.msra.mxu0 0.0
      %8176 = vmatprep.subr.mxu0 0.0
      %8177 = vmatpush1.msra.mxu0 0.0
      %8178 = vmatprep.subr.mxu0 0.0
      %8179 = vmatpush1.msra.mxu0 0.0
      %8180 = vmatprep.subr.mxu0 0.0
      %8181 = vmatpush1.msra.mxu0 0.0
      %8182 = vmatprep.subr.mxu0 0.0
      %8183 = vmatpush1.msra.mxu0 0.0
      %8184 = vmatprep.subr.mxu0 0.0
      %8185 = vmatpush1.msra.mxu0 0.0
      %8186 = vmatprep.subr.mxu0 0.0
      %8187 = vmatpush1.msra.mxu0 0.0
      %8188 = vmatprep.subr.mxu0 0.0
      %8189 = vmatpush1.msra.mxu0 0.0
      %8190 = vmatprep.subr.mxu0 0.0
      %8191 = vmatpush1.msra.mxu0 0.0
      %8192 = vmatprep.mubr.f32.mxu0 0.0
      %8193 = vmatmul.mubr.f32.gmra.mrb[0].mxu0 %v7937
      %v8194 = vpop.f32.mrb[0].mxu0
      %v8195 = vadd.f32 %v7935, %v8194
      %v8196 = vpop.f32.mrb[0].mxu0
      %8197 = vmatprep.mubr.f32.mxu0 0.0
      %8198 = vmatmul.mubr.f32.gmra.mrb[0].mxu0 %v7940
      %v8199 = vpop.f32.mrb[0].mxu0
      %v8200 = vadd.f32 %v7935, %v8199
      %v8201 = vpop.f32.mrb[0].mxu0
      %8202 = vmatprep.mubr.f32.mxu0 0.0
      %8203 = vmatmul.mubr.f32.gmra.mrb[0].mxu0 %v7943
      %v8204 = vpop.f32.mrb[0].mxu0
      %v8205 = vadd.f32 %v7935, %v8204
      %v8206 = vpop.f32.mrb[0].mxu0
      %8207 = vmatprep.mubr.f32.mxu0 0.0
      %8208 = vmatmul.mubr.f32.gmra.mrb[0].mxu0 %v7946
      %v8209 = vpop.f32.mrb[0].mxu0
      %v8210 = vadd.f32 %v7935, %v8209
      %v8211 = vpop.f32.mrb[0].mxu0
      %8212 = vmatprep.mubr.f32.mxu0 0.0
      %8213 = vmatmul.mubr.f32.gmra.mrb[0].mxu0 %v7949
      %v8214 = vpop.f32.mrb[0].mxu0
      %v8215 = vadd.f32 %v7935, %v8214
      %v8216 = vpop.f32.mrb[0].mxu0
      %8217 = vmatprep.mubr.f32.mxu0 0.0
      %8218 = vmatmul.mubr.f32.gmra.mrb[0].mxu0 %v7952
      %v8219 = vpop.f32.mrb[0].mxu0
      %v8220 = vadd.f32 %v7935, %v8219
      %v8221 = vpop.f32.mrb[0].mxu0
      %8222 = vmatprep.mubr.f32.mxu0 0.0
      %8223 = vmatmul.mubr.f32.gmra.mrb[0].mxu0 %v7955
      %v8224 = vpop.f32.mrb[0].mxu0
      %v8225 = vadd.f32 %v7935, %v8224
      %v8226 = vpop.f32.mrb[0].mxu0
      %8227 = vmatprep.mubr.f32.mxu0 0.0
      %8228 = vmatmul.mubr.f32.gmra.mrb[0].mxu0 %v7958
      %v8229 = vpop.f32.mrb[0].mxu0
      %v8230 = vadd.f32 %v7935, %v8229
      %v8231 = vpop.f32.mrb[0].mxu0
      %8232 = vmatprep.mubr.f32.mxu0 0.0
      %8233 = vmatmul.mubr.f32.gmra.mrb[0].mxu0 %v7961
      %v8234 = vpop.f32.mrb[0].mxu0
      %v8235 = vadd.f32 %v7935, %v8234
      %v8236 = vpop.f32.mrb[0].mxu0
      %8237 = vmatprep.mubr.f32.mxu0 0.0
      %8238 = vmatmul.mubr.f32.gmra.mrb[0].mxu0 %v7964
      %v8239 = vpop.f32.mrb[0].mxu0
      %v8240 = vadd.f32 %v7935, %v8239
      %v8241 = vpop.f32.mrb[0].mxu0
      %8242 = vmatprep.mubr.f32.mxu0 0.0
      %8243 = vmatmul.mubr.f32.gmra.mrb[0].mxu0 %v7967
      %v8244 = vpop.f32.mrb[0].mxu0
      %v8245 = vadd.f32 %v7935, %v8244
      %v8246 = vpop.f32.mrb[0].mxu0
      %8247 = vmatprep.mubr.f32.mxu0 0.0
      %8248 = vmatmul.mubr.f32.gmra.mrb[0].mxu0 %v7970
      %v8249 = vpop.f32.mrb[0].mxu0
      %v8250 = vadd.f32 %v7935, %v8249
      %v8251 = vpop.f32.mrb[0].mxu0
      %8252 = vmatprep.mubr.f32.mxu0 0.0
      %8253 = vmatmul.mubr.f32.gmra.mrb[0].mxu0 %v7973
      %v8254 = vpop.f32.mrb[0].mxu0
      %v8255 = vadd.f32 %v7935, %v8254
      %v8256 = vpop.f32.mrb[0].mxu0
      %8257 = vmatprep.mubr.f32.mxu0 0.0
      %8258 = vmatmul.mubr.f32.gmra.mrb[0].mxu0 %v7976
      %v8259 = vpop.f32.mrb[0].mxu0
      %v8260 = vadd.f32 %v7935, %v8259
      %v8261 = vpop.f32.mrb[0].mxu0
      %8262 = vmatprep.mubr.f32.mxu0 0.0
      %8263 = vmatmul.mubr.f32.gmra.mrb[0].mxu0 %v7979
      %v8264 = vpop.f32.mrb[0].mxu0
      %v8265 = vadd.f32 %v7935, %v8264
      %v8266 = vpop.f32.mrb[0].mxu0
      %8267 = vmatprep.mubr.f32.mxu0 0.0
      %8268 = vmatmul.mubr.f32.gmra.mrb[0].mxu0 %v7982
      %v8269 = vpop.f32.mrb[0].mxu0
      %v8270 = vadd.f32 %v7935, %v8269
      %v8271 = vpop.f32.mrb[0].mxu0
      %8272 = vmatprep.mubr.f32.mxu0 0.0
      %8273 = vmatmul.mubr.f32.gmra.mrb[0].mxu0 %v7985
      %v8274 = vpop.f32.mrb[0].mxu0
      %v8275 = vadd.f32 %v7935, %v8274
      %v8276 = vpop.f32.mrb[0].mxu0
      %8277 = vmatprep.mubr.f32.mxu0 0.0
      %8278 = vmatmul.mubr.f32.gmra.mrb[0].mxu0 %v7988
      %v8279 = vpop.f32.mrb[0].mxu0
      %v8280 = vadd.f32 %v7935, %v8279
      %v8281 = vpop.f32.mrb[0].mxu0
      %8282 = vmatprep.mubr.f32.mxu0 0.0
      %8283 = vmatmul.mubr.f32.gmra.mrb[0].mxu0 %v7991
      %v8284 = vpop.f32.mrb[0].mxu0
      %v8285 = vadd.f32 %v7935, %v8284
      %v8286 = vpop.f32.mrb[0].mxu0
      %8287 = vmatprep.mubr.f32.mxu0 0.0
      %8288 = vmatmul.mubr.f32.gmra.mrb[0].mxu0 %v7994
      %v8289 = vpop.f32.mrb[0].mxu0
      %v8290 = vadd.f32 %v7935, %v8289
      %v8291 = vpop.f32.mrb[0].mxu0
      %8292 = vmatprep.mubr.f32.mxu0 0.0
      %8293 = vmatmul.mubr.f32.gmra.mrb[0].mxu0 %v7997
      %v8294 = vpop.f32.mrb[0].mxu0
      %v8295 = vadd.f32 %v7935, %v8294
      %v8296 = vpop.f32.mrb[0].mxu0
      %8297 = vmatprep.mubr.f32.mxu0 0.0
      %8298 = vmatmul.mubr.f32.gmra.mrb[0].mxu0 %v8000
      %v8299 = vpop.f32.mrb[0].mxu0
      %v8300 = vadd.f32 %v7935, %v8299
      %v8301 = vpop.f32.mrb[0].mxu0
      %8302 = vmatprep.mubr.f32.mxu0 0.0
      %8303 = vmatmul.mubr.f32.gmra.mrb[0].mxu0 %v8003
      %v8304 = vpop.f32.mrb[0].mxu0
      %v8305 = vadd.f32 %v7935, %v8304
      %v8306 = vpop.f32.mrb[0].mxu0
      %8307 = vmatprep.mubr.f32.mxu0 0.0
      %8308 = vmatmul.mubr.f32.gmra.mrb[0].mxu0 %v8006
      %v8309 = vpop.f32.mrb[0].mxu0
      %v8310 = vadd.f32 %v7935, %v8309
      %v8311 = vpop.f32.mrb[0].mxu0
      %8312 = vmatprep.mubr.f32.mxu0 0.0
      %8313 = vmatmul.mubr.f32.gmra.mrb[0].mxu0 %v8009
      %v8314 = vpop.f32.mrb[0].mxu0
      %v8315 = vadd.f32 %v7935, %v8314
      %v8316 = vpop.f32.mrb[0].mxu0
      %8317 = vmatprep.mubr.f32.mxu0 0.0
      %8318 = vmatmul.mubr.f32.gmra.mrb[0].mxu0 %v8012
      %v8319 = vpop.f32.mrb[0].mxu0
      %v8320 = vadd.f32 %v7935, %v8319
      %v8321 = vpop.f32.mrb[0].mxu0
      %8322 = vmatprep.mubr.f32.mxu0 0.0
      %8323 = vmatmul.mubr.f32.gmra.mrb[0].mxu0 %v8015
      %v8324 = vpop.f32.mrb[0].mxu0
      %v8325 = vadd.f32 %v7935, %v8324
      %v8326 = vpop.f32.mrb[0].mxu0
      %8327 = vmatprep.mubr.f32.mxu0 0.0
      %8328 = vmatmul.mubr.f32.gmra.mrb[0].mxu0 %v8018
      %v8329 = vpop.f32.mrb[0].mxu0
      %v8330 = vadd.f32 %v7935, %v8329
      %v8331 = vpop.f32.mrb[0].mxu0
      %8332 = vmatprep.mubr.f32.mxu0 0.0
      %8333 = vmatmul.mubr.f32.gmra.mrb[0].mxu0 %v8021
      %v8334 = vpop.f32.mrb[0].mxu0
      %v8335 = vadd.f32 %v7935, %v8334
      %v8336 = vpop.f32.mrb[0].mxu0
      %8337 = vmatprep.mubr.f32.mxu0 0.0
      %8338 = vmatmul.mubr.f32.gmra.mrb[0].mxu0 %v8024
      %v8339 = vpop.f32.mrb[0].mxu0
      %v8340 = vadd.f32 %v7935, %v8339
      %v8341 = vpop.f32.mrb[0].mxu0
      %8342 = vmatprep.mubr.f32.mxu0 0.0
      %8343 = vmatmul.mubr.f32.gmra.mrb[0].mxu0 %v8027
      %v8344 = vpop.f32.mrb[0].mxu0
      %v8345 = vadd.f32 %v7935, %v8344
      %v8346 = vpop.f32.mrb[0].mxu0
      %8347 = vmatprep.mubr.f32.mxu0 0.0
      %8348 = vmatmul.mubr.f32.gmra.mrb[0].mxu0 %v8030
      %v8349 = vpop.f32.mrb[0].mxu0
      %v8350 = vadd.f32 %v7935, %v8349
      %v8351 = vpop.f32.mrb[0].mxu0
      %8352 = vmatprep.mubr.f32.mxu0 0.0
      %8353 = vmatmul.mubr.f32.gmra.mrb[0].mxu0 %v8033
      %v8354 = vpop.f32.mrb[0].mxu0
      %v8355 = vadd.f32 %v7935, %v8354
      %v8356 = vpop.f32.mrb[0].mxu0
      %8357 = vmatprep.mubr.f32.mxu0 0.0
      %8358 = vmatmul.mubr.f32.gmra.mrb[0].mxu0 %v8036
      %v8359 = vpop.f32.mrb[0].mxu0
      %v8360 = vadd.f32 %v7935, %v8359
      %v8361 = vpop.f32.mrb[0].mxu0
      %8362 = vmatprep.mubr.f32.mxu0 0.0
      %8363 = vmatmul.mubr.f32.gmra.mrb[0].mxu0 %v8039
      %v8364 = vpop.f32.mrb[0].mxu0
      %v8365 = vadd.f32 %v7935, %v8364
      %v8366 = vpop.f32.mrb[0].mxu0
      %8367 = vmatprep.mubr.f32.mxu0 0.0
      %8368 = vmatmul.mubr.f32.gmra.mrb[0].mxu0 %v8042
      %v8369 = vpop.f32.mrb[0].mxu0
      %v8370 = vadd.f32 %v7935, %v8369
      %v8371 = vpop.f32.mrb[0].mxu0
      %8372 = vmatprep.mubr.f32.mxu0 0.0
      %8373 = vmatmul.mubr.f32.gmra.mrb[0].mxu0 %v8045
      %v8374 = vpop.f32.mrb[0].mxu0
      %v8375 = vadd.f32 %v7935, %v8374
      %v8376 = vpop.f32.mrb[0].mxu0
      %8377 = vmatprep.mubr.f32.mxu0 0.0
      %8378 = vmatmul.mubr.f32.gmra.mrb[0].mxu0 %v8048
      %v8379 = vpop.f32.mrb[0].mxu0
      %v8380 = vadd.f32 %v7935, %v8379
      %v8381 = vpop.f32.mrb[0].mxu0
      %8382 = vmatprep.mubr.f32.mxu0 0.0
      %8383 = vmatmul.mubr.f32.gmra.mrb[0].mxu0 %v8051
      %v8384 = vpop.f32.mrb[0].mxu0
      %v8385 = vadd.f32 %v7935, %v8384
      %v8386 = vpop.f32.mrb[0].mxu0
      %8387 = vmatprep.mubr.f32.mxu0 0.0
      %8388 = vmatmul.mubr.f32.gmra.mrb[0].mxu0 %v8054
      %v8389 = vpop.f32.mrb[0].mxu0
      %v8390 = vadd.f32 %v7935, %v8389
      %v8391 = vpop.f32.mrb[0].mxu0
      %8392 = vmatprep.mubr.f32.mxu0 0.0
      %8393 = vmatmul.mubr.f32.gmra.mrb[0].mxu0 %v8057
      %v8394 = vpop.f32.mrb[0].mxu0
      %v8395 = vadd.f32 %v7935, %v8394
      %v8396 = vpop.f32.mrb[0].mxu0
      %8397 = vmatprep.mubr.f32.mxu0 0.0
      %8398 = vmatmul.mubr.f32.gmra.mrb[0].mxu0 %v8060
      %v8399 = vpop.f32.mrb[0].mxu0
      %v8400 = vadd.f32 %v7935, %v8399
      %v8401 = vpop.f32.mrb[0].mxu0
      %8402 = vmatprep.mubr.f32.mxu0 0.0
      %8403 = vmatmul.mubr.f32.gmra.mrb[0].mxu0 %v8063
      %v8404 = vpop.f32.mrb[0].mxu0
      %v8405 = vadd.f32 %v7935, %v8404
      %v8406 = vpop.f32.mrb[0].mxu0
      %8407 = vmatprep.mubr.f32.mxu0 0.0
      %8408 = vmatmul.mubr.f32.gmra.mrb[0].mxu0 %v8066
      %v8409 = vpop.f32.mrb[0].mxu0
      %v8410 = vadd.f32 %v7935, %v8409
      %v8411 = vpop.f32.mrb[0].mxu0
      %8412 = vmatprep.mubr.f32.mxu0 0.0
      %8413 = vmatmul.mubr.f32.gmra.mrb[0].mxu0 %v8069
      %v8414 = vpop.f32.mrb[0].mxu0
      %v8415 = vadd.f32 %v7935, %v8414
      %v8416 = vpop.f32.mrb[0].mxu0
      %8417 = vmatprep.mubr.f32.mxu0 0.0
      %8418 = vmatmul.mubr.f32.gmra.mrb[0].mxu0 %v8072
      %v8419 = vpop.f32.mrb[0].mxu0
      %v8420 = vadd.f32 %v7935, %v8419
      %v8421 = vpop.f32.mrb[0].mxu0
      %8422 = vmatprep.mubr.f32.mxu0 0.0
      %8423 = vmatmul.mubr.f32.gmra.mrb[0].mxu0 %v8075
      %v8424 = vpop.f32.mrb[0].mxu0
      %v8425 = vadd.f32 %v7935, %v8424
      %v8426 = vpop.f32.mrb[0].mxu0
      %8427 = vmatprep.mubr.f32.mxu0 0.0
      %8428 = vmatmul.mubr.f32.gmra.mrb[0].mxu0 %v8078
      %v8429 = vpop.f32.mrb[0].mxu0
      %v8430 = vadd.f32 %v7935, %v8429
      %v8431 = vpop.f32.mrb[0].mxu0
      %8432 = vmatprep.mubr.f32.mxu0 0.0
      %8433 = vmatmul.mubr.f32.gmra.mrb[0].mxu0 %v8081
      %v8434 = vpop.f32.mrb[0].mxu0
      %v8435 = vadd.f32 %v7935, %v8434
      %v8436 = vpop.f32.mrb[0].mxu0
      %8437 = vmatprep.mubr.f32.mxu0 0.0
      %8438 = vmatmul.mubr.f32.gmra.mrb[0].mxu0 %v8084
      %v8439 = vpop.f32.mrb[0].mxu0
      %v8440 = vadd.f32 %v7935, %v8439
      %v8441 = vpop.f32.mrb[0].mxu0
      %8442 = vmatprep.mubr.f32.mxu0 0.0
      %8443 = vmatmul.mubr.f32.gmra.mrb[0].mxu0 %v8087
      %v8444 = vpop.f32.mrb[0].mxu0
      %v8445 = vadd.f32 %v7935, %v8444
      %v8446 = vpop.f32.mrb[0].mxu0
      %8447 = vmatprep.mubr.f32.mxu0 0.0
      %8448 = vmatmul.mubr.f32.gmra.mrb[0].mxu0 %v8090
      %v8449 = vpop.f32.mrb[0].mxu0
      %v8450 = vadd.f32 %v7935, %v8449
      %v8451 = vpop.f32.mrb[0].mxu0
      %8452 = vmatprep.mubr.f32.mxu0 0.0
      %8453 = vmatmul.mubr.f32.gmra.mrb[0].mxu0 %v8093
      %v8454 = vpop.f32.mrb[0].mxu0
      %v8455 = vadd.f32 %v7935, %v8454
      %v8456 = vpop.f32.mrb[0].mxu0
      %8457 = vmatprep.mubr.f32.mxu0 0.0
      %8458 = vmatmul.mubr.f32.gmra.mrb[0].mxu0 %v8096
      %v8459 = vpop.f32.mrb[0].mxu0
      %v8460 = vadd.f32 %v7935, %v8459
      %v8461 = vpop.f32.mrb[0].mxu0
      %8462 = vmatprep.mubr.f32.mxu0 0.0
      %8463 = vmatmul.mubr.f32.gmra.mrb[0].mxu0 %v8099
      %v8464 = vpop.f32.mrb[0].mxu0
      %v8465 = vadd.f32 %v7935, %v8464
      %v8466 = vpop.f32.mrb[0].mxu0
      %8467 = vmatprep.mubr.f32.mxu0 0.0
      %8468 = vmatmul.mubr.f32.gmra.mrb[0].mxu0 %v8102
      %v8469 = vpop.f32.mrb[0].mxu0
      %v8470 = vadd.f32 %v7935, %v8469
      %v8471 = vpop.f32.mrb[0].mxu0
      %8472 = vmatprep.mubr.f32.mxu0 0.0
      %8473 = vmatmul.mubr.f32.gmra.mrb[0].mxu0 %v8105
      %v8474 = vpop.f32.mrb[0].mxu0
      %v8475 = vadd.f32 %v7935, %v8474
      %v8476 = vpop.f32.mrb[0].mxu0
      %8477 = vmatprep.mubr.f32.mxu0 0.0
      %8478 = vmatmul.mubr.f32.gmra.mrb[0].mxu0 %v8108
      %v8479 = vpop.f32.mrb[0].mxu0
      %v8480 = vadd.f32 %v7935, %v8479
      %v8481 = vpop.f32.mrb[0].mxu0
      %8482 = vmatprep.mubr.f32.mxu0 0.0
      %8483 = vmatmul.mubr.f32.gmra.mrb[0].mxu0 %v8111
      %v8484 = vpop.f32.mrb[0].mxu0
      %v8485 = vadd.f32 %v7935, %v8484
      %v8486 = vpop.f32.mrb[0].mxu0
      %8487 = vmatprep.mubr.f32.mxu0 0.0
      %8488 = vmatmul.mubr.f32.gmra.mrb[0].mxu0 %v8114
      %v8489 = vpop.f32.mrb[0].mxu0
      %v8490 = vadd.f32 %v7935, %v8489
      %v8491 = vpop.f32.mrb[0].mxu0
      %8492 = vmatprep.mubr.f32.mxu0 0.0
      %8493 = vmatmul.mubr.f32.gmra.mrb[0].mxu0 %v8117
      %v8494 = vpop.f32.mrb[0].mxu0
      %v8495 = vadd.f32 %v7935, %v8494
      %v8496 = vpop.f32.mrb[0].mxu0
      %8497 = vmatprep.mubr.f32.mxu0 0.0
      %8498 = vmatmul.mubr.f32.gmra.mrb[0].mxu0 %v8120
      %v8499 = vpop.f32.mrb[0].mxu0
      %v8500 = vadd.f32 %v7935, %v8499
      %v8501 = vpop.f32.mrb[0].mxu0
      %8502 = vmatprep.mubr.f32.mxu0 0.0
      %8503 = vmatmul.mubr.f32.gmra.mrb[0].mxu0 %v8123
      %v8504 = vpop.f32.mrb[0].mxu0
      %v8505 = vadd.f32 %v7935, %v8504
      %v8506 = vpop.f32.mrb[0].mxu0
      %8507 = vmatprep.mubr.f32.mxu0 0.0
      %8508 = vmatmul.mubr.f32.gmra.mrb[0].mxu0 %v8126
      %v8509 = vpop.f32.mrb[0].mxu0
      %v8510 = vadd.f32 %v7935, %v8509
      %v8511 = vpop.f32.mrb[0].mxu0
      %8512 = vdwg.mxu0
      %v8513 = vadd.f32 %v8195, %v536
      %v8514 = vadd.f32 %v8200, %v537
      %v8515 = vadd.f32 %v8205, %v538
      %v8516 = vadd.f32 %v8210, %v539
      %v8517 = vadd.f32 %v8215, %v540
      %v8518 = vadd.f32 %v8220, %v541
      %v8519 = vadd.f32 %v8225, %v542
      %v8520 = vadd.f32 %v8230, %v543
      %v8521 = vadd.f32 %v8235, %v544
      %v8522 = vadd.f32 %v8240, %v545
      %v8523 = vadd.f32 %v8245, %v546
      %v8524 = vadd.f32 %v8250, %v547
      %v8525 = vadd.f32 %v8255, %v548
      %v8526 = vadd.f32 %v8260, %v549
      %v8527 = vadd.f32 %v8265, %v550
      %v8528 = vadd.f32 %v8270, %v551
      %v8529 = vadd.f32 %v8275, %v552
      %v8530 = vadd.f32 %v8280, %v553
      %v8531 = vadd.f32 %v8285, %v554
      %v8532 = vadd.f32 %v8290, %v555
      %v8533 = vadd.f32 %v8295, %v556
      %v8534 = vadd.f32 %v8300, %v557
      %v8535 = vadd.f32 %v8305, %v558
      %v8536 = vadd.f32 %v8310, %v559
      %v8537 = vadd.f32 %v8315, %v560
      %v8538 = vadd.f32 %v8320, %v561
      %v8539 = vadd.f32 %v8325, %v562
      %v8540 = vadd.f32 %v8330, %v563
      %v8541 = vadd.f32 %v8335, %v564
      %v8542 = vadd.f32 %v8340, %v565
      %v8543 = vadd.f32 %v8345, %v566
      %v8544 = vadd.f32 %v8350, %v567
      %v8545 = vadd.f32 %v8355, %v568
      %v8546 = vadd.f32 %v8360, %v569
      %v8547 = vadd.f32 %v8365, %v570
      %v8548 = vadd.f32 %v8370, %v571
      %v8549 = vadd.f32 %v8375, %v572
      %v8550 = vadd.f32 %v8380, %v573
      %v8551 = vadd.f32 %v8385, %v574
      %v8552 = vadd.f32 %v8390, %v575
      %v8553 = vadd.f32 %v8395, %v576
      %v8554 = vadd.f32 %v8400, %v577
      %v8555 = vadd.f32 %v8405, %v578
      %v8556 = vadd.f32 %v8410, %v579
      %v8557 = vadd.f32 %v8415, %v580
      %v8558 = vadd.f32 %v8420, %v581
      %v8559 = vadd.f32 %v8425, %v582
      %v8560 = vadd.f32 %v8430, %v583
      %v8561 = vadd.f32 %v8435, %v584
      %v8562 = vadd.f32 %v8440, %v585
      %v8563 = vadd.f32 %v8445, %v586
      %v8564 = vadd.f32 %v8450, %v587
      %v8565 = vadd.f32 %v8455, %v588
      %v8566 = vadd.f32 %v8460, %v589
      %v8567 = vadd.f32 %v8465, %v590
      %v8568 = vadd.f32 %v8470, %v591
      %v8569 = vadd.f32 %v8475, %v592
      %v8570 = vadd.f32 %v8480, %v593
      %v8571 = vadd.f32 %v8485, %v594
      %v8572 = vadd.f32 %v8490, %v595
      %v8573 = vadd.f32 %v8495, %v596
      %v8574 = vadd.f32 %v8500, %v597
      %v8575 = vadd.f32 %v8505, %v598
      %v8576 = vadd.f32 %v8510, %v599
      %v8577 = vmax.f32 %v8513, 0.0
      %v8578 = vmax.f32 %v8514, 0.0
      %v8579 = vmax.f32 %v8515, 0.0
      %v8580 = vmax.f32 %v8516, 0.0
      %v8581 = vmax.f32 %v8517, 0.0
      %v8582 = vmax.f32 %v8518, 0.0
      %v8583 = vmax.f32 %v8519, 0.0
      %v8584 = vmax.f32 %v8520, 0.0
      %v8585 = vmax.f32 %v8521, 0.0
      %v8586 = vmax.f32 %v8522, 0.0
      %v8587 = vmax.f32 %v8523, 0.0
      %v8588 = vmax.f32 %v8524, 0.0
      %v8589 = vmax.f32 %v8525, 0.0
      %v8590 = vmax.f32 %v8526, 0.0
      %v8591 = vmax.f32 %v8527, 0.0
      %v8592 = vmax.f32 %v8528, 0.0
      %v8593 = vmax.f32 %v8529, 0.0
      %v8594 = vmax.f32 %v8530, 0.0
      %v8595 = vmax.f32 %v8531, 0.0
      %v8596 = vmax.f32 %v8532, 0.0
      %v8597 = vmax.f32 %v8533, 0.0
      %v8598 = vmax.f32 %v8534, 0.0
      %v8599 = vmax.f32 %v8535, 0.0
      %v8600 = vmax.f32 %v8536, 0.0
      %v8601 = vmax.f32 %v8537, 0.0
      %v8602 = vmax.f32 %v8538, 0.0
      %v8603 = vmax.f32 %v8539, 0.0
      %v8604 = vmax.f32 %v8540, 0.0
      %v8605 = vmax.f32 %v8541, 0.0
      %v8606 = vmax.f32 %v8542, 0.0
      %v8607 = vmax.f32 %v8543, 0.0
      %v8608 = vmax.f32 %v8544, 0.0
      %v8609 = vmax.f32 %v8545, 0.0
      %v8610 = vmax.f32 %v8546, 0.0
      %v8611 = vmax.f32 %v8547, 0.0
      %v8612 = vmax.f32 %v8548, 0.0
      %v8613 = vmax.f32 %v8549, 0.0
      %v8614 = vmax.f32 %v8550, 0.0
      %v8615 = vmax.f32 %v8551, 0.0
      %v8616 = vmax.f32 %v8552, 0.0
      %v8617 = vmax.f32 %v8553, 0.0
      %v8618 = vmax.f32 %v8554, 0.0
      %v8619 = vmax.f32 %v8555, 0.0
      %v8620 = vmax.f32 %v8556, 0.0
      %v8621 = vmax.f32 %v8557, 0.0
      %v8622 = vmax.f32 %v8558, 0.0
      %v8623 = vmax.f32 %v8559, 0.0
      %v8624 = vmax.f32 %v8560, 0.0
      %v8625 = vmax.f32 %v8561, 0.0
      %v8626 = vmax.f32 %v8562, 0.0
      %v8627 = vmax.f32 %v8563, 0.0
      %v8628 = vmax.f32 %v8564, 0.0
      %v8629 = vmax.f32 %v8565, 0.0
      %v8630 = vmax.f32 %v8566, 0.0
      %v8631 = vmax.f32 %v8567, 0.0
      %v8632 = vmax.f32 %v8568, 0.0
      %v8633 = vmax.f32 %v8569, 0.0
      %v8634 = vmax.f32 %v8570, 0.0
      %v8635 = vmax.f32 %v8571, 0.0
      %v8636 = vmax.f32 %v8572, 0.0
      %v8637 = vmax.f32 %v8573, 0.0
      %v8638 = vmax.f32 %v8574, 0.0
      %v8639 = vmax.f32 %v8575, 0.0
      %v8640 = vmax.f32 %v8576, 0.0
      %8641 = vst.msk [vmem:[#allocation2] sm:$0xff] %vm620, %v8577
      %8642 = vst.msk [vmem:[#allocation2 + $0x8] sm:$0xff] %vm620, %v8578
      %8643 = vst.msk [vmem:[#allocation2 + $0x10] sm:$0xff] %vm620, %v8579
      %8644 = vst.msk [vmem:[#allocation2 + $0x18] sm:$0xff] %vm620, %v8580
      %8645 = vst.msk [vmem:[#allocation2 + $0x20] sm:$0xff] %vm620, %v8581
      %8646 = vst.msk [vmem:[#allocation2 + $0x28] sm:$0xff] %vm620, %v8582
      %8647 = vst.msk [vmem:[#allocation2 + $0x30] sm:$0xff] %vm620, %v8583
      %8648 = vst.msk [vmem:[#allocation2 + $0x38] sm:$0xff] %vm620, %v8584
      %8649 = vst.msk [vmem:[#allocation2 + $0x40] sm:$0xff] %vm620, %v8585
      %8650 = vst.msk [vmem:[#allocation2 + $0x48] sm:$0xff] %vm620, %v8586
      %8651 = vst.msk [vmem:[#allocation2 + $0x50] sm:$0xff] %vm620, %v8587
      %8652 = vst.msk [vmem:[#allocation2 + $0x58] sm:$0xff] %vm620, %v8588
      %8653 = vst.msk [vmem:[#allocation2 + $0x60] sm:$0xff] %vm620, %v8589
      %8654 = vst.msk [vmem:[#allocation2 + $0x68] sm:$0xff] %vm620, %v8590
      %8655 = vst.msk [vmem:[#allocation2 + $0x70] sm:$0xff] %vm620, %v8591
      %8656 = vst.msk [vmem:[#allocation2 + $0x78] sm:$0xff] %vm620, %v8592
      %8657 = vst.msk [vmem:[#allocation2 + $0x80] sm:$0xff] %vm620, %v8593
      %8658 = vst.msk [vmem:[#allocation2 + $0x88] sm:$0xff] %vm620, %v8594
      %8659 = vst.msk [vmem:[#allocation2 + $0x90] sm:$0xff] %vm620, %v8595
      %8660 = vst.msk [vmem:[#allocation2 + $0x98] sm:$0xff] %vm620, %v8596
      %8661 = vst.msk [vmem:[#allocation2 + $0xa0] sm:$0xff] %vm620, %v8597
      %8662 = vst.msk [vmem:[#allocation2 + $0xa8] sm:$0xff] %vm620, %v8598
      %8663 = vst.msk [vmem:[#allocation2 + $0xb0] sm:$0xff] %vm620, %v8599
      %8664 = vst.msk [vmem:[#allocation2 + $0xb8] sm:$0xff] %vm620, %v8600
      %8665 = vst.msk [vmem:[#allocation2 + $0xc0] sm:$0xff] %vm620, %v8601
      %8666 = vst.msk [vmem:[#allocation2 + $0xc8] sm:$0xff] %vm620, %v8602
      %8667 = vst.msk [vmem:[#allocation2 + $0xd0] sm:$0xff] %vm620, %v8603
      %8668 = vst.msk [vmem:[#allocation2 + $0xd8] sm:$0xff] %vm620, %v8604
      %8669 = vst.msk [vmem:[#allocation2 + $0xe0] sm:$0xff] %vm620, %v8605
      %8670 = vst.msk [vmem:[#allocation2 + $0xe8] sm:$0xff] %vm620, %v8606
      %8671 = vst.msk [vmem:[#allocation2 + $0xf0] sm:$0xff] %vm620, %v8607
      %8672 = vst.msk [vmem:[#allocation2 + $0xf8] sm:$0xff] %vm620, %v8608
      %8673 = vst.msk [vmem:[#allocation2 + $0x100] sm:$0xff] %vm620, %v8609
      %8674 = vst.msk [vmem:[#allocation2 + $0x108] sm:$0xff] %vm620, %v8610
      %8675 = vst.msk [vmem:[#allocation2 + $0x110] sm:$0xff] %vm620, %v8611
      %8676 = vst.msk [vmem:[#allocation2 + $0x118] sm:$0xff] %vm620, %v8612
      %8677 = vst.msk [vmem:[#allocation2 + $0x120] sm:$0xff] %vm620, %v8613
      %8678 = vst.msk [vmem:[#allocation2 + $0x128] sm:$0xff] %vm620, %v8614
      %8679 = vst.msk [vmem:[#allocation2 + $0x130] sm:$0xff] %vm620, %v8615
      %8680 = vst.msk [vmem:[#allocation2 + $0x138] sm:$0xff] %vm620, %v8616
      %8681 = vst.msk [vmem:[#allocation2 + $0x140] sm:$0xff] %vm620, %v8617
      %8682 = vst.msk [vmem:[#allocation2 + $0x148] sm:$0xff] %vm620, %v8618
      %8683 = vst.msk [vmem:[#allocation2 + $0x150] sm:$0xff] %vm620, %v8619
      %8684 = vst.msk [vmem:[#allocation2 + $0x158] sm:$0xff] %vm620, %v8620
      %8685 = vst.msk [vmem:[#allocation2 + $0x160] sm:$0xff] %vm620, %v8621
      %8686 = vst.msk [vmem:[#allocation2 + $0x168] sm:$0xff] %vm620, %v8622
      %8687 = vst.msk [vmem:[#allocation2 + $0x170] sm:$0xff] %vm620, %v8623
      %8688 = vst.msk [vmem:[#allocation2 + $0x178] sm:$0xff] %vm620, %v8624
      %8689 = vst.msk [vmem:[#allocation2 + $0x180] sm:$0xff] %vm620, %v8625
      %8690 = vst.msk [vmem:[#allocation2 + $0x188] sm:$0xff] %vm620, %v8626
      %8691 = vst.msk [vmem:[#allocation2 + $0x190] sm:$0xff] %vm620, %v8627
      %8692 = vst.msk [vmem:[#allocation2 + $0x198] sm:$0xff] %vm620, %v8628
      %8693 = vst.msk [vmem:[#allocation2 + $0x1a0] sm:$0xff] %vm620, %v8629
      %8694 = vst.msk [vmem:[#allocation2 + $0x1a8] sm:$0xff] %vm620, %v8630
      %8695 = vst.msk [vmem:[#allocation2 + $0x1b0] sm:$0xff] %vm620, %v8631
      %8696 = vst.msk [vmem:[#allocation2 + $0x1b8] sm:$0xff] %vm620, %v8632
      %8697 = vst.msk [vmem:[#allocation2 + $0x1c0] sm:$0xff] %vm620, %v8633
      %8698 = vst.msk [vmem:[#allocation2 + $0x1c8] sm:$0xff] %vm620, %v8634
      %8699 = vst.msk [vmem:[#allocation2 + $0x1d0] sm:$0xff] %vm620, %v8635
      %8700 = vst.msk [vmem:[#allocation2 + $0x1d8] sm:$0xff] %vm620, %v8636
      %8701 = vst.msk [vmem:[#allocation2 + $0x1e0] sm:$0xff] %vm620, %v8637
      %8702 = vst.msk [vmem:[#allocation2 + $0x1e8] sm:$0xff] %vm620, %v8638
      %8703 = vst.msk [vmem:[#allocation2 + $0x1f0] sm:$0xff] %vm620, %v8639
      %8704 = vst.msk [vmem:[#allocation2 + $0x1f8] sm:$0xff] %vm620, %v8640
      %p8705 = scmp.eq.s32.totalorder %s21, 1
      // Predicated region
      $region37: #{tpu_custom_call.1} parent=31 // pred_check
        %p8706 = pneg %p8705
      $region38: #{tpu_custom_call.1} parent=31 // pred_check_branch
        %8708 = sbr.rel (%p8706) target = $region40
      $region39: #{tpu_custom_call.1} parent=31 // pred_region
        %8709 = vst.msk [vmem:[%s257] sm:$0xff] %vm620, %v8577
        %8710 = vst.msk [vmem:[%s257 + $0x8] sm:$0xff] %vm620, %v8578
        %8711 = vst.msk [vmem:[%s257 + $0x10] sm:$0xff] %vm620, %v8579
        %8712 = vst.msk [vmem:[%s257 + $0x18] sm:$0xff] %vm620, %v8580
        %8713 = vst.msk [vmem:[%s257 + $0x20] sm:$0xff] %vm620, %v8581
        %8714 = vst.msk [vmem:[%s257 + $0x28] sm:$0xff] %vm620, %v8582
        %8715 = vst.msk [vmem:[%s257 + $0x30] sm:$0xff] %vm620, %v8583
        %8716 = vst.msk [vmem:[%s257 + $0x38] sm:$0xff] %vm620, %v8584
        %8717 = vst.msk [vmem:[%s257 + $0x40] sm:$0xff] %vm620, %v8585
        %8718 = vst.msk [vmem:[%s257 + $0x48] sm:$0xff] %vm620, %v8586
        %8719 = vst.msk [vmem:[%s257 + $0x50] sm:$0xff] %vm620, %v8587
        %8720 = vst.msk [vmem:[%s257 + $0x58] sm:$0xff] %vm620, %v8588
        %8721 = vst.msk [vmem:[%s257 + $0x60] sm:$0xff] %vm620, %v8589
        %8722 = vst.msk [vmem:[%s257 + $0x68] sm:$0xff] %vm620, %v8590
        %8723 = vst.msk [vmem:[%s257 + $0x70] sm:$0xff] %vm620, %v8591
        %8724 = vst.msk [vmem:[%s257 + $0x78] sm:$0xff] %vm620, %v8592
        %8725 = vst.msk [vmem:[%s257 + $0x80] sm:$0xff] %vm620, %v8593
        %8726 = vst.msk [vmem:[%s257 + $0x88] sm:$0xff] %vm620, %v8594
        %8727 = vst.msk [vmem:[%s257 + $0x90] sm:$0xff] %vm620, %v8595
        %8728 = vst.msk [vmem:[%s257 + $0x98] sm:$0xff] %vm620, %v8596
        %8729 = vst.msk [vmem:[%s257 + $0xa0] sm:$0xff] %vm620, %v8597
        %8730 = vst.msk [vmem:[%s257 + $0xa8] sm:$0xff] %vm620, %v8598
        %8731 = vst.msk [vmem:[%s257 + $0xb0] sm:$0xff] %vm620, %v8599
        %8732 = vst.msk [vmem:[%s257 + $0xb8] sm:$0xff] %vm620, %v8600
        %8733 = vst.msk [vmem:[%s257 + $0xc0] sm:$0xff] %vm620, %v8601
        %8734 = vst.msk [vmem:[%s257 + $0xc8] sm:$0xff] %vm620, %v8602
        %8735 = vst.msk [vmem:[%s257 + $0xd0] sm:$0xff] %vm620, %v8603
        %8736 = vst.msk [vmem:[%s257 + $0xd8] sm:$0xff] %vm620, %v8604
        %8737 = vst.msk [vmem:[%s257 + $0xe0] sm:$0xff] %vm620, %v8605
        %8738 = vst.msk [vmem:[%s257 + $0xe8] sm:$0xff] %vm620, %v8606
        %8739 = vst.msk [vmem:[%s257 + $0xf0] sm:$0xff] %vm620, %v8607
        %8740 = vst.msk [vmem:[%s257 + $0xf8] sm:$0xff] %vm620, %v8608
        %8741 = vst.msk [vmem:[%s257 + $0x100] sm:$0xff] %vm620, %v8609
        %8742 = vst.msk [vmem:[%s257 + $0x108] sm:$0xff] %vm620, %v8610
        %8743 = vst.msk [vmem:[%s257 + $0x110] sm:$0xff] %vm620, %v8611
        %8744 = vst.msk [vmem:[%s257 + $0x118] sm:$0xff] %vm620, %v8612
        %8745 = vst.msk [vmem:[%s257 + $0x120] sm:$0xff] %vm620, %v8613
        %8746 = vst.msk [vmem:[%s257 + $0x128] sm:$0xff] %vm620, %v8614
        %8747 = vst.msk [vmem:[%s257 + $0x130] sm:$0xff] %vm620, %v8615
        %8748 = vst.msk [vmem:[%s257 + $0x138] sm:$0xff] %vm620, %v8616
        %8749 = vst.msk [vmem:[%s257 + $0x140] sm:$0xff] %vm620, %v8617
        %8750 = vst.msk [vmem:[%s257 + $0x148] sm:$0xff] %vm620, %v8618
        %8751 = vst.msk [vmem:[%s257 + $0x150] sm:$0xff] %vm620, %v8619
        %8752 = vst.msk [vmem:[%s257 + $0x158] sm:$0xff] %vm620, %v8620
        %8753 = vst.msk [vmem:[%s257 + $0x160] sm:$0xff] %vm620, %v8621
        %8754 = vst.msk [vmem:[%s257 + $0x168] sm:$0xff] %vm620, %v8622
        %8755 = vst.msk [vmem:[%s257 + $0x170] sm:$0xff] %vm620, %v8623
        %8756 = vst.msk [vmem:[%s257 + $0x178] sm:$0xff] %vm620, %v8624
        %8757 = vst.msk [vmem:[%s257 + $0x180] sm:$0xff] %vm620, %v8625
        %8758 = vst.msk [vmem:[%s257 + $0x188] sm:$0xff] %vm620, %v8626
        %8759 = vst.msk [vmem:[%s257 + $0x190] sm:$0xff] %vm620, %v8627
        %8760 = vst.msk [vmem:[%s257 + $0x198] sm:$0xff] %vm620, %v8628
        %8761 = vst.msk [vmem:[%s257 + $0x1a0] sm:$0xff] %vm620, %v8629
        %8762 = vst.msk [vmem:[%s257 + $0x1a8] sm:$0xff] %vm620, %v8630
        %8763 = vst.msk [vmem:[%s257 + $0x1b0] sm:$0xff] %vm620, %v8631
        %8764 = vst.msk [vmem:[%s257 + $0x1b8] sm:$0xff] %vm620, %v8632
        %8765 = vst.msk [vmem:[%s257 + $0x1c0] sm:$0xff] %vm620, %v8633
        %8766 = vst.msk [vmem:[%s257 + $0x1c8] sm:$0xff] %vm620, %v8634
        %8767 = vst.msk [vmem:[%s257 + $0x1d0] sm:$0xff] %vm620, %v8635
        %8768 = vst.msk [vmem:[%s257 + $0x1d8] sm:$0xff] %vm620, %v8636
        %8769 = vst.msk [vmem:[%s257 + $0x1e0] sm:$0xff] %vm620, %v8637
        %8770 = vst.msk [vmem:[%s257 + $0x1e8] sm:$0xff] %vm620, %v8638
        %8771 = vst.msk [vmem:[%s257 + $0x1f0] sm:$0xff] %vm620, %v8639
        %8772 = vst.msk [vmem:[%s257 + $0x1f8] sm:$0xff] %vm620, %v8640
      $region40: #{tpu_custom_call.1} parent=31 // pred_fallthru
        _
      %s8773 = smul.u32 2, %s20
      %p8774 = scmp.lt.s32.totalorder %s19, 1
      %s8775 = scalar_select %p8774, %s19, 1
      %p8776 = scmp.lt.s32.totalorder %s8773, 3
      %s8777 = scalar_select %p8776, %s8773, 3
      %s8778 = smul.addr %s8777, 32
      %s8779 = smul.addr %s8775, 128
      %s8780 = sadd.s32 %s8778, %s8779
      %s8781 = smul.addr %s8780, 8
      %s8782 = scalar_lea.vmem %s3, %s8781
      // Predicated region
      $region41: #{tpu_custom_call.1} parent=31 // pred_check
        %p8783 = pneg %p133
      $region42: #{tpu_custom_call.1} parent=31 // pred_check_branch
        %8785 = sbr.rel (%p8783) target = $region44
      $region43: #{tpu_custom_call.1} parent=31 // pred_region
        %s8786 = smul.u32 2, %s20
      $region44: #{tpu_custom_call.1} parent=31 // pred_fallthru
        _
    $region32: #{tpu_custom_call.1} parent=5 // pred_fallthru
      _
    %p8787 = scmp.le.s32.totalorder 2, %s9
    // Predicated region
    $region45: #{tpu_custom_call.1} parent=5 // pred_check
      %p8788 = pneg %p8787
    $region46: #{tpu_custom_call.1} parent=5 // pred_check_branch
      %8790 = sbr.rel (%p8788) target = $region48
    $region47: #{tpu_custom_call.1} parent=5 // pred_region
      %s8791 = ssub.s32 %s9, 2
      // Predicated region
      $region49: #{tpu_custom_call.1} parent=47 // pred_check
        %p8792 = pneg %p139
      $region50: #{tpu_custom_call.1} parent=47 // pred_check_branch
        %8794 = sbr.rel (%p8792) target = $region52
      $region51: #{tpu_custom_call.1} parent=47 // pred_region
        %s8795 = smul.u32 2, %s23
        %p8796 = scmp.lt.s32.totalorder %s22, 1
        %s8797 = scalar_select %p8796, %s22, 1
        %p8798 = scmp.lt.s32.totalorder %s8795, 3
        %s8799 = scalar_select %p8798, %s8795, 3
        %s8800 = smul.addr %s8799, 32
        %s8801 = smul.addr %s8797, 128
        %s8802 = sadd.s32 %s8800, %s8801
        %s8803 = smul.addr %s8802, 8
        %s8804 = scalar_lea.vmem %s3, %s8803
      $region52: #{tpu_custom_call.1} parent=47 // pred_fallthru
        _
    $region48: #{tpu_custom_call.1} parent=5 // pred_fallthru
      _
  $region6: #{tpu_custom_call.1} parent=0 // loop_footer
    %s13 = sadd.s32 1, %s9
  $region7: #{tpu_custom_call.1} parent=0 // loop_footer_branch
    %8 = sbr.rel target = $region3
  $region8: #{tpu_custom_call.1} parent=0 // loop_exit
    _

</llo_original>
